<compile_context>
chip_gen: v5e
topology: v5e:2x2
jax: 0.10.0
libtpu: 0.0.40
codegen_flags: <defaults>
</compile_context>

<pallas_src>
import math
import functools

import jax
import jax.numpy as jnp
from jax.experimental import pallas as pl
from jax.experimental.pallas import tpu as pltpu


# ----------------------------------------------------------------------------
# Fused whole-model kernel (single grid step; whole batch folded into rows)
# ----------------------------------------------------------------------------

def _layout_transformer_kernel(*refs, num_heads, n_layers, d_model):
    (src_ref, trg_ref, enc_bias_ref, self_bias_ref, cross_bias_ref,
     e_ln_g, e_ln_b, e_wqkv, e_bqkv, e_wo, e_bo,
     e_w1, e_b1, e_w2, e_b2, e_lnf_g, e_lnf_b,
     d_ln_g, d_ln_b, d_wqkv, d_bqkv, d_wso, d_bso,
     d_wcq, d_bcq, d_wckv, d_bckv, d_wco, d_bco,
     d_w1, d_b1, d_w2, d_b2, d_lnf_g, d_lnf_b,
     enc_pad_w, dec_big_w, dec_big_b,
     out_enc_ref, out_dec_ref) = refs

    H = num_heads
    D = d_model
    Dh = D // H
    bf16 = jnp.bfloat16

    def layer_norm(x, g, b):
        # JoeyNMT uses eps=1e-6; keep LN math in f32.
        mu = jnp.mean(x, axis=-1, keepdims=True)
        var = jnp.mean(jnp.square(x - mu), axis=-1, keepdims=True)
        return (x - mu) * jax.lax.rsqrt(var + 1e-6) * g + b

    def mha(q, k, v, bias, w_o):
        # q: [Rq, D] f32, k/v: [Rk, D] f32 (rows = batch*time, folded),
        # bias: [Rq, Rk] f32 (block-diag batch + padding [+ causal], prebuilt
        # on host), w_o: [D, D] bf16.
        # 1/sqrt(Dh) is already folded into the Q projection.
        # Heads accumulate ctx_h @ W_o[h] directly — no lane concat.
        out = None
        for h in range(H):
            lo = h * Dh
            qh = q[:, lo:lo + Dh].astype(bf16)
            kh = k[:, lo:lo + Dh].astype(bf16)
            vh = v[:, lo:lo + Dh].astype(bf16)
            s = jax.lax.dot_general(
                qh, kh, (((1,), (1,)), ((), ())),
                preferred_element_type=jnp.float32) + bias
            s = s - jnp.max(s, axis=-1, keepdims=True)
            p = jnp.exp(s)
            # max-subtraction guarantees denom >= 1, but guard anyway so
            # fully-masked rows can never hit the approx reciprocal at 0.
            denom = jnp.maximum(jnp.sum(p, axis=-1, keepdims=True), 1e-6)
            p = p * pl.reciprocal(denom, approx=True)
            ctx = jnp.dot(p.astype(bf16), vh,
                          preferred_element_type=jnp.float32)
            contrib = jnp.dot(ctx.astype(bf16), w_o[lo:lo + Dh, :],
                              preferred_element_type=jnp.float32)
            out = contrib if out is None else out + contrib
        return out

    enc_bias = enc_bias_ref[...]      # [B*S, B*S]
    self_bias = self_bias_ref[...]    # [B*T, B*T]
    cross_bias = cross_bias_ref[...]  # [B*T, B*S]

    # ------------------------------ encoder ------------------------------
    x = src_ref[...]                  # [B*S, D] f32
    for l in range(n_layers):
        lg = e_ln_g[l]
        lb = e_ln_b[l]
        # self-attention (fused QKV projection)
        xn = layer_norm(x, lg[0:1], lb[0:1])
        qkv = jnp.dot(xn.astype(bf16), e_wqkv[l],
                      preferred_element_type=jnp.float32) + e_bqkv[l]
        att = mha(qkv[:, :D], qkv[:, D:2 * D], qkv[:, 2 * D:],
                  enc_bias, e_wo[l])
        x = x + att + e_bo[l]
        # position-wise feed-forward
        xn = layer_norm(x, lg[1:2], lb[1:2])
        h1 = jnp.maximum(
            jnp.dot(xn.astype(bf16), e_w1[l],
                    preferred_element_type=jnp.float32) + e_b1[l], 0.0)
        x = x + jnp.dot(h1.astype(bf16), e_w2[l],
                        preferred_element_type=jnp.float32) + e_b2[l]
    enc = layer_norm(x, e_lnf_g[...], e_lnf_b[...])          # [B*S, D] f32
    # lane-dense (128-wide) store via identity-padded f32 matmul
    out_enc_ref[...] = jnp.dot(enc, enc_pad_w[...],
                               preferred_element_type=jnp.float32)

    enc_bf = enc.astype(bf16)

    # ------------------------------ decoder ------------------------------
    y = trg_ref[...]                  # [B*T, D] f32
    for l in range(n_layers):
        lg = d_ln_g[l]
        lb = d_ln_b[l]
        # masked self-attention (fused QKV)
        yn = layer_norm(y, lg[0:1], lb[0:1])
        qkv = jnp.dot(yn.astype(bf16), d_wqkv[l],
                      preferred_element_type=jnp.float32) + d_bqkv[l]
        att = mha(qkv[:, :D], qkv[:, D:2 * D], qkv[:, 2 * D:],
                  self_bias, d_wso[l])
        y = y + att + d_bso[l]
        # cross-attention over encoder output (fused KV projection)
        yn = layer_norm(y, lg[1:2], lb[1:2])
        qc = jnp.dot(yn.astype(bf16), d_wcq[l],
                     preferred_element_type=jnp.float32) + d_bcq[l]
        kv = jnp.dot(enc_bf, d_wckv[l],
                     preferred_element_type=jnp.float32) + d_bckv[l]
        att = mha(qc, kv[:, :D], kv[:, D:], cross_bias, d_wco[l])
        y = y + att + d_bco[l]
        # position-wise feed-forward
        yn = layer_norm(y, lg[2:3], lb[2:3])
        h1 = jnp.maximum(
            jnp.dot(yn.astype(bf16), d_w1[l],
                    preferred_element_type=jnp.float32) + d_b1[l], 0.0)
        y = y + jnp.dot(h1.astype(bf16), d_w2[l],
                        preferred_element_type=jnp.float32) + d_b2[l]

    hidden = layer_norm(y, d_lnf_g[...], d_lnf_b[...])       # [B*T, D] f32
    # fused lane-dense slab: [ hidden | cats | pos | shape | 0-pad ]
    # (f32 matmul so hidden passes through the identity columns exactly)
    out_dec_ref[...] = (jnp.dot(hidden, dec_big_w[...],
                                preferred_element_type=jnp.float32)
                        + dec_big_b[...])


# ----------------------------------------------------------------------------
# Wrapper: host-side param prep + one pallas_call for the whole forward pass
# ----------------------------------------------------------------------------

def layout_transformer_forward(params, src, trg_input, src_mask, trg_mask=None):
    """src: [B, S, D] (pre-embedded), trg_input: [B, T, D],
    src_mask: [B, 1, S] (1 at valid tokens), trg_mask: optional [B, 1, T].

    Returns (out_cats, out_pos, out_shape, decoder_hidden, encoder_output).
    """
    B, S, D = src.shape
    T = trg_input.shape[1]
    H = params["num_heads"]
    L = params["n_layers"]
    enc = params["encoder"]
    dec = params["decoder"]
    n_cats, n_pos, n_shape = params["n_cats"], params["n_pos"], params["n_shape"]
    n_out = n_cats + n_pos + n_shape
    Dh = D // H
    f32 = jnp.float32
    bf16 = jnp.bfloat16

    if trg_mask is None:
        trg_mask = jnp.ones((B, 1, T), dtype=jnp.bool_)

    # ---- parameter prep (once, outside the kernel): fold 1/sqrt(Dh) into Q,
    #      cast projection weights to bf16, build fused/identity-padded heads.
    scale = 1.0 / math.sqrt(Dh)
    e_wqkv = enc["w_qkv"].at[:, :, :D].multiply(scale).astype(bf16)
    e_bqkv = enc["b_qkv"].at[:, :, :D].multiply(scale)
    d_wqkv = dec["w_qkv"].at[:, :, :D].multiply(scale).astype(bf16)
    d_bqkv = dec["b_qkv"].at[:, :, :D].multiply(scale)
    d_wcq = (dec["w_cq"] * scale).astype(bf16)
    d_bcq = dec["b_cq"] * scale

    ENC_PAD = max(128, -(-D // 128) * 128)
    DEC_PAD = max(128, -(-(D + n_out) // 128) * 128)
    eye = jnp.eye(D, dtype=f32)
    enc_pad_w = jnp.zeros((D, ENC_PAD), f32).at[:, :D].set(eye)
    dec_big_w = (jnp.zeros((D, DEC_PAD), f32)
                 .at[:, :D].set(eye)
                 .at[:, D:D + n_out].set(params["head_w"]))
    dec_big_b = jnp.zeros((1, DEC_PAD), f32).at[:, D:D + n_out].set(
        params["head_b"].reshape(1, n_out))

    # ---- additive attention biases, built once on the host:
    #      block-diagonal over batch + key padding (+ causal for decoder self)
    sv = (src_mask.reshape(B * S) != 0)
    tv = (trg_mask.reshape(B * T) != 0)
    bid_s = jnp.repeat(jnp.arange(B), S)
    bid_t = jnp.repeat(jnp.arange(B), T)
    pos_t = jnp.tile(jnp.arange(T), B)
    neg = jnp.float32(-1e9)
    enc_bias = jnp.where((bid_s[:, None] == bid_s[None, :]) & sv[None, :],
                         0.0, neg).astype(f32)
    self_bias = jnp.where((bid_t[:, None] == bid_t[None, :])
                          & (pos_t[None, :] <= pos_t[:, None])
                          & tv[None, :], 0.0, neg).astype(f32)
    cross_bias = jnp.where((bid_t[:, None] == bid_s[None, :]) & sv[None, :],
                           0.0, neg).astype(f32)

    src2d = src.reshape(B * S, D).astype(f32)
    trg2d = trg_input.reshape(B * T, D).astype(f32)

    param_arrays = [
        enc["ln_g"], enc["ln_b"], e_wqkv, e_bqkv,
        enc["w_o"].astype(bf16), enc["b_o"],
        enc["w_ff1"].astype(bf16), enc["b_ff1"],
        enc["w_ff2"].astype(bf16), enc["b_ff2"],
        enc["lnf_g"], enc["lnf_b"],
        dec["ln_g"], dec["ln_b"], d_wqkv, d_bqkv,
        dec["w_so"].astype(bf16), dec["b_so"],
        d_wcq, d_bcq,
        dec["w_ckv"].astype(bf16), dec["b_ckv"],
        dec["w_co"].astype(bf16), dec["b_co"],
        dec["w_ff1"].astype(bf16), dec["b_ff1"],
        dec["w_ff2"].astype(bf16), dec["b_ff2"],
        dec["lnf_g"], dec["lnf_b"],
        enc_pad_w, dec_big_w, dec_big_b,
    ]
    all_inputs = [src2d, trg2d, enc_bias, self_bias, cross_bias] + param_arrays

    def full_spec(a):
        n = len(a.shape)
        return pl.BlockSpec(tuple(a.shape), lambda i, n=n: (0,) * n)

    in_specs = [full_spec(a) for a in all_inputs]
    out_shapes = (jax.ShapeDtypeStruct((B * S, ENC_PAD), f32),
                  jax.ShapeDtypeStruct((B * T, DEC_PAD), f32))
    out_specs = (full_spec(out_shapes[0]), full_spec(out_shapes[1]))

    # explicit VMEM budget (everything is resident), capped at the v7x 64 MiB
    # physical ceiling; 16 MiB floor leaves headroom for compiler scratch.
    in_bytes = sum(int(a.size) * a.dtype.itemsize for a in all_inputs)
    out_bytes = (B * S * ENC_PAD + B * T * DEC_PAD) * 4
    vmem_limit = int(min(64 * 1024 * 1024,
                         max(16 * 1024 * 1024, 4 * (in_bytes + out_bytes))))

    kern = functools.partial(_layout_transformer_kernel,
                             num_heads=H, n_layers=L, d_model=D)

    out_enc, out_dec = pl.pallas_call(
        kern,
        out_shape=out_shapes,
        grid=(1,),
        in_specs=in_specs,
        out_specs=out_specs,
        compiler_params=pltpu.CompilerParams(
            dimension_semantics=("arbitrary",),
            vmem_limit_bytes=vmem_limit),
    )(*all_inputs)

    enc_out = out_enc[:, :D].reshape(B, S, D)
    hidden = out_dec[:, :D].reshape(B, T, D)
    heads = out_dec[:, D:D + n_out]
    out_cats = heads[:, :n_cats].reshape(B, T, n_cats)
    out_pos = heads[:, n_cats:n_cats + n_pos].reshape(B, T, n_pos)
    out_shp = heads[:, n_cats + n_pos:n_out].reshape(B, T, n_shape)
    return out_cats, out_pos, out_shp, hidden, enc_out


# ----------------------------------------------------------------------------
# Deterministic parameter initialization (per-layer stacked)
# ----------------------------------------------------------------------------

def _init_dense(key, din, dout, scale=0.02):
    return jax.random.normal(key, (din, dout), jnp.float32) * scale


def init_params(key, d_model=32, num_heads=4, d_ff=64, n_layers=2,
                n_cats=10, n_pos=4, n_shape=2):
    D, F, L = d_model, d_ff, n_layers
    keys = jax.random.split(key, 12 * L + 4)
    it = iter(keys)

    def stack(fn):
        return jnp.stack([fn(next(it)) for _ in range(L)], axis=0)

    encoder = dict(
        ln_g=jnp.ones((L, 2, D), jnp.float32),
        ln_b=jnp.zeros((L, 2, D), jnp.float32),
        w_qkv=stack(lambda k: _init_dense(k, D, 3 * D)),
        b_qkv=jnp.zeros((L, 1, 3 * D), jnp.float32),
        w_o=stack(lambda k: _init_dense(k, D, D)),
        b_o=jnp.zeros((L, 1, D), jnp.float32),
        w_ff1=stack(lambda k: _init_dense(k, D, F)),
        b_ff1=jnp.zeros((L, 1, F), jnp.float32),
        w_ff2=stack(lambda k: _init_dense(k, F, D)),
        b_ff2=jnp.zeros((L, 1, D), jnp.float32),
        lnf_g=jnp.ones((1, D), jnp.float32),
        lnf_b=jnp.zeros((1, D), jnp.float32),
    )
    decoder = dict(
        ln_g=jnp.ones((L, 3, D), jnp.float32),
        ln_b=jnp.zeros((L, 3, D), jnp.float32),
        w_qkv=stack(lambda k: _init_dense(k, D, 3 * D)),
        b_qkv=jnp.zeros((L, 1, 3 * D), jnp.float32),
        w_so=stack(lambda k: _init_dense(k, D, D)),
        b_so=jnp.zeros((L, 1, D), jnp.float32),
        w_cq=stack(lambda k: _init_dense(k, D, D)),
        b_cq=jnp.zeros((L, 1, D), jnp.float32),
        w_ckv=stack(lambda k: _init_dense(k, D, 2 * D)),
        b_ckv=jnp.zeros((L, 1, 2 * D), jnp.float32),
        w_co=stack(lambda k: _init_dense(k, D, D)),
        b_co=jnp.zeros((L, 1, D), jnp.float32),
        w_ff1=stack(lambda k: _init_dense(k, D, F)),
        b_ff1=jnp.zeros((L, 1, F), jnp.float32),
        w_ff2=stack(lambda k: _init_dense(k, F, D)),
        b_ff2=jnp.zeros((L, 1, D), jnp.float32),
        lnf_g=jnp.ones((1, D), jnp.float32),
        lnf_b=jnp.zeros((1, D), jnp.float32),
    )
    n_out = n_cats + n_pos + n_shape
    head_w = _init_dense(next(it), D, n_out)
    head_b = jnp.zeros((1, n_out), jnp.float32)
    return dict(num_heads=num_heads, n_layers=L,
                n_cats=n_cats, n_pos=n_pos, n_shape=n_shape,
                encoder=encoder, decoder=decoder,
                head_w=head_w, head_b=head_b)


# ----------------------------------------------------------------------------
# Main
# ----------------------------------------------------------------------------

if __name__ == "__main__":
    key = jax.random.PRNGKey(0)
    k_src, k_trg, k_par = jax.random.split(key, 3)

    B, S, T, D = 2, 8, 8, 32
    src = jax.random.normal(k_src, (B, S, D), jnp.float32)        # pre-embedded source
    trg_input = jax.random.normal(k_trg, (B, T, D), jnp.float32)  # pre-embedded target
    src_mask = jnp.ones((B, 1, S), dtype=jnp.bool_)               # 1 at valid tokens

    params = init_params(k_par, d_model=D, num_heads=4, d_ff=64, n_layers=2)

    outs = layout_transformer_forward(params, src, trg_input, src_mask)
    jax.block_until_ready(outs)

    out_cats, out_pos, out_shape, dec_hidden, enc_out = outs
    assert out_cats.shape == (B, T, 10)
    assert out_pos.shape == (B, T, 4)
    assert out_shape.shape == (B, T, 2)
    assert dec_hidden.shape == (B, T, D)
    assert enc_out.shape == (B, S, D)
    print("KERNEL_OK")
</pallas_src>

<mosaic_0001>
module attributes {stable_mosaic.version = 11 : i64} {
  func.func @_layout_transformer_kernel(%arg0: i32, %arg1: memref<16x32xf32, #tpu.memory_space<vmem>>, %arg2: memref<16x32xf32, #tpu.memory_space<vmem>>, %arg3: memref<16x16xf32, #tpu.memory_space<vmem>>, %arg4: memref<16x16xf32, #tpu.memory_space<vmem>>, %arg5: memref<16x16xf32, #tpu.memory_space<vmem>>, %arg6: memref<2x2x32xf32, #tpu.memory_space<vmem>>, %arg7: memref<2x2x32xf32, #tpu.memory_space<vmem>>, %arg8: memref<2x32x96xbf16, #tpu.memory_space<vmem>>, %arg9: memref<2x1x96xf32, #tpu.memory_space<vmem>>, %arg10: memref<2x32x32xbf16, #tpu.memory_space<vmem>>, %arg11: memref<2x1x32xf32, #tpu.memory_space<vmem>>, %arg12: memref<2x32x64xbf16, #tpu.memory_space<vmem>>, %arg13: memref<2x1x64xf32, #tpu.memory_space<vmem>>, %arg14: memref<2x64x32xbf16, #tpu.memory_space<vmem>>, %arg15: memref<2x1x32xf32, #tpu.memory_space<vmem>>, %arg16: memref<1x32xf32, #tpu.memory_space<vmem>>, %arg17: memref<1x32xf32, #tpu.memory_space<vmem>>, %arg18: memref<2x3x32xf32, #tpu.memory_space<vmem>>, %arg19: memref<2x3x32xf32, #tpu.memory_space<vmem>>, %arg20: memref<2x32x96xbf16, #tpu.memory_space<vmem>>, %arg21: memref<2x1x96xf32, #tpu.memory_space<vmem>>, %arg22: memref<2x32x32xbf16, #tpu.memory_space<vmem>>, %arg23: memref<2x1x32xf32, #tpu.memory_space<vmem>>, %arg24: memref<2x32x32xbf16, #tpu.memory_space<vmem>>, %arg25: memref<2x1x32xf32, #tpu.memory_space<vmem>>, %arg26: memref<2x32x64xbf16, #tpu.memory_space<vmem>>, %arg27: memref<2x1x64xf32, #tpu.memory_space<vmem>>, %arg28: memref<2x32x32xbf16, #tpu.memory_space<vmem>>, %arg29: memref<2x1x32xf32, #tpu.memory_space<vmem>>, %arg30: memref<2x32x64xbf16, #tpu.memory_space<vmem>>, %arg31: memref<2x1x64xf32, #tpu.memory_space<vmem>>, %arg32: memref<2x64x32xbf16, #tpu.memory_space<vmem>>, %arg33: memref<2x1x32xf32, #tpu.memory_space<vmem>>, %arg34: memref<1x32xf32, #tpu.memory_space<vmem>>, %arg35: memref<1x32xf32, #tpu.memory_space<vmem>>, %arg36: memref<32x128xf32, #tpu.memory_space<vmem>>, %arg37: memref<32x128xf32, #tpu.memory_space<vmem>>, %arg38: memref<1x128xf32, #tpu.memory_space<vmem>>, %arg39: memref<16x128xf32, #tpu.memory_space<vmem>>, %arg40: memref<16x128xf32, #tpu.memory_space<vmem>>) attributes {dimension_semantics = [#tpu.dimension_semantics<arbitrary>], iteration_bounds = array<i64: 1>, scalar_prefetch = 0 : i64, scratch_operands = 0 : i64, tpu.core_type = #tpu.core_type<tc>, window_params = [{pipeline_mode = #tpu.pipeline_mode<synchronous>, transform_indices = @transform_0, window_bounds = array<i64: 16, 32>}, {pipeline_mode = #tpu.pipeline_mode<synchronous>, transform_indices = @transform_1, window_bounds = array<i64: 16, 32>}, {pipeline_mode = #tpu.pipeline_mode<synchronous>, transform_indices = @transform_2, window_bounds = array<i64: 16, 16>}, {pipeline_mode = #tpu.pipeline_mode<synchronous>, transform_indices = @transform_3, window_bounds = array<i64: 16, 16>}, {pipeline_mode = #tpu.pipeline_mode<synchronous>, transform_indices = @transform_4, window_bounds = array<i64: 16, 16>}, {pipeline_mode = #tpu.pipeline_mode<synchronous>, transform_indices = @transform_5, window_bounds = array<i64: 2, 2, 32>}, {pipeline_mode = #tpu.pipeline_mode<synchronous>, transform_indices = @transform_6, window_bounds = array<i64: 2, 2, 32>}, {pipeline_mode = #tpu.pipeline_mode<synchronous>, transform_indices = @transform_7, window_bounds = array<i64: 2, 32, 96>}, {pipeline_mode = #tpu.pipeline_mode<synchronous>, transform_indices = @transform_8, window_bounds = array<i64: 2, 1, 96>}, {pipeline_mode = #tpu.pipeline_mode<synchronous>, transform_indices = @transform_9, window_bounds = array<i64: 2, 32, 32>}, {pipeline_mode = #tpu.pipeline_mode<synchronous>, transform_indices = @transform_10, window_bounds = array<i64: 2, 1, 32>}, {pipeline_mode = #tpu.pipeline_mode<synchronous>, transform_indices = @transform_11, window_bounds = array<i64: 2, 32, 64>}, {pipeline_mode = #tpu.pipeline_mode<synchronous>, transform_indices = @transform_12, window_bounds = array<i64: 2, 1, 64>}, {pipeline_mode = #tpu.pipeline_mode<synchronous>, transform_indices = @transform_13, window_bounds = array<i64: 2, 64, 32>}, {pipeline_mode = #tpu.pipeline_mode<synchronous>, transform_indices = @transform_14, window_bounds = array<i64: 2, 1, 32>}, {pipeline_mode = #tpu.pipeline_mode<synchronous>, transform_indices = @transform_15, window_bounds = array<i64: 1, 32>}, {pipeline_mode = #tpu.pipeline_mode<synchronous>, transform_indices = @transform_16, window_bounds = array<i64: 1, 32>}, {pipeline_mode = #tpu.pipeline_mode<synchronous>, transform_indices = @transform_17, window_bounds = array<i64: 2, 3, 32>}, {pipeline_mode = #tpu.pipeline_mode<synchronous>, transform_indices = @transform_18, window_bounds = array<i64: 2, 3, 32>}, {pipeline_mode = #tpu.pipeline_mode<synchronous>, transform_indices = @transform_19, window_bounds = array<i64: 2, 32, 96>}, {pipeline_mode = #tpu.pipeline_mode<synchronous>, transform_indices = @transform_20, window_bounds = array<i64: 2, 1, 96>}, {pipeline_mode = #tpu.pipeline_mode<synchronous>, transform_indices = @transform_21, window_bounds = array<i64: 2, 32, 32>}, {pipeline_mode = #tpu.pipeline_mode<synchronous>, transform_indices = @transform_22, window_bounds = array<i64: 2, 1, 32>}, {pipeline_mode = #tpu.pipeline_mode<synchronous>, transform_indices = @transform_23, window_bounds = array<i64: 2, 32, 32>}, {pipeline_mode = #tpu.pipeline_mode<synchronous>, transform_indices = @transform_24, window_bounds = array<i64: 2, 1, 32>}, {pipeline_mode = #tpu.pipeline_mode<synchronous>, transform_indices = @transform_25, window_bounds = array<i64: 2, 32, 64>}, {pipeline_mode = #tpu.pipeline_mode<synchronous>, transform_indices = @transform_26, window_bounds = array<i64: 2, 1, 64>}, {pipeline_mode = #tpu.pipeline_mode<synchronous>, transform_indices = @transform_27, window_bounds = array<i64: 2, 32, 32>}, {pipeline_mode = #tpu.pipeline_mode<synchronous>, transform_indices = @transform_28, window_bounds = array<i64: 2, 1, 32>}, {pipeline_mode = #tpu.pipeline_mode<synchronous>, transform_indices = @transform_29, window_bounds = array<i64: 2, 32, 64>}, {pipeline_mode = #tpu.pipeline_mode<synchronous>, transform_indices = @transform_30, window_bounds = array<i64: 2, 1, 64>}, {pipeline_mode = #tpu.pipeline_mode<synchronous>, transform_indices = @transform_31, window_bounds = array<i64: 2, 64, 32>}, {pipeline_mode = #tpu.pipeline_mode<synchronous>, transform_indices = @transform_32, window_bounds = array<i64: 2, 1, 32>}, {pipeline_mode = #tpu.pipeline_mode<synchronous>, transform_indices = @transform_33, window_bounds = array<i64: 1, 32>}, {pipeline_mode = #tpu.pipeline_mode<synchronous>, transform_indices = @transform_34, window_bounds = array<i64: 1, 32>}, {pipeline_mode = #tpu.pipeline_mode<synchronous>, transform_indices = @transform_35, window_bounds = array<i64: 32, 128>}, {pipeline_mode = #tpu.pipeline_mode<synchronous>, transform_indices = @transform_36, window_bounds = array<i64: 32, 128>}, {pipeline_mode = #tpu.pipeline_mode<synchronous>, transform_indices = @transform_37, window_bounds = array<i64: 1, 128>}, {pipeline_mode = #tpu.pipeline_mode<synchronous>, transform_indices = @transform_38, window_bounds = array<i64: 16, 128>}, {pipeline_mode = #tpu.pipeline_mode<synchronous>, transform_indices = @transform_39, window_bounds = array<i64: 16, 128>}]} {
    %c0 = arith.constant 0 : index
    %c0_0 = arith.constant 0 : index
    %0 = vector.load %arg3[%c0, %c0_0] : memref<16x16xf32, #tpu.memory_space<vmem>>, vector<16x16xf32>
    %c0_1 = arith.constant 0 : index
    %c0_2 = arith.constant 0 : index
    %1 = vector.load %arg4[%c0_1, %c0_2] : memref<16x16xf32, #tpu.memory_space<vmem>>, vector<16x16xf32>
    %c0_3 = arith.constant 0 : index
    %c0_4 = arith.constant 0 : index
    %2 = vector.load %arg5[%c0_3, %c0_4] : memref<16x16xf32, #tpu.memory_space<vmem>>, vector<16x16xf32>
    %c0_5 = arith.constant 0 : index
    %c0_6 = arith.constant 0 : index
    %3 = vector.load %arg1[%c0_5, %c0_6] : memref<16x32xf32, #tpu.memory_space<vmem>>, vector<16x32xf32>
    %c0_7 = arith.constant 0 : index
    %c0_8 = arith.constant 0 : index
    %c0_9 = arith.constant 0 : index
    %4 = vector.load %arg6[%c0_7, %c0_8, %c0_9] : memref<2x2x32xf32, #tpu.memory_space<vmem>>, vector<1x2x32xf32>
    %5 = vector.shape_cast %4 : vector<1x2x32xf32> to vector<2x32xf32>
    %c0_10 = arith.constant 0 : index
    %c0_11 = arith.constant 0 : index
    %c0_12 = arith.constant 0 : index
    %6 = vector.load %arg7[%c0_10, %c0_11, %c0_12] : memref<2x2x32xf32, #tpu.memory_space<vmem>>, vector<1x2x32xf32>
    %7 = vector.shape_cast %6 : vector<1x2x32xf32> to vector<2x32xf32>
    %8 = vector.extract_strided_slice %5 {offsets = [0, 0], sizes = [1, 32], strides = [1, 1]} : vector<2x32xf32> to vector<1x32xf32>
    %9 = vector.extract_strided_slice %7 {offsets = [0, 0], sizes = [1, 32], strides = [1, 1]} : vector<2x32xf32> to vector<1x32xf32>
    %cst = arith.constant dense<0.000000e+00> : vector<16xf32>
    %10 = vector.multi_reduction <add>, %3, %cst [1] : vector<16x32xf32> to vector<16xf32>
    %11 = vector.shape_cast %10 : vector<16xf32> to vector<16x1xf32>
    %cst_13 = arith.constant 3.200000e+01 : f32
    %12 = vector.broadcast %cst_13 : f32 to vector<16x1xf32>
    %13 = arith.divf %11, %12 : vector<16x1xf32>
    %14 = vector.broadcast %13 : vector<16x1xf32> to vector<16x32xf32>
    %15 = arith.subf %3, %14 : vector<16x32xf32>
    %16 = arith.mulf %15, %15 : vector<16x32xf32>
    %cst_14 = arith.constant dense<0.000000e+00> : vector<16xf32>
    %17 = vector.multi_reduction <add>, %16, %cst_14 [1] : vector<16x32xf32> to vector<16xf32>
    %18 = vector.shape_cast %17 : vector<16xf32> to vector<16x1xf32>
    %cst_15 = arith.constant 3.200000e+01 : f32
    %19 = vector.broadcast %cst_15 : f32 to vector<16x1xf32>
    %20 = arith.divf %18, %19 : vector<16x1xf32>
    %21 = vector.broadcast %13 : vector<16x1xf32> to vector<16x32xf32>
    %22 = arith.subf %3, %21 : vector<16x32xf32>
    %cst_16 = arith.constant 9.99999997E-7 : f32
    %23 = vector.broadcast %cst_16 : f32 to vector<16x1xf32>
    %24 = arith.addf %20, %23 : vector<16x1xf32>
    %25 = math.rsqrt %24 : vector<16x1xf32>
    %26 = vector.broadcast %25 : vector<16x1xf32> to vector<16x32xf32>
    %27 = arith.mulf %22, %26 : vector<16x32xf32>
    %28 = vector.broadcast %8 : vector<1x32xf32> to vector<16x32xf32>
    %29 = arith.mulf %27, %28 : vector<16x32xf32>
    %30 = vector.broadcast %9 : vector<1x32xf32> to vector<16x32xf32>
    %31 = arith.addf %29, %30 : vector<16x32xf32>
    %32 = arith.truncf %31 : vector<16x32xf32> to vector<16x32xbf16>
    %c0_17 = arith.constant 0 : index
    %c0_18 = arith.constant 0 : index
    %c0_19 = arith.constant 0 : index
    %33 = vector.load %arg8[%c0_17, %c0_18, %c0_19] : memref<2x32x96xbf16, #tpu.memory_space<vmem>>, vector<1x32x96xbf16>
    %34 = vector.shape_cast %33 : vector<1x32x96xbf16> to vector<32x96xbf16>
    %cst_20 = arith.constant dense<0.000000e+00> : vector<16x96xf32>
    %35 = tpu.matmul %32, %34, %cst_20 {dimension_numbers = #tpu.dot_dimension_numbers<[1], [0], [0], [1], [0, 0, 1, 1], [], []>} : vector<16x32xbf16>, vector<32x96xbf16>, vector<16x96xf32> -> vector<16x96xf32>
    %c0_21 = arith.constant 0 : index
    %c0_22 = arith.constant 0 : index
    %c0_23 = arith.constant 0 : index
    %36 = vector.load %arg9[%c0_21, %c0_22, %c0_23] : memref<2x1x96xf32, #tpu.memory_space<vmem>>, vector<1x1x96xf32>
    %37 = vector.shape_cast %36 : vector<1x1x96xf32> to vector<1x96xf32>
    %38 = vector.broadcast %37 : vector<1x96xf32> to vector<16x96xf32>
    %39 = arith.addf %35, %38 : vector<16x96xf32>
    %40 = vector.extract_strided_slice %39 {offsets = [0, 0], sizes = [16, 32], strides = [1, 1]} : vector<16x96xf32> to vector<16x32xf32>
    %41 = vector.extract_strided_slice %39 {offsets = [0, 32], sizes = [16, 32], strides = [1, 1]} : vector<16x96xf32> to vector<16x32xf32>
    %42 = vector.extract_strided_slice %39 {offsets = [0, 64], sizes = [16, 32], strides = [1, 1]} : vector<16x96xf32> to vector<16x32xf32>
    %c0_24 = arith.constant 0 : index
    %c0_25 = arith.constant 0 : index
    %c0_26 = arith.constant 0 : index
    %43 = vector.load %arg10[%c0_24, %c0_25, %c0_26] : memref<2x32x32xbf16, #tpu.memory_space<vmem>>, vector<1x32x32xbf16>
    %44 = vector.shape_cast %43 : vector<1x32x32xbf16> to vector<32x32xbf16>
    %45 = vector.extract_strided_slice %40 {offsets = [0, 0], sizes = [16, 8], strides = [1, 1]} : vector<16x32xf32> to vector<16x8xf32>
    %46 = arith.truncf %45 : vector<16x8xf32> to vector<16x8xbf16>
    %47 = vector.extract_strided_slice %41 {offsets = [0, 0], sizes = [16, 8], strides = [1, 1]} : vector<16x32xf32> to vector<16x8xf32>
    %48 = arith.truncf %47 : vector<16x8xf32> to vector<16x8xbf16>
    %49 = vector.extract_strided_slice %42 {offsets = [0, 0], sizes = [16, 8], strides = [1, 1]} : vector<16x32xf32> to vector<16x8xf32>
    %50 = arith.truncf %49 : vector<16x8xf32> to vector<16x8xbf16>
    %cst_27 = arith.constant dense<0.000000e+00> : vector<16x16xf32>
    %51 = tpu.matmul %46, %48, %cst_27 {dimension_numbers = #tpu.dot_dimension_numbers<[1], [1], [0], [0], [0, 0, 1, 0], [], []>} : vector<16x8xbf16>, vector<16x8xbf16>, vector<16x16xf32> -> vector<16x16xf32>
    %52 = arith.addf %51, %0 : vector<16x16xf32>
    %cst_28 = arith.constant dense<0xFF800000> : vector<16xf32>
    %53 = vector.multi_reduction <maximumf>, %52, %cst_28 [1] : vector<16x16xf32> to vector<16xf32>
    %54 = vector.shape_cast %53 : vector<16xf32> to vector<16x1xf32>
    %55 = vector.broadcast %54 : vector<16x1xf32> to vector<16x16xf32>
    %56 = arith.subf %52, %55 : vector<16x16xf32>
    %57 = math.exp %56 : vector<16x16xf32>
    %cst_29 = arith.constant dense<0.000000e+00> : vector<16xf32>
    %58 = vector.multi_reduction <add>, %57, %cst_29 [1] : vector<16x16xf32> to vector<16xf32>
    %59 = vector.shape_cast %58 : vector<16xf32> to vector<16x1xf32>
    %cst_30 = arith.constant 9.99999997E-7 : f32
    %60 = vector.broadcast %cst_30 : f32 to vector<16x1xf32>
    %61 = arith.maximumf %59, %60 : vector<16x1xf32>
    %62 = tpu.reciprocal %61 {approx = true} : vector<16x1xf32> -> vector<16x1xf32>
    %63 = vector.broadcast %62 : vector<16x1xf32> to vector<16x16xf32>
    %64 = arith.mulf %57, %63 : vector<16x16xf32>
    %65 = arith.truncf %64 : vector<16x16xf32> to vector<16x16xbf16>
    %cst_31 = arith.constant dense<0.000000e+00> : vector<16x8xf32>
    %66 = tpu.matmul %65, %50, %cst_31 {dimension_numbers = #tpu.dot_dimension_numbers<[1], [0], [0], [1], [0, 0, 1, 1], [], []>} : vector<16x16xbf16>, vector<16x8xbf16>, vector<16x8xf32> -> vector<16x8xf32>
    %67 = arith.truncf %66 : vector<16x8xf32> to vector<16x8xbf16>
    %68 = vector.extract_strided_slice %44 {offsets = [0, 0], sizes = [8, 32], strides = [1, 1]} : vector<32x32xbf16> to vector<8x32xbf16>
    %cst_32 = arith.constant dense<0.000000e+00> : vector<16x32xf32>
    %69 = tpu.matmul %67, %68, %cst_32 {dimension_numbers = #tpu.dot_dimension_numbers<[1], [0], [0], [1], [0, 0, 1, 1], [], []>} : vector<16x8xbf16>, vector<8x32xbf16>, vector<16x32xf32> -> vector<16x32xf32>
    %70 = vector.extract_strided_slice %40 {offsets = [0, 8], sizes = [16, 8], strides = [1, 1]} : vector<16x32xf32> to vector<16x8xf32>
    %71 = arith.truncf %70 : vector<16x8xf32> to vector<16x8xbf16>
    %72 = vector.extract_strided_slice %41 {offsets = [0, 8], sizes = [16, 8], strides = [1, 1]} : vector<16x32xf32> to vector<16x8xf32>
    %73 = arith.truncf %72 : vector<16x8xf32> to vector<16x8xbf16>
    %74 = vector.extract_strided_slice %42 {offsets = [0, 8], sizes = [16, 8], strides = [1, 1]} : vector<16x32xf32> to vector<16x8xf32>
    %75 = arith.truncf %74 : vector<16x8xf32> to vector<16x8xbf16>
    %cst_33 = arith.constant dense<0.000000e+00> : vector<16x16xf32>
    %76 = tpu.matmul %71, %73, %cst_33 {dimension_numbers = #tpu.dot_dimension_numbers<[1], [1], [0], [0], [0, 0, 1, 0], [], []>} : vector<16x8xbf16>, vector<16x8xbf16>, vector<16x16xf32> -> vector<16x16xf32>
    %77 = arith.addf %76, %0 : vector<16x16xf32>
    %cst_34 = arith.constant dense<0xFF800000> : vector<16xf32>
    %78 = vector.multi_reduction <maximumf>, %77, %cst_34 [1] : vector<16x16xf32> to vector<16xf32>
    %79 = vector.shape_cast %78 : vector<16xf32> to vector<16x1xf32>
    %80 = vector.broadcast %79 : vector<16x1xf32> to vector<16x16xf32>
    %81 = arith.subf %77, %80 : vector<16x16xf32>
    %82 = math.exp %81 : vector<16x16xf32>
    %cst_35 = arith.constant dense<0.000000e+00> : vector<16xf32>
    %83 = vector.multi_reduction <add>, %82, %cst_35 [1] : vector<16x16xf32> to vector<16xf32>
    %84 = vector.shape_cast %83 : vector<16xf32> to vector<16x1xf32>
    %cst_36 = arith.constant 9.99999997E-7 : f32
    %85 = vector.broadcast %cst_36 : f32 to vector<16x1xf32>
    %86 = arith.maximumf %84, %85 : vector<16x1xf32>
    %87 = tpu.reciprocal %86 {approx = true} : vector<16x1xf32> -> vector<16x1xf32>
    %88 = vector.broadcast %87 : vector<16x1xf32> to vector<16x16xf32>
    %89 = arith.mulf %82, %88 : vector<16x16xf32>
    %90 = arith.truncf %89 : vector<16x16xf32> to vector<16x16xbf16>
    %cst_37 = arith.constant dense<0.000000e+00> : vector<16x8xf32>
    %91 = tpu.matmul %90, %75, %cst_37 {dimension_numbers = #tpu.dot_dimension_numbers<[1], [0], [0], [1], [0, 0, 1, 1], [], []>} : vector<16x16xbf16>, vector<16x8xbf16>, vector<16x8xf32> -> vector<16x8xf32>
    %92 = arith.truncf %91 : vector<16x8xf32> to vector<16x8xbf16>
    %93 = vector.extract_strided_slice %44 {offsets = [8, 0], sizes = [8, 32], strides = [1, 1]} : vector<32x32xbf16> to vector<8x32xbf16>
    %cst_38 = arith.constant dense<0.000000e+00> : vector<16x32xf32>
    %94 = tpu.matmul %92, %93, %cst_38 {dimension_numbers = #tpu.dot_dimension_numbers<[1], [0], [0], [1], [0, 0, 1, 1], [], []>} : vector<16x8xbf16>, vector<8x32xbf16>, vector<16x32xf32> -> vector<16x32xf32>
    %95 = arith.addf %69, %94 : vector<16x32xf32>
    %96 = vector.extract_strided_slice %40 {offsets = [0, 16], sizes = [16, 8], strides = [1, 1]} : vector<16x32xf32> to vector<16x8xf32>
    %97 = arith.truncf %96 : vector<16x8xf32> to vector<16x8xbf16>
    %98 = vector.extract_strided_slice %41 {offsets = [0, 16], sizes = [16, 8], strides = [1, 1]} : vector<16x32xf32> to vector<16x8xf32>
    %99 = arith.truncf %98 : vector<16x8xf32> to vector<16x8xbf16>
    %100 = vector.extract_strided_slice %42 {offsets = [0, 16], sizes = [16, 8], strides = [1, 1]} : vector<16x32xf32> to vector<16x8xf32>
    %101 = arith.truncf %100 : vector<16x8xf32> to vector<16x8xbf16>
    %cst_39 = arith.constant dense<0.000000e+00> : vector<16x16xf32>
    %102 = tpu.matmul %97, %99, %cst_39 {dimension_numbers = #tpu.dot_dimension_numbers<[1], [1], [0], [0], [0, 0, 1, 0], [], []>} : vector<16x8xbf16>, vector<16x8xbf16>, vector<16x16xf32> -> vector<16x16xf32>
    %103 = arith.addf %102, %0 : vector<16x16xf32>
    %cst_40 = arith.constant dense<0xFF800000> : vector<16xf32>
    %104 = vector.multi_reduction <maximumf>, %103, %cst_40 [1] : vector<16x16xf32> to vector<16xf32>
    %105 = vector.shape_cast %104 : vector<16xf32> to vector<16x1xf32>
    %106 = vector.broadcast %105 : vector<16x1xf32> to vector<16x16xf32>
    %107 = arith.subf %103, %106 : vector<16x16xf32>
    %108 = math.exp %107 : vector<16x16xf32>
    %cst_41 = arith.constant dense<0.000000e+00> : vector<16xf32>
    %109 = vector.multi_reduction <add>, %108, %cst_41 [1] : vector<16x16xf32> to vector<16xf32>
    %110 = vector.shape_cast %109 : vector<16xf32> to vector<16x1xf32>
    %cst_42 = arith.constant 9.99999997E-7 : f32
    %111 = vector.broadcast %cst_42 : f32 to vector<16x1xf32>
    %112 = arith.maximumf %110, %111 : vector<16x1xf32>
    %113 = tpu.reciprocal %112 {approx = true} : vector<16x1xf32> -> vector<16x1xf32>
    %114 = vector.broadcast %113 : vector<16x1xf32> to vector<16x16xf32>
    %115 = arith.mulf %108, %114 : vector<16x16xf32>
    %116 = arith.truncf %115 : vector<16x16xf32> to vector<16x16xbf16>
    %cst_43 = arith.constant dense<0.000000e+00> : vector<16x8xf32>
    %117 = tpu.matmul %116, %101, %cst_43 {dimension_numbers = #tpu.dot_dimension_numbers<[1], [0], [0], [1], [0, 0, 1, 1], [], []>} : vector<16x16xbf16>, vector<16x8xbf16>, vector<16x8xf32> -> vector<16x8xf32>
    %118 = arith.truncf %117 : vector<16x8xf32> to vector<16x8xbf16>
    %119 = vector.extract_strided_slice %44 {offsets = [16, 0], sizes = [8, 32], strides = [1, 1]} : vector<32x32xbf16> to vector<8x32xbf16>
    %cst_44 = arith.constant dense<0.000000e+00> : vector<16x32xf32>
    %120 = tpu.matmul %118, %119, %cst_44 {dimension_numbers = #tpu.dot_dimension_numbers<[1], [0], [0], [1], [0, 0, 1, 1], [], []>} : vector<16x8xbf16>, vector<8x32xbf16>, vector<16x32xf32> -> vector<16x32xf32>
    %121 = arith.addf %95, %120 : vector<16x32xf32>
    %122 = vector.extract_strided_slice %40 {offsets = [0, 24], sizes = [16, 8], strides = [1, 1]} : vector<16x32xf32> to vector<16x8xf32>
    %123 = arith.truncf %122 : vector<16x8xf32> to vector<16x8xbf16>
    %124 = vector.extract_strided_slice %41 {offsets = [0, 24], sizes = [16, 8], strides = [1, 1]} : vector<16x32xf32> to vector<16x8xf32>
    %125 = arith.truncf %124 : vector<16x8xf32> to vector<16x8xbf16>
    %126 = vector.extract_strided_slice %42 {offsets = [0, 24], sizes = [16, 8], strides = [1, 1]} : vector<16x32xf32> to vector<16x8xf32>
    %127 = arith.truncf %126 : vector<16x8xf32> to vector<16x8xbf16>
    %cst_45 = arith.constant dense<0.000000e+00> : vector<16x16xf32>
    %128 = tpu.matmul %123, %125, %cst_45 {dimension_numbers = #tpu.dot_dimension_numbers<[1], [1], [0], [0], [0, 0, 1, 0], [], []>} : vector<16x8xbf16>, vector<16x8xbf16>, vector<16x16xf32> -> vector<16x16xf32>
    %129 = arith.addf %128, %0 : vector<16x16xf32>
    %cst_46 = arith.constant dense<0xFF800000> : vector<16xf32>
    %130 = vector.multi_reduction <maximumf>, %129, %cst_46 [1] : vector<16x16xf32> to vector<16xf32>
    %131 = vector.shape_cast %130 : vector<16xf32> to vector<16x1xf32>
    %132 = vector.broadcast %131 : vector<16x1xf32> to vector<16x16xf32>
    %133 = arith.subf %129, %132 : vector<16x16xf32>
    %134 = math.exp %133 : vector<16x16xf32>
    %cst_47 = arith.constant dense<0.000000e+00> : vector<16xf32>
    %135 = vector.multi_reduction <add>, %134, %cst_47 [1] : vector<16x16xf32> to vector<16xf32>
    %136 = vector.shape_cast %135 : vector<16xf32> to vector<16x1xf32>
    %cst_48 = arith.constant 9.99999997E-7 : f32
    %137 = vector.broadcast %cst_48 : f32 to vector<16x1xf32>
    %138 = arith.maximumf %136, %137 : vector<16x1xf32>
    %139 = tpu.reciprocal %138 {approx = true} : vector<16x1xf32> -> vector<16x1xf32>
    %140 = vector.broadcast %139 : vector<16x1xf32> to vector<16x16xf32>
    %141 = arith.mulf %134, %140 : vector<16x16xf32>
    %142 = arith.truncf %141 : vector<16x16xf32> to vector<16x16xbf16>
    %cst_49 = arith.constant dense<0.000000e+00> : vector<16x8xf32>
    %143 = tpu.matmul %142, %127, %cst_49 {dimension_numbers = #tpu.dot_dimension_numbers<[1], [0], [0], [1], [0, 0, 1, 1], [], []>} : vector<16x16xbf16>, vector<16x8xbf16>, vector<16x8xf32> -> vector<16x8xf32>
    %144 = arith.truncf %143 : vector<16x8xf32> to vector<16x8xbf16>
    %145 = vector.extract_strided_slice %44 {offsets = [24, 0], sizes = [8, 32], strides = [1, 1]} : vector<32x32xbf16> to vector<8x32xbf16>
    %cst_50 = arith.constant dense<0.000000e+00> : vector<16x32xf32>
    %146 = tpu.matmul %144, %145, %cst_50 {dimension_numbers = #tpu.dot_dimension_numbers<[1], [0], [0], [1], [0, 0, 1, 1], [], []>} : vector<16x8xbf16>, vector<8x32xbf16>, vector<16x32xf32> -> vector<16x32xf32>
    %147 = arith.addf %121, %146 : vector<16x32xf32>
    %148 = arith.addf %3, %147 : vector<16x32xf32>
    %c0_51 = arith.constant 0 : index
    %c0_52 = arith.constant 0 : index
    %c0_53 = arith.constant 0 : index
    %149 = vector.load %arg11[%c0_51, %c0_52, %c0_53] : memref<2x1x32xf32, #tpu.memory_space<vmem>>, vector<1x1x32xf32>
    %150 = vector.shape_cast %149 : vector<1x1x32xf32> to vector<1x32xf32>
    %151 = vector.broadcast %150 : vector<1x32xf32> to vector<16x32xf32>
    %152 = arith.addf %148, %151 : vector<16x32xf32>
    %153 = vector.extract_strided_slice %5 {offsets = [1, 0], sizes = [1, 32], strides = [1, 1]} : vector<2x32xf32> to vector<1x32xf32>
    %154 = vector.extract_strided_slice %7 {offsets = [1, 0], sizes = [1, 32], strides = [1, 1]} : vector<2x32xf32> to vector<1x32xf32>
    %cst_54 = arith.constant dense<0.000000e+00> : vector<16xf32>
    %155 = vector.multi_reduction <add>, %152, %cst_54 [1] : vector<16x32xf32> to vector<16xf32>
    %156 = vector.shape_cast %155 : vector<16xf32> to vector<16x1xf32>
    %cst_55 = arith.constant 3.200000e+01 : f32
    %157 = vector.broadcast %cst_55 : f32 to vector<16x1xf32>
    %158 = arith.divf %156, %157 : vector<16x1xf32>
    %159 = vector.broadcast %158 : vector<16x1xf32> to vector<16x32xf32>
    %160 = arith.subf %152, %159 : vector<16x32xf32>
    %161 = arith.mulf %160, %160 : vector<16x32xf32>
    %cst_56 = arith.constant dense<0.000000e+00> : vector<16xf32>
    %162 = vector.multi_reduction <add>, %161, %cst_56 [1] : vector<16x32xf32> to vector<16xf32>
    %163 = vector.shape_cast %162 : vector<16xf32> to vector<16x1xf32>
    %cst_57 = arith.constant 3.200000e+01 : f32
    %164 = vector.broadcast %cst_57 : f32 to vector<16x1xf32>
    %165 = arith.divf %163, %164 : vector<16x1xf32>
    %166 = vector.broadcast %158 : vector<16x1xf32> to vector<16x32xf32>
    %167 = arith.subf %152, %166 : vector<16x32xf32>
    %cst_58 = arith.constant 9.99999997E-7 : f32
    %168 = vector.broadcast %cst_58 : f32 to vector<16x1xf32>
    %169 = arith.addf %165, %168 : vector<16x1xf32>
    %170 = math.rsqrt %169 : vector<16x1xf32>
    %171 = vector.broadcast %170 : vector<16x1xf32> to vector<16x32xf32>
    %172 = arith.mulf %167, %171 : vector<16x32xf32>
    %173 = vector.broadcast %153 : vector<1x32xf32> to vector<16x32xf32>
    %174 = arith.mulf %172, %173 : vector<16x32xf32>
    %175 = vector.broadcast %154 : vector<1x32xf32> to vector<16x32xf32>
    %176 = arith.addf %174, %175 : vector<16x32xf32>
    %177 = arith.truncf %176 : vector<16x32xf32> to vector<16x32xbf16>
    %c0_59 = arith.constant 0 : index
    %c0_60 = arith.constant 0 : index
    %c0_61 = arith.constant 0 : index
    %178 = vector.load %arg12[%c0_59, %c0_60, %c0_61] : memref<2x32x64xbf16, #tpu.memory_space<vmem>>, vector<1x32x64xbf16>
    %179 = vector.shape_cast %178 : vector<1x32x64xbf16> to vector<32x64xbf16>
    %cst_62 = arith.constant dense<0.000000e+00> : vector<16x64xf32>
    %180 = tpu.matmul %177, %179, %cst_62 {dimension_numbers = #tpu.dot_dimension_numbers<[1], [0], [0], [1], [0, 0, 1, 1], [], []>} : vector<16x32xbf16>, vector<32x64xbf16>, vector<16x64xf32> -> vector<16x64xf32>
    %c0_63 = arith.constant 0 : index
    %c0_64 = arith.constant 0 : index
    %c0_65 = arith.constant 0 : index
    %181 = vector.load %arg13[%c0_63, %c0_64, %c0_65] : memref<2x1x64xf32, #tpu.memory_space<vmem>>, vector<1x1x64xf32>
    %182 = vector.shape_cast %181 : vector<1x1x64xf32> to vector<1x64xf32>
    %183 = vector.broadcast %182 : vector<1x64xf32> to vector<16x64xf32>
    %184 = arith.addf %180, %183 : vector<16x64xf32>
    %cst_66 = arith.constant 0.000000e+00 : f32
    %185 = vector.broadcast %cst_66 : f32 to vector<16x64xf32>
    %186 = arith.maximumf %184, %185 : vector<16x64xf32>
    %187 = arith.truncf %186 : vector<16x64xf32> to vector<16x64xbf16>
    %c0_67 = arith.constant 0 : index
    %c0_68 = arith.constant 0 : index
    %c0_69 = arith.constant 0 : index
    %188 = vector.load %arg14[%c0_67, %c0_68, %c0_69] : memref<2x64x32xbf16, #tpu.memory_space<vmem>>, vector<1x64x32xbf16>
    %189 = vector.shape_cast %188 : vector<1x64x32xbf16> to vector<64x32xbf16>
    %cst_70 = arith.constant dense<0.000000e+00> : vector<16x32xf32>
    %190 = tpu.matmul %187, %189, %cst_70 {dimension_numbers = #tpu.dot_dimension_numbers<[1], [0], [0], [1], [0, 0, 1, 1], [], []>} : vector<16x64xbf16>, vector<64x32xbf16>, vector<16x32xf32> -> vector<16x32xf32>
    %191 = arith.addf %152, %190 : vector<16x32xf32>
    %c0_71 = arith.constant 0 : index
    %c0_72 = arith.constant 0 : index
    %c0_73 = arith.constant 0 : index
    %192 = vector.load %arg15[%c0_71, %c0_72, %c0_73] : memref<2x1x32xf32, #tpu.memory_space<vmem>>, vector<1x1x32xf32>
    %193 = vector.shape_cast %192 : vector<1x1x32xf32> to vector<1x32xf32>
    %194 = vector.broadcast %193 : vector<1x32xf32> to vector<16x32xf32>
    %195 = arith.addf %191, %194 : vector<16x32xf32>
    %c1 = arith.constant 1 : index
    %c0_74 = arith.constant 0 : index
    %c0_75 = arith.constant 0 : index
    %196 = vector.load %arg6[%c1, %c0_74, %c0_75] : memref<2x2x32xf32, #tpu.memory_space<vmem>>, vector<1x2x32xf32>
    %197 = vector.shape_cast %196 : vector<1x2x32xf32> to vector<2x32xf32>
    %c1_76 = arith.constant 1 : index
    %c0_77 = arith.constant 0 : index
    %c0_78 = arith.constant 0 : index
    %198 = vector.load %arg7[%c1_76, %c0_77, %c0_78] : memref<2x2x32xf32, #tpu.memory_space<vmem>>, vector<1x2x32xf32>
    %199 = vector.shape_cast %198 : vector<1x2x32xf32> to vector<2x32xf32>
    %200 = vector.extract_strided_slice %197 {offsets = [0, 0], sizes = [1, 32], strides = [1, 1]} : vector<2x32xf32> to vector<1x32xf32>
    %201 = vector.extract_strided_slice %199 {offsets = [0, 0], sizes = [1, 32], strides = [1, 1]} : vector<2x32xf32> to vector<1x32xf32>
    %cst_79 = arith.constant dense<0.000000e+00> : vector<16xf32>
    %202 = vector.multi_reduction <add>, %195, %cst_79 [1] : vector<16x32xf32> to vector<16xf32>
    %203 = vector.shape_cast %202 : vector<16xf32> to vector<16x1xf32>
    %cst_80 = arith.constant 3.200000e+01 : f32
    %204 = vector.broadcast %cst_80 : f32 to vector<16x1xf32>
    %205 = arith.divf %203, %204 : vector<16x1xf32>
    %206 = vector.broadcast %205 : vector<16x1xf32> to vector<16x32xf32>
    %207 = arith.subf %195, %206 : vector<16x32xf32>
    %208 = arith.mulf %207, %207 : vector<16x32xf32>
    %cst_81 = arith.constant dense<0.000000e+00> : vector<16xf32>
    %209 = vector.multi_reduction <add>, %208, %cst_81 [1] : vector<16x32xf32> to vector<16xf32>
    %210 = vector.shape_cast %209 : vector<16xf32> to vector<16x1xf32>
    %cst_82 = arith.constant 3.200000e+01 : f32
    %211 = vector.broadcast %cst_82 : f32 to vector<16x1xf32>
    %212 = arith.divf %210, %211 : vector<16x1xf32>
    %213 = vector.broadcast %205 : vector<16x1xf32> to vector<16x32xf32>
    %214 = arith.subf %195, %213 : vector<16x32xf32>
    %cst_83 = arith.constant 9.99999997E-7 : f32
    %215 = vector.broadcast %cst_83 : f32 to vector<16x1xf32>
    %216 = arith.addf %212, %215 : vector<16x1xf32>
    %217 = math.rsqrt %216 : vector<16x1xf32>
    %218 = vector.broadcast %217 : vector<16x1xf32> to vector<16x32xf32>
    %219 = arith.mulf %214, %218 : vector<16x32xf32>
    %220 = vector.broadcast %200 : vector<1x32xf32> to vector<16x32xf32>
    %221 = arith.mulf %219, %220 : vector<16x32xf32>
    %222 = vector.broadcast %201 : vector<1x32xf32> to vector<16x32xf32>
    %223 = arith.addf %221, %222 : vector<16x32xf32>
    %224 = arith.truncf %223 : vector<16x32xf32> to vector<16x32xbf16>
    %c1_84 = arith.constant 1 : index
    %c0_85 = arith.constant 0 : index
    %c0_86 = arith.constant 0 : index
    %225 = vector.load %arg8[%c1_84, %c0_85, %c0_86] : memref<2x32x96xbf16, #tpu.memory_space<vmem>>, vector<1x32x96xbf16>
    %226 = vector.shape_cast %225 : vector<1x32x96xbf16> to vector<32x96xbf16>
    %cst_87 = arith.constant dense<0.000000e+00> : vector<16x96xf32>
    %227 = tpu.matmul %224, %226, %cst_87 {dimension_numbers = #tpu.dot_dimension_numbers<[1], [0], [0], [1], [0, 0, 1, 1], [], []>} : vector<16x32xbf16>, vector<32x96xbf16>, vector<16x96xf32> -> vector<16x96xf32>
    %c1_88 = arith.constant 1 : index
    %c0_89 = arith.constant 0 : index
    %c0_90 = arith.constant 0 : index
    %228 = vector.load %arg9[%c1_88, %c0_89, %c0_90] : memref<2x1x96xf32, #tpu.memory_space<vmem>>, vector<1x1x96xf32>
    %229 = vector.shape_cast %228 : vector<1x1x96xf32> to vector<1x96xf32>
    %230 = vector.broadcast %229 : vector<1x96xf32> to vector<16x96xf32>
    %231 = arith.addf %227, %230 : vector<16x96xf32>
    %232 = vector.extract_strided_slice %231 {offsets = [0, 0], sizes = [16, 32], strides = [1, 1]} : vector<16x96xf32> to vector<16x32xf32>
    %233 = vector.extract_strided_slice %231 {offsets = [0, 32], sizes = [16, 32], strides = [1, 1]} : vector<16x96xf32> to vector<16x32xf32>
    %234 = vector.extract_strided_slice %231 {offsets = [0, 64], sizes = [16, 32], strides = [1, 1]} : vector<16x96xf32> to vector<16x32xf32>
    %c1_91 = arith.constant 1 : index
    %c0_92 = arith.constant 0 : index
    %c0_93 = arith.constant 0 : index
    %235 = vector.load %arg10[%c1_91, %c0_92, %c0_93] : memref<2x32x32xbf16, #tpu.memory_space<vmem>>, vector<1x32x32xbf16>
    %236 = vector.shape_cast %235 : vector<1x32x32xbf16> to vector<32x32xbf16>
    %237 = vector.extract_strided_slice %232 {offsets = [0, 0], sizes = [16, 8], strides = [1, 1]} : vector<16x32xf32> to vector<16x8xf32>
    %238 = arith.truncf %237 : vector<16x8xf32> to vector<16x8xbf16>
    %239 = vector.extract_strided_slice %233 {offsets = [0, 0], sizes = [16, 8], strides = [1, 1]} : vector<16x32xf32> to vector<16x8xf32>
    %240 = arith.truncf %239 : vector<16x8xf32> to vector<16x8xbf16>
    %241 = vector.extract_strided_slice %234 {offsets = [0, 0], sizes = [16, 8], strides = [1, 1]} : vector<16x32xf32> to vector<16x8xf32>
    %242 = arith.truncf %241 : vector<16x8xf32> to vector<16x8xbf16>
    %cst_94 = arith.constant dense<0.000000e+00> : vector<16x16xf32>
    %243 = tpu.matmul %238, %240, %cst_94 {dimension_numbers = #tpu.dot_dimension_numbers<[1], [1], [0], [0], [0, 0, 1, 0], [], []>} : vector<16x8xbf16>, vector<16x8xbf16>, vector<16x16xf32> -> vector<16x16xf32>
    %244 = arith.addf %243, %0 : vector<16x16xf32>
    %cst_95 = arith.constant dense<0xFF800000> : vector<16xf32>
    %245 = vector.multi_reduction <maximumf>, %244, %cst_95 [1] : vector<16x16xf32> to vector<16xf32>
    %246 = vector.shape_cast %245 : vector<16xf32> to vector<16x1xf32>
    %247 = vector.broadcast %246 : vector<16x1xf32> to vector<16x16xf32>
    %248 = arith.subf %244, %247 : vector<16x16xf32>
    %249 = math.exp %248 : vector<16x16xf32>
    %cst_96 = arith.constant dense<0.000000e+00> : vector<16xf32>
    %250 = vector.multi_reduction <add>, %249, %cst_96 [1] : vector<16x16xf32> to vector<16xf32>
    %251 = vector.shape_cast %250 : vector<16xf32> to vector<16x1xf32>
    %cst_97 = arith.constant 9.99999997E-7 : f32
    %252 = vector.broadcast %cst_97 : f32 to vector<16x1xf32>
    %253 = arith.maximumf %251, %252 : vector<16x1xf32>
    %254 = tpu.reciprocal %253 {approx = true} : vector<16x1xf32> -> vector<16x1xf32>
    %255 = vector.broadcast %254 : vector<16x1xf32> to vector<16x16xf32>
    %256 = arith.mulf %249, %255 : vector<16x16xf32>
    %257 = arith.truncf %256 : vector<16x16xf32> to vector<16x16xbf16>
    %cst_98 = arith.constant dense<0.000000e+00> : vector<16x8xf32>
    %258 = tpu.matmul %257, %242, %cst_98 {dimension_numbers = #tpu.dot_dimension_numbers<[1], [0], [0], [1], [0, 0, 1, 1], [], []>} : vector<16x16xbf16>, vector<16x8xbf16>, vector<16x8xf32> -> vector<16x8xf32>
    %259 = arith.truncf %258 : vector<16x8xf32> to vector<16x8xbf16>
    %260 = vector.extract_strided_slice %236 {offsets = [0, 0], sizes = [8, 32], strides = [1, 1]} : vector<32x32xbf16> to vector<8x32xbf16>
    %cst_99 = arith.constant dense<0.000000e+00> : vector<16x32xf32>
    %261 = tpu.matmul %259, %260, %cst_99 {dimension_numbers = #tpu.dot_dimension_numbers<[1], [0], [0], [1], [0, 0, 1, 1], [], []>} : vector<16x8xbf16>, vector<8x32xbf16>, vector<16x32xf32> -> vector<16x32xf32>
    %262 = vector.extract_strided_slice %232 {offsets = [0, 8], sizes = [16, 8], strides = [1, 1]} : vector<16x32xf32> to vector<16x8xf32>
    %263 = arith.truncf %262 : vector<16x8xf32> to vector<16x8xbf16>
    %264 = vector.extract_strided_slice %233 {offsets = [0, 8], sizes = [16, 8], strides = [1, 1]} : vector<16x32xf32> to vector<16x8xf32>
    %265 = arith.truncf %264 : vector<16x8xf32> to vector<16x8xbf16>
    %266 = vector.extract_strided_slice %234 {offsets = [0, 8], sizes = [16, 8], strides = [1, 1]} : vector<16x32xf32> to vector<16x8xf32>
    %267 = arith.truncf %266 : vector<16x8xf32> to vector<16x8xbf16>
    %cst_100 = arith.constant dense<0.000000e+00> : vector<16x16xf32>
    %268 = tpu.matmul %263, %265, %cst_100 {dimension_numbers = #tpu.dot_dimension_numbers<[1], [1], [0], [0], [0, 0, 1, 0], [], []>} : vector<16x8xbf16>, vector<16x8xbf16>, vector<16x16xf32> -> vector<16x16xf32>
    %269 = arith.addf %268, %0 : vector<16x16xf32>
    %cst_101 = arith.constant dense<0xFF800000> : vector<16xf32>
    %270 = vector.multi_reduction <maximumf>, %269, %cst_101 [1] : vector<16x16xf32> to vector<16xf32>
    %271 = vector.shape_cast %270 : vector<16xf32> to vector<16x1xf32>
    %272 = vector.broadcast %271 : vector<16x1xf32> to vector<16x16xf32>
    %273 = arith.subf %269, %272 : vector<16x16xf32>
    %274 = math.exp %273 : vector<16x16xf32>
    %cst_102 = arith.constant dense<0.000000e+00> : vector<16xf32>
    %275 = vector.multi_reduction <add>, %274, %cst_102 [1] : vector<16x16xf32> to vector<16xf32>
    %276 = vector.shape_cast %275 : vector<16xf32> to vector<16x1xf32>
    %cst_103 = arith.constant 9.99999997E-7 : f32
    %277 = vector.broadcast %cst_103 : f32 to vector<16x1xf32>
    %278 = arith.maximumf %276, %277 : vector<16x1xf32>
    %279 = tpu.reciprocal %278 {approx = true} : vector<16x1xf32> -> vector<16x1xf32>
    %280 = vector.broadcast %279 : vector<16x1xf32> to vector<16x16xf32>
    %281 = arith.mulf %274, %280 : vector<16x16xf32>
    %282 = arith.truncf %281 : vector<16x16xf32> to vector<16x16xbf16>
    %cst_104 = arith.constant dense<0.000000e+00> : vector<16x8xf32>
    %283 = tpu.matmul %282, %267, %cst_104 {dimension_numbers = #tpu.dot_dimension_numbers<[1], [0], [0], [1], [0, 0, 1, 1], [], []>} : vector<16x16xbf16>, vector<16x8xbf16>, vector<16x8xf32> -> vector<16x8xf32>
    %284 = arith.truncf %283 : vector<16x8xf32> to vector<16x8xbf16>
    %285 = vector.extract_strided_slice %236 {offsets = [8, 0], sizes = [8, 32], strides = [1, 1]} : vector<32x32xbf16> to vector<8x32xbf16>
    %cst_105 = arith.constant dense<0.000000e+00> : vector<16x32xf32>
    %286 = tpu.matmul %284, %285, %cst_105 {dimension_numbers = #tpu.dot_dimension_numbers<[1], [0], [0], [1], [0, 0, 1, 1], [], []>} : vector<16x8xbf16>, vector<8x32xbf16>, vector<16x32xf32> -> vector<16x32xf32>
    %287 = arith.addf %261, %286 : vector<16x32xf32>
    %288 = vector.extract_strided_slice %232 {offsets = [0, 16], sizes = [16, 8], strides = [1, 1]} : vector<16x32xf32> to vector<16x8xf32>
    %289 = arith.truncf %288 : vector<16x8xf32> to vector<16x8xbf16>
    %290 = vector.extract_strided_slice %233 {offsets = [0, 16], sizes = [16, 8], strides = [1, 1]} : vector<16x32xf32> to vector<16x8xf32>
    %291 = arith.truncf %290 : vector<16x8xf32> to vector<16x8xbf16>
    %292 = vector.extract_strided_slice %234 {offsets = [0, 16], sizes = [16, 8], strides = [1, 1]} : vector<16x32xf32> to vector<16x8xf32>
    %293 = arith.truncf %292 : vector<16x8xf32> to vector<16x8xbf16>
    %cst_106 = arith.constant dense<0.000000e+00> : vector<16x16xf32>
    %294 = tpu.matmul %289, %291, %cst_106 {dimension_numbers = #tpu.dot_dimension_numbers<[1], [1], [0], [0], [0, 0, 1, 0], [], []>} : vector<16x8xbf16>, vector<16x8xbf16>, vector<16x16xf32> -> vector<16x16xf32>
    %295 = arith.addf %294, %0 : vector<16x16xf32>
    %cst_107 = arith.constant dense<0xFF800000> : vector<16xf32>
    %296 = vector.multi_reduction <maximumf>, %295, %cst_107 [1] : vector<16x16xf32> to vector<16xf32>
    %297 = vector.shape_cast %296 : vector<16xf32> to vector<16x1xf32>
    %298 = vector.broadcast %297 : vector<16x1xf32> to vector<16x16xf32>
    %299 = arith.subf %295, %298 : vector<16x16xf32>
    %300 = math.exp %299 : vector<16x16xf32>
    %cst_108 = arith.constant dense<0.000000e+00> : vector<16xf32>
    %301 = vector.multi_reduction <add>, %300, %cst_108 [1] : vector<16x16xf32> to vector<16xf32>
    %302 = vector.shape_cast %301 : vector<16xf32> to vector<16x1xf32>
    %cst_109 = arith.constant 9.99999997E-7 : f32
    %303 = vector.broadcast %cst_109 : f32 to vector<16x1xf32>
    %304 = arith.maximumf %302, %303 : vector<16x1xf32>
    %305 = tpu.reciprocal %304 {approx = true} : vector<16x1xf32> -> vector<16x1xf32>
    %306 = vector.broadcast %305 : vector<16x1xf32> to vector<16x16xf32>
    %307 = arith.mulf %300, %306 : vector<16x16xf32>
    %308 = arith.truncf %307 : vector<16x16xf32> to vector<16x16xbf16>
    %cst_110 = arith.constant dense<0.000000e+00> : vector<16x8xf32>
    %309 = tpu.matmul %308, %293, %cst_110 {dimension_numbers = #tpu.dot_dimension_numbers<[1], [0], [0], [1], [0, 0, 1, 1], [], []>} : vector<16x16xbf16>, vector<16x8xbf16>, vector<16x8xf32> -> vector<16x8xf32>
    %310 = arith.truncf %309 : vector<16x8xf32> to vector<16x8xbf16>
    %311 = vector.extract_strided_slice %236 {offsets = [16, 0], sizes = [8, 32], strides = [1, 1]} : vector<32x32xbf16> to vector<8x32xbf16>
    %cst_111 = arith.constant dense<0.000000e+00> : vector<16x32xf32>
    %312 = tpu.matmul %310, %311, %cst_111 {dimension_numbers = #tpu.dot_dimension_numbers<[1], [0], [0], [1], [0, 0, 1, 1], [], []>} : vector<16x8xbf16>, vector<8x32xbf16>, vector<16x32xf32> -> vector<16x32xf32>
    %313 = arith.addf %287, %312 : vector<16x32xf32>
    %314 = vector.extract_strided_slice %232 {offsets = [0, 24], sizes = [16, 8], strides = [1, 1]} : vector<16x32xf32> to vector<16x8xf32>
    %315 = arith.truncf %314 : vector<16x8xf32> to vector<16x8xbf16>
    %316 = vector.extract_strided_slice %233 {offsets = [0, 24], sizes = [16, 8], strides = [1, 1]} : vector<16x32xf32> to vector<16x8xf32>
    %317 = arith.truncf %316 : vector<16x8xf32> to vector<16x8xbf16>
    %318 = vector.extract_strided_slice %234 {offsets = [0, 24], sizes = [16, 8], strides = [1, 1]} : vector<16x32xf32> to vector<16x8xf32>
    %319 = arith.truncf %318 : vector<16x8xf32> to vector<16x8xbf16>
    %cst_112 = arith.constant dense<0.000000e+00> : vector<16x16xf32>
    %320 = tpu.matmul %315, %317, %cst_112 {dimension_numbers = #tpu.dot_dimension_numbers<[1], [1], [0], [0], [0, 0, 1, 0], [], []>} : vector<16x8xbf16>, vector<16x8xbf16>, vector<16x16xf32> -> vector<16x16xf32>
    %321 = arith.addf %320, %0 : vector<16x16xf32>
    %cst_113 = arith.constant dense<0xFF800000> : vector<16xf32>
    %322 = vector.multi_reduction <maximumf>, %321, %cst_113 [1] : vector<16x16xf32> to vector<16xf32>
    %323 = vector.shape_cast %322 : vector<16xf32> to vector<16x1xf32>
    %324 = vector.broadcast %323 : vector<16x1xf32> to vector<16x16xf32>
    %325 = arith.subf %321, %324 : vector<16x16xf32>
    %326 = math.exp %325 : vector<16x16xf32>
    %cst_114 = arith.constant dense<0.000000e+00> : vector<16xf32>
    %327 = vector.multi_reduction <add>, %326, %cst_114 [1] : vector<16x16xf32> to vector<16xf32>
    %328 = vector.shape_cast %327 : vector<16xf32> to vector<16x1xf32>
    %cst_115 = arith.constant 9.99999997E-7 : f32
    %329 = vector.broadcast %cst_115 : f32 to vector<16x1xf32>
    %330 = arith.maximumf %328, %329 : vector<16x1xf32>
    %331 = tpu.reciprocal %330 {approx = true} : vector<16x1xf32> -> vector<16x1xf32>
    %332 = vector.broadcast %331 : vector<16x1xf32> to vector<16x16xf32>
    %333 = arith.mulf %326, %332 : vector<16x16xf32>
    %334 = arith.truncf %333 : vector<16x16xf32> to vector<16x16xbf16>
    %cst_116 = arith.constant dense<0.000000e+00> : vector<16x8xf32>
    %335 = tpu.matmul %334, %319, %cst_116 {dimension_numbers = #tpu.dot_dimension_numbers<[1], [0], [0], [1], [0, 0, 1, 1], [], []>} : vector<16x16xbf16>, vector<16x8xbf16>, vector<16x8xf32> -> vector<16x8xf32>
    %336 = arith.truncf %335 : vector<16x8xf32> to vector<16x8xbf16>
    %337 = vector.extract_strided_slice %236 {offsets = [24, 0], sizes = [8, 32], strides = [1, 1]} : vector<32x32xbf16> to vector<8x32xbf16>
    %cst_117 = arith.constant dense<0.000000e+00> : vector<16x32xf32>
    %338 = tpu.matmul %336, %337, %cst_117 {dimension_numbers = #tpu.dot_dimension_numbers<[1], [0], [0], [1], [0, 0, 1, 1], [], []>} : vector<16x8xbf16>, vector<8x32xbf16>, vector<16x32xf32> -> vector<16x32xf32>
    %339 = arith.addf %313, %338 : vector<16x32xf32>
    %340 = arith.addf %195, %339 : vector<16x32xf32>
    %c1_118 = arith.constant 1 : index
    %c0_119 = arith.constant 0 : index
    %c0_120 = arith.constant 0 : index
    %341 = vector.load %arg11[%c1_118, %c0_119, %c0_120] : memref<2x1x32xf32, #tpu.memory_space<vmem>>, vector<1x1x32xf32>
    %342 = vector.shape_cast %341 : vector<1x1x32xf32> to vector<1x32xf32>
    %343 = vector.broadcast %342 : vector<1x32xf32> to vector<16x32xf32>
    %344 = arith.addf %340, %343 : vector<16x32xf32>
    %345 = vector.extract_strided_slice %197 {offsets = [1, 0], sizes = [1, 32], strides = [1, 1]} : vector<2x32xf32> to vector<1x32xf32>
    %346 = vector.extract_strided_slice %199 {offsets = [1, 0], sizes = [1, 32], strides = [1, 1]} : vector<2x32xf32> to vector<1x32xf32>
    %cst_121 = arith.constant dense<0.000000e+00> : vector<16xf32>
    %347 = vector.multi_reduction <add>, %344, %cst_121 [1] : vector<16x32xf32> to vector<16xf32>
    %348 = vector.shape_cast %347 : vector<16xf32> to vector<16x1xf32>
    %cst_122 = arith.constant 3.200000e+01 : f32
    %349 = vector.broadcast %cst_122 : f32 to vector<16x1xf32>
    %350 = arith.divf %348, %349 : vector<16x1xf32>
    %351 = vector.broadcast %350 : vector<16x1xf32> to vector<16x32xf32>
    %352 = arith.subf %344, %351 : vector<16x32xf32>
    %353 = arith.mulf %352, %352 : vector<16x32xf32>
    %cst_123 = arith.constant dense<0.000000e+00> : vector<16xf32>
    %354 = vector.multi_reduction <add>, %353, %cst_123 [1] : vector<16x32xf32> to vector<16xf32>
    %355 = vector.shape_cast %354 : vector<16xf32> to vector<16x1xf32>
    %cst_124 = arith.constant 3.200000e+01 : f32
    %356 = vector.broadcast %cst_124 : f32 to vector<16x1xf32>
    %357 = arith.divf %355, %356 : vector<16x1xf32>
    %358 = vector.broadcast %350 : vector<16x1xf32> to vector<16x32xf32>
    %359 = arith.subf %344, %358 : vector<16x32xf32>
    %cst_125 = arith.constant 9.99999997E-7 : f32
    %360 = vector.broadcast %cst_125 : f32 to vector<16x1xf32>
    %361 = arith.addf %357, %360 : vector<16x1xf32>
    %362 = math.rsqrt %361 : vector<16x1xf32>
    %363 = vector.broadcast %362 : vector<16x1xf32> to vector<16x32xf32>
    %364 = arith.mulf %359, %363 : vector<16x32xf32>
    %365 = vector.broadcast %345 : vector<1x32xf32> to vector<16x32xf32>
    %366 = arith.mulf %364, %365 : vector<16x32xf32>
    %367 = vector.broadcast %346 : vector<1x32xf32> to vector<16x32xf32>
    %368 = arith.addf %366, %367 : vector<16x32xf32>
    %369 = arith.truncf %368 : vector<16x32xf32> to vector<16x32xbf16>
    %c1_126 = arith.constant 1 : index
    %c0_127 = arith.constant 0 : index
    %c0_128 = arith.constant 0 : index
    %370 = vector.load %arg12[%c1_126, %c0_127, %c0_128] : memref<2x32x64xbf16, #tpu.memory_space<vmem>>, vector<1x32x64xbf16>
    %371 = vector.shape_cast %370 : vector<1x32x64xbf16> to vector<32x64xbf16>
    %cst_129 = arith.constant dense<0.000000e+00> : vector<16x64xf32>
    %372 = tpu.matmul %369, %371, %cst_129 {dimension_numbers = #tpu.dot_dimension_numbers<[1], [0], [0], [1], [0, 0, 1, 1], [], []>} : vector<16x32xbf16>, vector<32x64xbf16>, vector<16x64xf32> -> vector<16x64xf32>
    %c1_130 = arith.constant 1 : index
    %c0_131 = arith.constant 0 : index
    %c0_132 = arith.constant 0 : index
    %373 = vector.load %arg13[%c1_130, %c0_131, %c0_132] : memref<2x1x64xf32, #tpu.memory_space<vmem>>, vector<1x1x64xf32>
    %374 = vector.shape_cast %373 : vector<1x1x64xf32> to vector<1x64xf32>
    %375 = vector.broadcast %374 : vector<1x64xf32> to vector<16x64xf32>
    %376 = arith.addf %372, %375 : vector<16x64xf32>
    %cst_133 = arith.constant 0.000000e+00 : f32
    %377 = vector.broadcast %cst_133 : f32 to vector<16x64xf32>
    %378 = arith.maximumf %376, %377 : vector<16x64xf32>
    %379 = arith.truncf %378 : vector<16x64xf32> to vector<16x64xbf16>
    %c1_134 = arith.constant 1 : index
    %c0_135 = arith.constant 0 : index
    %c0_136 = arith.constant 0 : index
    %380 = vector.load %arg14[%c1_134, %c0_135, %c0_136] : memref<2x64x32xbf16, #tpu.memory_space<vmem>>, vector<1x64x32xbf16>
    %381 = vector.shape_cast %380 : vector<1x64x32xbf16> to vector<64x32xbf16>
    %cst_137 = arith.constant dense<0.000000e+00> : vector<16x32xf32>
    %382 = tpu.matmul %379, %381, %cst_137 {dimension_numbers = #tpu.dot_dimension_numbers<[1], [0], [0], [1], [0, 0, 1, 1], [], []>} : vector<16x64xbf16>, vector<64x32xbf16>, vector<16x32xf32> -> vector<16x32xf32>
    %383 = arith.addf %344, %382 : vector<16x32xf32>
    %c1_138 = arith.constant 1 : index
    %c0_139 = arith.constant 0 : index
    %c0_140 = arith.constant 0 : index
    %384 = vector.load %arg15[%c1_138, %c0_139, %c0_140] : memref<2x1x32xf32, #tpu.memory_space<vmem>>, vector<1x1x32xf32>
    %385 = vector.shape_cast %384 : vector<1x1x32xf32> to vector<1x32xf32>
    %386 = vector.broadcast %385 : vector<1x32xf32> to vector<16x32xf32>
    %387 = arith.addf %383, %386 : vector<16x32xf32>
    %c0_141 = arith.constant 0 : index
    %c0_142 = arith.constant 0 : index
    %388 = vector.load %arg16[%c0_141, %c0_142] : memref<1x32xf32, #tpu.memory_space<vmem>>, vector<1x32xf32>
    %c0_143 = arith.constant 0 : index
    %c0_144 = arith.constant 0 : index
    %389 = vector.load %arg17[%c0_143, %c0_144] : memref<1x32xf32, #tpu.memory_space<vmem>>, vector<1x32xf32>
    %cst_145 = arith.constant dense<0.000000e+00> : vector<16xf32>
    %390 = vector.multi_reduction <add>, %387, %cst_145 [1] : vector<16x32xf32> to vector<16xf32>
    %391 = vector.shape_cast %390 : vector<16xf32> to vector<16x1xf32>
    %cst_146 = arith.constant 3.200000e+01 : f32
    %392 = vector.broadcast %cst_146 : f32 to vector<16x1xf32>
    %393 = arith.divf %391, %392 : vector<16x1xf32>
    %394 = vector.broadcast %393 : vector<16x1xf32> to vector<16x32xf32>
    %395 = arith.subf %387, %394 : vector<16x32xf32>
    %396 = arith.mulf %395, %395 : vector<16x32xf32>
    %cst_147 = arith.constant dense<0.000000e+00> : vector<16xf32>
    %397 = vector.multi_reduction <add>, %396, %cst_147 [1] : vector<16x32xf32> to vector<16xf32>
    %398 = vector.shape_cast %397 : vector<16xf32> to vector<16x1xf32>
    %cst_148 = arith.constant 3.200000e+01 : f32
    %399 = vector.broadcast %cst_148 : f32 to vector<16x1xf32>
    %400 = arith.divf %398, %399 : vector<16x1xf32>
    %401 = vector.broadcast %393 : vector<16x1xf32> to vector<16x32xf32>
    %402 = arith.subf %387, %401 : vector<16x32xf32>
    %cst_149 = arith.constant 9.99999997E-7 : f32
    %403 = vector.broadcast %cst_149 : f32 to vector<16x1xf32>
    %404 = arith.addf %400, %403 : vector<16x1xf32>
    %405 = math.rsqrt %404 : vector<16x1xf32>
    %406 = vector.broadcast %405 : vector<16x1xf32> to vector<16x32xf32>
    %407 = arith.mulf %402, %406 : vector<16x32xf32>
    %408 = vector.broadcast %388 : vector<1x32xf32> to vector<16x32xf32>
    %409 = arith.mulf %407, %408 : vector<16x32xf32>
    %410 = vector.broadcast %389 : vector<1x32xf32> to vector<16x32xf32>
    %411 = arith.addf %409, %410 : vector<16x32xf32>
    %c0_150 = arith.constant 0 : index
    %c0_151 = arith.constant 0 : index
    %412 = vector.load %arg36[%c0_150, %c0_151] : memref<32x128xf32, #tpu.memory_space<vmem>>, vector<32x128xf32>
    %cst_152 = arith.constant dense<0.000000e+00> : vector<16x128xf32>
    %413 = tpu.matmul %411, %412, %cst_152 {dimension_numbers = #tpu.dot_dimension_numbers<[1], [0], [0], [1], [0, 0, 1, 1], [], []>} : vector<16x32xf32>, vector<32x128xf32>, vector<16x128xf32> -> vector<16x128xf32>
    %c0_153 = arith.constant 0 : index
    %c0_154 = arith.constant 0 : index
    %414 = vector.load %arg39[%c0_153, %c0_154] : memref<16x128xf32, #tpu.memory_space<vmem>>, vector<16x128xf32>
    tpu.vector_store %arg39[%c0_153, %c0_154], %413 {strides = array<i32>} : memref<16x128xf32, #tpu.memory_space<vmem>>, vector<16x128xf32>,
    %415 = arith.truncf %411 : vector<16x32xf32> to vector<16x32xbf16>
    %c0_155 = arith.constant 0 : index
    %c0_156 = arith.constant 0 : index
    %416 = vector.load %arg2[%c0_155, %c0_156] : memref<16x32xf32, #tpu.memory_space<vmem>>, vector<16x32xf32>
    %c0_157 = arith.constant 0 : index
    %c0_158 = arith.constant 0 : index
    %c0_159 = arith.constant 0 : index
    %417 = vector.load %arg18[%c0_157, %c0_158, %c0_159] : memref<2x3x32xf32, #tpu.memory_space<vmem>>, vector<1x3x32xf32>
    %418 = vector.shape_cast %417 : vector<1x3x32xf32> to vector<3x32xf32>
    %c0_160 = arith.constant 0 : index
    %c0_161 = arith.constant 0 : index
    %c0_162 = arith.constant 0 : index
    %419 = vector.load %arg19[%c0_160, %c0_161, %c0_162] : memref<2x3x32xf32, #tpu.memory_space<vmem>>, vector<1x3x32xf32>
    %420 = vector.shape_cast %419 : vector<1x3x32xf32> to vector<3x32xf32>
    %421 = vector.extract_strided_slice %418 {offsets = [0, 0], sizes = [1, 32], strides = [1, 1]} : vector<3x32xf32> to vector<1x32xf32>
    %422 = vector.extract_strided_slice %420 {offsets = [0, 0], sizes = [1, 32], strides = [1, 1]} : vector<3x32xf32> to vector<1x32xf32>
    %cst_163 = arith.constant dense<0.000000e+00> : vector<16xf32>
    %423 = vector.multi_reduction <add>, %416, %cst_163 [1] : vector<16x32xf32> to vector<16xf32>
    %424 = vector.shape_cast %423 : vector<16xf32> to vector<16x1xf32>
    %cst_164 = arith.constant 3.200000e+01 : f32
    %425 = vector.broadcast %cst_164 : f32 to vector<16x1xf32>
    %426 = arith.divf %424, %425 : vector<16x1xf32>
    %427 = vector.broadcast %426 : vector<16x1xf32> to vector<16x32xf32>
    %428 = arith.subf %416, %427 : vector<16x32xf32>
    %429 = arith.mulf %428, %428 : vector<16x32xf32>
    %cst_165 = arith.constant dense<0.000000e+00> : vector<16xf32>
    %430 = vector.multi_reduction <add>, %429, %cst_165 [1] : vector<16x32xf32> to vector<16xf32>
    %431 = vector.shape_cast %430 : vector<16xf32> to vector<16x1xf32>
    %cst_166 = arith.constant 3.200000e+01 : f32
    %432 = vector.broadcast %cst_166 : f32 to vector<16x1xf32>
    %433 = arith.divf %431, %432 : vector<16x1xf32>
    %434 = vector.broadcast %426 : vector<16x1xf32> to vector<16x32xf32>
    %435 = arith.subf %416, %434 : vector<16x32xf32>
    %cst_167 = arith.constant 9.99999997E-7 : f32
    %436 = vector.broadcast %cst_167 : f32 to vector<16x1xf32>
    %437 = arith.addf %433, %436 : vector<16x1xf32>
    %438 = math.rsqrt %437 : vector<16x1xf32>
    %439 = vector.broadcast %438 : vector<16x1xf32> to vector<16x32xf32>
    %440 = arith.mulf %435, %439 : vector<16x32xf32>
    %441 = vector.broadcast %421 : vector<1x32xf32> to vector<16x32xf32>
    %442 = arith.mulf %440, %441 : vector<16x32xf32>
    %443 = vector.broadcast %422 : vector<1x32xf32> to vector<16x32xf32>
    %444 = arith.addf %442, %443 : vector<16x32xf32>
    %445 = arith.truncf %444 : vector<16x32xf32> to vector<16x32xbf16>
    %c0_168 = arith.constant 0 : index
    %c0_169 = arith.constant 0 : index
    %c0_170 = arith.constant 0 : index
    %446 = vector.load %arg20[%c0_168, %c0_169, %c0_170] : memref<2x32x96xbf16, #tpu.memory_space<vmem>>, vector<1x32x96xbf16>
    %447 = vector.shape_cast %446 : vector<1x32x96xbf16> to vector<32x96xbf16>
    %cst_171 = arith.constant dense<0.000000e+00> : vector<16x96xf32>
    %448 = tpu.matmul %445, %447, %cst_171 {dimension_numbers = #tpu.dot_dimension_numbers<[1], [0], [0], [1], [0, 0, 1, 1], [], []>} : vector<16x32xbf16>, vector<32x96xbf16>, vector<16x96xf32> -> vector<16x96xf32>
    %c0_172 = arith.constant 0 : index
    %c0_173 = arith.constant 0 : index
    %c0_174 = arith.constant 0 : index
    %449 = vector.load %arg21[%c0_172, %c0_173, %c0_174] : memref<2x1x96xf32, #tpu.memory_space<vmem>>, vector<1x1x96xf32>
    %450 = vector.shape_cast %449 : vector<1x1x96xf32> to vector<1x96xf32>
    %451 = vector.broadcast %450 : vector<1x96xf32> to vector<16x96xf32>
    %452 = arith.addf %448, %451 : vector<16x96xf32>
    %453 = vector.extract_strided_slice %452 {offsets = [0, 0], sizes = [16, 32], strides = [1, 1]} : vector<16x96xf32> to vector<16x32xf32>
    %454 = vector.extract_strided_slice %452 {offsets = [0, 32], sizes = [16, 32], strides = [1, 1]} : vector<16x96xf32> to vector<16x32xf32>
    %455 = vector.extract_strided_slice %452 {offsets = [0, 64], sizes = [16, 32], strides = [1, 1]} : vector<16x96xf32> to vector<16x32xf32>
    %c0_175 = arith.constant 0 : index
    %c0_176 = arith.constant 0 : index
    %c0_177 = arith.constant 0 : index
    %456 = vector.load %arg22[%c0_175, %c0_176, %c0_177] : memref<2x32x32xbf16, #tpu.memory_space<vmem>>, vector<1x32x32xbf16>
    %457 = vector.shape_cast %456 : vector<1x32x32xbf16> to vector<32x32xbf16>
    %458 = vector.extract_strided_slice %453 {offsets = [0, 0], sizes = [16, 8], strides = [1, 1]} : vector<16x32xf32> to vector<16x8xf32>
    %459 = arith.truncf %458 : vector<16x8xf32> to vector<16x8xbf16>
    %460 = vector.extract_strided_slice %454 {offsets = [0, 0], sizes = [16, 8], strides = [1, 1]} : vector<16x32xf32> to vector<16x8xf32>
    %461 = arith.truncf %460 : vector<16x8xf32> to vector<16x8xbf16>
    %462 = vector.extract_strided_slice %455 {offsets = [0, 0], sizes = [16, 8], strides = [1, 1]} : vector<16x32xf32> to vector<16x8xf32>
    %463 = arith.truncf %462 : vector<16x8xf32> to vector<16x8xbf16>
    %cst_178 = arith.constant dense<0.000000e+00> : vector<16x16xf32>
    %464 = tpu.matmul %459, %461, %cst_178 {dimension_numbers = #tpu.dot_dimension_numbers<[1], [1], [0], [0], [0, 0, 1, 0], [], []>} : vector<16x8xbf16>, vector<16x8xbf16>, vector<16x16xf32> -> vector<16x16xf32>
    %465 = arith.addf %464, %1 : vector<16x16xf32>
    %cst_179 = arith.constant dense<0xFF800000> : vector<16xf32>
    %466 = vector.multi_reduction <maximumf>, %465, %cst_179 [1] : vector<16x16xf32> to vector<16xf32>
    %467 = vector.shape_cast %466 : vector<16xf32> to vector<16x1xf32>
    %468 = vector.broadcast %467 : vector<16x1xf32> to vector<16x16xf32>
    %469 = arith.subf %465, %468 : vector<16x16xf32>
    %470 = math.exp %469 : vector<16x16xf32>
    %cst_180 = arith.constant dense<0.000000e+00> : vector<16xf32>
    %471 = vector.multi_reduction <add>, %470, %cst_180 [1] : vector<16x16xf32> to vector<16xf32>
    %472 = vector.shape_cast %471 : vector<16xf32> to vector<16x1xf32>
    %cst_181 = arith.constant 9.99999997E-7 : f32
    %473 = vector.broadcast %cst_181 : f32 to vector<16x1xf32>
    %474 = arith.maximumf %472, %473 : vector<16x1xf32>
    %475 = tpu.reciprocal %474 {approx = true} : vector<16x1xf32> -> vector<16x1xf32>
    %476 = vector.broadcast %475 : vector<16x1xf32> to vector<16x16xf32>
    %477 = arith.mulf %470, %476 : vector<16x16xf32>
    %478 = arith.truncf %477 : vector<16x16xf32> to vector<16x16xbf16>
    %cst_182 = arith.constant dense<0.000000e+00> : vector<16x8xf32>
    %479 = tpu.matmul %478, %463, %cst_182 {dimension_numbers = #tpu.dot_dimension_numbers<[1], [0], [0], [1], [0, 0, 1, 1], [], []>} : vector<16x16xbf16>, vector<16x8xbf16>, vector<16x8xf32> -> vector<16x8xf32>
    %480 = arith.truncf %479 : vector<16x8xf32> to vector<16x8xbf16>
    %481 = vector.extract_strided_slice %457 {offsets = [0, 0], sizes = [8, 32], strides = [1, 1]} : vector<32x32xbf16> to vector<8x32xbf16>
    %cst_183 = arith.constant dense<0.000000e+00> : vector<16x32xf32>
    %482 = tpu.matmul %480, %481, %cst_183 {dimension_numbers = #tpu.dot_dimension_numbers<[1], [0], [0], [1], [0, 0, 1, 1], [], []>} : vector<16x8xbf16>, vector<8x32xbf16>, vector<16x32xf32> -> vector<16x32xf32>
    %483 = vector.extract_strided_slice %453 {offsets = [0, 8], sizes = [16, 8], strides = [1, 1]} : vector<16x32xf32> to vector<16x8xf32>
    %484 = arith.truncf %483 : vector<16x8xf32> to vector<16x8xbf16>
    %485 = vector.extract_strided_slice %454 {offsets = [0, 8], sizes = [16, 8], strides = [1, 1]} : vector<16x32xf32> to vector<16x8xf32>
    %486 = arith.truncf %485 : vector<16x8xf32> to vector<16x8xbf16>
    %487 = vector.extract_strided_slice %455 {offsets = [0, 8], sizes = [16, 8], strides = [1, 1]} : vector<16x32xf32> to vector<16x8xf32>
    %488 = arith.truncf %487 : vector<16x8xf32> to vector<16x8xbf16>
    %cst_184 = arith.constant dense<0.000000e+00> : vector<16x16xf32>
    %489 = tpu.matmul %484, %486, %cst_184 {dimension_numbers = #tpu.dot_dimension_numbers<[1], [1], [0], [0], [0, 0, 1, 0], [], []>} : vector<16x8xbf16>, vector<16x8xbf16>, vector<16x16xf32> -> vector<16x16xf32>
    %490 = arith.addf %489, %1 : vector<16x16xf32>
    %cst_185 = arith.constant dense<0xFF800000> : vector<16xf32>
    %491 = vector.multi_reduction <maximumf>, %490, %cst_185 [1] : vector<16x16xf32> to vector<16xf32>
    %492 = vector.shape_cast %491 : vector<16xf32> to vector<16x1xf32>
    %493 = vector.broadcast %492 : vector<16x1xf32> to vector<16x16xf32>
    %494 = arith.subf %490, %493 : vector<16x16xf32>
    %495 = math.exp %494 : vector<16x16xf32>
    %cst_186 = arith.constant dense<0.000000e+00> : vector<16xf32>
    %496 = vector.multi_reduction <add>, %495, %cst_186 [1] : vector<16x16xf32> to vector<16xf32>
    %497 = vector.shape_cast %496 : vector<16xf32> to vector<16x1xf32>
    %cst_187 = arith.constant 9.99999997E-7 : f32
    %498 = vector.broadcast %cst_187 : f32 to vector<16x1xf32>
    %499 = arith.maximumf %497, %498 : vector<16x1xf32>
    %500 = tpu.reciprocal %499 {approx = true} : vector<16x1xf32> -> vector<16x1xf32>
    %501 = vector.broadcast %500 : vector<16x1xf32> to vector<16x16xf32>
    %502 = arith.mulf %495, %501 : vector<16x16xf32>
    %503 = arith.truncf %502 : vector<16x16xf32> to vector<16x16xbf16>
    %cst_188 = arith.constant dense<0.000000e+00> : vector<16x8xf32>
    %504 = tpu.matmul %503, %488, %cst_188 {dimension_numbers = #tpu.dot_dimension_numbers<[1], [0], [0], [1], [0, 0, 1, 1], [], []>} : vector<16x16xbf16>, vector<16x8xbf16>, vector<16x8xf32> -> vector<16x8xf32>
    %505 = arith.truncf %504 : vector<16x8xf32> to vector<16x8xbf16>
    %506 = vector.extract_strided_slice %457 {offsets = [8, 0], sizes = [8, 32], strides = [1, 1]} : vector<32x32xbf16> to vector<8x32xbf16>
    %cst_189 = arith.constant dense<0.000000e+00> : vector<16x32xf32>
    %507 = tpu.matmul %505, %506, %cst_189 {dimension_numbers = #tpu.dot_dimension_numbers<[1], [0], [0], [1], [0, 0, 1, 1], [], []>} : vector<16x8xbf16>, vector<8x32xbf16>, vector<16x32xf32> -> vector<16x32xf32>
    %508 = arith.addf %482, %507 : vector<16x32xf32>
    %509 = vector.extract_strided_slice %453 {offsets = [0, 16], sizes = [16, 8], strides = [1, 1]} : vector<16x32xf32> to vector<16x8xf32>
    %510 = arith.truncf %509 : vector<16x8xf32> to vector<16x8xbf16>
    %511 = vector.extract_strided_slice %454 {offsets = [0, 16], sizes = [16, 8], strides = [1, 1]} : vector<16x32xf32> to vector<16x8xf32>
    %512 = arith.truncf %511 : vector<16x8xf32> to vector<16x8xbf16>
    %513 = vector.extract_strided_slice %455 {offsets = [0, 16], sizes = [16, 8], strides = [1, 1]} : vector<16x32xf32> to vector<16x8xf32>
    %514 = arith.truncf %513 : vector<16x8xf32> to vector<16x8xbf16>
    %cst_190 = arith.constant dense<0.000000e+00> : vector<16x16xf32>
    %515 = tpu.matmul %510, %512, %cst_190 {dimension_numbers = #tpu.dot_dimension_numbers<[1], [1], [0], [0], [0, 0, 1, 0], [], []>} : vector<16x8xbf16>, vector<16x8xbf16>, vector<16x16xf32> -> vector<16x16xf32>
    %516 = arith.addf %515, %1 : vector<16x16xf32>
    %cst_191 = arith.constant dense<0xFF800000> : vector<16xf32>
    %517 = vector.multi_reduction <maximumf>, %516, %cst_191 [1] : vector<16x16xf32> to vector<16xf32>
    %518 = vector.shape_cast %517 : vector<16xf32> to vector<16x1xf32>
    %519 = vector.broadcast %518 : vector<16x1xf32> to vector<16x16xf32>
    %520 = arith.subf %516, %519 : vector<16x16xf32>
    %521 = math.exp %520 : vector<16x16xf32>
    %cst_192 = arith.constant dense<0.000000e+00> : vector<16xf32>
    %522 = vector.multi_reduction <add>, %521, %cst_192 [1] : vector<16x16xf32> to vector<16xf32>
    %523 = vector.shape_cast %522 : vector<16xf32> to vector<16x1xf32>
    %cst_193 = arith.constant 9.99999997E-7 : f32
    %524 = vector.broadcast %cst_193 : f32 to vector<16x1xf32>
    %525 = arith.maximumf %523, %524 : vector<16x1xf32>
    %526 = tpu.reciprocal %525 {approx = true} : vector<16x1xf32> -> vector<16x1xf32>
    %527 = vector.broadcast %526 : vector<16x1xf32> to vector<16x16xf32>
    %528 = arith.mulf %521, %527 : vector<16x16xf32>
    %529 = arith.truncf %528 : vector<16x16xf32> to vector<16x16xbf16>
    %cst_194 = arith.constant dense<0.000000e+00> : vector<16x8xf32>
    %530 = tpu.matmul %529, %514, %cst_194 {dimension_numbers = #tpu.dot_dimension_numbers<[1], [0], [0], [1], [0, 0, 1, 1], [], []>} : vector<16x16xbf16>, vector<16x8xbf16>, vector<16x8xf32> -> vector<16x8xf32>
    %531 = arith.truncf %530 : vector<16x8xf32> to vector<16x8xbf16>
    %532 = vector.extract_strided_slice %457 {offsets = [16, 0], sizes = [8, 32], strides = [1, 1]} : vector<32x32xbf16> to vector<8x32xbf16>
    %cst_195 = arith.constant dense<0.000000e+00> : vector<16x32xf32>
    %533 = tpu.matmul %531, %532, %cst_195 {dimension_numbers = #tpu.dot_dimension_numbers<[1], [0], [0], [1], [0, 0, 1, 1], [], []>} : vector<16x8xbf16>, vector<8x32xbf16>, vector<16x32xf32> -> vector<16x32xf32>
    %534 = arith.addf %508, %533 : vector<16x32xf32>
    %535 = vector.extract_strided_slice %453 {offsets = [0, 24], sizes = [16, 8], strides = [1, 1]} : vector<16x32xf32> to vector<16x8xf32>
    %536 = arith.truncf %535 : vector<16x8xf32> to vector<16x8xbf16>
    %537 = vector.extract_strided_slice %454 {offsets = [0, 24], sizes = [16, 8], strides = [1, 1]} : vector<16x32xf32> to vector<16x8xf32>
    %538 = arith.truncf %537 : vector<16x8xf32> to vector<16x8xbf16>
    %539 = vector.extract_strided_slice %455 {offsets = [0, 24], sizes = [16, 8], strides = [1, 1]} : vector<16x32xf32> to vector<16x8xf32>
    %540 = arith.truncf %539 : vector<16x8xf32> to vector<16x8xbf16>
    %cst_196 = arith.constant dense<0.000000e+00> : vector<16x16xf32>
    %541 = tpu.matmul %536, %538, %cst_196 {dimension_numbers = #tpu.dot_dimension_numbers<[1], [1], [0], [0], [0, 0, 1, 0], [], []>} : vector<16x8xbf16>, vector<16x8xbf16>, vector<16x16xf32> -> vector<16x16xf32>
    %542 = arith.addf %541, %1 : vector<16x16xf32>
    %cst_197 = arith.constant dense<0xFF800000> : vector<16xf32>
    %543 = vector.multi_reduction <maximumf>, %542, %cst_197 [1] : vector<16x16xf32> to vector<16xf32>
    %544 = vector.shape_cast %543 : vector<16xf32> to vector<16x1xf32>
    %545 = vector.broadcast %544 : vector<16x1xf32> to vector<16x16xf32>
    %546 = arith.subf %542, %545 : vector<16x16xf32>
    %547 = math.exp %546 : vector<16x16xf32>
    %cst_198 = arith.constant dense<0.000000e+00> : vector<16xf32>
    %548 = vector.multi_reduction <add>, %547, %cst_198 [1] : vector<16x16xf32> to vector<16xf32>
    %549 = vector.shape_cast %548 : vector<16xf32> to vector<16x1xf32>
    %cst_199 = arith.constant 9.99999997E-7 : f32
    %550 = vector.broadcast %cst_199 : f32 to vector<16x1xf32>
    %551 = arith.maximumf %549, %550 : vector<16x1xf32>
    %552 = tpu.reciprocal %551 {approx = true} : vector<16x1xf32> -> vector<16x1xf32>
    %553 = vector.broadcast %552 : vector<16x1xf32> to vector<16x16xf32>
    %554 = arith.mulf %547, %553 : vector<16x16xf32>
    %555 = arith.truncf %554 : vector<16x16xf32> to vector<16x16xbf16>
    %cst_200 = arith.constant dense<0.000000e+00> : vector<16x8xf32>
    %556 = tpu.matmul %555, %540, %cst_200 {dimension_numbers = #tpu.dot_dimension_numbers<[1], [0], [0], [1], [0, 0, 1, 1], [], []>} : vector<16x16xbf16>, vector<16x8xbf16>, vector<16x8xf32> -> vector<16x8xf32>
    %557 = arith.truncf %556 : vector<16x8xf32> to vector<16x8xbf16>
    %558 = vector.extract_strided_slice %457 {offsets = [24, 0], sizes = [8, 32], strides = [1, 1]} : vector<32x32xbf16> to vector<8x32xbf16>
    %cst_201 = arith.constant dense<0.000000e+00> : vector<16x32xf32>
    %559 = tpu.matmul %557, %558, %cst_201 {dimension_numbers = #tpu.dot_dimension_numbers<[1], [0], [0], [1], [0, 0, 1, 1], [], []>} : vector<16x8xbf16>, vector<8x32xbf16>, vector<16x32xf32> -> vector<16x32xf32>
    %560 = arith.addf %534, %559 : vector<16x32xf32>
    %561 = arith.addf %416, %560 : vector<16x32xf32>
    %c0_202 = arith.constant 0 : index
    %c0_203 = arith.constant 0 : index
    %c0_204 = arith.constant 0 : index
    %562 = vector.load %arg23[%c0_202, %c0_203, %c0_204] : memref<2x1x32xf32, #tpu.memory_space<vmem>>, vector<1x1x32xf32>
    %563 = vector.shape_cast %562 : vector<1x1x32xf32> to vector<1x32xf32>
    %564 = vector.broadcast %563 : vector<1x32xf32> to vector<16x32xf32>
    %565 = arith.addf %561, %564 : vector<16x32xf32>
    %566 = vector.extract_strided_slice %418 {offsets = [1, 0], sizes = [1, 32], strides = [1, 1]} : vector<3x32xf32> to vector<1x32xf32>
    %567 = vector.extract_strided_slice %420 {offsets = [1, 0], sizes = [1, 32], strides = [1, 1]} : vector<3x32xf32> to vector<1x32xf32>
    %cst_205 = arith.constant dense<0.000000e+00> : vector<16xf32>
    %568 = vector.multi_reduction <add>, %565, %cst_205 [1] : vector<16x32xf32> to vector<16xf32>
    %569 = vector.shape_cast %568 : vector<16xf32> to vector<16x1xf32>
    %cst_206 = arith.constant 3.200000e+01 : f32
    %570 = vector.broadcast %cst_206 : f32 to vector<16x1xf32>
    %571 = arith.divf %569, %570 : vector<16x1xf32>
    %572 = vector.broadcast %571 : vector<16x1xf32> to vector<16x32xf32>
    %573 = arith.subf %565, %572 : vector<16x32xf32>
    %574 = arith.mulf %573, %573 : vector<16x32xf32>
    %cst_207 = arith.constant dense<0.000000e+00> : vector<16xf32>
    %575 = vector.multi_reduction <add>, %574, %cst_207 [1] : vector<16x32xf32> to vector<16xf32>
    %576 = vector.shape_cast %575 : vector<16xf32> to vector<16x1xf32>
    %cst_208 = arith.constant 3.200000e+01 : f32
    %577 = vector.broadcast %cst_208 : f32 to vector<16x1xf32>
    %578 = arith.divf %576, %577 : vector<16x1xf32>
    %579 = vector.broadcast %571 : vector<16x1xf32> to vector<16x32xf32>
    %580 = arith.subf %565, %579 : vector<16x32xf32>
    %cst_209 = arith.constant 9.99999997E-7 : f32
    %581 = vector.broadcast %cst_209 : f32 to vector<16x1xf32>
    %582 = arith.addf %578, %581 : vector<16x1xf32>
    %583 = math.rsqrt %582 : vector<16x1xf32>
    %584 = vector.broadcast %583 : vector<16x1xf32> to vector<16x32xf32>
    %585 = arith.mulf %580, %584 : vector<16x32xf32>
    %586 = vector.broadcast %566 : vector<1x32xf32> to vector<16x32xf32>
    %587 = arith.mulf %585, %586 : vector<16x32xf32>
    %588 = vector.broadcast %567 : vector<1x32xf32> to vector<16x32xf32>
    %589 = arith.addf %587, %588 : vector<16x32xf32>
    %590 = arith.truncf %589 : vector<16x32xf32> to vector<16x32xbf16>
    %c0_210 = arith.constant 0 : index
    %c0_211 = arith.constant 0 : index
    %c0_212 = arith.constant 0 : index
    %591 = vector.load %arg24[%c0_210, %c0_211, %c0_212] : memref<2x32x32xbf16, #tpu.memory_space<vmem>>, vector<1x32x32xbf16>
    %592 = vector.shape_cast %591 : vector<1x32x32xbf16> to vector<32x32xbf16>
    %cst_213 = arith.constant dense<0.000000e+00> : vector<16x32xf32>
    %593 = tpu.matmul %590, %592, %cst_213 {dimension_numbers = #tpu.dot_dimension_numbers<[1], [0], [0], [1], [0, 0, 1, 1], [], []>} : vector<16x32xbf16>, vector<32x32xbf16>, vector<16x32xf32> -> vector<16x32xf32>
    %c0_214 = arith.constant 0 : index
    %c0_215 = arith.constant 0 : index
    %c0_216 = arith.constant 0 : index
    %594 = vector.load %arg25[%c0_214, %c0_215, %c0_216] : memref<2x1x32xf32, #tpu.memory_space<vmem>>, vector<1x1x32xf32>
    %595 = vector.shape_cast %594 : vector<1x1x32xf32> to vector<1x32xf32>
    %596 = vector.broadcast %595 : vector<1x32xf32> to vector<16x32xf32>
    %597 = arith.addf %593, %596 : vector<16x32xf32>
    %c0_217 = arith.constant 0 : index
    %c0_218 = arith.constant 0 : index
    %c0_219 = arith.constant 0 : index
    %598 = vector.load %arg26[%c0_217, %c0_218, %c0_219] : memref<2x32x64xbf16, #tpu.memory_space<vmem>>, vector<1x32x64xbf16>
    %599 = vector.shape_cast %598 : vector<1x32x64xbf16> to vector<32x64xbf16>
    %cst_220 = arith.constant dense<0.000000e+00> : vector<16x64xf32>
    %600 = tpu.matmul %415, %599, %cst_220 {dimension_numbers = #tpu.dot_dimension_numbers<[1], [0], [0], [1], [0, 0, 1, 1], [], []>} : vector<16x32xbf16>, vector<32x64xbf16>, vector<16x64xf32> -> vector<16x64xf32>
    %c0_221 = arith.constant 0 : index
    %c0_222 = arith.constant 0 : index
    %c0_223 = arith.constant 0 : index
    %601 = vector.load %arg27[%c0_221, %c0_222, %c0_223] : memref<2x1x64xf32, #tpu.memory_space<vmem>>, vector<1x1x64xf32>
    %602 = vector.shape_cast %601 : vector<1x1x64xf32> to vector<1x64xf32>
    %603 = vector.broadcast %602 : vector<1x64xf32> to vector<16x64xf32>
    %604 = arith.addf %600, %603 : vector<16x64xf32>
    %605 = vector.extract_strided_slice %604 {offsets = [0, 0], sizes = [16, 32], strides = [1, 1]} : vector<16x64xf32> to vector<16x32xf32>
    %606 = vector.extract_strided_slice %604 {offsets = [0, 32], sizes = [16, 32], strides = [1, 1]} : vector<16x64xf32> to vector<16x32xf32>
    %c0_224 = arith.constant 0 : index
    %c0_225 = arith.constant 0 : index
    %c0_226 = arith.constant 0 : index
    %607 = vector.load %arg28[%c0_224, %c0_225, %c0_226] : memref<2x32x32xbf16, #tpu.memory_space<vmem>>, vector<1x32x32xbf16>
    %608 = vector.shape_cast %607 : vector<1x32x32xbf16> to vector<32x32xbf16>
    %609 = vector.extract_strided_slice %597 {offsets = [0, 0], sizes = [16, 8], strides = [1, 1]} : vector<16x32xf32> to vector<16x8xf32>
    %610 = arith.truncf %609 : vector<16x8xf32> to vector<16x8xbf16>
    %611 = vector.extract_strided_slice %605 {offsets = [0, 0], sizes = [16, 8], strides = [1, 1]} : vector<16x32xf32> to vector<16x8xf32>
    %612 = arith.truncf %611 : vector<16x8xf32> to vector<16x8xbf16>
    %613 = vector.extract_strided_slice %606 {offsets = [0, 0], sizes = [16, 8], strides = [1, 1]} : vector<16x32xf32> to vector<16x8xf32>
    %614 = arith.truncf %613 : vector<16x8xf32> to vector<16x8xbf16>
    %cst_227 = arith.constant dense<0.000000e+00> : vector<16x16xf32>
    %615 = tpu.matmul %610, %612, %cst_227 {dimension_numbers = #tpu.dot_dimension_numbers<[1], [1], [0], [0], [0, 0, 1, 0], [], []>} : vector<16x8xbf16>, vector<16x8xbf16>, vector<16x16xf32> -> vector<16x16xf32>
    %616 = arith.addf %615, %2 : vector<16x16xf32>
    %cst_228 = arith.constant dense<0xFF800000> : vector<16xf32>
    %617 = vector.multi_reduction <maximumf>, %616, %cst_228 [1] : vector<16x16xf32> to vector<16xf32>
    %618 = vector.shape_cast %617 : vector<16xf32> to vector<16x1xf32>
    %619 = vector.broadcast %618 : vector<16x1xf32> to vector<16x16xf32>
    %620 = arith.subf %616, %619 : vector<16x16xf32>
    %621 = math.exp %620 : vector<16x16xf32>
    %cst_229 = arith.constant dense<0.000000e+00> : vector<16xf32>
    %622 = vector.multi_reduction <add>, %621, %cst_229 [1] : vector<16x16xf32> to vector<16xf32>
    %623 = vector.shape_cast %622 : vector<16xf32> to vector<16x1xf32>
    %cst_230 = arith.constant 9.99999997E-7 : f32
    %624 = vector.broadcast %cst_230 : f32 to vector<16x1xf32>
    %625 = arith.maximumf %623, %624 : vector<16x1xf32>
    %626 = tpu.reciprocal %625 {approx = true} : vector<16x1xf32> -> vector<16x1xf32>
    %627 = vector.broadcast %626 : vector<16x1xf32> to vector<16x16xf32>
    %628 = arith.mulf %621, %627 : vector<16x16xf32>
    %629 = arith.truncf %628 : vector<16x16xf32> to vector<16x16xbf16>
    %cst_231 = arith.constant dense<0.000000e+00> : vector<16x8xf32>
    %630 = tpu.matmul %629, %614, %cst_231 {dimension_numbers = #tpu.dot_dimension_numbers<[1], [0], [0], [1], [0, 0, 1, 1], [], []>} : vector<16x16xbf16>, vector<16x8xbf16>, vector<16x8xf32> -> vector<16x8xf32>
    %631 = arith.truncf %630 : vector<16x8xf32> to vector<16x8xbf16>
    %632 = vector.extract_strided_slice %608 {offsets = [0, 0], sizes = [8, 32], strides = [1, 1]} : vector<32x32xbf16> to vector<8x32xbf16>
    %cst_232 = arith.constant dense<0.000000e+00> : vector<16x32xf32>
    %633 = tpu.matmul %631, %632, %cst_232 {dimension_numbers = #tpu.dot_dimension_numbers<[1], [0], [0], [1], [0, 0, 1, 1], [], []>} : vector<16x8xbf16>, vector<8x32xbf16>, vector<16x32xf32> -> vector<16x32xf32>
    %634 = vector.extract_strided_slice %597 {offsets = [0, 8], sizes = [16, 8], strides = [1, 1]} : vector<16x32xf32> to vector<16x8xf32>
    %635 = arith.truncf %634 : vector<16x8xf32> to vector<16x8xbf16>
    %636 = vector.extract_strided_slice %605 {offsets = [0, 8], sizes = [16, 8], strides = [1, 1]} : vector<16x32xf32> to vector<16x8xf32>
    %637 = arith.truncf %636 : vector<16x8xf32> to vector<16x8xbf16>
    %638 = vector.extract_strided_slice %606 {offsets = [0, 8], sizes = [16, 8], strides = [1, 1]} : vector<16x32xf32> to vector<16x8xf32>
    %639 = arith.truncf %638 : vector<16x8xf32> to vector<16x8xbf16>
    %cst_233 = arith.constant dense<0.000000e+00> : vector<16x16xf32>
    %640 = tpu.matmul %635, %637, %cst_233 {dimension_numbers = #tpu.dot_dimension_numbers<[1], [1], [0], [0], [0, 0, 1, 0], [], []>} : vector<16x8xbf16>, vector<16x8xbf16>, vector<16x16xf32> -> vector<16x16xf32>
    %641 = arith.addf %640, %2 : vector<16x16xf32>
    %cst_234 = arith.constant dense<0xFF800000> : vector<16xf32>
    %642 = vector.multi_reduction <maximumf>, %641, %cst_234 [1] : vector<16x16xf32> to vector<16xf32>
    %643 = vector.shape_cast %642 : vector<16xf32> to vector<16x1xf32>
    %644 = vector.broadcast %643 : vector<16x1xf32> to vector<16x16xf32>
    %645 = arith.subf %641, %644 : vector<16x16xf32>
    %646 = math.exp %645 : vector<16x16xf32>
    %cst_235 = arith.constant dense<0.000000e+00> : vector<16xf32>
    %647 = vector.multi_reduction <add>, %646, %cst_235 [1] : vector<16x16xf32> to vector<16xf32>
    %648 = vector.shape_cast %647 : vector<16xf32> to vector<16x1xf32>
    %cst_236 = arith.constant 9.99999997E-7 : f32
    %649 = vector.broadcast %cst_236 : f32 to vector<16x1xf32>
    %650 = arith.maximumf %648, %649 : vector<16x1xf32>
    %651 = tpu.reciprocal %650 {approx = true} : vector<16x1xf32> -> vector<16x1xf32>
    %652 = vector.broadcast %651 : vector<16x1xf32> to vector<16x16xf32>
    %653 = arith.mulf %646, %652 : vector<16x16xf32>
    %654 = arith.truncf %653 : vector<16x16xf32> to vector<16x16xbf16>
    %cst_237 = arith.constant dense<0.000000e+00> : vector<16x8xf32>
    %655 = tpu.matmul %654, %639, %cst_237 {dimension_numbers = #tpu.dot_dimension_numbers<[1], [0], [0], [1], [0, 0, 1, 1], [], []>} : vector<16x16xbf16>, vector<16x8xbf16>, vector<16x8xf32> -> vector<16x8xf32>
    %656 = arith.truncf %655 : vector<16x8xf32> to vector<16x8xbf16>
    %657 = vector.extract_strided_slice %608 {offsets = [8, 0], sizes = [8, 32], strides = [1, 1]} : vector<32x32xbf16> to vector<8x32xbf16>
    %cst_238 = arith.constant dense<0.000000e+00> : vector<16x32xf32>
    %658 = tpu.matmul %656, %657, %cst_238 {dimension_numbers = #tpu.dot_dimension_numbers<[1], [0], [0], [1], [0, 0, 1, 1], [], []>} : vector<16x8xbf16>, vector<8x32xbf16>, vector<16x32xf32> -> vector<16x32xf32>
    %659 = arith.addf %633, %658 : vector<16x32xf32>
    %660 = vector.extract_strided_slice %597 {offsets = [0, 16], sizes = [16, 8], strides = [1, 1]} : vector<16x32xf32> to vector<16x8xf32>
    %661 = arith.truncf %660 : vector<16x8xf32> to vector<16x8xbf16>
    %662 = vector.extract_strided_slice %605 {offsets = [0, 16], sizes = [16, 8], strides = [1, 1]} : vector<16x32xf32> to vector<16x8xf32>
    %663 = arith.truncf %662 : vector<16x8xf32> to vector<16x8xbf16>
    %664 = vector.extract_strided_slice %606 {offsets = [0, 16], sizes = [16, 8], strides = [1, 1]} : vector<16x32xf32> to vector<16x8xf32>
    %665 = arith.truncf %664 : vector<16x8xf32> to vector<16x8xbf16>
    %cst_239 = arith.constant dense<0.000000e+00> : vector<16x16xf32>
    %666 = tpu.matmul %661, %663, %cst_239 {dimension_numbers = #tpu.dot_dimension_numbers<[1], [1], [0], [0], [0, 0, 1, 0], [], []>} : vector<16x8xbf16>, vector<16x8xbf16>, vector<16x16xf32> -> vector<16x16xf32>
    %667 = arith.addf %666, %2 : vector<16x16xf32>
    %cst_240 = arith.constant dense<0xFF800000> : vector<16xf32>
    %668 = vector.multi_reduction <maximumf>, %667, %cst_240 [1] : vector<16x16xf32> to vector<16xf32>
    %669 = vector.shape_cast %668 : vector<16xf32> to vector<16x1xf32>
    %670 = vector.broadcast %669 : vector<16x1xf32> to vector<16x16xf32>
    %671 = arith.subf %667, %670 : vector<16x16xf32>
    %672 = math.exp %671 : vector<16x16xf32>
    %cst_241 = arith.constant dense<0.000000e+00> : vector<16xf32>
    %673 = vector.multi_reduction <add>, %672, %cst_241 [1] : vector<16x16xf32> to vector<16xf32>
    %674 = vector.shape_cast %673 : vector<16xf32> to vector<16x1xf32>
    %cst_242 = arith.constant 9.99999997E-7 : f32
    %675 = vector.broadcast %cst_242 : f32 to vector<16x1xf32>
    %676 = arith.maximumf %674, %675 : vector<16x1xf32>
    %677 = tpu.reciprocal %676 {approx = true} : vector<16x1xf32> -> vector<16x1xf32>
    %678 = vector.broadcast %677 : vector<16x1xf32> to vector<16x16xf32>
    %679 = arith.mulf %672, %678 : vector<16x16xf32>
    %680 = arith.truncf %679 : vector<16x16xf32> to vector<16x16xbf16>
    %cst_243 = arith.constant dense<0.000000e+00> : vector<16x8xf32>
    %681 = tpu.matmul %680, %665, %cst_243 {dimension_numbers = #tpu.dot_dimension_numbers<[1], [0], [0], [1], [0, 0, 1, 1], [], []>} : vector<16x16xbf16>, vector<16x8xbf16>, vector<16x8xf32> -> vector<16x8xf32>
    %682 = arith.truncf %681 : vector<16x8xf32> to vector<16x8xbf16>
    %683 = vector.extract_strided_slice %608 {offsets = [16, 0], sizes = [8, 32], strides = [1, 1]} : vector<32x32xbf16> to vector<8x32xbf16>
    %cst_244 = arith.constant dense<0.000000e+00> : vector<16x32xf32>
    %684 = tpu.matmul %682, %683, %cst_244 {dimension_numbers = #tpu.dot_dimension_numbers<[1], [0], [0], [1], [0, 0, 1, 1], [], []>} : vector<16x8xbf16>, vector<8x32xbf16>, vector<16x32xf32> -> vector<16x32xf32>
    %685 = arith.addf %659, %684 : vector<16x32xf32>
    %686 = vector.extract_strided_slice %597 {offsets = [0, 24], sizes = [16, 8], strides = [1, 1]} : vector<16x32xf32> to vector<16x8xf32>
    %687 = arith.truncf %686 : vector<16x8xf32> to vector<16x8xbf16>
    %688 = vector.extract_strided_slice %605 {offsets = [0, 24], sizes = [16, 8], strides = [1, 1]} : vector<16x32xf32> to vector<16x8xf32>
    %689 = arith.truncf %688 : vector<16x8xf32> to vector<16x8xbf16>
    %690 = vector.extract_strided_slice %606 {offsets = [0, 24], sizes = [16, 8], strides = [1, 1]} : vector<16x32xf32> to vector<16x8xf32>
    %691 = arith.truncf %690 : vector<16x8xf32> to vector<16x8xbf16>
    %cst_245 = arith.constant dense<0.000000e+00> : vector<16x16xf32>
    %692 = tpu.matmul %687, %689, %cst_245 {dimension_numbers = #tpu.dot_dimension_numbers<[1], [1], [0], [0], [0, 0, 1, 0], [], []>} : vector<16x8xbf16>, vector<16x8xbf16>, vector<16x16xf32> -> vector<16x16xf32>
    %693 = arith.addf %692, %2 : vector<16x16xf32>
    %cst_246 = arith.constant dense<0xFF800000> : vector<16xf32>
    %694 = vector.multi_reduction <maximumf>, %693, %cst_246 [1] : vector<16x16xf32> to vector<16xf32>
    %695 = vector.shape_cast %694 : vector<16xf32> to vector<16x1xf32>
    %696 = vector.broadcast %695 : vector<16x1xf32> to vector<16x16xf32>
    %697 = arith.subf %693, %696 : vector<16x16xf32>
    %698 = math.exp %697 : vector<16x16xf32>
    %cst_247 = arith.constant dense<0.000000e+00> : vector<16xf32>
    %699 = vector.multi_reduction <add>, %698, %cst_247 [1] : vector<16x16xf32> to vector<16xf32>
    %700 = vector.shape_cast %699 : vector<16xf32> to vector<16x1xf32>
    %cst_248 = arith.constant 9.99999997E-7 : f32
    %701 = vector.broadcast %cst_248 : f32 to vector<16x1xf32>
    %702 = arith.maximumf %700, %701 : vector<16x1xf32>
    %703 = tpu.reciprocal %702 {approx = true} : vector<16x1xf32> -> vector<16x1xf32>
    %704 = vector.broadcast %703 : vector<16x1xf32> to vector<16x16xf32>
    %705 = arith.mulf %698, %704 : vector<16x16xf32>
    %706 = arith.truncf %705 : vector<16x16xf32> to vector<16x16xbf16>
    %cst_249 = arith.constant dense<0.000000e+00> : vector<16x8xf32>
    %707 = tpu.matmul %706, %691, %cst_249 {dimension_numbers = #tpu.dot_dimension_numbers<[1], [0], [0], [1], [0, 0, 1, 1], [], []>} : vector<16x16xbf16>, vector<16x8xbf16>, vector<16x8xf32> -> vector<16x8xf32>
    %708 = arith.truncf %707 : vector<16x8xf32> to vector<16x8xbf16>
    %709 = vector.extract_strided_slice %608 {offsets = [24, 0], sizes = [8, 32], strides = [1, 1]} : vector<32x32xbf16> to vector<8x32xbf16>
    %cst_250 = arith.constant dense<0.000000e+00> : vector<16x32xf32>
    %710 = tpu.matmul %708, %709, %cst_250 {dimension_numbers = #tpu.dot_dimension_numbers<[1], [0], [0], [1], [0, 0, 1, 1], [], []>} : vector<16x8xbf16>, vector<8x32xbf16>, vector<16x32xf32> -> vector<16x32xf32>
    %711 = arith.addf %685, %710 : vector<16x32xf32>
    %712 = arith.addf %565, %711 : vector<16x32xf32>
    %c0_251 = arith.constant 0 : index
    %c0_252 = arith.constant 0 : index
    %c0_253 = arith.constant 0 : index
    %713 = vector.load %arg29[%c0_251, %c0_252, %c0_253] : memref<2x1x32xf32, #tpu.memory_space<vmem>>, vector<1x1x32xf32>
    %714 = vector.shape_cast %713 : vector<1x1x32xf32> to vector<1x32xf32>
    %715 = vector.broadcast %714 : vector<1x32xf32> to vector<16x32xf32>
    %716 = arith.addf %712, %715 : vector<16x32xf32>
    %717 = vector.extract_strided_slice %418 {offsets = [2, 0], sizes = [1, 32], strides = [1, 1]} : vector<3x32xf32> to vector<1x32xf32>
    %718 = vector.extract_strided_slice %420 {offsets = [2, 0], sizes = [1, 32], strides = [1, 1]} : vector<3x32xf32> to vector<1x32xf32>
    %cst_254 = arith.constant dense<0.000000e+00> : vector<16xf32>
    %719 = vector.multi_reduction <add>, %716, %cst_254 [1] : vector<16x32xf32> to vector<16xf32>
    %720 = vector.shape_cast %719 : vector<16xf32> to vector<16x1xf32>
    %cst_255 = arith.constant 3.200000e+01 : f32
    %721 = vector.broadcast %cst_255 : f32 to vector<16x1xf32>
    %722 = arith.divf %720, %721 : vector<16x1xf32>
    %723 = vector.broadcast %722 : vector<16x1xf32> to vector<16x32xf32>
    %724 = arith.subf %716, %723 : vector<16x32xf32>
    %725 = arith.mulf %724, %724 : vector<16x32xf32>
    %cst_256 = arith.constant dense<0.000000e+00> : vector<16xf32>
    %726 = vector.multi_reduction <add>, %725, %cst_256 [1] : vector<16x32xf32> to vector<16xf32>
    %727 = vector.shape_cast %726 : vector<16xf32> to vector<16x1xf32>
    %cst_257 = arith.constant 3.200000e+01 : f32
    %728 = vector.broadcast %cst_257 : f32 to vector<16x1xf32>
    %729 = arith.divf %727, %728 : vector<16x1xf32>
    %730 = vector.broadcast %722 : vector<16x1xf32> to vector<16x32xf32>
    %731 = arith.subf %716, %730 : vector<16x32xf32>
    %cst_258 = arith.constant 9.99999997E-7 : f32
    %732 = vector.broadcast %cst_258 : f32 to vector<16x1xf32>
    %733 = arith.addf %729, %732 : vector<16x1xf32>
    %734 = math.rsqrt %733 : vector<16x1xf32>
    %735 = vector.broadcast %734 : vector<16x1xf32> to vector<16x32xf32>
    %736 = arith.mulf %731, %735 : vector<16x32xf32>
    %737 = vector.broadcast %717 : vector<1x32xf32> to vector<16x32xf32>
    %738 = arith.mulf %736, %737 : vector<16x32xf32>
    %739 = vector.broadcast %718 : vector<1x32xf32> to vector<16x32xf32>
    %740 = arith.addf %738, %739 : vector<16x32xf32>
    %741 = arith.truncf %740 : vector<16x32xf32> to vector<16x32xbf16>
    %c0_259 = arith.constant 0 : index
    %c0_260 = arith.constant 0 : index
    %c0_261 = arith.constant 0 : index
    %742 = vector.load %arg30[%c0_259, %c0_260, %c0_261] : memref<2x32x64xbf16, #tpu.memory_space<vmem>>, vector<1x32x64xbf16>
    %743 = vector.shape_cast %742 : vector<1x32x64xbf16> to vector<32x64xbf16>
    %cst_262 = arith.constant dense<0.000000e+00> : vector<16x64xf32>
    %744 = tpu.matmul %741, %743, %cst_262 {dimension_numbers = #tpu.dot_dimension_numbers<[1], [0], [0], [1], [0, 0, 1, 1], [], []>} : vector<16x32xbf16>, vector<32x64xbf16>, vector<16x64xf32> -> vector<16x64xf32>
    %c0_263 = arith.constant 0 : index
    %c0_264 = arith.constant 0 : index
    %c0_265 = arith.constant 0 : index
    %745 = vector.load %arg31[%c0_263, %c0_264, %c0_265] : memref<2x1x64xf32, #tpu.memory_space<vmem>>, vector<1x1x64xf32>
    %746 = vector.shape_cast %745 : vector<1x1x64xf32> to vector<1x64xf32>
    %747 = vector.broadcast %746 : vector<1x64xf32> to vector<16x64xf32>
    %748 = arith.addf %744, %747 : vector<16x64xf32>
    %cst_266 = arith.constant 0.000000e+00 : f32
    %749 = vector.broadcast %cst_266 : f32 to vector<16x64xf32>
    %750 = arith.maximumf %748, %749 : vector<16x64xf32>
    %751 = arith.truncf %750 : vector<16x64xf32> to vector<16x64xbf16>
    %c0_267 = arith.constant 0 : index
    %c0_268 = arith.constant 0 : index
    %c0_269 = arith.constant 0 : index
    %752 = vector.load %arg32[%c0_267, %c0_268, %c0_269] : memref<2x64x32xbf16, #tpu.memory_space<vmem>>, vector<1x64x32xbf16>
    %753 = vector.shape_cast %752 : vector<1x64x32xbf16> to vector<64x32xbf16>
    %cst_270 = arith.constant dense<0.000000e+00> : vector<16x32xf32>
    %754 = tpu.matmul %751, %753, %cst_270 {dimension_numbers = #tpu.dot_dimension_numbers<[1], [0], [0], [1], [0, 0, 1, 1], [], []>} : vector<16x64xbf16>, vector<64x32xbf16>, vector<16x32xf32> -> vector<16x32xf32>
    %755 = arith.addf %716, %754 : vector<16x32xf32>
    %c0_271 = arith.constant 0 : index
    %c0_272 = arith.constant 0 : index
    %c0_273 = arith.constant 0 : index
    %756 = vector.load %arg33[%c0_271, %c0_272, %c0_273] : memref<2x1x32xf32, #tpu.memory_space<vmem>>, vector<1x1x32xf32>
    %757 = vector.shape_cast %756 : vector<1x1x32xf32> to vector<1x32xf32>
    %758 = vector.broadcast %757 : vector<1x32xf32> to vector<16x32xf32>
    %759 = arith.addf %755, %758 : vector<16x32xf32>
    %c1_274 = arith.constant 1 : index
    %c0_275 = arith.constant 0 : index
    %c0_276 = arith.constant 0 : index
    %760 = vector.load %arg18[%c1_274, %c0_275, %c0_276] : memref<2x3x32xf32, #tpu.memory_space<vmem>>, vector<1x3x32xf32>
    %761 = vector.shape_cast %760 : vector<1x3x32xf32> to vector<3x32xf32>
    %c1_277 = arith.constant 1 : index
    %c0_278 = arith.constant 0 : index
    %c0_279 = arith.constant 0 : index
    %762 = vector.load %arg19[%c1_277, %c0_278, %c0_279] : memref<2x3x32xf32, #tpu.memory_space<vmem>>, vector<1x3x32xf32>
    %763 = vector.shape_cast %762 : vector<1x3x32xf32> to vector<3x32xf32>
    %764 = vector.extract_strided_slice %761 {offsets = [0, 0], sizes = [1, 32], strides = [1, 1]} : vector<3x32xf32> to vector<1x32xf32>
    %765 = vector.extract_strided_slice %763 {offsets = [0, 0], sizes = [1, 32], strides = [1, 1]} : vector<3x32xf32> to vector<1x32xf32>
    %cst_280 = arith.constant dense<0.000000e+00> : vector<16xf32>
    %766 = vector.multi_reduction <add>, %759, %cst_280 [1] : vector<16x32xf32> to vector<16xf32>
    %767 = vector.shape_cast %766 : vector<16xf32> to vector<16x1xf32>
    %cst_281 = arith.constant 3.200000e+01 : f32
    %768 = vector.broadcast %cst_281 : f32 to vector<16x1xf32>
    %769 = arith.divf %767, %768 : vector<16x1xf32>
    %770 = vector.broadcast %769 : vector<16x1xf32> to vector<16x32xf32>
    %771 = arith.subf %759, %770 : vector<16x32xf32>
    %772 = arith.mulf %771, %771 : vector<16x32xf32>
    %cst_282 = arith.constant dense<0.000000e+00> : vector<16xf32>
    %773 = vector.multi_reduction <add>, %772, %cst_282 [1] : vector<16x32xf32> to vector<16xf32>
    %774 = vector.shape_cast %773 : vector<16xf32> to vector<16x1xf32>
    %cst_283 = arith.constant 3.200000e+01 : f32
    %775 = vector.broadcast %cst_283 : f32 to vector<16x1xf32>
    %776 = arith.divf %774, %775 : vector<16x1xf32>
    %777 = vector.broadcast %769 : vector<16x1xf32> to vector<16x32xf32>
    %778 = arith.subf %759, %777 : vector<16x32xf32>
    %cst_284 = arith.constant 9.99999997E-7 : f32
    %779 = vector.broadcast %cst_284 : f32 to vector<16x1xf32>
    %780 = arith.addf %776, %779 : vector<16x1xf32>
    %781 = math.rsqrt %780 : vector<16x1xf32>
    %782 = vector.broadcast %781 : vector<16x1xf32> to vector<16x32xf32>
    %783 = arith.mulf %778, %782 : vector<16x32xf32>
    %784 = vector.broadcast %764 : vector<1x32xf32> to vector<16x32xf32>
    %785 = arith.mulf %783, %784 : vector<16x32xf32>
    %786 = vector.broadcast %765 : vector<1x32xf32> to vector<16x32xf32>
    %787 = arith.addf %785, %786 : vector<16x32xf32>
    %788 = arith.truncf %787 : vector<16x32xf32> to vector<16x32xbf16>
    %c1_285 = arith.constant 1 : index
    %c0_286 = arith.constant 0 : index
    %c0_287 = arith.constant 0 : index
    %789 = vector.load %arg20[%c1_285, %c0_286, %c0_287] : memref<2x32x96xbf16, #tpu.memory_space<vmem>>, vector<1x32x96xbf16>
    %790 = vector.shape_cast %789 : vector<1x32x96xbf16> to vector<32x96xbf16>
    %cst_288 = arith.constant dense<0.000000e+00> : vector<16x96xf32>
    %791 = tpu.matmul %788, %790, %cst_288 {dimension_numbers = #tpu.dot_dimension_numbers<[1], [0], [0], [1], [0, 0, 1, 1], [], []>} : vector<16x32xbf16>, vector<32x96xbf16>, vector<16x96xf32> -> vector<16x96xf32>
    %c1_289 = arith.constant 1 : index
    %c0_290 = arith.constant 0 : index
    %c0_291 = arith.constant 0 : index
    %792 = vector.load %arg21[%c1_289, %c0_290, %c0_291] : memref<2x1x96xf32, #tpu.memory_space<vmem>>, vector<1x1x96xf32>
    %793 = vector.shape_cast %792 : vector<1x1x96xf32> to vector<1x96xf32>
    %794 = vector.broadcast %793 : vector<1x96xf32> to vector<16x96xf32>
    %795 = arith.addf %791, %794 : vector<16x96xf32>
    %796 = vector.extract_strided_slice %795 {offsets = [0, 0], sizes = [16, 32], strides = [1, 1]} : vector<16x96xf32> to vector<16x32xf32>
    %797 = vector.extract_strided_slice %795 {offsets = [0, 32], sizes = [16, 32], strides = [1, 1]} : vector<16x96xf32> to vector<16x32xf32>
    %798 = vector.extract_strided_slice %795 {offsets = [0, 64], sizes = [16, 32], strides = [1, 1]} : vector<16x96xf32> to vector<16x32xf32>
    %c1_292 = arith.constant 1 : index
    %c0_293 = arith.constant 0 : index
    %c0_294 = arith.constant 0 : index
    %799 = vector.load %arg22[%c1_292, %c0_293, %c0_294] : memref<2x32x32xbf16, #tpu.memory_space<vmem>>, vector<1x32x32xbf16>
    %800 = vector.shape_cast %799 : vector<1x32x32xbf16> to vector<32x32xbf16>
    %801 = vector.extract_strided_slice %796 {offsets = [0, 0], sizes = [16, 8], strides = [1, 1]} : vector<16x32xf32> to vector<16x8xf32>
    %802 = arith.truncf %801 : vector<16x8xf32> to vector<16x8xbf16>
    %803 = vector.extract_strided_slice %797 {offsets = [0, 0], sizes = [16, 8], strides = [1, 1]} : vector<16x32xf32> to vector<16x8xf32>
    %804 = arith.truncf %803 : vector<16x8xf32> to vector<16x8xbf16>
    %805 = vector.extract_strided_slice %798 {offsets = [0, 0], sizes = [16, 8], strides = [1, 1]} : vector<16x32xf32> to vector<16x8xf32>
    %806 = arith.truncf %805 : vector<16x8xf32> to vector<16x8xbf16>
    %cst_295 = arith.constant dense<0.000000e+00> : vector<16x16xf32>
    %807 = tpu.matmul %802, %804, %cst_295 {dimension_numbers = #tpu.dot_dimension_numbers<[1], [1], [0], [0], [0, 0, 1, 0], [], []>} : vector<16x8xbf16>, vector<16x8xbf16>, vector<16x16xf32> -> vector<16x16xf32>
    %808 = arith.addf %807, %1 : vector<16x16xf32>
    %cst_296 = arith.constant dense<0xFF800000> : vector<16xf32>
    %809 = vector.multi_reduction <maximumf>, %808, %cst_296 [1] : vector<16x16xf32> to vector<16xf32>
    %810 = vector.shape_cast %809 : vector<16xf32> to vector<16x1xf32>
    %811 = vector.broadcast %810 : vector<16x1xf32> to vector<16x16xf32>
    %812 = arith.subf %808, %811 : vector<16x16xf32>
    %813 = math.exp %812 : vector<16x16xf32>
    %cst_297 = arith.constant dense<0.000000e+00> : vector<16xf32>
    %814 = vector.multi_reduction <add>, %813, %cst_297 [1] : vector<16x16xf32> to vector<16xf32>
    %815 = vector.shape_cast %814 : vector<16xf32> to vector<16x1xf32>
    %cst_298 = arith.constant 9.99999997E-7 : f32
    %816 = vector.broadcast %cst_298 : f32 to vector<16x1xf32>
    %817 = arith.maximumf %815, %816 : vector<16x1xf32>
    %818 = tpu.reciprocal %817 {approx = true} : vector<16x1xf32> -> vector<16x1xf32>
    %819 = vector.broadcast %818 : vector<16x1xf32> to vector<16x16xf32>
    %820 = arith.mulf %813, %819 : vector<16x16xf32>
    %821 = arith.truncf %820 : vector<16x16xf32> to vector<16x16xbf16>
    %cst_299 = arith.constant dense<0.000000e+00> : vector<16x8xf32>
    %822 = tpu.matmul %821, %806, %cst_299 {dimension_numbers = #tpu.dot_dimension_numbers<[1], [0], [0], [1], [0, 0, 1, 1], [], []>} : vector<16x16xbf16>, vector<16x8xbf16>, vector<16x8xf32> -> vector<16x8xf32>
    %823 = arith.truncf %822 : vector<16x8xf32> to vector<16x8xbf16>
    %824 = vector.extract_strided_slice %800 {offsets = [0, 0], sizes = [8, 32], strides = [1, 1]} : vector<32x32xbf16> to vector<8x32xbf16>
    %cst_300 = arith.constant dense<0.000000e+00> : vector<16x32xf32>
    %825 = tpu.matmul %823, %824, %cst_300 {dimension_numbers = #tpu.dot_dimension_numbers<[1], [0], [0], [1], [0, 0, 1, 1], [], []>} : vector<16x8xbf16>, vector<8x32xbf16>, vector<16x32xf32> -> vector<16x32xf32>
    %826 = vector.extract_strided_slice %796 {offsets = [0, 8], sizes = [16, 8], strides = [1, 1]} : vector<16x32xf32> to vector<16x8xf32>
    %827 = arith.truncf %826 : vector<16x8xf32> to vector<16x8xbf16>
    %828 = vector.extract_strided_slice %797 {offsets = [0, 8], sizes = [16, 8], strides = [1, 1]} : vector<16x32xf32> to vector<16x8xf32>
    %829 = arith.truncf %828 : vector<16x8xf32> to vector<16x8xbf16>
    %830 = vector.extract_strided_slice %798 {offsets = [0, 8], sizes = [16, 8], strides = [1, 1]} : vector<16x32xf32> to vector<16x8xf32>
    %831 = arith.truncf %830 : vector<16x8xf32> to vector<16x8xbf16>
    %cst_301 = arith.constant dense<0.000000e+00> : vector<16x16xf32>
    %832 = tpu.matmul %827, %829, %cst_301 {dimension_numbers = #tpu.dot_dimension_numbers<[1], [1], [0], [0], [0, 0, 1, 0], [], []>} : vector<16x8xbf16>, vector<16x8xbf16>, vector<16x16xf32> -> vector<16x16xf32>
    %833 = arith.addf %832, %1 : vector<16x16xf32>
    %cst_302 = arith.constant dense<0xFF800000> : vector<16xf32>
    %834 = vector.multi_reduction <maximumf>, %833, %cst_302 [1] : vector<16x16xf32> to vector<16xf32>
    %835 = vector.shape_cast %834 : vector<16xf32> to vector<16x1xf32>
    %836 = vector.broadcast %835 : vector<16x1xf32> to vector<16x16xf32>
    %837 = arith.subf %833, %836 : vector<16x16xf32>
    %838 = math.exp %837 : vector<16x16xf32>
    %cst_303 = arith.constant dense<0.000000e+00> : vector<16xf32>
    %839 = vector.multi_reduction <add>, %838, %cst_303 [1] : vector<16x16xf32> to vector<16xf32>
    %840 = vector.shape_cast %839 : vector<16xf32> to vector<16x1xf32>
    %cst_304 = arith.constant 9.99999997E-7 : f32
    %841 = vector.broadcast %cst_304 : f32 to vector<16x1xf32>
    %842 = arith.maximumf %840, %841 : vector<16x1xf32>
    %843 = tpu.reciprocal %842 {approx = true} : vector<16x1xf32> -> vector<16x1xf32>
    %844 = vector.broadcast %843 : vector<16x1xf32> to vector<16x16xf32>
    %845 = arith.mulf %838, %844 : vector<16x16xf32>
    %846 = arith.truncf %845 : vector<16x16xf32> to vector<16x16xbf16>
    %cst_305 = arith.constant dense<0.000000e+00> : vector<16x8xf32>
    %847 = tpu.matmul %846, %831, %cst_305 {dimension_numbers = #tpu.dot_dimension_numbers<[1], [0], [0], [1], [0, 0, 1, 1], [], []>} : vector<16x16xbf16>, vector<16x8xbf16>, vector<16x8xf32> -> vector<16x8xf32>
    %848 = arith.truncf %847 : vector<16x8xf32> to vector<16x8xbf16>
    %849 = vector.extract_strided_slice %800 {offsets = [8, 0], sizes = [8, 32], strides = [1, 1]} : vector<32x32xbf16> to vector<8x32xbf16>
    %cst_306 = arith.constant dense<0.000000e+00> : vector<16x32xf32>
    %850 = tpu.matmul %848, %849, %cst_306 {dimension_numbers = #tpu.dot_dimension_numbers<[1], [0], [0], [1], [0, 0, 1, 1], [], []>} : vector<16x8xbf16>, vector<8x32xbf16>, vector<16x32xf32> -> vector<16x32xf32>
    %851 = arith.addf %825, %850 : vector<16x32xf32>
    %852 = vector.extract_strided_slice %796 {offsets = [0, 16], sizes = [16, 8], strides = [1, 1]} : vector<16x32xf32> to vector<16x8xf32>
    %853 = arith.truncf %852 : vector<16x8xf32> to vector<16x8xbf16>
    %854 = vector.extract_strided_slice %797 {offsets = [0, 16], sizes = [16, 8], strides = [1, 1]} : vector<16x32xf32> to vector<16x8xf32>
    %855 = arith.truncf %854 : vector<16x8xf32> to vector<16x8xbf16>
    %856 = vector.extract_strided_slice %798 {offsets = [0, 16], sizes = [16, 8], strides = [1, 1]} : vector<16x32xf32> to vector<16x8xf32>
    %857 = arith.truncf %856 : vector<16x8xf32> to vector<16x8xbf16>
    %cst_307 = arith.constant dense<0.000000e+00> : vector<16x16xf32>
    %858 = tpu.matmul %853, %855, %cst_307 {dimension_numbers = #tpu.dot_dimension_numbers<[1], [1], [0], [0], [0, 0, 1, 0], [], []>} : vector<16x8xbf16>, vector<16x8xbf16>, vector<16x16xf32> -> vector<16x16xf32>
    %859 = arith.addf %858, %1 : vector<16x16xf32>
    %cst_308 = arith.constant dense<0xFF800000> : vector<16xf32>
    %860 = vector.multi_reduction <maximumf>, %859, %cst_308 [1] : vector<16x16xf32> to vector<16xf32>
    %861 = vector.shape_cast %860 : vector<16xf32> to vector<16x1xf32>
    %862 = vector.broadcast %861 : vector<16x1xf32> to vector<16x16xf32>
    %863 = arith.subf %859, %862 : vector<16x16xf32>
    %864 = math.exp %863 : vector<16x16xf32>
    %cst_309 = arith.constant dense<0.000000e+00> : vector<16xf32>
    %865 = vector.multi_reduction <add>, %864, %cst_309 [1] : vector<16x16xf32> to vector<16xf32>
    %866 = vector.shape_cast %865 : vector<16xf32> to vector<16x1xf32>
    %cst_310 = arith.constant 9.99999997E-7 : f32
    %867 = vector.broadcast %cst_310 : f32 to vector<16x1xf32>
    %868 = arith.maximumf %866, %867 : vector<16x1xf32>
    %869 = tpu.reciprocal %868 {approx = true} : vector<16x1xf32> -> vector<16x1xf32>
    %870 = vector.broadcast %869 : vector<16x1xf32> to vector<16x16xf32>
    %871 = arith.mulf %864, %870 : vector<16x16xf32>
    %872 = arith.truncf %871 : vector<16x16xf32> to vector<16x16xbf16>
    %cst_311 = arith.constant dense<0.000000e+00> : vector<16x8xf32>
    %873 = tpu.matmul %872, %857, %cst_311 {dimension_numbers = #tpu.dot_dimension_numbers<[1], [0], [0], [1], [0, 0, 1, 1], [], []>} : vector<16x16xbf16>, vector<16x8xbf16>, vector<16x8xf32> -> vector<16x8xf32>
    %874 = arith.truncf %873 : vector<16x8xf32> to vector<16x8xbf16>
    %875 = vector.extract_strided_slice %800 {offsets = [16, 0], sizes = [8, 32], strides = [1, 1]} : vector<32x32xbf16> to vector<8x32xbf16>
    %cst_312 = arith.constant dense<0.000000e+00> : vector<16x32xf32>
    %876 = tpu.matmul %874, %875, %cst_312 {dimension_numbers = #tpu.dot_dimension_numbers<[1], [0], [0], [1], [0, 0, 1, 1], [], []>} : vector<16x8xbf16>, vector<8x32xbf16>, vector<16x32xf32> -> vector<16x32xf32>
    %877 = arith.addf %851, %876 : vector<16x32xf32>
    %878 = vector.extract_strided_slice %796 {offsets = [0, 24], sizes = [16, 8], strides = [1, 1]} : vector<16x32xf32> to vector<16x8xf32>
    %879 = arith.truncf %878 : vector<16x8xf32> to vector<16x8xbf16>
    %880 = vector.extract_strided_slice %797 {offsets = [0, 24], sizes = [16, 8], strides = [1, 1]} : vector<16x32xf32> to vector<16x8xf32>
    %881 = arith.truncf %880 : vector<16x8xf32> to vector<16x8xbf16>
    %882 = vector.extract_strided_slice %798 {offsets = [0, 24], sizes = [16, 8], strides = [1, 1]} : vector<16x32xf32> to vector<16x8xf32>
    %883 = arith.truncf %882 : vector<16x8xf32> to vector<16x8xbf16>
    %cst_313 = arith.constant dense<0.000000e+00> : vector<16x16xf32>
    %884 = tpu.matmul %879, %881, %cst_313 {dimension_numbers = #tpu.dot_dimension_numbers<[1], [1], [0], [0], [0, 0, 1, 0], [], []>} : vector<16x8xbf16>, vector<16x8xbf16>, vector<16x16xf32> -> vector<16x16xf32>
    %885 = arith.addf %884, %1 : vector<16x16xf32>
    %cst_314 = arith.constant dense<0xFF800000> : vector<16xf32>
    %886 = vector.multi_reduction <maximumf>, %885, %cst_314 [1] : vector<16x16xf32> to vector<16xf32>
    %887 = vector.shape_cast %886 : vector<16xf32> to vector<16x1xf32>
    %888 = vector.broadcast %887 : vector<16x1xf32> to vector<16x16xf32>
    %889 = arith.subf %885, %888 : vector<16x16xf32>
    %890 = math.exp %889 : vector<16x16xf32>
    %cst_315 = arith.constant dense<0.000000e+00> : vector<16xf32>
    %891 = vector.multi_reduction <add>, %890, %cst_315 [1] : vector<16x16xf32> to vector<16xf32>
    %892 = vector.shape_cast %891 : vector<16xf32> to vector<16x1xf32>
    %cst_316 = arith.constant 9.99999997E-7 : f32
    %893 = vector.broadcast %cst_316 : f32 to vector<16x1xf32>
    %894 = arith.maximumf %892, %893 : vector<16x1xf32>
    %895 = tpu.reciprocal %894 {approx = true} : vector<16x1xf32> -> vector<16x1xf32>
    %896 = vector.broadcast %895 : vector<16x1xf32> to vector<16x16xf32>
    %897 = arith.mulf %890, %896 : vector<16x16xf32>
    %898 = arith.truncf %897 : vector<16x16xf32> to vector<16x16xbf16>
    %cst_317 = arith.constant dense<0.000000e+00> : vector<16x8xf32>
    %899 = tpu.matmul %898, %883, %cst_317 {dimension_numbers = #tpu.dot_dimension_numbers<[1], [0], [0], [1], [0, 0, 1, 1], [], []>} : vector<16x16xbf16>, vector<16x8xbf16>, vector<16x8xf32> -> vector<16x8xf32>
    %900 = arith.truncf %899 : vector<16x8xf32> to vector<16x8xbf16>
    %901 = vector.extract_strided_slice %800 {offsets = [24, 0], sizes = [8, 32], strides = [1, 1]} : vector<32x32xbf16> to vector<8x32xbf16>
    %cst_318 = arith.constant dense<0.000000e+00> : vector<16x32xf32>
    %902 = tpu.matmul %900, %901, %cst_318 {dimension_numbers = #tpu.dot_dimension_numbers<[1], [0], [0], [1], [0, 0, 1, 1], [], []>} : vector<16x8xbf16>, vector<8x32xbf16>, vector<16x32xf32> -> vector<16x32xf32>
    %903 = arith.addf %877, %902 : vector<16x32xf32>
    %904 = arith.addf %759, %903 : vector<16x32xf32>
    %c1_319 = arith.constant 1 : index
    %c0_320 = arith.constant 0 : index
    %c0_321 = arith.constant 0 : index
    %905 = vector.load %arg23[%c1_319, %c0_320, %c0_321] : memref<2x1x32xf32, #tpu.memory_space<vmem>>, vector<1x1x32xf32>
    %906 = vector.shape_cast %905 : vector<1x1x32xf32> to vector<1x32xf32>
    %907 = vector.broadcast %906 : vector<1x32xf32> to vector<16x32xf32>
    %908 = arith.addf %904, %907 : vector<16x32xf32>
    %909 = vector.extract_strided_slice %761 {offsets = [1, 0], sizes = [1, 32], strides = [1, 1]} : vector<3x32xf32> to vector<1x32xf32>
    %910 = vector.extract_strided_slice %763 {offsets = [1, 0], sizes = [1, 32], strides = [1, 1]} : vector<3x32xf32> to vector<1x32xf32>
    %cst_322 = arith.constant dense<0.000000e+00> : vector<16xf32>
    %911 = vector.multi_reduction <add>, %908, %cst_322 [1] : vector<16x32xf32> to vector<16xf32>
    %912 = vector.shape_cast %911 : vector<16xf32> to vector<16x1xf32>
    %cst_323 = arith.constant 3.200000e+01 : f32
    %913 = vector.broadcast %cst_323 : f32 to vector<16x1xf32>
    %914 = arith.divf %912, %913 : vector<16x1xf32>
    %915 = vector.broadcast %914 : vector<16x1xf32> to vector<16x32xf32>
    %916 = arith.subf %908, %915 : vector<16x32xf32>
    %917 = arith.mulf %916, %916 : vector<16x32xf32>
    %cst_324 = arith.constant dense<0.000000e+00> : vector<16xf32>
    %918 = vector.multi_reduction <add>, %917, %cst_324 [1] : vector<16x32xf32> to vector<16xf32>
    %919 = vector.shape_cast %918 : vector<16xf32> to vector<16x1xf32>
    %cst_325 = arith.constant 3.200000e+01 : f32
    %920 = vector.broadcast %cst_325 : f32 to vector<16x1xf32>
    %921 = arith.divf %919, %920 : vector<16x1xf32>
    %922 = vector.broadcast %914 : vector<16x1xf32> to vector<16x32xf32>
    %923 = arith.subf %908, %922 : vector<16x32xf32>
    %cst_326 = arith.constant 9.99999997E-7 : f32
    %924 = vector.broadcast %cst_326 : f32 to vector<16x1xf32>
    %925 = arith.addf %921, %924 : vector<16x1xf32>
    %926 = math.rsqrt %925 : vector<16x1xf32>
    %927 = vector.broadcast %926 : vector<16x1xf32> to vector<16x32xf32>
    %928 = arith.mulf %923, %927 : vector<16x32xf32>
    %929 = vector.broadcast %909 : vector<1x32xf32> to vector<16x32xf32>
    %930 = arith.mulf %928, %929 : vector<16x32xf32>
    %931 = vector.broadcast %910 : vector<1x32xf32> to vector<16x32xf32>
    %932 = arith.addf %930, %931 : vector<16x32xf32>
    %933 = arith.truncf %932 : vector<16x32xf32> to vector<16x32xbf16>
    %c1_327 = arith.constant 1 : index
    %c0_328 = arith.constant 0 : index
    %c0_329 = arith.constant 0 : index
    %934 = vector.load %arg24[%c1_327, %c0_328, %c0_329] : memref<2x32x32xbf16, #tpu.memory_space<vmem>>, vector<1x32x32xbf16>
    %935 = vector.shape_cast %934 : vector<1x32x32xbf16> to vector<32x32xbf16>
    %cst_330 = arith.constant dense<0.000000e+00> : vector<16x32xf32>
    %936 = tpu.matmul %933, %935, %cst_330 {dimension_numbers = #tpu.dot_dimension_numbers<[1], [0], [0], [1], [0, 0, 1, 1], [], []>} : vector<16x32xbf16>, vector<32x32xbf16>, vector<16x32xf32> -> vector<16x32xf32>
    %c1_331 = arith.constant 1 : index
    %c0_332 = arith.constant 0 : index
    %c0_333 = arith.constant 0 : index
    %937 = vector.load %arg25[%c1_331, %c0_332, %c0_333] : memref<2x1x32xf32, #tpu.memory_space<vmem>>, vector<1x1x32xf32>
    %938 = vector.shape_cast %937 : vector<1x1x32xf32> to vector<1x32xf32>
    %939 = vector.broadcast %938 : vector<1x32xf32> to vector<16x32xf32>
    %940 = arith.addf %936, %939 : vector<16x32xf32>
    %c1_334 = arith.constant 1 : index
    %c0_335 = arith.constant 0 : index
    %c0_336 = arith.constant 0 : index
    %941 = vector.load %arg26[%c1_334, %c0_335, %c0_336] : memref<2x32x64xbf16, #tpu.memory_space<vmem>>, vector<1x32x64xbf16>
    %942 = vector.shape_cast %941 : vector<1x32x64xbf16> to vector<32x64xbf16>
    %cst_337 = arith.constant dense<0.000000e+00> : vector<16x64xf32>
    %943 = tpu.matmul %415, %942, %cst_337 {dimension_numbers = #tpu.dot_dimension_numbers<[1], [0], [0], [1], [0, 0, 1, 1], [], []>} : vector<16x32xbf16>, vector<32x64xbf16>, vector<16x64xf32> -> vector<16x64xf32>
    %c1_338 = arith.constant 1 : index
    %c0_339 = arith.constant 0 : index
    %c0_340 = arith.constant 0 : index
    %944 = vector.load %arg27[%c1_338, %c0_339, %c0_340] : memref<2x1x64xf32, #tpu.memory_space<vmem>>, vector<1x1x64xf32>
    %945 = vector.shape_cast %944 : vector<1x1x64xf32> to vector<1x64xf32>
    %946 = vector.broadcast %945 : vector<1x64xf32> to vector<16x64xf32>
    %947 = arith.addf %943, %946 : vector<16x64xf32>
    %948 = vector.extract_strided_slice %947 {offsets = [0, 0], sizes = [16, 32], strides = [1, 1]} : vector<16x64xf32> to vector<16x32xf32>
    %949 = vector.extract_strided_slice %947 {offsets = [0, 32], sizes = [16, 32], strides = [1, 1]} : vector<16x64xf32> to vector<16x32xf32>
    %c1_341 = arith.constant 1 : index
    %c0_342 = arith.constant 0 : index
    %c0_343 = arith.constant 0 : index
    %950 = vector.load %arg28[%c1_341, %c0_342, %c0_343] : memref<2x32x32xbf16, #tpu.memory_space<vmem>>, vector<1x32x32xbf16>
    %951 = vector.shape_cast %950 : vector<1x32x32xbf16> to vector<32x32xbf16>
    %952 = vector.extract_strided_slice %940 {offsets = [0, 0], sizes = [16, 8], strides = [1, 1]} : vector<16x32xf32> to vector<16x8xf32>
    %953 = arith.truncf %952 : vector<16x8xf32> to vector<16x8xbf16>
    %954 = vector.extract_strided_slice %948 {offsets = [0, 0], sizes = [16, 8], strides = [1, 1]} : vector<16x32xf32> to vector<16x8xf32>
    %955 = arith.truncf %954 : vector<16x8xf32> to vector<16x8xbf16>
    %956 = vector.extract_strided_slice %949 {offsets = [0, 0], sizes = [16, 8], strides = [1, 1]} : vector<16x32xf32> to vector<16x8xf32>
    %957 = arith.truncf %956 : vector<16x8xf32> to vector<16x8xbf16>
    %cst_344 = arith.constant dense<0.000000e+00> : vector<16x16xf32>
    %958 = tpu.matmul %953, %955, %cst_344 {dimension_numbers = #tpu.dot_dimension_numbers<[1], [1], [0], [0], [0, 0, 1, 0], [], []>} : vector<16x8xbf16>, vector<16x8xbf16>, vector<16x16xf32> -> vector<16x16xf32>
    %959 = arith.addf %958, %2 : vector<16x16xf32>
    %cst_345 = arith.constant dense<0xFF800000> : vector<16xf32>
    %960 = vector.multi_reduction <maximumf>, %959, %cst_345 [1] : vector<16x16xf32> to vector<16xf32>
    %961 = vector.shape_cast %960 : vector<16xf32> to vector<16x1xf32>
    %962 = vector.broadcast %961 : vector<16x1xf32> to vector<16x16xf32>
    %963 = arith.subf %959, %962 : vector<16x16xf32>
    %964 = math.exp %963 : vector<16x16xf32>
    %cst_346 = arith.constant dense<0.000000e+00> : vector<16xf32>
    %965 = vector.multi_reduction <add>, %964, %cst_346 [1] : vector<16x16xf32> to vector<16xf32>
    %966 = vector.shape_cast %965 : vector<16xf32> to vector<16x1xf32>
    %cst_347 = arith.constant 9.99999997E-7 : f32
    %967 = vector.broadcast %cst_347 : f32 to vector<16x1xf32>
    %968 = arith.maximumf %966, %967 : vector<16x1xf32>
    %969 = tpu.reciprocal %968 {approx = true} : vector<16x1xf32> -> vector<16x1xf32>
    %970 = vector.broadcast %969 : vector<16x1xf32> to vector<16x16xf32>
    %971 = arith.mulf %964, %970 : vector<16x16xf32>
    %972 = arith.truncf %971 : vector<16x16xf32> to vector<16x16xbf16>
    %cst_348 = arith.constant dense<0.000000e+00> : vector<16x8xf32>
    %973 = tpu.matmul %972, %957, %cst_348 {dimension_numbers = #tpu.dot_dimension_numbers<[1], [0], [0], [1], [0, 0, 1, 1], [], []>} : vector<16x16xbf16>, vector<16x8xbf16>, vector<16x8xf32> -> vector<16x8xf32>
    %974 = arith.truncf %973 : vector<16x8xf32> to vector<16x8xbf16>
    %975 = vector.extract_strided_slice %951 {offsets = [0, 0], sizes = [8, 32], strides = [1, 1]} : vector<32x32xbf16> to vector<8x32xbf16>
    %cst_349 = arith.constant dense<0.000000e+00> : vector<16x32xf32>
    %976 = tpu.matmul %974, %975, %cst_349 {dimension_numbers = #tpu.dot_dimension_numbers<[1], [0], [0], [1], [0, 0, 1, 1], [], []>} : vector<16x8xbf16>, vector<8x32xbf16>, vector<16x32xf32> -> vector<16x32xf32>
    %977 = vector.extract_strided_slice %940 {offsets = [0, 8], sizes = [16, 8], strides = [1, 1]} : vector<16x32xf32> to vector<16x8xf32>
    %978 = arith.truncf %977 : vector<16x8xf32> to vector<16x8xbf16>
    %979 = vector.extract_strided_slice %948 {offsets = [0, 8], sizes = [16, 8], strides = [1, 1]} : vector<16x32xf32> to vector<16x8xf32>
    %980 = arith.truncf %979 : vector<16x8xf32> to vector<16x8xbf16>
    %981 = vector.extract_strided_slice %949 {offsets = [0, 8], sizes = [16, 8], strides = [1, 1]} : vector<16x32xf32> to vector<16x8xf32>
    %982 = arith.truncf %981 : vector<16x8xf32> to vector<16x8xbf16>
    %cst_350 = arith.constant dense<0.000000e+00> : vector<16x16xf32>
    %983 = tpu.matmul %978, %980, %cst_350 {dimension_numbers = #tpu.dot_dimension_numbers<[1], [1], [0], [0], [0, 0, 1, 0], [], []>} : vector<16x8xbf16>, vector<16x8xbf16>, vector<16x16xf32> -> vector<16x16xf32>
    %984 = arith.addf %983, %2 : vector<16x16xf32>
    %cst_351 = arith.constant dense<0xFF800000> : vector<16xf32>
    %985 = vector.multi_reduction <maximumf>, %984, %cst_351 [1] : vector<16x16xf32> to vector<16xf32>
    %986 = vector.shape_cast %985 : vector<16xf32> to vector<16x1xf32>
    %987 = vector.broadcast %986 : vector<16x1xf32> to vector<16x16xf32>
    %988 = arith.subf %984, %987 : vector<16x16xf32>
    %989 = math.exp %988 : vector<16x16xf32>
    %cst_352 = arith.constant dense<0.000000e+00> : vector<16xf32>
    %990 = vector.multi_reduction <add>, %989, %cst_352 [1] : vector<16x16xf32> to vector<16xf32>
    %991 = vector.shape_cast %990 : vector<16xf32> to vector<16x1xf32>
    %cst_353 = arith.constant 9.99999997E-7 : f32
    %992 = vector.broadcast %cst_353 : f32 to vector<16x1xf32>
    %993 = arith.maximumf %991, %992 : vector<16x1xf32>
    %994 = tpu.reciprocal %993 {approx = true} : vector<16x1xf32> -> vector<16x1xf32>
    %995 = vector.broadcast %994 : vector<16x1xf32> to vector<16x16xf32>
    %996 = arith.mulf %989, %995 : vector<16x16xf32>
    %997 = arith.truncf %996 : vector<16x16xf32> to vector<16x16xbf16>
    %cst_354 = arith.constant dense<0.000000e+00> : vector<16x8xf32>
    %998 = tpu.matmul %997, %982, %cst_354 {dimension_numbers = #tpu.dot_dimension_numbers<[1], [0], [0], [1], [0, 0, 1, 1], [], []>} : vector<16x16xbf16>, vector<16x8xbf16>, vector<16x8xf32> -> vector<16x8xf32>
    %999 = arith.truncf %998 : vector<16x8xf32> to vector<16x8xbf16>
    %1000 = vector.extract_strided_slice %951 {offsets = [8, 0], sizes = [8, 32], strides = [1, 1]} : vector<32x32xbf16> to vector<8x32xbf16>
    %cst_355 = arith.constant dense<0.000000e+00> : vector<16x32xf32>
    %1001 = tpu.matmul %999, %1000, %cst_355 {dimension_numbers = #tpu.dot_dimension_numbers<[1], [0], [0], [1], [0, 0, 1, 1], [], []>} : vector<16x8xbf16>, vector<8x32xbf16>, vector<16x32xf32> -> vector<16x32xf32>
    %1002 = arith.addf %976, %1001 : vector<16x32xf32>
    %1003 = vector.extract_strided_slice %940 {offsets = [0, 16], sizes = [16, 8], strides = [1, 1]} : vector<16x32xf32> to vector<16x8xf32>
    %1004 = arith.truncf %1003 : vector<16x8xf32> to vector<16x8xbf16>
    %1005 = vector.extract_strided_slice %948 {offsets = [0, 16], sizes = [16, 8], strides = [1, 1]} : vector<16x32xf32> to vector<16x8xf32>
    %1006 = arith.truncf %1005 : vector<16x8xf32> to vector<16x8xbf16>
    %1007 = vector.extract_strided_slice %949 {offsets = [0, 16], sizes = [16, 8], strides = [1, 1]} : vector<16x32xf32> to vector<16x8xf32>
    %1008 = arith.truncf %1007 : vector<16x8xf32> to vector<16x8xbf16>
    %cst_356 = arith.constant dense<0.000000e+00> : vector<16x16xf32>
    %1009 = tpu.matmul %1004, %1006, %cst_356 {dimension_numbers = #tpu.dot_dimension_numbers<[1], [1], [0], [0], [0, 0, 1, 0], [], []>} : vector<16x8xbf16>, vector<16x8xbf16>, vector<16x16xf32> -> vector<16x16xf32>
    %1010 = arith.addf %1009, %2 : vector<16x16xf32>
    %cst_357 = arith.constant dense<0xFF800000> : vector<16xf32>
    %1011 = vector.multi_reduction <maximumf>, %1010, %cst_357 [1] : vector<16x16xf32> to vector<16xf32>
    %1012 = vector.shape_cast %1011 : vector<16xf32> to vector<16x1xf32>
    %1013 = vector.broadcast %1012 : vector<16x1xf32> to vector<16x16xf32>
    %1014 = arith.subf %1010, %1013 : vector<16x16xf32>
    %1015 = math.exp %1014 : vector<16x16xf32>
    %cst_358 = arith.constant dense<0.000000e+00> : vector<16xf32>
    %1016 = vector.multi_reduction <add>, %1015, %cst_358 [1] : vector<16x16xf32> to vector<16xf32>
    %1017 = vector.shape_cast %1016 : vector<16xf32> to vector<16x1xf32>
    %cst_359 = arith.constant 9.99999997E-7 : f32
    %1018 = vector.broadcast %cst_359 : f32 to vector<16x1xf32>
    %1019 = arith.maximumf %1017, %1018 : vector<16x1xf32>
    %1020 = tpu.reciprocal %1019 {approx = true} : vector<16x1xf32> -> vector<16x1xf32>
    %1021 = vector.broadcast %1020 : vector<16x1xf32> to vector<16x16xf32>
    %1022 = arith.mulf %1015, %1021 : vector<16x16xf32>
    %1023 = arith.truncf %1022 : vector<16x16xf32> to vector<16x16xbf16>
    %cst_360 = arith.constant dense<0.000000e+00> : vector<16x8xf32>
    %1024 = tpu.matmul %1023, %1008, %cst_360 {dimension_numbers = #tpu.dot_dimension_numbers<[1], [0], [0], [1], [0, 0, 1, 1], [], []>} : vector<16x16xbf16>, vector<16x8xbf16>, vector<16x8xf32> -> vector<16x8xf32>
    %1025 = arith.truncf %1024 : vector<16x8xf32> to vector<16x8xbf16>
    %1026 = vector.extract_strided_slice %951 {offsets = [16, 0], sizes = [8, 32], strides = [1, 1]} : vector<32x32xbf16> to vector<8x32xbf16>
    %cst_361 = arith.constant dense<0.000000e+00> : vector<16x32xf32>
    %1027 = tpu.matmul %1025, %1026, %cst_361 {dimension_numbers = #tpu.dot_dimension_numbers<[1], [0], [0], [1], [0, 0, 1, 1], [], []>} : vector<16x8xbf16>, vector<8x32xbf16>, vector<16x32xf32> -> vector<16x32xf32>
    %1028 = arith.addf %1002, %1027 : vector<16x32xf32>
    %1029 = vector.extract_strided_slice %940 {offsets = [0, 24], sizes = [16, 8], strides = [1, 1]} : vector<16x32xf32> to vector<16x8xf32>
    %1030 = arith.truncf %1029 : vector<16x8xf32> to vector<16x8xbf16>
    %1031 = vector.extract_strided_slice %948 {offsets = [0, 24], sizes = [16, 8], strides = [1, 1]} : vector<16x32xf32> to vector<16x8xf32>
    %1032 = arith.truncf %1031 : vector<16x8xf32> to vector<16x8xbf16>
    %1033 = vector.extract_strided_slice %949 {offsets = [0, 24], sizes = [16, 8], strides = [1, 1]} : vector<16x32xf32> to vector<16x8xf32>
    %1034 = arith.truncf %1033 : vector<16x8xf32> to vector<16x8xbf16>
    %cst_362 = arith.constant dense<0.000000e+00> : vector<16x16xf32>
    %1035 = tpu.matmul %1030, %1032, %cst_362 {dimension_numbers = #tpu.dot_dimension_numbers<[1], [1], [0], [0], [0, 0, 1, 0], [], []>} : vector<16x8xbf16>, vector<16x8xbf16>, vector<16x16xf32> -> vector<16x16xf32>
    %1036 = arith.addf %1035, %2 : vector<16x16xf32>
    %cst_363 = arith.constant dense<0xFF800000> : vector<16xf32>
    %1037 = vector.multi_reduction <maximumf>, %1036, %cst_363 [1] : vector<16x16xf32> to vector<16xf32>
    %1038 = vector.shape_cast %1037 : vector<16xf32> to vector<16x1xf32>
    %1039 = vector.broadcast %1038 : vector<16x1xf32> to vector<16x16xf32>
    %1040 = arith.subf %1036, %1039 : vector<16x16xf32>
    %1041 = math.exp %1040 : vector<16x16xf32>
    %cst_364 = arith.constant dense<0.000000e+00> : vector<16xf32>
    %1042 = vector.multi_reduction <add>, %1041, %cst_364 [1] : vector<16x16xf32> to vector<16xf32>
    %1043 = vector.shape_cast %1042 : vector<16xf32> to vector<16x1xf32>
    %cst_365 = arith.constant 9.99999997E-7 : f32
    %1044 = vector.broadcast %cst_365 : f32 to vector<16x1xf32>
    %1045 = arith.maximumf %1043, %1044 : vector<16x1xf32>
    %1046 = tpu.reciprocal %1045 {approx = true} : vector<16x1xf32> -> vector<16x1xf32>
    %1047 = vector.broadcast %1046 : vector<16x1xf32> to vector<16x16xf32>
    %1048 = arith.mulf %1041, %1047 : vector<16x16xf32>
    %1049 = arith.truncf %1048 : vector<16x16xf32> to vector<16x16xbf16>
    %cst_366 = arith.constant dense<0.000000e+00> : vector<16x8xf32>
    %1050 = tpu.matmul %1049, %1034, %cst_366 {dimension_numbers = #tpu.dot_dimension_numbers<[1], [0], [0], [1], [0, 0, 1, 1], [], []>} : vector<16x16xbf16>, vector<16x8xbf16>, vector<16x8xf32> -> vector<16x8xf32>
    %1051 = arith.truncf %1050 : vector<16x8xf32> to vector<16x8xbf16>
    %1052 = vector.extract_strided_slice %951 {offsets = [24, 0], sizes = [8, 32], strides = [1, 1]} : vector<32x32xbf16> to vector<8x32xbf16>
    %cst_367 = arith.constant dense<0.000000e+00> : vector<16x32xf32>
    %1053 = tpu.matmul %1051, %1052, %cst_367 {dimension_numbers = #tpu.dot_dimension_numbers<[1], [0], [0], [1], [0, 0, 1, 1], [], []>} : vector<16x8xbf16>, vector<8x32xbf16>, vector<16x32xf32> -> vector<16x32xf32>
    %1054 = arith.addf %1028, %1053 : vector<16x32xf32>
    %1055 = arith.addf %908, %1054 : vector<16x32xf32>
    %c1_368 = arith.constant 1 : index
    %c0_369 = arith.constant 0 : index
    %c0_370 = arith.constant 0 : index
    %1056 = vector.load %arg29[%c1_368, %c0_369, %c0_370] : memref<2x1x32xf32, #tpu.memory_space<vmem>>, vector<1x1x32xf32>
    %1057 = vector.shape_cast %1056 : vector<1x1x32xf32> to vector<1x32xf32>
    %1058 = vector.broadcast %1057 : vector<1x32xf32> to vector<16x32xf32>
    %1059 = arith.addf %1055, %1058 : vector<16x32xf32>
    %1060 = vector.extract_strided_slice %761 {offsets = [2, 0], sizes = [1, 32], strides = [1, 1]} : vector<3x32xf32> to vector<1x32xf32>
    %1061 = vector.extract_strided_slice %763 {offsets = [2, 0], sizes = [1, 32], strides = [1, 1]} : vector<3x32xf32> to vector<1x32xf32>
    %cst_371 = arith.constant dense<0.000000e+00> : vector<16xf32>
    %1062 = vector.multi_reduction <add>, %1059, %cst_371 [1] : vector<16x32xf32> to vector<16xf32>
    %1063 = vector.shape_cast %1062 : vector<16xf32> to vector<16x1xf32>
    %cst_372 = arith.constant 3.200000e+01 : f32
    %1064 = vector.broadcast %cst_372 : f32 to vector<16x1xf32>
    %1065 = arith.divf %1063, %1064 : vector<16x1xf32>
    %1066 = vector.broadcast %1065 : vector<16x1xf32> to vector<16x32xf32>
    %1067 = arith.subf %1059, %1066 : vector<16x32xf32>
    %1068 = arith.mulf %1067, %1067 : vector<16x32xf32>
    %cst_373 = arith.constant dense<0.000000e+00> : vector<16xf32>
    %1069 = vector.multi_reduction <add>, %1068, %cst_373 [1] : vector<16x32xf32> to vector<16xf32>
    %1070 = vector.shape_cast %1069 : vector<16xf32> to vector<16x1xf32>
    %cst_374 = arith.constant 3.200000e+01 : f32
    %1071 = vector.broadcast %cst_374 : f32 to vector<16x1xf32>
    %1072 = arith.divf %1070, %1071 : vector<16x1xf32>
    %1073 = vector.broadcast %1065 : vector<16x1xf32> to vector<16x32xf32>
    %1074 = arith.subf %1059, %1073 : vector<16x32xf32>
    %cst_375 = arith.constant 9.99999997E-7 : f32
    %1075 = vector.broadcast %cst_375 : f32 to vector<16x1xf32>
    %1076 = arith.addf %1072, %1075 : vector<16x1xf32>
    %1077 = math.rsqrt %1076 : vector<16x1xf32>
    %1078 = vector.broadcast %1077 : vector<16x1xf32> to vector<16x32xf32>
    %1079 = arith.mulf %1074, %1078 : vector<16x32xf32>
    %1080 = vector.broadcast %1060 : vector<1x32xf32> to vector<16x32xf32>
    %1081 = arith.mulf %1079, %1080 : vector<16x32xf32>
    %1082 = vector.broadcast %1061 : vector<1x32xf32> to vector<16x32xf32>
    %1083 = arith.addf %1081, %1082 : vector<16x32xf32>
    %1084 = arith.truncf %1083 : vector<16x32xf32> to vector<16x32xbf16>
    %c1_376 = arith.constant 1 : index
    %c0_377 = arith.constant 0 : index
    %c0_378 = arith.constant 0 : index
    %1085 = vector.load %arg30[%c1_376, %c0_377, %c0_378] : memref<2x32x64xbf16, #tpu.memory_space<vmem>>, vector<1x32x64xbf16>
    %1086 = vector.shape_cast %1085 : vector<1x32x64xbf16> to vector<32x64xbf16>
    %cst_379 = arith.constant dense<0.000000e+00> : vector<16x64xf32>
    %1087 = tpu.matmul %1084, %1086, %cst_379 {dimension_numbers = #tpu.dot_dimension_numbers<[1], [0], [0], [1], [0, 0, 1, 1], [], []>} : vector<16x32xbf16>, vector<32x64xbf16>, vector<16x64xf32> -> vector<16x64xf32>
    %c1_380 = arith.constant 1 : index
    %c0_381 = arith.constant 0 : index
    %c0_382 = arith.constant 0 : index
    %1088 = vector.load %arg31[%c1_380, %c0_381, %c0_382] : memref<2x1x64xf32, #tpu.memory_space<vmem>>, vector<1x1x64xf32>
    %1089 = vector.shape_cast %1088 : vector<1x1x64xf32> to vector<1x64xf32>
    %1090 = vector.broadcast %1089 : vector<1x64xf32> to vector<16x64xf32>
    %1091 = arith.addf %1087, %1090 : vector<16x64xf32>
    %cst_383 = arith.constant 0.000000e+00 : f32
    %1092 = vector.broadcast %cst_383 : f32 to vector<16x64xf32>
    %1093 = arith.maximumf %1091, %1092 : vector<16x64xf32>
    %1094 = arith.truncf %1093 : vector<16x64xf32> to vector<16x64xbf16>
    %c1_384 = arith.constant 1 : index
    %c0_385 = arith.constant 0 : index
    %c0_386 = arith.constant 0 : index
    %1095 = vector.load %arg32[%c1_384, %c0_385, %c0_386] : memref<2x64x32xbf16, #tpu.memory_space<vmem>>, vector<1x64x32xbf16>
    %1096 = vector.shape_cast %1095 : vector<1x64x32xbf16> to vector<64x32xbf16>
    %cst_387 = arith.constant dense<0.000000e+00> : vector<16x32xf32>
    %1097 = tpu.matmul %1094, %1096, %cst_387 {dimension_numbers = #tpu.dot_dimension_numbers<[1], [0], [0], [1], [0, 0, 1, 1], [], []>} : vector<16x64xbf16>, vector<64x32xbf16>, vector<16x32xf32> -> vector<16x32xf32>
    %1098 = arith.addf %1059, %1097 : vector<16x32xf32>
    %c1_388 = arith.constant 1 : index
    %c0_389 = arith.constant 0 : index
    %c0_390 = arith.constant 0 : index
    %1099 = vector.load %arg33[%c1_388, %c0_389, %c0_390] : memref<2x1x32xf32, #tpu.memory_space<vmem>>, vector<1x1x32xf32>
    %1100 = vector.shape_cast %1099 : vector<1x1x32xf32> to vector<1x32xf32>
    %1101 = vector.broadcast %1100 : vector<1x32xf32> to vector<16x32xf32>
    %1102 = arith.addf %1098, %1101 : vector<16x32xf32>
    %c0_391 = arith.constant 0 : index
    %c0_392 = arith.constant 0 : index
    %1103 = vector.load %arg34[%c0_391, %c0_392] : memref<1x32xf32, #tpu.memory_space<vmem>>, vector<1x32xf32>
    %c0_393 = arith.constant 0 : index
    %c0_394 = arith.constant 0 : index
    %1104 = vector.load %arg35[%c0_393, %c0_394] : memref<1x32xf32, #tpu.memory_space<vmem>>, vector<1x32xf32>
    %cst_395 = arith.constant dense<0.000000e+00> : vector<16xf32>
    %1105 = vector.multi_reduction <add>, %1102, %cst_395 [1] : vector<16x32xf32> to vector<16xf32>
    %1106 = vector.shape_cast %1105 : vector<16xf32> to vector<16x1xf32>
    %cst_396 = arith.constant 3.200000e+01 : f32
    %1107 = vector.broadcast %cst_396 : f32 to vector<16x1xf32>
    %1108 = arith.divf %1106, %1107 : vector<16x1xf32>
    %1109 = vector.broadcast %1108 : vector<16x1xf32> to vector<16x32xf32>
    %1110 = arith.subf %1102, %1109 : vector<16x32xf32>
    %1111 = arith.mulf %1110, %1110 : vector<16x32xf32>
    %cst_397 = arith.constant dense<0.000000e+00> : vector<16xf32>
    %1112 = vector.multi_reduction <add>, %1111, %cst_397 [1] : vector<16x32xf32> to vector<16xf32>
    %1113 = vector.shape_cast %1112 : vector<16xf32> to vector<16x1xf32>
    %cst_398 = arith.constant 3.200000e+01 : f32
    %1114 = vector.broadcast %cst_398 : f32 to vector<16x1xf32>
    %1115 = arith.divf %1113, %1114 : vector<16x1xf32>
    %1116 = vector.broadcast %1108 : vector<16x1xf32> to vector<16x32xf32>
    %1117 = arith.subf %1102, %1116 : vector<16x32xf32>
    %cst_399 = arith.constant 9.99999997E-7 : f32
    %1118 = vector.broadcast %cst_399 : f32 to vector<16x1xf32>
    %1119 = arith.addf %1115, %1118 : vector<16x1xf32>
    %1120 = math.rsqrt %1119 : vector<16x1xf32>
    %1121 = vector.broadcast %1120 : vector<16x1xf32> to vector<16x32xf32>
    %1122 = arith.mulf %1117, %1121 : vector<16x32xf32>
    %1123 = vector.broadcast %1103 : vector<1x32xf32> to vector<16x32xf32>
    %1124 = arith.mulf %1122, %1123 : vector<16x32xf32>
    %1125 = vector.broadcast %1104 : vector<1x32xf32> to vector<16x32xf32>
    %1126 = arith.addf %1124, %1125 : vector<16x32xf32>
    %c0_400 = arith.constant 0 : index
    %c0_401 = arith.constant 0 : index
    %1127 = vector.load %arg37[%c0_400, %c0_401] : memref<32x128xf32, #tpu.memory_space<vmem>>, vector<32x128xf32>
    %cst_402 = arith.constant dense<0.000000e+00> : vector<16x128xf32>
    %1128 = tpu.matmul %1126, %1127, %cst_402 {dimension_numbers = #tpu.dot_dimension_numbers<[1], [0], [0], [1], [0, 0, 1, 1], [], []>} : vector<16x32xf32>, vector<32x128xf32>, vector<16x128xf32> -> vector<16x128xf32>
    %c0_403 = arith.constant 0 : index
    %c0_404 = arith.constant 0 : index
    %1129 = vector.load %arg38[%c0_403, %c0_404] : memref<1x128xf32, #tpu.memory_space<vmem>>, vector<1x128xf32>
    %1130 = vector.broadcast %1129 : vector<1x128xf32> to vector<16x128xf32>
    %1131 = arith.addf %1128, %1130 : vector<16x128xf32>
    %c0_405 = arith.constant 0 : index
    %c0_406 = arith.constant 0 : index
    %1132 = vector.load %arg40[%c0_405, %c0_406] : memref<16x128xf32, #tpu.memory_space<vmem>>, vector<16x128xf32>
    tpu.vector_store %arg40[%c0_405, %c0_406], %1131 {strides = array<i32>} : memref<16x128xf32, #tpu.memory_space<vmem>>, vector<16x128xf32>,
    return
  }
  func.func @transform_0(%arg0: i32) -> (i32, i32) {
    %c0_i32 = arith.constant 0 : i32
    %c0_i32_0 = arith.constant 0 : i32
    %c0_i32_1 = arith.constant 0 : i32
    return %c0_i32, %c0_i32_0 : i32, i32
  }
  func.func @transform_1(%arg0: i32) -> (i32, i32) {
    %c0_i32 = arith.constant 0 : i32
    %c0_i32_0 = arith.constant 0 : i32
    %c0_i32_1 = arith.constant 0 : i32
    return %c0_i32, %c0_i32_0 : i32, i32
  }
  func.func @transform_2(%arg0: i32) -> (i32, i32) {
    %c0_i32 = arith.constant 0 : i32
    %c0_i32_0 = arith.constant 0 : i32
    %c0_i32_1 = arith.constant 0 : i32
    return %c0_i32, %c0_i32_0 : i32, i32
  }
  func.func @transform_3(%arg0: i32) -> (i32, i32) {
    %c0_i32 = arith.constant 0 : i32
    %c0_i32_0 = arith.constant 0 : i32
    %c0_i32_1 = arith.constant 0 : i32
    return %c0_i32, %c0_i32_0 : i32, i32
  }
  func.func @transform_4(%arg0: i32) -> (i32, i32) {
    %c0_i32 = arith.constant 0 : i32
    %c0_i32_0 = arith.constant 0 : i32
    %c0_i32_1 = arith.constant 0 : i32
    return %c0_i32, %c0_i32_0 : i32, i32
  }
  func.func @transform_5(%arg0: i32) -> (i32, i32, i32) {
    %c0_i32 = arith.constant 0 : i32
    %c0_i32_0 = arith.constant 0 : i32
    %c0_i32_1 = arith.constant 0 : i32
    %c0_i32_2 = arith.constant 0 : i32
    return %c0_i32, %c0_i32_0, %c0_i32_1 : i32, i32, i32
  }
  func.func @transform_6(%arg0: i32) -> (i32, i32, i32) {
    %c0_i32 = arith.constant 0 : i32
    %c0_i32_0 = arith.constant 0 : i32
    %c0_i32_1 = arith.constant 0 : i32
    %c0_i32_2 = arith.constant 0 : i32
    return %c0_i32, %c0_i32_0, %c0_i32_1 : i32, i32, i32
  }
  func.func @transform_7(%arg0: i32) -> (i32, i32, i32) {
    %c0_i32 = arith.constant 0 : i32
    %c0_i32_0 = arith.constant 0 : i32
    %c0_i32_1 = arith.constant 0 : i32
    %c0_i32_2 = arith.constant 0 : i32
    return %c0_i32, %c0_i32_0, %c0_i32_1 : i32, i32, i32
  }
  func.func @transform_8(%arg0: i32) -> (i32, i32, i32) {
    %c0_i32 = arith.constant 0 : i32
    %c0_i32_0 = arith.constant 0 : i32
    %c0_i32_1 = arith.constant 0 : i32
    %c0_i32_2 = arith.constant 0 : i32
    return %c0_i32, %c0_i32_0, %c0_i32_1 : i32, i32, i32
  }
  func.func @transform_9(%arg0: i32) -> (i32, i32, i32) {
    %c0_i32 = arith.constant 0 : i32
    %c0_i32_0 = arith.constant 0 : i32
    %c0_i32_1 = arith.constant 0 : i32
    %c0_i32_2 = arith.constant 0 : i32
    return %c0_i32, %c0_i32_0, %c0_i32_1 : i32, i32, i32
  }
  func.func @transform_10(%arg0: i32) -> (i32, i32, i32) {
    %c0_i32 = arith.constant 0 : i32
    %c0_i32_0 = arith.constant 0 : i32
    %c0_i32_1 = arith.constant 0 : i32
    %c0_i32_2 = arith.constant 0 : i32
    return %c0_i32, %c0_i32_0, %c0_i32_1 : i32, i32, i32
  }
  func.func @transform_11(%arg0: i32) -> (i32, i32, i32) {
    %c0_i32 = arith.constant 0 : i32
    %c0_i32_0 = arith.constant 0 : i32
    %c0_i32_1 = arith.constant 0 : i32
    %c0_i32_2 = arith.constant 0 : i32
    return %c0_i32, %c0_i32_0, %c0_i32_1 : i32, i32, i32
  }
  func.func @transform_12(%arg0: i32) -> (i32, i32, i32) {
    %c0_i32 = arith.constant 0 : i32
    %c0_i32_0 = arith.constant 0 : i32
    %c0_i32_1 = arith.constant 0 : i32
    %c0_i32_2 = arith.constant 0 : i32
    return %c0_i32, %c0_i32_0, %c0_i32_1 : i32, i32, i32
  }
  func.func @transform_13(%arg0: i32) -> (i32, i32, i32) {
    %c0_i32 = arith.constant 0 : i32
    %c0_i32_0 = arith.constant 0 : i32
    %c0_i32_1 = arith.constant 0 : i32
    %c0_i32_2 = arith.constant 0 : i32
    return %c0_i32, %c0_i32_0, %c0_i32_1 : i32, i32, i32
  }
  func.func @transform_14(%arg0: i32) -> (i32, i32, i32) {
    %c0_i32 = arith.constant 0 : i32
    %c0_i32_0 = arith.constant 0 : i32
    %c0_i32_1 = arith.constant 0 : i32
    %c0_i32_2 = arith.constant 0 : i32
    return %c0_i32, %c0_i32_0, %c0_i32_1 : i32, i32, i32
  }
  func.func @transform_15(%arg0: i32) -> (i32, i32) {
    %c0_i32 = arith.constant 0 : i32
    %c0_i32_0 = arith.constant 0 : i32
    %c0_i32_1 = arith.constant 0 : i32
    return %c0_i32, %c0_i32_0 : i32, i32
  }
  func.func @transform_16(%arg0: i32) -> (i32, i32) {
    %c0_i32 = arith.constant 0 : i32
    %c0_i32_0 = arith.constant 0 : i32
    %c0_i32_1 = arith.constant 0 : i32
    return %c0_i32, %c0_i32_0 : i32, i32
  }
  func.func @transform_17(%arg0: i32) -> (i32, i32, i32) {
    %c0_i32 = arith.constant 0 : i32
    %c0_i32_0 = arith.constant 0 : i32
    %c0_i32_1 = arith.constant 0 : i32
    %c0_i32_2 = arith.constant 0 : i32
    return %c0_i32, %c0_i32_0, %c0_i32_1 : i32, i32, i32
  }
  func.func @transform_18(%arg0: i32) -> (i32, i32, i32) {
    %c0_i32 = arith.constant 0 : i32
    %c0_i32_0 = arith.constant 0 : i32
    %c0_i32_1 = arith.constant 0 : i32
    %c0_i32_2 = arith.constant 0 : i32
    return %c0_i32, %c0_i32_0, %c0_i32_1 : i32, i32, i32
  }
  func.func @transform_19(%arg0: i32) -> (i32, i32, i32) {
    %c0_i32 = arith.constant 0 : i32
    %c0_i32_0 = arith.constant 0 : i32
    %c0_i32_1 = arith.constant 0 : i32
    %c0_i32_2 = arith.constant 0 : i32
    return %c0_i32, %c0_i32_0, %c0_i32_1 : i32, i32, i32
  }
  func.func @transform_20(%arg0: i32) -> (i32, i32, i32) {
    %c0_i32 = arith.constant 0 : i32
    %c0_i32_0 = arith.constant 0 : i32
    %c0_i32_1 = arith.constant 0 : i32
    %c0_i32_2 = arith.constant 0 : i32
    return %c0_i32, %c0_i32_0, %c0_i32_1 : i32, i32, i32
  }
  func.func @transform_21(%arg0: i32) -> (i32, i32, i32) {
    %c0_i32 = arith.constant 0 : i32
    %c0_i32_0 = arith.constant 0 : i32
    %c0_i32_1 = arith.constant 0 : i32
    %c0_i32_2 = arith.constant 0 : i32
    return %c0_i32, %c0_i32_0, %c0_i32_1 : i32, i32, i32
  }
  func.func @transform_22(%arg0: i32) -> (i32, i32, i32) {
    %c0_i32 = arith.constant 0 : i32
    %c0_i32_0 = arith.constant 0 : i32
    %c0_i32_1 = arith.constant 0 : i32
    %c0_i32_2 = arith.constant 0 : i32
    return %c0_i32, %c0_i32_0, %c0_i32_1 : i32, i32, i32
  }
  func.func @transform_23(%arg0: i32) -> (i32, i32, i32) {
    %c0_i32 = arith.constant 0 : i32
    %c0_i32_0 = arith.constant 0 : i32
    %c0_i32_1 = arith.constant 0 : i32
    %c0_i32_2 = arith.constant 0 : i32
    return %c0_i32, %c0_i32_0, %c0_i32_1 : i32, i32, i32
  }
  func.func @transform_24(%arg0: i32) -> (i32, i32, i32) {
    %c0_i32 = arith.constant 0 : i32
    %c0_i32_0 = arith.constant 0 : i32
    %c0_i32_1 = arith.constant 0 : i32
    %c0_i32_2 = arith.constant 0 : i32
    return %c0_i32, %c0_i32_0, %c0_i32_1 : i32, i32, i32
  }
  func.func @transform_25(%arg0: i32) -> (i32, i32, i32) {
    %c0_i32 = arith.constant 0 : i32
    %c0_i32_0 = arith.constant 0 : i32
    %c0_i32_1 = arith.constant 0 : i32
    %c0_i32_2 = arith.constant 0 : i32
    return %c0_i32, %c0_i32_0, %c0_i32_1 : i32, i32, i32
  }
  func.func @transform_26(%arg0: i32) -> (i32, i32, i32) {
    %c0_i32 = arith.constant 0 : i32
    %c0_i32_0 = arith.constant 0 : i32
    %c0_i32_1 = arith.constant 0 : i32
    %c0_i32_2 = arith.constant 0 : i32
    return %c0_i32, %c0_i32_0, %c0_i32_1 : i32, i32, i32
  }
  func.func @transform_27(%arg0: i32) -> (i32, i32, i32) {
    %c0_i32 = arith.constant 0 : i32
    %c0_i32_0 = arith.constant 0 : i32
    %c0_i32_1 = arith.constant 0 : i32
    %c0_i32_2 = arith.constant 0 : i32
    return %c0_i32, %c0_i32_0, %c0_i32_1 : i32, i32, i32
  }
  func.func @transform_28(%arg0: i32) -> (i32, i32, i32) {
    %c0_i32 = arith.constant 0 : i32
    %c0_i32_0 = arith.constant 0 : i32
    %c0_i32_1 = arith.constant 0 : i32
    %c0_i32_2 = arith.constant 0 : i32
    return %c0_i32, %c0_i32_0, %c0_i32_1 : i32, i32, i32
  }
  func.func @transform_29(%arg0: i32) -> (i32, i32, i32) {
    %c0_i32 = arith.constant 0 : i32
    %c0_i32_0 = arith.constant 0 : i32
    %c0_i32_1 = arith.constant 0 : i32
    %c0_i32_2 = arith.constant 0 : i32
    return %c0_i32, %c0_i32_0, %c0_i32_1 : i32, i32, i32
  }
  func.func @transform_30(%arg0: i32) -> (i32, i32, i32) {
    %c0_i32 = arith.constant 0 : i32
    %c0_i32_0 = arith.constant 0 : i32
    %c0_i32_1 = arith.constant 0 : i32
    %c0_i32_2 = arith.constant 0 : i32
    return %c0_i32, %c0_i32_0, %c0_i32_1 : i32, i32, i32
  }
  func.func @transform_31(%arg0: i32) -> (i32, i32, i32) {
    %c0_i32 = arith.constant 0 : i32
    %c0_i32_0 = arith.constant 0 : i32
    %c0_i32_1 = arith.constant 0 : i32
    %c0_i32_2 = arith.constant 0 : i32
    return %c0_i32, %c0_i32_0, %c0_i32_1 : i32, i32, i32
  }
  func.func @transform_32(%arg0: i32) -> (i32, i32, i32) {
    %c0_i32 = arith.constant 0 : i32
    %c0_i32_0 = arith.constant 0 : i32
    %c0_i32_1 = arith.constant 0 : i32
    %c0_i32_2 = arith.constant 0 : i32
    return %c0_i32, %c0_i32_0, %c0_i32_1 : i32, i32, i32
  }
  func.func @transform_33(%arg0: i32) -> (i32, i32) {
    %c0_i32 = arith.constant 0 : i32
    %c0_i32_0 = arith.constant 0 : i32
    %c0_i32_1 = arith.constant 0 : i32
    return %c0_i32, %c0_i32_0 : i32, i32
  }
  func.func @transform_34(%arg0: i32) -> (i32, i32) {
    %c0_i32 = arith.constant 0 : i32
    %c0_i32_0 = arith.constant 0 : i32
    %c0_i32_1 = arith.constant 0 : i32
    return %c0_i32, %c0_i32_0 : i32, i32
  }
  func.func @transform_35(%arg0: i32) -> (i32, i32) {
    %c0_i32 = arith.constant 0 : i32
    %c0_i32_0 = arith.constant 0 : i32
    %c0_i32_1 = arith.constant 0 : i32
    return %c0_i32, %c0_i32_0 : i32, i32
  }
  func.func @transform_36(%arg0: i32) -> (i32, i32) {
    %c0_i32 = arith.constant 0 : i32
    %c0_i32_0 = arith.constant 0 : i32
    %c0_i32_1 = arith.constant 0 : i32
    return %c0_i32, %c0_i32_0 : i32, i32
  }
  func.func @transform_37(%arg0: i32) -> (i32, i32) {
    %c0_i32 = arith.constant 0 : i32
    %c0_i32_0 = arith.constant 0 : i32
    %c0_i32_1 = arith.constant 0 : i32
    return %c0_i32, %c0_i32_0 : i32, i32
  }
  func.func @transform_38(%arg0: i32) -> (i32, i32) {
    %c0_i32 = arith.constant 0 : i32
    %c0_i32_0 = arith.constant 0 : i32
    %c0_i32_1 = arith.constant 0 : i32
    return %c0_i32, %c0_i32_0 : i32, i32
  }
  func.func @transform_39(%arg0: i32) -> (i32, i32) {
    %c0_i32 = arith.constant 0 : i32
    %c0_i32_0 = arith.constant 0 : i32
    %c0_i32_1 = arith.constant 0 : i32
    return %c0_i32, %c0_i32_0 : i32, i32
  }
}

</mosaic_0001>

<llo_original>
// kernel: tpu_custom_call.1
$region0: #{tpu_custom_call.1}
  #allocation0 [shape = 'u32[]', space=smem, size = 0x4, offset = 0x4, fixed_abs, tag = 'smem constant byte address 0x4 - core index']
  #allocation1 [shape = 'u32[72,128]{1,0:T(1,128)}', space=vmem, size = 0x9000, scoped, tag = 'internal scratch']
  %s0 = inlined_call_operand.smem [shape: u32[40], index: -1, kind: input, shape index: {}]
  %s1 = sld [smem:[%s0]]
  %s2 = scalar_lea.smem %s0, 1
  %s3 = sld [smem:[%s2]]
  %s4 = scalar_lea.smem %s0, 2
  %s5 = sld [smem:[%s4]]
  %s6 = scalar_lea.smem %s0, 3
  %s7 = sld [smem:[%s6]]
  %s8 = scalar_lea.smem %s0, 4
  %s9 = sld [smem:[%s8]]
  %s10 = scalar_lea.smem %s0, 5
  %s11 = sld [smem:[%s10]]
  %s12 = scalar_lea.smem %s0, 6
  %s13 = sld [smem:[%s12]]
  %s14 = scalar_lea.smem %s0, 7
  %s15 = sld [smem:[%s14]]
  %s16 = scalar_lea.smem %s0, 8
  %s17 = sld [smem:[%s16]]
  %s18 = scalar_lea.smem %s0, 9
  %s19 = sld [smem:[%s18]]
  %s20 = scalar_lea.smem %s0, 10
  %s21 = sld [smem:[%s20]]
  %s22 = scalar_lea.smem %s0, 11
  %s23 = sld [smem:[%s22]]
  %s24 = scalar_lea.smem %s0, 12
  %s25 = sld [smem:[%s24]]
  %s26 = scalar_lea.smem %s0, 13
  %s27 = sld [smem:[%s26]]
  %s28 = scalar_lea.smem %s0, 14
  %s29 = sld [smem:[%s28]]
  %s30 = scalar_lea.smem %s0, 15
  %s31 = sld [smem:[%s30]]
  %s32 = scalar_lea.smem %s0, 16
  %s33 = sld [smem:[%s32]]
  %s34 = scalar_lea.smem %s0, 17
  %s35 = sld [smem:[%s34]]
  %s36 = scalar_lea.smem %s0, 18
  %s37 = sld [smem:[%s36]]
  %s38 = scalar_lea.smem %s0, 19
  %s39 = sld [smem:[%s38]]
  %s40 = scalar_lea.smem %s0, 20
  %s41 = sld [smem:[%s40]]
  %s42 = scalar_lea.smem %s0, 21
  %s43 = sld [smem:[%s42]]
  %s44 = scalar_lea.smem %s0, 22
  %s45 = sld [smem:[%s44]]
  %s46 = scalar_lea.smem %s0, 23
  %s47 = sld [smem:[%s46]]
  %s48 = scalar_lea.smem %s0, 24
  %s49 = sld [smem:[%s48]]
  %s50 = scalar_lea.smem %s0, 25
  %s51 = sld [smem:[%s50]]
  %s52 = scalar_lea.smem %s0, 26
  %s53 = sld [smem:[%s52]]
  %s54 = scalar_lea.smem %s0, 27
  %s55 = sld [smem:[%s54]]
  %s56 = scalar_lea.smem %s0, 28
  %s57 = sld [smem:[%s56]]
  %s58 = scalar_lea.smem %s0, 29
  %s59 = sld [smem:[%s58]]
  %s60 = scalar_lea.smem %s0, 30
  %s61 = sld [smem:[%s60]]
  %s62 = scalar_lea.smem %s0, 31
  %s63 = sld [smem:[%s62]]
  %s64 = scalar_lea.smem %s0, 32
  %s65 = sld [smem:[%s64]]
  %s66 = scalar_lea.smem %s0, 33
  %s67 = sld [smem:[%s66]]
  %s68 = scalar_lea.smem %s0, 34
  %s69 = sld [smem:[%s68]]
  %s70 = scalar_lea.smem %s0, 35
  %s71 = sld [smem:[%s70]]
  %s72 = scalar_lea.smem %s0, 36
  %s73 = sld [smem:[%s72]]
  %s74 = scalar_lea.smem %s0, 37
  %s75 = sld [smem:[%s74]]
  %s76 = scalar_lea.smem %s0, 38
  %s77 = sld [smem:[%s76]]
  %s78 = scalar_lea.smem %s0, 39
  %s79 = sld [smem:[%s78]]
  %80 = xla_tuple %s77, %s79
  %s81 = sld [smem:[#allocation0]]
  $region250: #{tpu_custom_call.1} parent=0
    _
  %s83 = ssub.s32 1, %s81
  %s84 = scalar_select 0, %s83, %s81
  $region1: #{tpu_custom_call.1} parent=0
    #allocation2 [shape = 'u8[8192]{0}', space=vmem, size = 0x2000, scoped, tag = 'input window, operand 0, single buffered']
    #allocation3 [shape = 's32[1]{0}', space=sflag, size = 0x4, scoped, tag = 'scoped memory for tpu_custom_call.1']
    #allocation4 [shape = 's32[1]{0}', space=sflag, size = 0x4, scoped, tag = 'scoped memory for tpu_custom_call.1']
    #allocation5 [shape = 'u8[8192]{0}', space=vmem, size = 0x2000, scoped, tag = 'input window, operand 1, single buffered']
    #allocation6 [shape = 's32[1]{0}', space=sflag, size = 0x4, scoped, tag = 'scoped memory for tpu_custom_call.1']
    #allocation7 [shape = 'u8[8192]{0}', space=vmem, size = 0x2000, scoped, tag = 'input window, operand 2, single buffered']
    #allocation8 [shape = 'u8[8192]{0}', space=vmem, size = 0x2000, scoped, tag = 'input window, operand 3, single buffered']
    #allocation9 [shape = 's32[1]{0}', space=sflag, size = 0x4, scoped, tag = 'scoped memory for tpu_custom_call.1']
    #allocation10 [shape = 'u8[8192]{0}', space=vmem, size = 0x2000, scoped, tag = 'input window, operand 4, single buffered']
    #allocation11 [shape = 'u8[2048]{0}', space=vmem, size = 0x800, scoped, tag = 'input window, operand 5, single buffered']
    #allocation12 [shape = 's32[1]{0}', space=sflag, size = 0x4, scoped, tag = 'scoped memory for tpu_custom_call.1']
    #allocation13 [shape = 'u8[2048]{0}', space=vmem, size = 0x800, scoped, tag = 'input window, operand 6, single buffered']
    #allocation14 [shape = 'u8[1024]{0}', space=vmem, size = 0x400, scoped, tag = 'input window, operand 8, single buffered']
    #allocation15 [shape = 's32[1]{0}', space=sflag, size = 0x4, scoped, tag = 'scoped memory for tpu_custom_call.1']
    #allocation16 [shape = 'u8[1024]{0}', space=vmem, size = 0x400, scoped, tag = 'input window, operand 10, single buffered']
    #allocation17 [shape = 'u8[1024]{0}', space=vmem, size = 0x400, scoped, tag = 'input window, operand 12, single buffered']
    #allocation18 [shape = 's32[1]{0}', space=sflag, size = 0x4, scoped, tag = 'scoped memory for tpu_custom_call.1']
    #allocation19 [shape = 'u8[1024]{0}', space=vmem, size = 0x400, scoped, tag = 'input window, operand 14, single buffered']
    #allocation20 [shape = 'u8[512]{0}', space=vmem, size = 0x400, scoped, tag = 'input window, operand 15, single buffered']
    #allocation21 [shape = 's32[1]{0}', space=sflag, size = 0x4, scoped, tag = 'scoped memory for tpu_custom_call.1']
    #allocation22 [shape = 'u8[512]{0}', space=vmem, size = 0x400, scoped, tag = 'input window, operand 16, single buffered']
    #allocation23 [shape = 'u8[1024]{0}', space=vmem, size = 0x400, scoped, tag = 'input window, operand 20, single buffered']
    #allocation24 [shape = 's32[1]{0}', space=sflag, size = 0x4, scoped, tag = 'scoped memory for tpu_custom_call.1']
    #allocation25 [shape = 'u8[16384]{0}', space=vmem, size = 0x4000, scoped, tag = 'input window, operand 23, single buffered']
    #allocation26 [shape = 'u8[16384]{0}', space=vmem, size = 0x4000, scoped, tag = 'input window, operand 25, single buffered']
    #allocation27 [shape = 's32[1]{0}', space=sflag, size = 0x4, scoped, tag = 'scoped memory for tpu_custom_call.1']
    #allocation28 [shape = 'u8[16384]{0}', space=vmem, size = 0x4000, scoped, tag = 'input window, operand 27, single buffered']
    #allocation29 [shape = 'u8[16384]{0}', space=vmem, size = 0x4000, scoped, tag = 'input window, operand 29, single buffered']
    #allocation30 [shape = 's32[1]{0}', space=sflag, size = 0x4, scoped, tag = 'scoped memory for tpu_custom_call.1']
    #allocation31 [shape = 'u8[16384]{0}', space=vmem, size = 0x4000, scoped, tag = 'input window, operand 35, single buffered']
    #allocation32 [shape = 'u8[16384]{0}', space=vmem, size = 0x4000, scoped, tag = 'input window, operand 36, single buffered']
    #allocation33 [shape = 's32[1]{0}', space=sflag, size = 0x4, scoped, tag = 'scoped memory for tpu_custom_call.1']
    #allocation34 [shape = 'u8[8192]{0}', space=vmem, size = 0x2000, scoped, tag = 'output window, operand 0, single buffered']
    #allocation35 [shape = 'u8[8192]{0}', space=vmem, size = 0x2000, scoped, tag = 'output window, operand 1, single buffered']
    #allocation36 [shape = 's32[1]{0}', space=sflag, size = 0x4, scoped, tag = 'scoped memory for tpu_custom_call.1']
    %85 = vsyncpa [#allocation3], 0
    %86 = vsyncpa [#allocation6], 0
    %87 = vsyncpa [#allocation9], 0
    %88 = vsyncpa [#allocation12], 0
    %89 = vsyncpa [#allocation15], 0
    %90 = vsyncpa [#allocation18], 0
    %91 = vsyncpa [#allocation21], 0
    %92 = vsyncpa [#allocation24], 0
    %93 = vsyncpa [#allocation27], 0
    %94 = vsyncpa [#allocation30], 0
    %95 = vsyncpa [#allocation33], 0
    %96 = vsyncpa [#allocation4], 0
    %97 = vsyncpa [#allocation36], 0
    // Predicated region
    $region2: #{tpu_custom_call.1} parent=1 // pred_check
      _
    $region3: #{tpu_custom_call.1} parent=1 // pred_check_branch
      %99 = sbr.rel (0) target = $region5
    $region4: #{tpu_custom_call.1} parent=1 // pred_region
      %101 = vsyncadd [#allocation3], 0
      %s102 = sshll.u32 %s1, 4
      %s103 = int_to_ptr.hbm [resolvable:$true] %s102
      %s104 = sshll.u32 [#allocation2], 4
      %s105 = int_to_ptr.vmem [resolvable:$true] %s104
      %110 = dma.hbm_to_vmem [thread:$0]  %s103, 256, %s105, [#allocation3], 128, 128, 8
    $region5: #{tpu_custom_call.1} parent=1 // pred_fallthru
      _
    // Predicated region
    $region6: #{tpu_custom_call.1} parent=1 // pred_check
      _
    $region7: #{tpu_custom_call.1} parent=1 // pred_check_branch
      %112 = sbr.rel (0) target = $region9
    $region8: #{tpu_custom_call.1} parent=1 // pred_region
      %114 = vsyncadd [#allocation6], 0
      %s115 = sshll.u32 %s3, 4
      %s116 = int_to_ptr.hbm [resolvable:$true] %s115
      %s117 = sshll.u32 [#allocation5], 4
      %s118 = int_to_ptr.vmem [resolvable:$true] %s117
      %123 = dma.hbm_to_vmem [thread:$0]  %s116, 256, %s118, [#allocation6], 128, 128, 8
    $region9: #{tpu_custom_call.1} parent=1 // pred_fallthru
      _
    // Predicated region
    $region10: #{tpu_custom_call.1} parent=1 // pred_check
      _
    $region11: #{tpu_custom_call.1} parent=1 // pred_check_branch
      %125 = sbr.rel (0) target = $region13
    $region12: #{tpu_custom_call.1} parent=1 // pred_region
      %127 = vsyncadd [#allocation6], 0
      %s128 = sshll.u32 %s5, 4
      %s129 = int_to_ptr.hbm [resolvable:$true] %s128
      %s130 = sshll.u32 [#allocation7], 4
      %s131 = int_to_ptr.vmem [resolvable:$true] %s130
      %136 = dma.hbm_to_vmem [thread:$0]  %s129, 256, %s131, [#allocation6], 128, 128, 8
    $region13: #{tpu_custom_call.1} parent=1 // pred_fallthru
      _
    // Predicated region
    $region14: #{tpu_custom_call.1} parent=1 // pred_check
      _
    $region15: #{tpu_custom_call.1} parent=1 // pred_check_branch
      %138 = sbr.rel (0) target = $region17
    $region16: #{tpu_custom_call.1} parent=1 // pred_region
      %140 = vsyncadd [#allocation9], 0
      %s141 = sshll.u32 %s7, 4
      %s142 = int_to_ptr.hbm [resolvable:$true] %s141
      %s143 = sshll.u32 [#allocation8], 4
      %s144 = int_to_ptr.vmem [resolvable:$true] %s143
      %149 = dma.hbm_to_vmem [thread:$0]  %s142, 256, %s144, [#allocation9], 128, 128, 8
    $region17: #{tpu_custom_call.1} parent=1 // pred_fallthru
      _
    // Predicated region
    $region18: #{tpu_custom_call.1} parent=1 // pred_check
      _
    $region19: #{tpu_custom_call.1} parent=1 // pred_check_branch
      %151 = sbr.rel (0) target = $region21
    $region20: #{tpu_custom_call.1} parent=1 // pred_region
      %153 = vsyncadd [#allocation9], 0
      %s154 = sshll.u32 %s9, 4
      %s155 = int_to_ptr.hbm [resolvable:$true] %s154
      %s156 = sshll.u32 [#allocation10], 4
      %s157 = int_to_ptr.vmem [resolvable:$true] %s156
      %162 = dma.hbm_to_vmem [thread:$0]  %s155, 256, %s157, [#allocation9], 128, 128, 8
    $region21: #{tpu_custom_call.1} parent=1 // pred_fallthru
      _
    // Predicated region
    $region22: #{tpu_custom_call.1} parent=1 // pred_check
      _
    $region23: #{tpu_custom_call.1} parent=1 // pred_check_branch
      %164 = sbr.rel (0) target = $region25
    $region24: #{tpu_custom_call.1} parent=1 // pred_region
      %166 = vsyncadd [#allocation12], 0
      %s167 = sshll.u32 %s11, 4
      %s168 = int_to_ptr.hbm [resolvable:$true] %s167
      %s169 = sshll.u32 [#allocation11], 4
      %s170 = int_to_ptr.vmem [resolvable:$true] %s169
      %175 = dma.hbm_to_vmem [thread:$0]  %s168, 64, %s170, [#allocation12], 32, 32, 2
    $region25: #{tpu_custom_call.1} parent=1 // pred_fallthru
      _
    // Predicated region
    $region26: #{tpu_custom_call.1} parent=1 // pred_check
      _
    $region27: #{tpu_custom_call.1} parent=1 // pred_check_branch
      %177 = sbr.rel (0) target = $region29
    $region28: #{tpu_custom_call.1} parent=1 // pred_region
      %179 = vsyncadd [#allocation12], 0
      %s180 = sshll.u32 %s13, 4
      %s181 = int_to_ptr.hbm [resolvable:$true] %s180
      %s182 = sshll.u32 [#allocation13], 4
      %s183 = int_to_ptr.vmem [resolvable:$true] %s182
      %188 = dma.hbm_to_vmem [thread:$0]  %s181, 64, %s183, [#allocation12], 32, 32, 2
    $region29: #{tpu_custom_call.1} parent=1 // pred_fallthru
      _
    // Predicated region
    $region30: #{tpu_custom_call.1} parent=1 // pred_check
      _
    $region31: #{tpu_custom_call.1} parent=1 // pred_check_branch
      %190 = sbr.rel (0) target = $region33
    $region32: #{tpu_custom_call.1} parent=1 // pred_region
      _
    $region33: #{tpu_custom_call.1} parent=1 // pred_fallthru
      _
    // Predicated region
    $region34: #{tpu_custom_call.1} parent=1 // pred_check
      _
    $region35: #{tpu_custom_call.1} parent=1 // pred_check_branch
      %192 = sbr.rel (0) target = $region37
    $region36: #{tpu_custom_call.1} parent=1 // pred_region
      %194 = vsyncadd [#allocation15], 0
      %s195 = sshll.u32 %s17, 4
      %s196 = int_to_ptr.hbm [resolvable:$true] %s195
      %s197 = sshll.u32 [#allocation14], 4
      %s198 = int_to_ptr.vmem [resolvable:$true] %s197
      %203 = dma.hbm_to_vmem [thread:$0]  %s196, 32, %s198, [#allocation15], 16, 16, 1
    $region37: #{tpu_custom_call.1} parent=1 // pred_fallthru
      _
    // Predicated region
    $region38: #{tpu_custom_call.1} parent=1 // pred_check
      _
    $region39: #{tpu_custom_call.1} parent=1 // pred_check_branch
      %205 = sbr.rel (0) target = $region41
    $region40: #{tpu_custom_call.1} parent=1 // pred_region
      _
    $region41: #{tpu_custom_call.1} parent=1 // pred_fallthru
      _
    // Predicated region
    $region42: #{tpu_custom_call.1} parent=1 // pred_check
      _
    $region43: #{tpu_custom_call.1} parent=1 // pred_check_branch
      %207 = sbr.rel (0) target = $region45
    $region44: #{tpu_custom_call.1} parent=1 // pred_region
      %209 = vsyncadd [#allocation15], 0
      %s210 = sshll.u32 %s21, 4
      %s211 = int_to_ptr.hbm [resolvable:$true] %s210
      %s212 = sshll.u32 [#allocation16], 4
      %s213 = int_to_ptr.vmem [resolvable:$true] %s212
      %218 = dma.hbm_to_vmem [thread:$0]  %s211, 32, %s213, [#allocation15], 16, 16, 1
    $region45: #{tpu_custom_call.1} parent=1 // pred_fallthru
      _
    // Predicated region
    $region46: #{tpu_custom_call.1} parent=1 // pred_check
      _
    $region47: #{tpu_custom_call.1} parent=1 // pred_check_branch
      %220 = sbr.rel (0) target = $region49
    $region48: #{tpu_custom_call.1} parent=1 // pred_region
      _
    $region49: #{tpu_custom_call.1} parent=1 // pred_fallthru
      _
    // Predicated region
    $region50: #{tpu_custom_call.1} parent=1 // pred_check
      _
    $region51: #{tpu_custom_call.1} parent=1 // pred_check_branch
      %222 = sbr.rel (0) target = $region53
    $region52: #{tpu_custom_call.1} parent=1 // pred_region
      %224 = vsyncadd [#allocation18], 0
      %s225 = sshll.u32 %s25, 4
      %s226 = int_to_ptr.hbm [resolvable:$true] %s225
      %s227 = sshll.u32 [#allocation17], 4
      %s228 = int_to_ptr.vmem [resolvable:$true] %s227
      %233 = dma.hbm_to_vmem [thread:$0]  %s226, 32, %s228, [#allocation18], 16, 16, 1
    $region53: #{tpu_custom_call.1} parent=1 // pred_fallthru
      _
    // Predicated region
    $region54: #{tpu_custom_call.1} parent=1 // pred_check
      _
    $region55: #{tpu_custom_call.1} parent=1 // pred_check_branch
      %235 = sbr.rel (0) target = $region57
    $region56: #{tpu_custom_call.1} parent=1 // pred_region
      _
    $region57: #{tpu_custom_call.1} parent=1 // pred_fallthru
      _
    // Predicated region
    $region58: #{tpu_custom_call.1} parent=1 // pred_check
      _
    $region59: #{tpu_custom_call.1} parent=1 // pred_check_branch
      %237 = sbr.rel (0) target = $region61
    $region60: #{tpu_custom_call.1} parent=1 // pred_region
      %239 = vsyncadd [#allocation18], 0
      %s240 = sshll.u32 %s29, 4
      %s241 = int_to_ptr.hbm [resolvable:$true] %s240
      %s242 = sshll.u32 [#allocation19], 4
      %s243 = int_to_ptr.vmem [resolvable:$true] %s242
      %248 = dma.hbm_to_vmem [thread:$0]  %s241, 32, %s243, [#allocation18], 16, 16, 1
    $region61: #{tpu_custom_call.1} parent=1 // pred_fallthru
      _
    // Predicated region
    $region62: #{tpu_custom_call.1} parent=1 // pred_check
      _
    $region63: #{tpu_custom_call.1} parent=1 // pred_check_branch
      %250 = sbr.rel (0) target = $region65
    $region64: #{tpu_custom_call.1} parent=1 // pred_region
      %252 = vsyncadd [#allocation21], 0
      %s254 = sshll.u32 %s31, 4
      %s255 = int_to_ptr.hbm [resolvable:$true] %s254
      %s256 = sshll.u32 [#allocation20], 4
      %s257 = int_to_ptr.vmem [resolvable:$true] %s256
      %259 = dma.hbm_to_vmem [thread:$0]  %s255, 16, %s257, [#allocation21]
    $region65: #{tpu_custom_call.1} parent=1 // pred_fallthru
      _
    // Predicated region
    $region66: #{tpu_custom_call.1} parent=1 // pred_check
      _
    $region67: #{tpu_custom_call.1} parent=1 // pred_check_branch
      %261 = sbr.rel (0) target = $region69
    $region68: #{tpu_custom_call.1} parent=1 // pred_region
      %263 = vsyncadd [#allocation21], 0
      %s265 = sshll.u32 %s33, 4
      %s266 = int_to_ptr.hbm [resolvable:$true] %s265
      %s267 = sshll.u32 [#allocation22], 4
      %s268 = int_to_ptr.vmem [resolvable:$true] %s267
      %270 = dma.hbm_to_vmem [thread:$0]  %s266, 16, %s268, [#allocation21]
    $region69: #{tpu_custom_call.1} parent=1 // pred_fallthru
      _
    // Predicated region
    $region70: #{tpu_custom_call.1} parent=1 // pred_check
      _
    $region71: #{tpu_custom_call.1} parent=1 // pred_check_branch
      %272 = sbr.rel (0) target = $region73
    $region72: #{tpu_custom_call.1} parent=1 // pred_region
      _
    $region73: #{tpu_custom_call.1} parent=1 // pred_fallthru
      _
    // Predicated region
    $region74: #{tpu_custom_call.1} parent=1 // pred_check
      _
    $region75: #{tpu_custom_call.1} parent=1 // pred_check_branch
      %274 = sbr.rel (0) target = $region77
    $region76: #{tpu_custom_call.1} parent=1 // pred_region
      _
    $region77: #{tpu_custom_call.1} parent=1 // pred_fallthru
      _
    // Predicated region
    $region78: #{tpu_custom_call.1} parent=1 // pred_check
      _
    $region79: #{tpu_custom_call.1} parent=1 // pred_check_branch
      %276 = sbr.rel (0) target = $region81
    $region80: #{tpu_custom_call.1} parent=1 // pred_region
      _
    $region81: #{tpu_custom_call.1} parent=1 // pred_fallthru
      _
    // Predicated region
    $region82: #{tpu_custom_call.1} parent=1 // pred_check
      _
    $region83: #{tpu_custom_call.1} parent=1 // pred_check_branch
      %278 = sbr.rel (0) target = $region85
    $region84: #{tpu_custom_call.1} parent=1 // pred_region
      %280 = vsyncadd [#allocation24], 0
      %s281 = sshll.u32 %s41, 4
      %s282 = int_to_ptr.hbm [resolvable:$true] %s281
      %s283 = sshll.u32 [#allocation23], 4
      %s284 = int_to_ptr.vmem [resolvable:$true] %s283
      %289 = dma.hbm_to_vmem [thread:$0]  %s282, 32, %s284, [#allocation24], 16, 16, 1
    $region85: #{tpu_custom_call.1} parent=1 // pred_fallthru
      _
    // Predicated region
    $region86: #{tpu_custom_call.1} parent=1 // pred_check
      _
    $region87: #{tpu_custom_call.1} parent=1 // pred_check_branch
      %291 = sbr.rel (0) target = $region89
    $region88: #{tpu_custom_call.1} parent=1 // pred_region
      _
    $region89: #{tpu_custom_call.1} parent=1 // pred_fallthru
      _
    // Predicated region
    $region90: #{tpu_custom_call.1} parent=1 // pred_check
      _
    $region91: #{tpu_custom_call.1} parent=1 // pred_check_branch
      %293 = sbr.rel (0) target = $region93
    $region92: #{tpu_custom_call.1} parent=1 // pred_region
      _
    $region93: #{tpu_custom_call.1} parent=1 // pred_fallthru
      _
    // Predicated region
    $region94: #{tpu_custom_call.1} parent=1 // pred_check
      _
    $region95: #{tpu_custom_call.1} parent=1 // pred_check_branch
      %295 = sbr.rel (0) target = $region97
    $region96: #{tpu_custom_call.1} parent=1 // pred_region
      %297 = vsyncadd [#allocation24], 0
      %s298 = sshll.u32 %s47, 4
      %s299 = int_to_ptr.hbm [resolvable:$true] %s298
      %s300 = sshll.u32 [#allocation25], 4
      %s301 = int_to_ptr.vmem [resolvable:$true] %s300
      %306 = dma.hbm_to_vmem [thread:$0]  %s299, 512, %s301, [#allocation24], 64, 64, 4
    $region97: #{tpu_custom_call.1} parent=1 // pred_fallthru
      _
    // Predicated region
    $region98: #{tpu_custom_call.1} parent=1 // pred_check
      _
    $region99: #{tpu_custom_call.1} parent=1 // pred_check_branch
      %308 = sbr.rel (0) target = $region101
    $region100: #{tpu_custom_call.1} parent=1 // pred_region
      _
    $region101: #{tpu_custom_call.1} parent=1 // pred_fallthru
      _
    // Predicated region
    $region102: #{tpu_custom_call.1} parent=1 // pred_check
      _
    $region103: #{tpu_custom_call.1} parent=1 // pred_check_branch
      %310 = sbr.rel (0) target = $region105
    $region104: #{tpu_custom_call.1} parent=1 // pred_region
      %312 = vsyncadd [#allocation27], 0
      %s313 = sshll.u32 %s51, 4
      %s314 = int_to_ptr.hbm [resolvable:$true] %s313
      %s315 = sshll.u32 [#allocation26], 4
      %s316 = int_to_ptr.vmem [resolvable:$true] %s315
      %321 = dma.hbm_to_vmem [thread:$0]  %s314, 512, %s316, [#allocation27], 64, 64, 4
    $region105: #{tpu_custom_call.1} parent=1 // pred_fallthru
      _
    // Predicated region
    $region106: #{tpu_custom_call.1} parent=1 // pred_check
      _
    $region107: #{tpu_custom_call.1} parent=1 // pred_check_branch
      %323 = sbr.rel (0) target = $region109
    $region108: #{tpu_custom_call.1} parent=1 // pred_region
      _
    $region109: #{tpu_custom_call.1} parent=1 // pred_fallthru
      _
    // Predicated region
    $region110: #{tpu_custom_call.1} parent=1 // pred_check
      _
    $region111: #{tpu_custom_call.1} parent=1 // pred_check_branch
      %325 = sbr.rel (0) target = $region113
    $region112: #{tpu_custom_call.1} parent=1 // pred_region
      %327 = vsyncadd [#allocation27], 0
      %s328 = sshll.u32 %s55, 4
      %s329 = int_to_ptr.hbm [resolvable:$true] %s328
      %s330 = sshll.u32 [#allocation28], 4
      %s331 = int_to_ptr.vmem [resolvable:$true] %s330
      %336 = dma.hbm_to_vmem [thread:$0]  %s329, 512, %s331, [#allocation27], 64, 64, 4
    $region113: #{tpu_custom_call.1} parent=1 // pred_fallthru
      _
    // Predicated region
    $region114: #{tpu_custom_call.1} parent=1 // pred_check
      _
    $region115: #{tpu_custom_call.1} parent=1 // pred_check_branch
      %338 = sbr.rel (0) target = $region117
    $region116: #{tpu_custom_call.1} parent=1 // pred_region
      _
    $region117: #{tpu_custom_call.1} parent=1 // pred_fallthru
      _
    // Predicated region
    $region118: #{tpu_custom_call.1} parent=1 // pred_check
      _
    $region119: #{tpu_custom_call.1} parent=1 // pred_check_branch
      %340 = sbr.rel (0) target = $region121
    $region120: #{tpu_custom_call.1} parent=1 // pred_region
      %342 = vsyncadd [#allocation30], 0
      %s343 = sshll.u32 %s59, 4
      %s344 = int_to_ptr.hbm [resolvable:$true] %s343
      %s345 = sshll.u32 [#allocation29], 4
      %s346 = int_to_ptr.vmem [resolvable:$true] %s345
      %351 = dma.hbm_to_vmem [thread:$0]  %s344, 512, %s346, [#allocation30], 64, 64, 4
    $region121: #{tpu_custom_call.1} parent=1 // pred_fallthru
      _
    // Predicated region
    $region122: #{tpu_custom_call.1} parent=1 // pred_check
      _
    $region123: #{tpu_custom_call.1} parent=1 // pred_check_branch
      %353 = sbr.rel (0) target = $region125
    $region124: #{tpu_custom_call.1} parent=1 // pred_region
      _
    $region125: #{tpu_custom_call.1} parent=1 // pred_fallthru
      _
    // Predicated region
    $region126: #{tpu_custom_call.1} parent=1 // pred_check
      _
    $region127: #{tpu_custom_call.1} parent=1 // pred_check_branch
      %355 = sbr.rel (0) target = $region129
    $region128: #{tpu_custom_call.1} parent=1 // pred_region
      _
    $region129: #{tpu_custom_call.1} parent=1 // pred_fallthru
      _
    // Predicated region
    $region130: #{tpu_custom_call.1} parent=1 // pred_check
      _
    $region131: #{tpu_custom_call.1} parent=1 // pred_check_branch
      %357 = sbr.rel (0) target = $region133
    $region132: #{tpu_custom_call.1} parent=1 // pred_region
      _
    $region133: #{tpu_custom_call.1} parent=1 // pred_fallthru
      _
    // Predicated region
    $region134: #{tpu_custom_call.1} parent=1 // pred_check
      _
    $region135: #{tpu_custom_call.1} parent=1 // pred_check_branch
      %359 = sbr.rel (0) target = $region137
    $region136: #{tpu_custom_call.1} parent=1 // pred_region
      _
    $region137: #{tpu_custom_call.1} parent=1 // pred_fallthru
      _
    // Predicated region
    $region138: #{tpu_custom_call.1} parent=1 // pred_check
      _
    $region139: #{tpu_custom_call.1} parent=1 // pred_check_branch
      %361 = sbr.rel (0) target = $region141
    $region140: #{tpu_custom_call.1} parent=1 // pred_region
      _
    $region141: #{tpu_custom_call.1} parent=1 // pred_fallthru
      _
    // Predicated region
    $region142: #{tpu_custom_call.1} parent=1 // pred_check
      _
    $region143: #{tpu_custom_call.1} parent=1 // pred_check_branch
      %363 = sbr.rel (0) target = $region145
    $region144: #{tpu_custom_call.1} parent=1 // pred_region
      %365 = vsyncadd [#allocation30], 0
      %s366 = sshll.u32 %s71, 4
      %s367 = int_to_ptr.hbm [resolvable:$true] %s366
      %s368 = sshll.u32 [#allocation31], 4
      %s369 = int_to_ptr.vmem [resolvable:$true] %s368
      %374 = dma.hbm_to_vmem [thread:$0]  %s367, 512, %s369, [#allocation30], 128, 128, 8
    $region145: #{tpu_custom_call.1} parent=1 // pred_fallthru
      _
    // Predicated region
    $region146: #{tpu_custom_call.1} parent=1 // pred_check
      _
    $region147: #{tpu_custom_call.1} parent=1 // pred_check_branch
      %376 = sbr.rel (0) target = $region149
    $region148: #{tpu_custom_call.1} parent=1 // pred_region
      %378 = vsyncadd [#allocation33], 0
      %s379 = sshll.u32 %s73, 4
      %s380 = int_to_ptr.hbm [resolvable:$true] %s379
      %s381 = sshll.u32 [#allocation32], 4
      %s382 = int_to_ptr.vmem [resolvable:$true] %s381
      %387 = dma.hbm_to_vmem [thread:$0]  %s380, 512, %s382, [#allocation33], 128, 128, 8
    $region149: #{tpu_custom_call.1} parent=1 // pred_fallthru
      _
    // Predicated region
    $region150: #{tpu_custom_call.1} parent=1 // pred_check
      _
    $region151: #{tpu_custom_call.1} parent=1 // pred_check_branch
      %389 = sbr.rel (0) target = $region153
    $region152: #{tpu_custom_call.1} parent=1 // pred_region
      _
    $region153: #{tpu_custom_call.1} parent=1 // pred_fallthru
      _
    // Predicated region
    $region154: #{tpu_custom_call.1} parent=1 // pred_check
      _
    $region155: #{tpu_custom_call.1} parent=1 // pred_check_branch
      %391 = sbr.rel (0) target = $region157
    $region156: #{tpu_custom_call.1} parent=1 // pred_region
      %393 = dma.done [#allocation3], 256
    $region157: #{tpu_custom_call.1} parent=1 // pred_fallthru
      _
    // Predicated region
    $region158: #{tpu_custom_call.1} parent=1 // pred_check
      _
    $region159: #{tpu_custom_call.1} parent=1 // pred_check_branch
      %395 = sbr.rel (0) target = $region161
    $region160: #{tpu_custom_call.1} parent=1 // pred_region
      %397 = dma.done [#allocation6], 256
    $region161: #{tpu_custom_call.1} parent=1 // pred_fallthru
      _
    // Predicated region
    $region162: #{tpu_custom_call.1} parent=1 // pred_check
      _
    $region163: #{tpu_custom_call.1} parent=1 // pred_check_branch
      %399 = sbr.rel (0) target = $region165
    $region164: #{tpu_custom_call.1} parent=1 // pred_region
      %401 = dma.done [#allocation6], 256
    $region165: #{tpu_custom_call.1} parent=1 // pred_fallthru
      _
    // Predicated region
    $region166: #{tpu_custom_call.1} parent=1 // pred_check
      _
    $region167: #{tpu_custom_call.1} parent=1 // pred_check_branch
      %403 = sbr.rel (0) target = $region169
    $region168: #{tpu_custom_call.1} parent=1 // pred_region
      %405 = dma.done [#allocation9], 256
    $region169: #{tpu_custom_call.1} parent=1 // pred_fallthru
      _
    // Predicated region
    $region170: #{tpu_custom_call.1} parent=1 // pred_check
      _
    $region171: #{tpu_custom_call.1} parent=1 // pred_check_branch
      %407 = sbr.rel (0) target = $region173
    $region172: #{tpu_custom_call.1} parent=1 // pred_region
      %409 = dma.done [#allocation9], 256
    $region173: #{tpu_custom_call.1} parent=1 // pred_fallthru
      _
    // Predicated region
    $region174: #{tpu_custom_call.1} parent=1 // pred_check
      _
    $region175: #{tpu_custom_call.1} parent=1 // pred_check_branch
      %411 = sbr.rel (0) target = $region177
    $region176: #{tpu_custom_call.1} parent=1 // pred_region
      %413 = dma.done [#allocation12], 64
    $region177: #{tpu_custom_call.1} parent=1 // pred_fallthru
      _
    // Predicated region
    $region178: #{tpu_custom_call.1} parent=1 // pred_check
      _
    $region179: #{tpu_custom_call.1} parent=1 // pred_check_branch
      %415 = sbr.rel (0) target = $region181
    $region180: #{tpu_custom_call.1} parent=1 // pred_region
      %417 = dma.done [#allocation12], 64
    $region181: #{tpu_custom_call.1} parent=1 // pred_fallthru
      _
    // Predicated region
    $region182: #{tpu_custom_call.1} parent=1 // pred_check
      _
    $region183: #{tpu_custom_call.1} parent=1 // pred_check_branch
      %419 = sbr.rel (0) target = $region185
    $region184: #{tpu_custom_call.1} parent=1 // pred_region
      %421 = dma.done [#allocation15], 32
    $region185: #{tpu_custom_call.1} parent=1 // pred_fallthru
      _
    // Predicated region
    $region186: #{tpu_custom_call.1} parent=1 // pred_check
      _
    $region187: #{tpu_custom_call.1} parent=1 // pred_check_branch
      %423 = sbr.rel (0) target = $region189
    $region188: #{tpu_custom_call.1} parent=1 // pred_region
      %425 = dma.done [#allocation15], 32
    $region189: #{tpu_custom_call.1} parent=1 // pred_fallthru
      _
    // Predicated region
    $region190: #{tpu_custom_call.1} parent=1 // pred_check
      _
    $region191: #{tpu_custom_call.1} parent=1 // pred_check_branch
      %427 = sbr.rel (0) target = $region193
    $region192: #{tpu_custom_call.1} parent=1 // pred_region
      %429 = dma.done [#allocation18], 32
    $region193: #{tpu_custom_call.1} parent=1 // pred_fallthru
      _
    // Predicated region
    $region194: #{tpu_custom_call.1} parent=1 // pred_check
      _
    $region195: #{tpu_custom_call.1} parent=1 // pred_check_branch
      %431 = sbr.rel (0) target = $region197
    $region196: #{tpu_custom_call.1} parent=1 // pred_region
      %433 = dma.done [#allocation18], 32
    $region197: #{tpu_custom_call.1} parent=1 // pred_fallthru
      _
    // Predicated region
    $region198: #{tpu_custom_call.1} parent=1 // pred_check
      _
    $region199: #{tpu_custom_call.1} parent=1 // pred_check_branch
      %435 = sbr.rel (0) target = $region201
    $region200: #{tpu_custom_call.1} parent=1 // pred_region
      %437 = dma.done [#allocation21], 16
    $region201: #{tpu_custom_call.1} parent=1 // pred_fallthru
      _
    // Predicated region
    $region202: #{tpu_custom_call.1} parent=1 // pred_check
      _
    $region203: #{tpu_custom_call.1} parent=1 // pred_check_branch
      %439 = sbr.rel (0) target = $region205
    $region204: #{tpu_custom_call.1} parent=1 // pred_region
      %441 = dma.done [#allocation21], 16
    $region205: #{tpu_custom_call.1} parent=1 // pred_fallthru
      _
    // Predicated region
    $region206: #{tpu_custom_call.1} parent=1 // pred_check
      _
    $region207: #{tpu_custom_call.1} parent=1 // pred_check_branch
      %443 = sbr.rel (0) target = $region209
    $region208: #{tpu_custom_call.1} parent=1 // pred_region
      %445 = dma.done [#allocation24], 32
    $region209: #{tpu_custom_call.1} parent=1 // pred_fallthru
      _
    // Predicated region
    $region210: #{tpu_custom_call.1} parent=1 // pred_check
      _
    $region211: #{tpu_custom_call.1} parent=1 // pred_check_branch
      %447 = sbr.rel (0) target = $region213
    $region212: #{tpu_custom_call.1} parent=1 // pred_region
      %449 = dma.done [#allocation24], 512
    $region213: #{tpu_custom_call.1} parent=1 // pred_fallthru
      _
    // Predicated region
    $region214: #{tpu_custom_call.1} parent=1 // pred_check
      _
    $region215: #{tpu_custom_call.1} parent=1 // pred_check_branch
      %451 = sbr.rel (0) target = $region217
    $region216: #{tpu_custom_call.1} parent=1 // pred_region
      %453 = dma.done [#allocation27], 512
    $region217: #{tpu_custom_call.1} parent=1 // pred_fallthru
      _
    // Predicated region
    $region218: #{tpu_custom_call.1} parent=1 // pred_check
      _
    $region219: #{tpu_custom_call.1} parent=1 // pred_check_branch
      %455 = sbr.rel (0) target = $region221
    $region220: #{tpu_custom_call.1} parent=1 // pred_region
      %457 = dma.done [#allocation27], 512
    $region221: #{tpu_custom_call.1} parent=1 // pred_fallthru
      _
    // Predicated region
    $region222: #{tpu_custom_call.1} parent=1 // pred_check
      _
    $region223: #{tpu_custom_call.1} parent=1 // pred_check_branch
      %459 = sbr.rel (0) target = $region225
    $region224: #{tpu_custom_call.1} parent=1 // pred_region
      %461 = dma.done [#allocation30], 512
    $region225: #{tpu_custom_call.1} parent=1 // pred_fallthru
      _
    // Predicated region
    $region226: #{tpu_custom_call.1} parent=1 // pred_check
      _
    $region227: #{tpu_custom_call.1} parent=1 // pred_check_branch
      %463 = sbr.rel (0) target = $region229
    $region228: #{tpu_custom_call.1} parent=1 // pred_region
      %465 = dma.done [#allocation30], 512
    $region229: #{tpu_custom_call.1} parent=1 // pred_fallthru
      _
    // Predicated region
    $region230: #{tpu_custom_call.1} parent=1 // pred_check
      _
    $region231: #{tpu_custom_call.1} parent=1 // pred_check_branch
      %467 = sbr.rel (0) target = $region233
    $region232: #{tpu_custom_call.1} parent=1 // pred_region
      %469 = dma.done [#allocation33], 512
    $region233: #{tpu_custom_call.1} parent=1 // pred_fallthru
      _
    %v471 = vld [vmem:[#allocation7] sm:$0xff]
    %v472 = vld [vmem:[#allocation7 + $0x8] sm:$0xff]
    %v473 = vld [vmem:[#allocation8] sm:$0xff]
    %v474 = vld [vmem:[#allocation8 + $0x8] sm:$0xff]
    %v475 = vld [vmem:[#allocation10] sm:$0xff]
    %v476 = vld [vmem:[#allocation10 + $0x8] sm:$0xff]
    %v477 = vld [vmem:[#allocation2] sm:$0xff]
    %v478 = vld [vmem:[#allocation2 + $0x8] sm:$0xff]
    %v479 = vld [vmem:[#allocation11] sm:$0x3]
    %v480 = vld [vmem:[#allocation13] sm:$0x3]
    %vm481 = vcmask 261120
    %v482 = vsel %vm481, %v477, 0.0
    %483 = vadd.xlane.f32.xlu0 %v482
    %v484 = vpop.xlane.xlu0 %483
    %v485 = vsel %vm481, %v478, 0.0
    %486 = vadd.xlane.f32.xlu0 %v485
    %v487 = vpop.xlane.xlu0 %486
    %v488 = vrcp.pop 32.0
    %v489 = vmul.f32 32.0, %v488
    %v490 = vsub.f32 1.0, %v489
    %v491 = vmul.f32 %v488, %v490
    %v492 = vadd.f32 %v488, %v491
    %vm493 = vweird.f32 %v488
    %v494 = vsel %vm493, %v488, %v492
    %v495 = vmul.f32 %v484, %v494
    %v496 = vmul.f32 %v487, %v494
    %v497 = vsub.f32 %v477, %v495
    %v498 = vsub.f32 %v478, %v496
    %v499 = vmul.f32 %v497, %v497
    %v500 = vmul.f32 %v498, %v498
    %v501 = vsel %vm481, %v499, 0.0
    %502 = vadd.xlane.f32.xlu0 %v501
    %v503 = vpop.xlane.xlu0 %502
    %v504 = vsel %vm481, %v500, 0.0
    %505 = vadd.xlane.f32.xlu0 %v504
    %v506 = vpop.xlane.xlu0 %505
    %v507 = vmul.f32 %v503, %v494
    %v508 = vmul.f32 %v506, %v494
    %v509 = vadd.f32 %v507, 1e-06
    %v510 = vadd.f32 %v508, 1e-06
    %v511 = vrsqrt.pop %v509
    %v512 = vmul.f32 %v511, %v509
    %v513 = vmul.f32 %v512, %v511
    %v514 = vmul.f32 0.5, %v513
    %v515 = vsub.f32 1.5, %v514
    %v516 = vmul.f32 %v511, %v515
    %vm517 = vweird.f32 %v509
    %vm518 = vweird.f32 %v511
    %vm519 = vmor %vm517, %vm518
    %v520 = vsel %vm519, %v511, %v516
    %v521 = vrsqrt.pop %v510
    %v522 = vmul.f32 %v521, %v510
    %v523 = vmul.f32 %v522, %v521
    %v524 = vmul.f32 0.5, %v523
    %v525 = vsub.f32 1.5, %v524
    %v526 = vmul.f32 %v521, %v525
    %vm527 = vweird.f32 %v510
    %vm528 = vweird.f32 %v521
    %vm529 = vmor %vm527, %vm528
    %v530 = vsel %vm529, %v521, %v526
    %v531 = vmul.f32 %v497, %v520
    %v532 = vmul.f32 %v498, %v530
    %v533 = vperm.slane %v479, 0
    %v534 = vmul.f32 %v531, %v533
    %v535 = vmul.f32 %v532, %v533
    %v536 = vperm.slane %v480, 0
    %v537 = vadd.f32 %v534, %v536
    %v538 = vadd.f32 %v535, %v536
    %v539 = vpack.c.bf16 %v538, %v537
    %v540 = vld [vmem:[%s15] sm:$0xf]
    %v541 = vld [vmem:[%s15 + $0x4] sm:$0xf]
    %v542 = vld [vmem:[%s15 + $0x8] sm:$0xf]
    %v543 = vld [vmem:[%s15 + $0xc] sm:$0xf]
    %v544 = vld [vmem:[#allocation14] sm:$0x1]
    %v546 = vperm.slane %v544, 0
    %v552 = vunpack.c.l.b16 %v540
    %v553 = vunpack.c.l.b16 %v541
    %v554 = vunpack.c.l.b16 %v542
    %v555 = vunpack.c.l.b16 %v543
    %v556 = vpack.c.b16 %v553, %v552
    %v557 = vpack.c.b16 %v555, %v554
    %v561 = vsel %vm481, %v539, 0
    %563 = vmatpush.bf16.msra.mxu0 0
    %564 = vmatpush.bf16.msra.mxu0 0
    %565 = vmatpush.bf16.msra.mxu0 0
    %566 = vmatpush.bf16.msra.mxu0 0
    %567 = vmatpush.bf16.msra.mxu0 0
    %568 = vmatpush.bf16.msra.mxu0 0
    %569 = vmatpush.bf16.msra.mxu0 %v557
    %570 = vmatpush.bf16.msra.mxu0 %v556
    %571 = vmatmul.bf16.gmra.mxu0 %v561
    %v572 = vpop.f32.mrf.mxu0
    %v573 = vadd.f32 %v546, %v572
    %v574 = vpop.f32.mrf.mxu0
    %v575 = vadd.f32 %v546, %v574
    %576 = vdwg.mxu0
    %v577 = vld [vmem:[%s19] sm:$0xf]
    %v578 = vld [vmem:[%s19 + $0x4] sm:$0xf]
    %v579 = vld [vmem:[%s19 + $0x8] sm:$0xf]
    %v580 = vld [vmem:[%s19 + $0xc] sm:$0xf]
    %v581 = vpack.c.bf16 %v575, %v573
    %583 = vrot.lane.b32.xlu0 %v581, 96
    %v584 = vpop.permute.xlu0 %583
    %vm585 = vcmask 64512
    %v587 = vsel %vm585, %v581, 0
    %v590 = vsel %vm585, %v584, 0
    %592 = vmatpush.bf16.xpose.msra.mxu0 0
    %593 = vmatpush.bf16.xpose.msra.mxu0 0
    %594 = vmatpush.bf16.xpose.msra.mxu0 0
    %595 = vmatpush.bf16.xpose.msra.mxu0 0
    %596 = vmatpush.bf16.xpose.msra.mxu0 0
    %597 = vmatpush.bf16.xpose.msra.mxu0 0
    %598 = vmatpush.bf16.xpose.msra.mxu0 0
    %599 = vmatpush.bf16.xpose.msra.mxu0 %v590
    %600 = vmatmul.bf16.gmra.mxu0 %v587
    %v601 = vpop.f32.mrf.mxu0
    %v602 = vadd.f32 %v471, %v601
    %v603 = vpop.f32.mrf.mxu0
    %v604 = vadd.f32 %v472, %v603
    %605 = vdwg.mxu0
    %vm606 = vcmask 130048
    %v607 = vsel %vm606, %v602, -inf
    %608 = vmax.xlane.f32.xlu0 %v607
    %v609 = vpop.xlane.xlu0 %608
    %v610 = vsel %vm606, %v604, -inf
    %611 = vmax.xlane.f32.xlu0 %v610
    %v612 = vpop.xlane.xlu0 %611
    %v613 = vsub.f32 %v602, %v609
    %v614 = vsub.f32 %v604, %v612
    %v615 = vmul.f32 %v613, 1.442695
    %v616 = vpow.pop %v615
    %v617 = vmul.f32 %v614, 1.442695
    %v618 = vpow.pop %v617
    %v619 = vsel %vm606, %v616, 0.0
    %620 = vadd.xlane.f32.xlu0 %v619
    %v621 = vpop.xlane.xlu0 %620
    %v622 = vsel %vm606, %v618, 0.0
    %623 = vadd.xlane.f32.xlu0 %v622
    %v624 = vpop.xlane.xlu0 %623
    %v625 = vmax.f32 %v621, 1e-06
    %v626 = vmax.f32 %v624, 1e-06
    %v627 = vrcp.pop %v625
    %v628 = vrcp.pop %v626
    %v629 = vmul.f32 %v616, %v627
    %v630 = vmul.f32 %v618, %v628
    %v631 = vpack.c.bf16 %v630, %v629
    %632 = vrot.lane.b32.xlu0 %v581, 64
    %v633 = vpop.permute.xlu0 %632
    %v636 = vsel %vm606, %v631, 0
    %638 = vmatpush.bf16.msra.mxu0 0
    %639 = vmatpush.bf16.msra.mxu0 0
    %640 = vmatpush.bf16.msra.mxu0 0
    %641 = vmatpush.bf16.msra.mxu0 0
    %642 = vmatpush.bf16.msra.mxu0 0
    %643 = vmatpush.bf16.msra.mxu0 0
    %644 = vmatpush.bf16.msra.mxu0 0
    %645 = vmatpush.bf16.msra.mxu0 %v633
    %646 = vmatmul.bf16.gmra.mxu0 %v636
    %v647 = vpop.f32.mrf.mxu0
    %v648 = vadd.f32 0.0, %v647
    %v649 = vpop.f32.mrf.mxu0
    %v650 = vadd.f32 0.0, %v649
    %651 = vdwg.mxu0
    %v652 = vpack.c.bf16 %v650, %v648
    %653 = vrot.lane.b32.xlu0 %v581, 120
    %v654 = vpop.permute.xlu0 %653
    %655 = vrot.lane.b32.xlu0 %v581, 88
    %v656 = vpop.permute.xlu0 %655
    %v658 = vsel %vm585, %v654, 0
    %v661 = vsel %vm585, %v656, 0
    %663 = vmatpush.bf16.xpose.msra.mxu0 0
    %664 = vmatpush.bf16.xpose.msra.mxu0 0
    %665 = vmatpush.bf16.xpose.msra.mxu0 0
    %666 = vmatpush.bf16.xpose.msra.mxu0 0
    %667 = vmatpush.bf16.xpose.msra.mxu0 0
    %668 = vmatpush.bf16.xpose.msra.mxu0 0
    %669 = vmatpush.bf16.xpose.msra.mxu0 0
    %670 = vmatpush.bf16.xpose.msra.mxu0 %v661
    %671 = vmatmul.bf16.gmra.mxu0 %v658
    %v672 = vpop.f32.mrf.mxu0
    %v673 = vadd.f32 %v471, %v672
    %v674 = vpop.f32.mrf.mxu0
    %v675 = vadd.f32 %v472, %v674
    %676 = vdwg.mxu0
    %v677 = vsel %vm606, %v673, -inf
    %678 = vmax.xlane.f32.xlu0 %v677
    %v679 = vpop.xlane.xlu0 %678
    %v680 = vsel %vm606, %v675, -inf
    %681 = vmax.xlane.f32.xlu0 %v680
    %v682 = vpop.xlane.xlu0 %681
    %v683 = vsub.f32 %v673, %v679
    %v684 = vsub.f32 %v675, %v682
    %v685 = vmul.f32 %v683, 1.442695
    %v686 = vpow.pop %v685
    %v687 = vmul.f32 %v684, 1.442695
    %v688 = vpow.pop %v687
    %v689 = vsel %vm606, %v686, 0.0
    %690 = vadd.xlane.f32.xlu0 %v689
    %v691 = vpop.xlane.xlu0 %690
    %v692 = vsel %vm606, %v688, 0.0
    %693 = vadd.xlane.f32.xlu0 %v692
    %v694 = vpop.xlane.xlu0 %693
    %v695 = vmax.f32 %v691, 1e-06
    %v696 = vmax.f32 %v694, 1e-06
    %v697 = vrcp.pop %v695
    %v698 = vrcp.pop %v696
    %v699 = vmul.f32 %v686, %v697
    %v700 = vmul.f32 %v688, %v698
    %v701 = vpack.c.bf16 %v700, %v699
    %702 = vrot.lane.b32.xlu0 %v581, 56
    %v703 = vpop.permute.xlu0 %702
    %v706 = vsel %vm606, %v701, 0
    %708 = vmatpush.bf16.msra.mxu0 0
    %709 = vmatpush.bf16.msra.mxu0 0
    %710 = vmatpush.bf16.msra.mxu0 0
    %711 = vmatpush.bf16.msra.mxu0 0
    %712 = vmatpush.bf16.msra.mxu0 0
    %713 = vmatpush.bf16.msra.mxu0 0
    %714 = vmatpush.bf16.msra.mxu0 0
    %715 = vmatpush.bf16.msra.mxu0 %v703
    %716 = vmatmul.bf16.gmra.mxu0 %v706
    %v717 = vpop.f32.mrf.mxu0
    %v718 = vadd.f32 0.0, %v717
    %v719 = vpop.f32.mrf.mxu0
    %v720 = vadd.f32 0.0, %v719
    %721 = vdwg.mxu0
    %v722 = vpack.c.bf16 %v720, %v718
    %v724 = vsel %vm585, %v722, 0
    %vm726 = vcmask 1043456
    %v728 = vsel %vm726, %v578, 0
    %730 = vmatpush.bf16.msra.mxu0 0
    %731 = vmatpush.bf16.msra.mxu0 0
    %732 = vmatpush.bf16.msra.mxu0 0
    %733 = vmatpush.bf16.msra.mxu0 0
    %734 = vmatpush.bf16.msra.mxu0 0
    %735 = vmatpush.bf16.msra.mxu0 0
    %736 = vmatpush.bf16.msra.mxu0 0
    %737 = vmatpush.bf16.msra.mxu0 %v728
    %738 = vmatmul.bf16.gmra.mxu0 %v724
    %v739 = vpop.f32.mrf.mxu0
    %v740 = vadd.f32 0.0, %v739
    %v741 = vpop.f32.mrf.mxu0
    %v742 = vadd.f32 0.0, %v741
    %743 = vdwg.mxu0
    %v745 = vsel %vm585, %v652, 0
    %v748 = vsel %vm726, %v577, 0
    %750 = vmatpush.bf16.msra.mxu0 0
    %751 = vmatpush.bf16.msra.mxu0 0
    %752 = vmatpush.bf16.msra.mxu0 0
    %753 = vmatpush.bf16.msra.mxu0 0
    %754 = vmatpush.bf16.msra.mxu0 0
    %755 = vmatpush.bf16.msra.mxu0 0
    %756 = vmatpush.bf16.msra.mxu0 0
    %757 = vmatpush.bf16.msra.mxu0 %v748
    %758 = vmatmul.bf16.gmra.mxu0 %v745
    %v759 = vpop.f32.mrf.mxu0
    %v760 = vadd.f32 %v740, %v759
    %v761 = vpop.f32.mrf.mxu0
    %v762 = vadd.f32 %v742, %v761
    %763 = vdwg.mxu0
    %764 = vrot.lane.b32.xlu0 %v581, 112
    %v765 = vpop.permute.xlu0 %764
    %766 = vrot.lane.b32.xlu0 %v581, 80
    %v767 = vpop.permute.xlu0 %766
    %v769 = vsel %vm585, %v765, 0
    %v772 = vsel %vm585, %v767, 0
    %774 = vmatpush.bf16.xpose.msra.mxu0 0
    %775 = vmatpush.bf16.xpose.msra.mxu0 0
    %776 = vmatpush.bf16.xpose.msra.mxu0 0
    %777 = vmatpush.bf16.xpose.msra.mxu0 0
    %778 = vmatpush.bf16.xpose.msra.mxu0 0
    %779 = vmatpush.bf16.xpose.msra.mxu0 0
    %780 = vmatpush.bf16.xpose.msra.mxu0 0
    %781 = vmatpush.bf16.xpose.msra.mxu0 %v772
    %782 = vmatmul.bf16.gmra.mxu0 %v769
    %v783 = vpop.f32.mrf.mxu0
    %v784 = vadd.f32 %v471, %v783
    %v785 = vpop.f32.mrf.mxu0
    %v786 = vadd.f32 %v472, %v785
    %787 = vdwg.mxu0
    %v788 = vsel %vm606, %v784, -inf
    %789 = vmax.xlane.f32.xlu0 %v788
    %v790 = vpop.xlane.xlu0 %789
    %v791 = vsel %vm606, %v786, -inf
    %792 = vmax.xlane.f32.xlu0 %v791
    %v793 = vpop.xlane.xlu0 %792
    %v794 = vsub.f32 %v784, %v790
    %v795 = vsub.f32 %v786, %v793
    %v796 = vmul.f32 %v794, 1.442695
    %v797 = vpow.pop %v796
    %v798 = vmul.f32 %v795, 1.442695
    %v799 = vpow.pop %v798
    %v800 = vsel %vm606, %v797, 0.0
    %801 = vadd.xlane.f32.xlu0 %v800
    %v802 = vpop.xlane.xlu0 %801
    %v803 = vsel %vm606, %v799, 0.0
    %804 = vadd.xlane.f32.xlu0 %v803
    %v805 = vpop.xlane.xlu0 %804
    %v806 = vmax.f32 %v802, 1e-06
    %v807 = vmax.f32 %v805, 1e-06
    %v808 = vrcp.pop %v806
    %v809 = vrcp.pop %v807
    %v810 = vmul.f32 %v797, %v808
    %v811 = vmul.f32 %v799, %v809
    %v812 = vpack.c.bf16 %v811, %v810
    %813 = vrot.lane.b32.xlu0 %v581, 48
    %v814 = vpop.permute.xlu0 %813
    %v817 = vsel %vm606, %v812, 0
    %819 = vmatpush.bf16.msra.mxu0 0
    %820 = vmatpush.bf16.msra.mxu0 0
    %821 = vmatpush.bf16.msra.mxu0 0
    %822 = vmatpush.bf16.msra.mxu0 0
    %823 = vmatpush.bf16.msra.mxu0 0
    %824 = vmatpush.bf16.msra.mxu0 0
    %825 = vmatpush.bf16.msra.mxu0 0
    %826 = vmatpush.bf16.msra.mxu0 %v814
    %827 = vmatmul.bf16.gmra.mxu0 %v817
    %v828 = vpop.f32.mrf.mxu0
    %v829 = vadd.f32 0.0, %v828
    %v830 = vpop.f32.mrf.mxu0
    %v831 = vadd.f32 0.0, %v830
    %832 = vdwg.mxu0
    %v833 = vpack.c.bf16 %v831, %v829
    %v835 = vsel %vm585, %v833, 0
    %v838 = vsel %vm726, %v579, 0
    %840 = vmatpush.bf16.msra.mxu0 0
    %841 = vmatpush.bf16.msra.mxu0 0
    %842 = vmatpush.bf16.msra.mxu0 0
    %843 = vmatpush.bf16.msra.mxu0 0
    %844 = vmatpush.bf16.msra.mxu0 0
    %845 = vmatpush.bf16.msra.mxu0 0
    %846 = vmatpush.bf16.msra.mxu0 0
    %847 = vmatpush.bf16.msra.mxu0 %v838
    %848 = vmatmul.bf16.gmra.mxu0 %v835
    %v849 = vpop.f32.mrf.mxu0
    %v850 = vadd.f32 0.0, %v849
    %v851 = vpop.f32.mrf.mxu0
    %v852 = vadd.f32 0.0, %v851
    %853 = vdwg.mxu0
    %v854 = vadd.f32 %v760, %v850
    %v855 = vadd.f32 %v762, %v852
    %856 = vrot.lane.b32.xlu0 %v581, 104
    %v857 = vpop.permute.xlu0 %856
    %858 = vrot.lane.b32.xlu0 %v581, 72
    %v859 = vpop.permute.xlu0 %858
    %v861 = vsel %vm585, %v857, 0
    %v864 = vsel %vm585, %v859, 0
    %866 = vmatpush.bf16.xpose.msra.mxu0 0
    %867 = vmatpush.bf16.xpose.msra.mxu0 0
    %868 = vmatpush.bf16.xpose.msra.mxu0 0
    %869 = vmatpush.bf16.xpose.msra.mxu0 0
    %870 = vmatpush.bf16.xpose.msra.mxu0 0
    %871 = vmatpush.bf16.xpose.msra.mxu0 0
    %872 = vmatpush.bf16.xpose.msra.mxu0 0
    %873 = vmatpush.bf16.xpose.msra.mxu0 %v864
    %874 = vmatmul.bf16.gmra.mxu0 %v861
    %v875 = vpop.f32.mrf.mxu0
    %v876 = vadd.f32 %v471, %v875
    %v877 = vpop.f32.mrf.mxu0
    %v878 = vadd.f32 %v472, %v877
    %879 = vdwg.mxu0
    %v880 = vsel %vm606, %v876, -inf
    %881 = vmax.xlane.f32.xlu0 %v880
    %v882 = vpop.xlane.xlu0 %881
    %v883 = vsel %vm606, %v878, -inf
    %884 = vmax.xlane.f32.xlu0 %v883
    %v885 = vpop.xlane.xlu0 %884
    %v886 = vsub.f32 %v876, %v882
    %v887 = vsub.f32 %v878, %v885
    %v888 = vmul.f32 %v886, 1.442695
    %v889 = vpow.pop %v888
    %v890 = vmul.f32 %v887, 1.442695
    %v891 = vpow.pop %v890
    %v892 = vsel %vm606, %v889, 0.0
    %893 = vadd.xlane.f32.xlu0 %v892
    %v894 = vpop.xlane.xlu0 %893
    %v895 = vsel %vm606, %v891, 0.0
    %896 = vadd.xlane.f32.xlu0 %v895
    %v897 = vpop.xlane.xlu0 %896
    %v898 = vmax.f32 %v894, 1e-06
    %v899 = vmax.f32 %v897, 1e-06
    %v900 = vrcp.pop %v898
    %v901 = vrcp.pop %v899
    %v902 = vmul.f32 %v889, %v900
    %v903 = vmul.f32 %v891, %v901
    %v904 = vpack.c.bf16 %v903, %v902
    %905 = vrot.lane.b32.xlu0 %v581, 40
    %v906 = vpop.permute.xlu0 %905
    %v909 = vsel %vm606, %v904, 0
    %911 = vmatpush.bf16.msra.mxu0 0
    %912 = vmatpush.bf16.msra.mxu0 0
    %913 = vmatpush.bf16.msra.mxu0 0
    %914 = vmatpush.bf16.msra.mxu0 0
    %915 = vmatpush.bf16.msra.mxu0 0
    %916 = vmatpush.bf16.msra.mxu0 0
    %917 = vmatpush.bf16.msra.mxu0 0
    %918 = vmatpush.bf16.msra.mxu0 %v906
    %919 = vmatmul.bf16.gmra.mxu0 %v909
    %v920 = vpop.f32.mrf.mxu0
    %v921 = vadd.f32 0.0, %v920
    %v922 = vpop.f32.mrf.mxu0
    %v923 = vadd.f32 0.0, %v922
    %924 = vdwg.mxu0
    %v925 = vpack.c.bf16 %v923, %v921
    %v927 = vsel %vm585, %v925, 0
    %v930 = vsel %vm726, %v580, 0
    %932 = vmatpush.bf16.msra.mxu0 0
    %933 = vmatpush.bf16.msra.mxu0 0
    %934 = vmatpush.bf16.msra.mxu0 0
    %935 = vmatpush.bf16.msra.mxu0 0
    %936 = vmatpush.bf16.msra.mxu0 0
    %937 = vmatpush.bf16.msra.mxu0 0
    %938 = vmatpush.bf16.msra.mxu0 0
    %939 = vmatpush.bf16.msra.mxu0 %v930
    %940 = vmatmul.bf16.gmra.mxu0 %v927
    %v941 = vpop.f32.mrf.mxu0
    %v942 = vadd.f32 0.0, %v941
    %v943 = vpop.f32.mrf.mxu0
    %v944 = vadd.f32 0.0, %v943
    %945 = vdwg.mxu0
    %v946 = vadd.f32 %v854, %v942
    %v947 = vadd.f32 %v855, %v944
    %v948 = vadd.f32 %v477, %v946
    %v949 = vadd.f32 %v478, %v947
    %v950 = vld [vmem:[#allocation16] sm:$0x1]
    %v952 = vperm.slane %v950, 0
    %v954 = vadd.f32 %v948, %v952
    %v955 = vadd.f32 %v949, %v952
    %v956 = vsel %vm481, %v954, 0.0
    %957 = vadd.xlane.f32.xlu0 %v956
    %v958 = vpop.xlane.xlu0 %957
    %v959 = vsel %vm481, %v955, 0.0
    %960 = vadd.xlane.f32.xlu0 %v959
    %v961 = vpop.xlane.xlu0 %960
    %v962 = vmul.f32 %v958, %v494
    %v963 = vmul.f32 %v961, %v494
    %v964 = vsub.f32 %v954, %v962
    %v965 = vsub.f32 %v955, %v963
    %v966 = vmul.f32 %v964, %v964
    %v967 = vmul.f32 %v965, %v965
    %v968 = vsel %vm481, %v966, 0.0
    %969 = vadd.xlane.f32.xlu0 %v968
    %v970 = vpop.xlane.xlu0 %969
    %v971 = vsel %vm481, %v967, 0.0
    %972 = vadd.xlane.f32.xlu0 %v971
    %v973 = vpop.xlane.xlu0 %972
    %v974 = vmul.f32 %v970, %v494
    %v975 = vmul.f32 %v973, %v494
    %v976 = vadd.f32 %v974, 1e-06
    %v977 = vadd.f32 %v975, 1e-06
    %v978 = vrsqrt.pop %v976
    %v979 = vmul.f32 %v978, %v976
    %v980 = vmul.f32 %v979, %v978
    %v981 = vmul.f32 0.5, %v980
    %v982 = vsub.f32 1.5, %v981
    %v983 = vmul.f32 %v978, %v982
    %vm984 = vweird.f32 %v976
    %vm985 = vweird.f32 %v978
    %vm986 = vmor %vm984, %vm985
    %v987 = vsel %vm986, %v978, %v983
    %v988 = vrsqrt.pop %v977
    %v989 = vmul.f32 %v988, %v977
    %v990 = vmul.f32 %v989, %v988
    %v991 = vmul.f32 0.5, %v990
    %v992 = vsub.f32 1.5, %v991
    %v993 = vmul.f32 %v988, %v992
    %vm994 = vweird.f32 %v977
    %vm995 = vweird.f32 %v988
    %vm996 = vmor %vm994, %vm995
    %v997 = vsel %vm996, %v988, %v993
    %v998 = vmul.f32 %v964, %v987
    %v999 = vmul.f32 %v965, %v997
    %v1000 = vperm.slane %v479, 1
    %v1001 = vmul.f32 %v998, %v1000
    %v1002 = vmul.f32 %v999, %v1000
    %v1003 = vperm.slane %v480, 1
    %v1004 = vadd.f32 %v1001, %v1003
    %v1005 = vadd.f32 %v1002, %v1003
    %v1006 = vpack.c.bf16 %v1005, %v1004
    %v1007 = vld [vmem:[%s23] sm:$0xf]
    %v1008 = vld [vmem:[%s23 + $0x4] sm:$0xf]
    %v1009 = vld [vmem:[%s23 + $0x8] sm:$0xf]
    %v1010 = vld [vmem:[%s23 + $0xc] sm:$0xf]
    %v1011 = vld [vmem:[#allocation17] sm:$0x1]
    %v1013 = vperm.slane %v1011, 0
    %v1019 = vunpack.c.l.b16 %v1007
    %v1020 = vunpack.c.l.b16 %v1008
    %v1021 = vunpack.c.l.b16 %v1009
    %v1022 = vunpack.c.l.b16 %v1010
    %v1023 = vpack.c.b16 %v1020, %v1019
    %v1024 = vpack.c.b16 %v1022, %v1021
    %v1028 = vsel %vm481, %v1006, 0
    %1030 = vmatpush.bf16.msra.mxu0 0
    %1031 = vmatpush.bf16.msra.mxu0 0
    %1032 = vmatpush.bf16.msra.mxu0 0
    %1033 = vmatpush.bf16.msra.mxu0 0
    %1034 = vmatpush.bf16.msra.mxu0 0
    %1035 = vmatpush.bf16.msra.mxu0 0
    %1036 = vmatpush.bf16.msra.mxu0 %v1024
    %1037 = vmatpush.bf16.msra.mxu0 %v1023
    %1038 = vmatmul.bf16.gmra.mxu0 %v1028
    %v1039 = vpop.f32.mrf.mxu0
    %v1040 = vadd.f32 %v1013, %v1039
    %v1041 = vpop.f32.mrf.mxu0
    %v1042 = vadd.f32 %v1013, %v1041
    %1043 = vdwg.mxu0
    %v1044 = vmax.f32 %v1040, 0.0
    %v1045 = vmax.f32 %v1042, 0.0
    %v1046 = vpack.c.bf16 %v1045, %v1044
    %v1047 = vld [vmem:[%s27] sm:$0xf]
    %v1048 = vld [vmem:[%s27 + $0x4] sm:$0xf]
    %v1049 = vld [vmem:[%s27 + $0x8] sm:$0xf]
    %v1050 = vld [vmem:[%s27 + $0xc] sm:$0xf]
    %v1051 = vld [vmem:[%s27 + $0x10] sm:$0xf]
    %v1052 = vld [vmem:[%s27 + $0x14] sm:$0xf]
    %v1053 = vld [vmem:[%s27 + $0x18] sm:$0xf]
    %v1054 = vld [vmem:[%s27 + $0x1c] sm:$0xf]
    %v1063 = vunpack.c.l.b16 %v1047
    %v1064 = vunpack.c.l.b16 %v1048
    %v1065 = vunpack.c.l.b16 %v1049
    %v1066 = vunpack.c.l.b16 %v1050
    %v1067 = vunpack.c.l.b16 %v1051
    %v1068 = vunpack.c.l.b16 %v1052
    %v1069 = vunpack.c.l.b16 %v1053
    %v1070 = vunpack.c.l.b16 %v1054
    %v1071 = vpack.c.b16 %v1064, %v1063
    %v1072 = vpack.c.b16 %v1066, %v1065
    %v1073 = vpack.c.b16 %v1068, %v1067
    %v1074 = vpack.c.b16 %v1070, %v1069
    %vm1079 = vcmask 523264
    %v1081 = vsel %vm1079, %v1046, 0
    %1083 = vmatpush.bf16.msra.mxu0 0
    %1084 = vmatpush.bf16.msra.mxu0 0
    %1085 = vmatpush.bf16.msra.mxu0 0
    %1086 = vmatpush.bf16.msra.mxu0 0
    %1087 = vmatpush.bf16.msra.mxu0 %v1074
    %1088 = vmatpush.bf16.msra.mxu0 %v1073
    %1089 = vmatpush.bf16.msra.mxu0 %v1072
    %1090 = vmatpush.bf16.msra.mxu0 %v1071
    %1091 = vmatmul.bf16.gmra.mxu0 %v1081
    %v1092 = vpop.f32.mrf.mxu0
    %v1093 = vadd.f32 0.0, %v1092
    %v1094 = vpop.f32.mrf.mxu0
    %v1095 = vadd.f32 0.0, %v1094
    %1096 = vdwg.mxu0
    %v1097 = vadd.f32 %v954, %v1093
    %v1098 = vadd.f32 %v955, %v1095
    %v1099 = vld [vmem:[#allocation19] sm:$0x1]
    %v1101 = vperm.slane %v1099, 0
    %v1103 = vadd.f32 %v1097, %v1101
    %v1104 = vadd.f32 %v1098, %v1101
    %s1105 = scalar_lea.vmem [#allocation11], 2
    %v1106 = vld [vmem:[%s1105] sm:$0x3]
    %s1107 = scalar_lea.vmem [#allocation13], 2
    %v1108 = vld [vmem:[%s1107] sm:$0x3]
    %v1109 = vsel %vm481, %v1103, 0.0
    %1110 = vadd.xlane.f32.xlu0 %v1109
    %v1111 = vpop.xlane.xlu0 %1110
    %v1112 = vsel %vm481, %v1104, 0.0
    %1113 = vadd.xlane.f32.xlu0 %v1112
    %v1114 = vpop.xlane.xlu0 %1113
    %v1115 = vmul.f32 %v1111, %v494
    %v1116 = vmul.f32 %v1114, %v494
    %v1117 = vsub.f32 %v1103, %v1115
    %v1118 = vsub.f32 %v1104, %v1116
    %v1119 = vmul.f32 %v1117, %v1117
    %v1120 = vmul.f32 %v1118, %v1118
    %v1121 = vsel %vm481, %v1119, 0.0
    %1122 = vadd.xlane.f32.xlu0 %v1121
    %v1123 = vpop.xlane.xlu0 %1122
    %v1124 = vsel %vm481, %v1120, 0.0
    %1125 = vadd.xlane.f32.xlu0 %v1124
    %v1126 = vpop.xlane.xlu0 %1125
    %v1127 = vmul.f32 %v1123, %v494
    %v1128 = vmul.f32 %v1126, %v494
    %v1129 = vadd.f32 %v1127, 1e-06
    %v1130 = vadd.f32 %v1128, 1e-06
    %v1131 = vrsqrt.pop %v1129
    %v1132 = vmul.f32 %v1131, %v1129
    %v1133 = vmul.f32 %v1132, %v1131
    %v1134 = vmul.f32 0.5, %v1133
    %v1135 = vsub.f32 1.5, %v1134
    %v1136 = vmul.f32 %v1131, %v1135
    %vm1137 = vweird.f32 %v1129
    %vm1138 = vweird.f32 %v1131
    %vm1139 = vmor %vm1137, %vm1138
    %v1140 = vsel %vm1139, %v1131, %v1136
    %v1141 = vrsqrt.pop %v1130
    %v1142 = vmul.f32 %v1141, %v1130
    %v1143 = vmul.f32 %v1142, %v1141
    %v1144 = vmul.f32 0.5, %v1143
    %v1145 = vsub.f32 1.5, %v1144
    %v1146 = vmul.f32 %v1141, %v1145
    %vm1147 = vweird.f32 %v1130
    %vm1148 = vweird.f32 %v1141
    %vm1149 = vmor %vm1147, %vm1148
    %v1150 = vsel %vm1149, %v1141, %v1146
    %v1151 = vmul.f32 %v1117, %v1140
    %v1152 = vmul.f32 %v1118, %v1150
    %v1153 = vperm.slane %v1106, 0
    %v1154 = vmul.f32 %v1151, %v1153
    %v1155 = vmul.f32 %v1152, %v1153
    %v1156 = vperm.slane %v1108, 0
    %v1157 = vadd.f32 %v1154, %v1156
    %v1158 = vadd.f32 %v1155, %v1156
    %v1159 = vpack.c.bf16 %v1158, %v1157
    %s1160 = scalar_lea.vmem %s15, 16
    %v1161 = vld [vmem:[%s1160] sm:$0xf]
    %v1162 = vld [vmem:[%s1160 + $0x4] sm:$0xf]
    %v1163 = vld [vmem:[%s1160 + $0x8] sm:$0xf]
    %v1164 = vld [vmem:[%s1160 + $0xc] sm:$0xf]
    %s1165 = scalar_lea.vmem [#allocation14], 1
    %v1166 = vld [vmem:[%s1165] sm:$0x1]
    %v1168 = vperm.slane %v1166, 0
    %v1174 = vunpack.c.l.b16 %v1161
    %v1175 = vunpack.c.l.b16 %v1162
    %v1176 = vunpack.c.l.b16 %v1163
    %v1177 = vunpack.c.l.b16 %v1164
    %v1178 = vpack.c.b16 %v1175, %v1174
    %v1179 = vpack.c.b16 %v1177, %v1176
    %v1183 = vsel %vm481, %v1159, 0
    %1185 = vmatpush.bf16.msra.mxu0 0
    %1186 = vmatpush.bf16.msra.mxu0 0
    %1187 = vmatpush.bf16.msra.mxu0 0
    %1188 = vmatpush.bf16.msra.mxu0 0
    %1189 = vmatpush.bf16.msra.mxu0 0
    %1190 = vmatpush.bf16.msra.mxu0 0
    %1191 = vmatpush.bf16.msra.mxu0 %v1179
    %1192 = vmatpush.bf16.msra.mxu0 %v1178
    %1193 = vmatmul.bf16.gmra.mxu0 %v1183
    %v1194 = vpop.f32.mrf.mxu0
    %v1195 = vadd.f32 %v1168, %v1194
    %v1196 = vpop.f32.mrf.mxu0
    %v1197 = vadd.f32 %v1168, %v1196
    %1198 = vdwg.mxu0
    %s1199 = scalar_lea.vmem %s19, 16
    %v1200 = vld [vmem:[%s1199] sm:$0xf]
    %v1201 = vld [vmem:[%s1199 + $0x4] sm:$0xf]
    %v1202 = vld [vmem:[%s1199 + $0x8] sm:$0xf]
    %v1203 = vld [vmem:[%s1199 + $0xc] sm:$0xf]
    %v1204 = vpack.c.bf16 %v1197, %v1195
    %1206 = vrot.lane.b32.xlu0 %v1204, 96
    %v1207 = vpop.permute.xlu0 %1206
    %v1209 = vsel %vm585, %v1204, 0
    %v1212 = vsel %vm585, %v1207, 0
    %1214 = vmatpush.bf16.xpose.msra.mxu0 0
    %1215 = vmatpush.bf16.xpose.msra.mxu0 0
    %1216 = vmatpush.bf16.xpose.msra.mxu0 0
    %1217 = vmatpush.bf16.xpose.msra.mxu0 0
    %1218 = vmatpush.bf16.xpose.msra.mxu0 0
    %1219 = vmatpush.bf16.xpose.msra.mxu0 0
    %1220 = vmatpush.bf16.xpose.msra.mxu0 0
    %1221 = vmatpush.bf16.xpose.msra.mxu0 %v1212
    %1222 = vmatmul.bf16.gmra.mxu0 %v1209
    %v1223 = vpop.f32.mrf.mxu0
    %v1224 = vadd.f32 %v471, %v1223
    %v1225 = vpop.f32.mrf.mxu0
    %v1226 = vadd.f32 %v472, %v1225
    %1227 = vdwg.mxu0
    %v1228 = vsel %vm606, %v1224, -inf
    %1229 = vmax.xlane.f32.xlu0 %v1228
    %v1230 = vpop.xlane.xlu0 %1229
    %v1231 = vsel %vm606, %v1226, -inf
    %1232 = vmax.xlane.f32.xlu0 %v1231
    %v1233 = vpop.xlane.xlu0 %1232
    %v1234 = vsub.f32 %v1224, %v1230
    %v1235 = vsub.f32 %v1226, %v1233
    %v1236 = vmul.f32 %v1234, 1.442695
    %v1237 = vpow.pop %v1236
    %v1238 = vmul.f32 %v1235, 1.442695
    %v1239 = vpow.pop %v1238
    %v1240 = vsel %vm606, %v1237, 0.0
    %1241 = vadd.xlane.f32.xlu0 %v1240
    %v1242 = vpop.xlane.xlu0 %1241
    %v1243 = vsel %vm606, %v1239, 0.0
    %1244 = vadd.xlane.f32.xlu0 %v1243
    %v1245 = vpop.xlane.xlu0 %1244
    %v1246 = vmax.f32 %v1242, 1e-06
    %v1247 = vmax.f32 %v1245, 1e-06
    %v1248 = vrcp.pop %v1246
    %v1249 = vrcp.pop %v1247
    %v1250 = vmul.f32 %v1237, %v1248
    %v1251 = vmul.f32 %v1239, %v1249
    %v1252 = vpack.c.bf16 %v1251, %v1250
    %1253 = vrot.lane.b32.xlu0 %v1204, 64
    %v1254 = vpop.permute.xlu0 %1253
    %v1257 = vsel %vm606, %v1252, 0
    %1259 = vmatpush.bf16.msra.mxu0 0
    %1260 = vmatpush.bf16.msra.mxu0 0
    %1261 = vmatpush.bf16.msra.mxu0 0
    %1262 = vmatpush.bf16.msra.mxu0 0
    %1263 = vmatpush.bf16.msra.mxu0 0
    %1264 = vmatpush.bf16.msra.mxu0 0
    %1265 = vmatpush.bf16.msra.mxu0 0
    %1266 = vmatpush.bf16.msra.mxu0 %v1254
    %1267 = vmatmul.bf16.gmra.mxu0 %v1257
    %v1268 = vpop.f32.mrf.mxu0
    %v1269 = vadd.f32 0.0, %v1268
    %v1270 = vpop.f32.mrf.mxu0
    %v1271 = vadd.f32 0.0, %v1270
    %1272 = vdwg.mxu0
    %v1273 = vpack.c.bf16 %v1271, %v1269
    %1274 = vrot.lane.b32.xlu0 %v1204, 120
    %v1275 = vpop.permute.xlu0 %1274
    %1276 = vrot.lane.b32.xlu0 %v1204, 88
    %v1277 = vpop.permute.xlu0 %1276
    %v1279 = vsel %vm585, %v1275, 0
    %v1282 = vsel %vm585, %v1277, 0
    %1284 = vmatpush.bf16.xpose.msra.mxu0 0
    %1285 = vmatpush.bf16.xpose.msra.mxu0 0
    %1286 = vmatpush.bf16.xpose.msra.mxu0 0
    %1287 = vmatpush.bf16.xpose.msra.mxu0 0
    %1288 = vmatpush.bf16.xpose.msra.mxu0 0
    %1289 = vmatpush.bf16.xpose.msra.mxu0 0
    %1290 = vmatpush.bf16.xpose.msra.mxu0 0
    %1291 = vmatpush.bf16.xpose.msra.mxu0 %v1282
    %1292 = vmatmul.bf16.gmra.mxu0 %v1279
    %v1293 = vpop.f32.mrf.mxu0
    %v1294 = vadd.f32 %v471, %v1293
    %v1295 = vpop.f32.mrf.mxu0
    %v1296 = vadd.f32 %v472, %v1295
    %1297 = vdwg.mxu0
    %v1298 = vsel %vm606, %v1294, -inf
    %1299 = vmax.xlane.f32.xlu0 %v1298
    %v1300 = vpop.xlane.xlu0 %1299
    %v1301 = vsel %vm606, %v1296, -inf
    %1302 = vmax.xlane.f32.xlu0 %v1301
    %v1303 = vpop.xlane.xlu0 %1302
    %v1304 = vsub.f32 %v1294, %v1300
    %v1305 = vsub.f32 %v1296, %v1303
    %v1306 = vmul.f32 %v1304, 1.442695
    %v1307 = vpow.pop %v1306
    %v1308 = vmul.f32 %v1305, 1.442695
    %v1309 = vpow.pop %v1308
    %v1310 = vsel %vm606, %v1307, 0.0
    %1311 = vadd.xlane.f32.xlu0 %v1310
    %v1312 = vpop.xlane.xlu0 %1311
    %v1313 = vsel %vm606, %v1309, 0.0
    %1314 = vadd.xlane.f32.xlu0 %v1313
    %v1315 = vpop.xlane.xlu0 %1314
    %v1316 = vmax.f32 %v1312, 1e-06
    %v1317 = vmax.f32 %v1315, 1e-06
    %v1318 = vrcp.pop %v1316
    %v1319 = vrcp.pop %v1317
    %v1320 = vmul.f32 %v1307, %v1318
    %v1321 = vmul.f32 %v1309, %v1319
    %v1322 = vpack.c.bf16 %v1321, %v1320
    %1323 = vrot.lane.b32.xlu0 %v1204, 56
    %v1324 = vpop.permute.xlu0 %1323
    %v1327 = vsel %vm606, %v1322, 0
    %1329 = vmatpush.bf16.msra.mxu0 0
    %1330 = vmatpush.bf16.msra.mxu0 0
    %1331 = vmatpush.bf16.msra.mxu0 0
    %1332 = vmatpush.bf16.msra.mxu0 0
    %1333 = vmatpush.bf16.msra.mxu0 0
    %1334 = vmatpush.bf16.msra.mxu0 0
    %1335 = vmatpush.bf16.msra.mxu0 0
    %1336 = vmatpush.bf16.msra.mxu0 %v1324
    %1337 = vmatmul.bf16.gmra.mxu0 %v1327
    %v1338 = vpop.f32.mrf.mxu0
    %v1339 = vadd.f32 0.0, %v1338
    %v1340 = vpop.f32.mrf.mxu0
    %v1341 = vadd.f32 0.0, %v1340
    %1342 = vdwg.mxu0
    %v1343 = vpack.c.bf16 %v1341, %v1339
    %v1345 = vsel %vm585, %v1343, 0
    %v1348 = vsel %vm726, %v1201, 0
    %1350 = vmatpush.bf16.msra.mxu0 0
    %1351 = vmatpush.bf16.msra.mxu0 0
    %1352 = vmatpush.bf16.msra.mxu0 0
    %1353 = vmatpush.bf16.msra.mxu0 0
    %1354 = vmatpush.bf16.msra.mxu0 0
    %1355 = vmatpush.bf16.msra.mxu0 0
    %1356 = vmatpush.bf16.msra.mxu0 0
    %1357 = vmatpush.bf16.msra.mxu0 %v1348
    %1358 = vmatmul.bf16.gmra.mxu0 %v1345
    %v1359 = vpop.f32.mrf.mxu0
    %v1360 = vadd.f32 0.0, %v1359
    %v1361 = vpop.f32.mrf.mxu0
    %v1362 = vadd.f32 0.0, %v1361
    %1363 = vdwg.mxu0
    %v1365 = vsel %vm585, %v1273, 0
    %v1368 = vsel %vm726, %v1200, 0
    %1370 = vmatpush.bf16.msra.mxu0 0
    %1371 = vmatpush.bf16.msra.mxu0 0
    %1372 = vmatpush.bf16.msra.mxu0 0
    %1373 = vmatpush.bf16.msra.mxu0 0
    %1374 = vmatpush.bf16.msra.mxu0 0
    %1375 = vmatpush.bf16.msra.mxu0 0
    %1376 = vmatpush.bf16.msra.mxu0 0
    %1377 = vmatpush.bf16.msra.mxu0 %v1368
    %1378 = vmatmul.bf16.gmra.mxu0 %v1365
    %v1379 = vpop.f32.mrf.mxu0
    %v1380 = vadd.f32 %v1360, %v1379
    %v1381 = vpop.f32.mrf.mxu0
    %v1382 = vadd.f32 %v1362, %v1381
    %1383 = vdwg.mxu0
    %1384 = vrot.lane.b32.xlu0 %v1204, 112
    %v1385 = vpop.permute.xlu0 %1384
    %1386 = vrot.lane.b32.xlu0 %v1204, 80
    %v1387 = vpop.permute.xlu0 %1386
    %v1389 = vsel %vm585, %v1385, 0
    %v1392 = vsel %vm585, %v1387, 0
    %1394 = vmatpush.bf16.xpose.msra.mxu0 0
    %1395 = vmatpush.bf16.xpose.msra.mxu0 0
    %1396 = vmatpush.bf16.xpose.msra.mxu0 0
    %1397 = vmatpush.bf16.xpose.msra.mxu0 0
    %1398 = vmatpush.bf16.xpose.msra.mxu0 0
    %1399 = vmatpush.bf16.xpose.msra.mxu0 0
    %1400 = vmatpush.bf16.xpose.msra.mxu0 0
    %1401 = vmatpush.bf16.xpose.msra.mxu0 %v1392
    %1402 = vmatmul.bf16.gmra.mxu0 %v1389
    %v1403 = vpop.f32.mrf.mxu0
    %v1404 = vadd.f32 %v471, %v1403
    %v1405 = vpop.f32.mrf.mxu0
    %v1406 = vadd.f32 %v472, %v1405
    %1407 = vdwg.mxu0
    %v1408 = vsel %vm606, %v1404, -inf
    %1409 = vmax.xlane.f32.xlu0 %v1408
    %v1410 = vpop.xlane.xlu0 %1409
    %v1411 = vsel %vm606, %v1406, -inf
    %1412 = vmax.xlane.f32.xlu0 %v1411
    %v1413 = vpop.xlane.xlu0 %1412
    %v1414 = vsub.f32 %v1404, %v1410
    %v1415 = vsub.f32 %v1406, %v1413
    %v1416 = vmul.f32 %v1414, 1.442695
    %v1417 = vpow.pop %v1416
    %v1418 = vmul.f32 %v1415, 1.442695
    %v1419 = vpow.pop %v1418
    %v1420 = vsel %vm606, %v1417, 0.0
    %1421 = vadd.xlane.f32.xlu0 %v1420
    %v1422 = vpop.xlane.xlu0 %1421
    %v1423 = vsel %vm606, %v1419, 0.0
    %1424 = vadd.xlane.f32.xlu0 %v1423
    %v1425 = vpop.xlane.xlu0 %1424
    %v1426 = vmax.f32 %v1422, 1e-06
    %v1427 = vmax.f32 %v1425, 1e-06
    %v1428 = vrcp.pop %v1426
    %v1429 = vrcp.pop %v1427
    %v1430 = vmul.f32 %v1417, %v1428
    %v1431 = vmul.f32 %v1419, %v1429
    %v1432 = vpack.c.bf16 %v1431, %v1430
    %1433 = vrot.lane.b32.xlu0 %v1204, 48
    %v1434 = vpop.permute.xlu0 %1433
    %v1437 = vsel %vm606, %v1432, 0
    %1439 = vmatpush.bf16.msra.mxu0 0
    %1440 = vmatpush.bf16.msra.mxu0 0
    %1441 = vmatpush.bf16.msra.mxu0 0
    %1442 = vmatpush.bf16.msra.mxu0 0
    %1443 = vmatpush.bf16.msra.mxu0 0
    %1444 = vmatpush.bf16.msra.mxu0 0
    %1445 = vmatpush.bf16.msra.mxu0 0
    %1446 = vmatpush.bf16.msra.mxu0 %v1434
    %1447 = vmatmul.bf16.gmra.mxu0 %v1437
    %v1448 = vpop.f32.mrf.mxu0
    %v1449 = vadd.f32 0.0, %v1448
    %v1450 = vpop.f32.mrf.mxu0
    %v1451 = vadd.f32 0.0, %v1450
    %1452 = vdwg.mxu0
    %v1453 = vpack.c.bf16 %v1451, %v1449
    %v1455 = vsel %vm585, %v1453, 0
    %v1458 = vsel %vm726, %v1202, 0
    %1460 = vmatpush.bf16.msra.mxu0 0
    %1461 = vmatpush.bf16.msra.mxu0 0
    %1462 = vmatpush.bf16.msra.mxu0 0
    %1463 = vmatpush.bf16.msra.mxu0 0
    %1464 = vmatpush.bf16.msra.mxu0 0
    %1465 = vmatpush.bf16.msra.mxu0 0
    %1466 = vmatpush.bf16.msra.mxu0 0
    %1467 = vmatpush.bf16.msra.mxu0 %v1458
    %1468 = vmatmul.bf16.gmra.mxu0 %v1455
    %v1469 = vpop.f32.mrf.mxu0
    %v1470 = vadd.f32 0.0, %v1469
    %v1471 = vpop.f32.mrf.mxu0
    %v1472 = vadd.f32 0.0, %v1471
    %1473 = vdwg.mxu0
    %v1474 = vadd.f32 %v1380, %v1470
    %v1475 = vadd.f32 %v1382, %v1472
    %1476 = vrot.lane.b32.xlu0 %v1204, 104
    %v1477 = vpop.permute.xlu0 %1476
    %1478 = vrot.lane.b32.xlu0 %v1204, 72
    %v1479 = vpop.permute.xlu0 %1478
    %v1481 = vsel %vm585, %v1477, 0
    %v1484 = vsel %vm585, %v1479, 0
    %1486 = vmatpush.bf16.xpose.msra.mxu0 0
    %1487 = vmatpush.bf16.xpose.msra.mxu0 0
    %1488 = vmatpush.bf16.xpose.msra.mxu0 0
    %1489 = vmatpush.bf16.xpose.msra.mxu0 0
    %1490 = vmatpush.bf16.xpose.msra.mxu0 0
    %1491 = vmatpush.bf16.xpose.msra.mxu0 0
    %1492 = vmatpush.bf16.xpose.msra.mxu0 0
    %1493 = vmatpush.bf16.xpose.msra.mxu0 %v1484
    %1494 = vmatmul.bf16.gmra.mxu0 %v1481
    %v1495 = vpop.f32.mrf.mxu0
    %v1496 = vadd.f32 %v471, %v1495
    %v1497 = vpop.f32.mrf.mxu0
    %v1498 = vadd.f32 %v472, %v1497
    %1499 = vdwg.mxu0
    %v1500 = vsel %vm606, %v1496, -inf
    %1501 = vmax.xlane.f32.xlu0 %v1500
    %v1502 = vpop.xlane.xlu0 %1501
    %v1503 = vsel %vm606, %v1498, -inf
    %1504 = vmax.xlane.f32.xlu0 %v1503
    %v1505 = vpop.xlane.xlu0 %1504
    %v1506 = vsub.f32 %v1496, %v1502
    %v1507 = vsub.f32 %v1498, %v1505
    %v1508 = vmul.f32 %v1506, 1.442695
    %v1509 = vpow.pop %v1508
    %v1510 = vmul.f32 %v1507, 1.442695
    %v1511 = vpow.pop %v1510
    %v1512 = vsel %vm606, %v1509, 0.0
    %1513 = vadd.xlane.f32.xlu0 %v1512
    %v1514 = vpop.xlane.xlu0 %1513
    %v1515 = vsel %vm606, %v1511, 0.0
    %1516 = vadd.xlane.f32.xlu0 %v1515
    %v1517 = vpop.xlane.xlu0 %1516
    %v1518 = vmax.f32 %v1514, 1e-06
    %v1519 = vmax.f32 %v1517, 1e-06
    %v1520 = vrcp.pop %v1518
    %v1521 = vrcp.pop %v1519
    %v1522 = vmul.f32 %v1509, %v1520
    %v1523 = vmul.f32 %v1511, %v1521
    %v1524 = vpack.c.bf16 %v1523, %v1522
    %1525 = vrot.lane.b32.xlu0 %v1204, 40
    %v1526 = vpop.permute.xlu0 %1525
    %v1529 = vsel %vm606, %v1524, 0
    %1531 = vmatpush.bf16.msra.mxu0 0
    %1532 = vmatpush.bf16.msra.mxu0 0
    %1533 = vmatpush.bf16.msra.mxu0 0
    %1534 = vmatpush.bf16.msra.mxu0 0
    %1535 = vmatpush.bf16.msra.mxu0 0
    %1536 = vmatpush.bf16.msra.mxu0 0
    %1537 = vmatpush.bf16.msra.mxu0 0
    %1538 = vmatpush.bf16.msra.mxu0 %v1526
    %1539 = vmatmul.bf16.gmra.mxu0 %v1529
    %v1540 = vpop.f32.mrf.mxu0
    %v1541 = vadd.f32 0.0, %v1540
    %v1542 = vpop.f32.mrf.mxu0
    %v1543 = vadd.f32 0.0, %v1542
    %1544 = vdwg.mxu0
    %v1545 = vpack.c.bf16 %v1543, %v1541
    %v1547 = vsel %vm585, %v1545, 0
    %v1550 = vsel %vm726, %v1203, 0
    %1552 = vmatpush.bf16.msra.mxu0 0
    %1553 = vmatpush.bf16.msra.mxu0 0
    %1554 = vmatpush.bf16.msra.mxu0 0
    %1555 = vmatpush.bf16.msra.mxu0 0
    %1556 = vmatpush.bf16.msra.mxu0 0
    %1557 = vmatpush.bf16.msra.mxu0 0
    %1558 = vmatpush.bf16.msra.mxu0 0
    %1559 = vmatpush.bf16.msra.mxu0 %v1550
    %1560 = vmatmul.bf16.gmra.mxu0 %v1547
    %v1561 = vpop.f32.mrf.mxu0
    %v1562 = vadd.f32 0.0, %v1561
    %v1563 = vpop.f32.mrf.mxu0
    %v1564 = vadd.f32 0.0, %v1563
    %1565 = vdwg.mxu0
    %v1566 = vadd.f32 %v1474, %v1562
    %v1567 = vadd.f32 %v1475, %v1564
    %v1568 = vadd.f32 %v1103, %v1566
    %v1569 = vadd.f32 %v1104, %v1567
    %s1570 = scalar_lea.vmem [#allocation16], 1
    %v1571 = vld [vmem:[%s1570] sm:$0x1]
    %v1573 = vperm.slane %v1571, 0
    %v1575 = vadd.f32 %v1568, %v1573
    %v1576 = vadd.f32 %v1569, %v1573
    %v1577 = vsel %vm481, %v1575, 0.0
    %1578 = vadd.xlane.f32.xlu0 %v1577
    %v1579 = vpop.xlane.xlu0 %1578
    %v1580 = vsel %vm481, %v1576, 0.0
    %1581 = vadd.xlane.f32.xlu0 %v1580
    %v1582 = vpop.xlane.xlu0 %1581
    %v1583 = vmul.f32 %v1579, %v494
    %v1584 = vmul.f32 %v1582, %v494
    %v1585 = vsub.f32 %v1575, %v1583
    %v1586 = vsub.f32 %v1576, %v1584
    %v1587 = vmul.f32 %v1585, %v1585
    %v1588 = vmul.f32 %v1586, %v1586
    %v1589 = vsel %vm481, %v1587, 0.0
    %1590 = vadd.xlane.f32.xlu0 %v1589
    %v1591 = vpop.xlane.xlu0 %1590
    %v1592 = vsel %vm481, %v1588, 0.0
    %1593 = vadd.xlane.f32.xlu0 %v1592
    %v1594 = vpop.xlane.xlu0 %1593
    %v1595 = vmul.f32 %v1591, %v494
    %v1596 = vmul.f32 %v1594, %v494
    %v1597 = vadd.f32 %v1595, 1e-06
    %v1598 = vadd.f32 %v1596, 1e-06
    %v1599 = vrsqrt.pop %v1597
    %v1600 = vmul.f32 %v1599, %v1597
    %v1601 = vmul.f32 %v1600, %v1599
    %v1602 = vmul.f32 0.5, %v1601
    %v1603 = vsub.f32 1.5, %v1602
    %v1604 = vmul.f32 %v1599, %v1603
    %vm1605 = vweird.f32 %v1597
    %vm1606 = vweird.f32 %v1599
    %vm1607 = vmor %vm1605, %vm1606
    %v1608 = vsel %vm1607, %v1599, %v1604
    %v1609 = vrsqrt.pop %v1598
    %v1610 = vmul.f32 %v1609, %v1598
    %v1611 = vmul.f32 %v1610, %v1609
    %v1612 = vmul.f32 0.5, %v1611
    %v1613 = vsub.f32 1.5, %v1612
    %v1614 = vmul.f32 %v1609, %v1613
    %vm1615 = vweird.f32 %v1598
    %vm1616 = vweird.f32 %v1609
    %vm1617 = vmor %vm1615, %vm1616
    %v1618 = vsel %vm1617, %v1609, %v1614
    %v1619 = vmul.f32 %v1585, %v1608
    %v1620 = vmul.f32 %v1586, %v1618
    %v1621 = vperm.slane %v1106, 1
    %v1622 = vmul.f32 %v1619, %v1621
    %v1623 = vmul.f32 %v1620, %v1621
    %v1624 = vperm.slane %v1108, 1
    %v1625 = vadd.f32 %v1622, %v1624
    %v1626 = vadd.f32 %v1623, %v1624
    %v1627 = vpack.c.bf16 %v1626, %v1625
    %s1628 = scalar_lea.vmem %s23, 16
    %v1629 = vld [vmem:[%s1628] sm:$0xf]
    %v1630 = vld [vmem:[%s1628 + $0x4] sm:$0xf]
    %v1631 = vld [vmem:[%s1628 + $0x8] sm:$0xf]
    %v1632 = vld [vmem:[%s1628 + $0xc] sm:$0xf]
    %s1633 = scalar_lea.vmem [#allocation17], 1
    %v1634 = vld [vmem:[%s1633] sm:$0x1]
    %v1636 = vperm.slane %v1634, 0
    %v1642 = vunpack.c.l.b16 %v1629
    %v1643 = vunpack.c.l.b16 %v1630
    %v1644 = vunpack.c.l.b16 %v1631
    %v1645 = vunpack.c.l.b16 %v1632
    %v1646 = vpack.c.b16 %v1643, %v1642
    %v1647 = vpack.c.b16 %v1645, %v1644
    %v1651 = vsel %vm481, %v1627, 0
    %1653 = vmatpush.bf16.msra.mxu0 0
    %1654 = vmatpush.bf16.msra.mxu0 0
    %1655 = vmatpush.bf16.msra.mxu0 0
    %1656 = vmatpush.bf16.msra.mxu0 0
    %1657 = vmatpush.bf16.msra.mxu0 0
    %1658 = vmatpush.bf16.msra.mxu0 0
    %1659 = vmatpush.bf16.msra.mxu0 %v1647
    %1660 = vmatpush.bf16.msra.mxu0 %v1646
    %1661 = vmatmul.bf16.gmra.mxu0 %v1651
    %v1662 = vpop.f32.mrf.mxu0
    %v1663 = vadd.f32 %v1636, %v1662
    %v1664 = vpop.f32.mrf.mxu0
    %v1665 = vadd.f32 %v1636, %v1664
    %1666 = vdwg.mxu0
    %v1667 = vmax.f32 %v1663, 0.0
    %v1668 = vmax.f32 %v1665, 0.0
    %v1669 = vpack.c.bf16 %v1668, %v1667
    %s1670 = scalar_lea.vmem %s27, 32
    %v1671 = vld [vmem:[%s1670] sm:$0xf]
    %v1672 = vld [vmem:[%s1670 + $0x4] sm:$0xf]
    %v1673 = vld [vmem:[%s1670 + $0x8] sm:$0xf]
    %v1674 = vld [vmem:[%s1670 + $0xc] sm:$0xf]
    %v1675 = vld [vmem:[%s1670 + $0x10] sm:$0xf]
    %v1676 = vld [vmem:[%s1670 + $0x14] sm:$0xf]
    %v1677 = vld [vmem:[%s1670 + $0x18] sm:$0xf]
    %v1678 = vld [vmem:[%s1670 + $0x1c] sm:$0xf]
    %v1687 = vunpack.c.l.b16 %v1671
    %v1688 = vunpack.c.l.b16 %v1672
    %v1689 = vunpack.c.l.b16 %v1673
    %v1690 = vunpack.c.l.b16 %v1674
    %v1691 = vunpack.c.l.b16 %v1675
    %v1692 = vunpack.c.l.b16 %v1676
    %v1693 = vunpack.c.l.b16 %v1677
    %v1694 = vunpack.c.l.b16 %v1678
    %v1695 = vpack.c.b16 %v1688, %v1687
    %v1696 = vpack.c.b16 %v1690, %v1689
    %v1697 = vpack.c.b16 %v1692, %v1691
    %v1698 = vpack.c.b16 %v1694, %v1693
    %v1704 = vsel %vm1079, %v1669, 0
    %1706 = vmatpush.bf16.msra.mxu0 0
    %1707 = vmatpush.bf16.msra.mxu0 0
    %1708 = vmatpush.bf16.msra.mxu0 0
    %1709 = vmatpush.bf16.msra.mxu0 0
    %1710 = vmatpush.bf16.msra.mxu0 %v1698
    %1711 = vmatpush.bf16.msra.mxu0 %v1697
    %1712 = vmatpush.bf16.msra.mxu0 %v1696
    %1713 = vmatpush.bf16.msra.mxu0 %v1695
    %1714 = vmatmul.bf16.gmra.mxu0 %v1704
    %v1715 = vpop.f32.mrf.mxu0
    %v1716 = vadd.f32 0.0, %v1715
    %v1717 = vpop.f32.mrf.mxu0
    %v1718 = vadd.f32 0.0, %v1717
    %1719 = vdwg.mxu0
    %v1720 = vadd.f32 %v1575, %v1716
    %v1721 = vadd.f32 %v1576, %v1718
    %s1722 = scalar_lea.vmem [#allocation19], 1
    %v1723 = vld [vmem:[%s1722] sm:$0x1]
    %v1725 = vperm.slane %v1723, 0
    %v1727 = vadd.f32 %v1720, %v1725
    %v1728 = vadd.f32 %v1721, %v1725
    %v1729 = vld [vmem:[#allocation20] sm:$0x1]
    %v1730 = vld [vmem:[#allocation22] sm:$0x1]
    %v1731 = vsel %vm481, %v1727, 0.0
    %1732 = vadd.xlane.f32.xlu0 %v1731
    %v1733 = vpop.xlane.xlu0 %1732
    %v1734 = vsel %vm481, %v1728, 0.0
    %1735 = vadd.xlane.f32.xlu0 %v1734
    %v1736 = vpop.xlane.xlu0 %1735
    %v1737 = vmul.f32 %v1733, %v494
    %v1738 = vmul.f32 %v1736, %v494
    %v1739 = vsub.f32 %v1727, %v1737
    %v1740 = vsub.f32 %v1728, %v1738
    %v1741 = vmul.f32 %v1739, %v1739
    %v1742 = vmul.f32 %v1740, %v1740
    %v1743 = vsel %vm481, %v1741, 0.0
    %1744 = vadd.xlane.f32.xlu0 %v1743
    %v1745 = vpop.xlane.xlu0 %1744
    %v1746 = vsel %vm481, %v1742, 0.0
    %1747 = vadd.xlane.f32.xlu0 %v1746
    %v1748 = vpop.xlane.xlu0 %1747
    %v1749 = vmul.f32 %v1745, %v494
    %v1750 = vmul.f32 %v1748, %v494
    %v1751 = vadd.f32 %v1749, 1e-06
    %v1752 = vadd.f32 %v1750, 1e-06
    %v1753 = vrsqrt.pop %v1751
    %v1754 = vmul.f32 %v1753, %v1751
    %v1755 = vmul.f32 %v1754, %v1753
    %v1756 = vmul.f32 0.5, %v1755
    %v1757 = vsub.f32 1.5, %v1756
    %v1758 = vmul.f32 %v1753, %v1757
    %vm1759 = vweird.f32 %v1751
    %vm1760 = vweird.f32 %v1753
    %vm1761 = vmor %vm1759, %vm1760
    %v1762 = vsel %vm1761, %v1753, %v1758
    %v1763 = vrsqrt.pop %v1752
    %v1764 = vmul.f32 %v1763, %v1752
    %v1765 = vmul.f32 %v1764, %v1763
    %v1766 = vmul.f32 0.5, %v1765
    %v1767 = vsub.f32 1.5, %v1766
    %v1768 = vmul.f32 %v1763, %v1767
    %vm1769 = vweird.f32 %v1752
    %vm1770 = vweird.f32 %v1763
    %vm1771 = vmor %vm1769, %vm1770
    %v1772 = vsel %vm1771, %v1763, %v1768
    %v1773 = vmul.f32 %v1739, %v1762
    %v1774 = vmul.f32 %v1740, %v1772
    %v1776 = vperm.slane %v1729, 0
    %v1778 = vmul.f32 %v1773, %v1776
    %v1779 = vmul.f32 %v1774, %v1776
    %v1781 = vperm.slane %v1730, 0
    %v1783 = vadd.f32 %v1778, %v1781
    %v1784 = vadd.f32 %v1779, %v1781
    %v1785 = vld [vmem:[#allocation31] sm:$0xff]
    %v1786 = vld [vmem:[#allocation31 + $0x8] sm:$0xff]
    %v1787 = vld [vmem:[#allocation31 + $0x10] sm:$0xff]
    %v1788 = vld [vmem:[#allocation31 + $0x18] sm:$0xff]
    %v1790 = vsel %vm481, %v1783, 0
    %v1793 = vsel %vm481, %v1784, 0
    %1795 = vmatpush.msra.mxu0 0.0
    %1796 = vmatpush.msra.mxu0 0.0
    %1797 = vmatpush.msra.mxu0 0.0
    %1798 = vmatpush.msra.mxu0 0.0
    %1799 = vmatpush.msra.mxu0 0.0
    %1800 = vmatpush.msra.mxu0 0.0
    %1801 = vmatpush.msra.mxu0 0.0
    %1802 = vmatpush.msra.mxu0 0.0
    %1803 = vmatpush.msra.mxu0 0.0
    %1804 = vmatpush.msra.mxu0 0.0
    %1805 = vmatpush.msra.mxu0 0.0
    %1806 = vmatpush.msra.mxu0 0.0
    %1807 = vmatpush.msra.mxu0 %v1788
    %1808 = vmatpush.msra.mxu0 %v1787
    %1809 = vmatpush.msra.mxu0 %v1786
    %1810 = vmatpush.msra.mxu0 %v1785
    %1811 = vmatmul.f32.gmra.mxu0 %v1790
    %v1812 = vpop.f32.mrf.mxu0
    %v1813 = vadd.f32 0.0, %v1812
    %1814 = vmatmul.f32.gmra.mxu0 %v1793
    %v1815 = vpop.f32.mrf.mxu0
    %v1816 = vadd.f32 0.0, %v1815
    %1817 = vdwg.mxu0
    %1818 = vst [vmem:[#allocation34] sm:$0xff] %v1813
    %1819 = vst [vmem:[#allocation34 + $0x8] sm:$0xff] %v1816
    %v1820 = vpack.c.bf16 %v1784, %v1783
    %v1821 = vld [vmem:[#allocation5] sm:$0xff]
    %v1822 = vld [vmem:[#allocation5 + $0x8] sm:$0xff]
    %v1823 = vld [vmem:[%s35] sm:$0x7]
    %v1824 = vld [vmem:[%s37] sm:$0x7]
    %v1825 = vsel %vm481, %v1821, 0.0
    %1826 = vadd.xlane.f32.xlu0 %v1825
    %v1827 = vpop.xlane.xlu0 %1826
    %v1828 = vsel %vm481, %v1822, 0.0
    %1829 = vadd.xlane.f32.xlu0 %v1828
    %v1830 = vpop.xlane.xlu0 %1829
    %v1831 = vmul.f32 %v1827, %v494
    %v1832 = vmul.f32 %v1830, %v494
    %v1833 = vsub.f32 %v1821, %v1831
    %v1834 = vsub.f32 %v1822, %v1832
    %v1835 = vmul.f32 %v1833, %v1833
    %v1836 = vmul.f32 %v1834, %v1834
    %v1837 = vsel %vm481, %v1835, 0.0
    %1838 = vadd.xlane.f32.xlu0 %v1837
    %v1839 = vpop.xlane.xlu0 %1838
    %v1840 = vsel %vm481, %v1836, 0.0
    %1841 = vadd.xlane.f32.xlu0 %v1840
    %v1842 = vpop.xlane.xlu0 %1841
    %v1843 = vmul.f32 %v1839, %v494
    %v1844 = vmul.f32 %v1842, %v494
    %v1845 = vadd.f32 %v1843, 1e-06
    %v1846 = vadd.f32 %v1844, 1e-06
    %v1847 = vrsqrt.pop %v1845
    %v1848 = vmul.f32 %v1847, %v1845
    %v1849 = vmul.f32 %v1848, %v1847
    %v1850 = vmul.f32 0.5, %v1849
    %v1851 = vsub.f32 1.5, %v1850
    %v1852 = vmul.f32 %v1847, %v1851
    %vm1853 = vweird.f32 %v1845
    %vm1854 = vweird.f32 %v1847
    %vm1855 = vmor %vm1853, %vm1854
    %v1856 = vsel %vm1855, %v1847, %v1852
    %v1857 = vrsqrt.pop %v1846
    %v1858 = vmul.f32 %v1857, %v1846
    %v1859 = vmul.f32 %v1858, %v1857
    %v1860 = vmul.f32 0.5, %v1859
    %v1861 = vsub.f32 1.5, %v1860
    %v1862 = vmul.f32 %v1857, %v1861
    %vm1863 = vweird.f32 %v1846
    %vm1864 = vweird.f32 %v1857
    %vm1865 = vmor %vm1863, %vm1864
    %v1866 = vsel %vm1865, %v1857, %v1862
    %v1867 = vmul.f32 %v1833, %v1856
    %v1868 = vmul.f32 %v1834, %v1866
    %v1869 = vperm.slane %v1823, 0
    %v1870 = vmul.f32 %v1867, %v1869
    %v1871 = vmul.f32 %v1868, %v1869
    %v1872 = vperm.slane %v1824, 0
    %v1873 = vadd.f32 %v1870, %v1872
    %v1874 = vadd.f32 %v1871, %v1872
    %v1875 = vpack.c.bf16 %v1874, %v1873
    %v1876 = vld [vmem:[%s39] sm:$0xf]
    %v1877 = vld [vmem:[%s39 + $0x4] sm:$0xf]
    %v1878 = vld [vmem:[%s39 + $0x8] sm:$0xf]
    %v1879 = vld [vmem:[%s39 + $0xc] sm:$0xf]
    %v1880 = vld [vmem:[#allocation23] sm:$0x1]
    %v1882 = vperm.slane %v1880, 0
    %v1888 = vunpack.c.l.b16 %v1876
    %v1889 = vunpack.c.l.b16 %v1877
    %v1890 = vunpack.c.l.b16 %v1878
    %v1891 = vunpack.c.l.b16 %v1879
    %v1892 = vpack.c.b16 %v1889, %v1888
    %v1893 = vpack.c.b16 %v1891, %v1890
    %v1897 = vsel %vm481, %v1875, 0
    %1899 = vmatpush.bf16.msra.mxu0 0
    %1900 = vmatpush.bf16.msra.mxu0 0
    %1901 = vmatpush.bf16.msra.mxu0 0
    %1902 = vmatpush.bf16.msra.mxu0 0
    %1903 = vmatpush.bf16.msra.mxu0 0
    %1904 = vmatpush.bf16.msra.mxu0 0
    %1905 = vmatpush.bf16.msra.mxu0 %v1893
    %1906 = vmatpush.bf16.msra.mxu0 %v1892
    %1907 = vmatmul.bf16.gmra.mxu0 %v1897
    %v1908 = vpop.f32.mrf.mxu0
    %v1909 = vadd.f32 %v1882, %v1908
    %v1910 = vpop.f32.mrf.mxu0
    %v1911 = vadd.f32 %v1882, %v1910
    %1912 = vdwg.mxu0
    %v1913 = vld [vmem:[%s43] sm:$0xf]
    %v1914 = vld [vmem:[%s43 + $0x4] sm:$0xf]
    %v1915 = vld [vmem:[%s43 + $0x8] sm:$0xf]
    %v1916 = vld [vmem:[%s43 + $0xc] sm:$0xf]
    %v1917 = vpack.c.bf16 %v1911, %v1909
    %1919 = vrot.lane.b32.xlu0 %v1917, 96
    %v1920 = vpop.permute.xlu0 %1919
    %v1922 = vsel %vm585, %v1917, 0
    %v1925 = vsel %vm585, %v1920, 0
    %1927 = vmatpush.bf16.xpose.msra.mxu0 0
    %1928 = vmatpush.bf16.xpose.msra.mxu0 0
    %1929 = vmatpush.bf16.xpose.msra.mxu0 0
    %1930 = vmatpush.bf16.xpose.msra.mxu0 0
    %1931 = vmatpush.bf16.xpose.msra.mxu0 0
    %1932 = vmatpush.bf16.xpose.msra.mxu0 0
    %1933 = vmatpush.bf16.xpose.msra.mxu0 0
    %1934 = vmatpush.bf16.xpose.msra.mxu0 %v1925
    %1935 = vmatmul.bf16.gmra.mxu0 %v1922
    %v1936 = vpop.f32.mrf.mxu0
    %v1937 = vadd.f32 %v473, %v1936
    %v1938 = vpop.f32.mrf.mxu0
    %v1939 = vadd.f32 %v474, %v1938
    %1940 = vdwg.mxu0
    %v1941 = vsel %vm606, %v1937, -inf
    %1942 = vmax.xlane.f32.xlu0 %v1941
    %v1943 = vpop.xlane.xlu0 %1942
    %v1944 = vsel %vm606, %v1939, -inf
    %1945 = vmax.xlane.f32.xlu0 %v1944
    %v1946 = vpop.xlane.xlu0 %1945
    %v1947 = vsub.f32 %v1937, %v1943
    %v1948 = vsub.f32 %v1939, %v1946
    %v1949 = vmul.f32 %v1947, 1.442695
    %v1950 = vpow.pop %v1949
    %v1951 = vmul.f32 %v1948, 1.442695
    %v1952 = vpow.pop %v1951
    %v1953 = vsel %vm606, %v1950, 0.0
    %1954 = vadd.xlane.f32.xlu0 %v1953
    %v1955 = vpop.xlane.xlu0 %1954
    %v1956 = vsel %vm606, %v1952, 0.0
    %1957 = vadd.xlane.f32.xlu0 %v1956
    %v1958 = vpop.xlane.xlu0 %1957
    %v1959 = vmax.f32 %v1955, 1e-06
    %v1960 = vmax.f32 %v1958, 1e-06
    %v1961 = vrcp.pop %v1959
    %v1962 = vrcp.pop %v1960
    %v1963 = vmul.f32 %v1950, %v1961
    %v1964 = vmul.f32 %v1952, %v1962
    %v1965 = vpack.c.bf16 %v1964, %v1963
    %1966 = vrot.lane.b32.xlu0 %v1917, 64
    %v1967 = vpop.permute.xlu0 %1966
    %v1970 = vsel %vm606, %v1965, 0
    %1972 = vmatpush.bf16.msra.mxu0 0
    %1973 = vmatpush.bf16.msra.mxu0 0
    %1974 = vmatpush.bf16.msra.mxu0 0
    %1975 = vmatpush.bf16.msra.mxu0 0
    %1976 = vmatpush.bf16.msra.mxu0 0
    %1977 = vmatpush.bf16.msra.mxu0 0
    %1978 = vmatpush.bf16.msra.mxu0 0
    %1979 = vmatpush.bf16.msra.mxu0 %v1967
    %1980 = vmatmul.bf16.gmra.mxu0 %v1970
    %v1981 = vpop.f32.mrf.mxu0
    %v1982 = vadd.f32 0.0, %v1981
    %v1983 = vpop.f32.mrf.mxu0
    %v1984 = vadd.f32 0.0, %v1983
    %1985 = vdwg.mxu0
    %v1986 = vpack.c.bf16 %v1984, %v1982
    %1987 = vrot.lane.b32.xlu0 %v1917, 120
    %v1988 = vpop.permute.xlu0 %1987
    %1989 = vrot.lane.b32.xlu0 %v1917, 88
    %v1990 = vpop.permute.xlu0 %1989
    %v1992 = vsel %vm585, %v1988, 0
    %v1995 = vsel %vm585, %v1990, 0
    %1997 = vmatpush.bf16.xpose.msra.mxu0 0
    %1998 = vmatpush.bf16.xpose.msra.mxu0 0
    %1999 = vmatpush.bf16.xpose.msra.mxu0 0
    %2000 = vmatpush.bf16.xpose.msra.mxu0 0
    %2001 = vmatpush.bf16.xpose.msra.mxu0 0
    %2002 = vmatpush.bf16.xpose.msra.mxu0 0
    %2003 = vmatpush.bf16.xpose.msra.mxu0 0
    %2004 = vmatpush.bf16.xpose.msra.mxu0 %v1995
    %2005 = vmatmul.bf16.gmra.mxu0 %v1992
    %v2006 = vpop.f32.mrf.mxu0
    %v2007 = vadd.f32 %v473, %v2006
    %v2008 = vpop.f32.mrf.mxu0
    %v2009 = vadd.f32 %v474, %v2008
    %2010 = vdwg.mxu0
    %v2011 = vsel %vm606, %v2007, -inf
    %2012 = vmax.xlane.f32.xlu0 %v2011
    %v2013 = vpop.xlane.xlu0 %2012
    %v2014 = vsel %vm606, %v2009, -inf
    %2015 = vmax.xlane.f32.xlu0 %v2014
    %v2016 = vpop.xlane.xlu0 %2015
    %v2017 = vsub.f32 %v2007, %v2013
    %v2018 = vsub.f32 %v2009, %v2016
    %v2019 = vmul.f32 %v2017, 1.442695
    %v2020 = vpow.pop %v2019
    %v2021 = vmul.f32 %v2018, 1.442695
    %v2022 = vpow.pop %v2021
    %v2023 = vsel %vm606, %v2020, 0.0
    %2024 = vadd.xlane.f32.xlu0 %v2023
    %v2025 = vpop.xlane.xlu0 %2024
    %v2026 = vsel %vm606, %v2022, 0.0
    %2027 = vadd.xlane.f32.xlu0 %v2026
    %v2028 = vpop.xlane.xlu0 %2027
    %v2029 = vmax.f32 %v2025, 1e-06
    %v2030 = vmax.f32 %v2028, 1e-06
    %v2031 = vrcp.pop %v2029
    %v2032 = vrcp.pop %v2030
    %v2033 = vmul.f32 %v2020, %v2031
    %v2034 = vmul.f32 %v2022, %v2032
    %v2035 = vpack.c.bf16 %v2034, %v2033
    %2036 = vrot.lane.b32.xlu0 %v1917, 56
    %v2037 = vpop.permute.xlu0 %2036
    %v2040 = vsel %vm606, %v2035, 0
    %2042 = vmatpush.bf16.msra.mxu0 0
    %2043 = vmatpush.bf16.msra.mxu0 0
    %2044 = vmatpush.bf16.msra.mxu0 0
    %2045 = vmatpush.bf16.msra.mxu0 0
    %2046 = vmatpush.bf16.msra.mxu0 0
    %2047 = vmatpush.bf16.msra.mxu0 0
    %2048 = vmatpush.bf16.msra.mxu0 0
    %2049 = vmatpush.bf16.msra.mxu0 %v2037
    %2050 = vmatmul.bf16.gmra.mxu0 %v2040
    %v2051 = vpop.f32.mrf.mxu0
    %v2052 = vadd.f32 0.0, %v2051
    %v2053 = vpop.f32.mrf.mxu0
    %v2054 = vadd.f32 0.0, %v2053
    %2055 = vdwg.mxu0
    %v2056 = vpack.c.bf16 %v2054, %v2052
    %v2058 = vsel %vm585, %v2056, 0
    %v2061 = vsel %vm726, %v1914, 0
    %2063 = vmatpush.bf16.msra.mxu0 0
    %2064 = vmatpush.bf16.msra.mxu0 0
    %2065 = vmatpush.bf16.msra.mxu0 0
    %2066 = vmatpush.bf16.msra.mxu0 0
    %2067 = vmatpush.bf16.msra.mxu0 0
    %2068 = vmatpush.bf16.msra.mxu0 0
    %2069 = vmatpush.bf16.msra.mxu0 0
    %2070 = vmatpush.bf16.msra.mxu0 %v2061
    %2071 = vmatmul.bf16.gmra.mxu0 %v2058
    %v2072 = vpop.f32.mrf.mxu0
    %v2073 = vadd.f32 0.0, %v2072
    %v2074 = vpop.f32.mrf.mxu0
    %v2075 = vadd.f32 0.0, %v2074
    %2076 = vdwg.mxu0
    %v2078 = vsel %vm585, %v1986, 0
    %v2081 = vsel %vm726, %v1913, 0
    %2083 = vmatpush.bf16.msra.mxu0 0
    %2084 = vmatpush.bf16.msra.mxu0 0
    %2085 = vmatpush.bf16.msra.mxu0 0
    %2086 = vmatpush.bf16.msra.mxu0 0
    %2087 = vmatpush.bf16.msra.mxu0 0
    %2088 = vmatpush.bf16.msra.mxu0 0
    %2089 = vmatpush.bf16.msra.mxu0 0
    %2090 = vmatpush.bf16.msra.mxu0 %v2081
    %2091 = vmatmul.bf16.gmra.mxu0 %v2078
    %v2092 = vpop.f32.mrf.mxu0
    %v2093 = vadd.f32 %v2073, %v2092
    %v2094 = vpop.f32.mrf.mxu0
    %v2095 = vadd.f32 %v2075, %v2094
    %2096 = vdwg.mxu0
    %2097 = vrot.lane.b32.xlu0 %v1917, 112
    %v2098 = vpop.permute.xlu0 %2097
    %2099 = vrot.lane.b32.xlu0 %v1917, 80
    %v2100 = vpop.permute.xlu0 %2099
    %v2102 = vsel %vm585, %v2098, 0
    %v2105 = vsel %vm585, %v2100, 0
    %2107 = vmatpush.bf16.xpose.msra.mxu0 0
    %2108 = vmatpush.bf16.xpose.msra.mxu0 0
    %2109 = vmatpush.bf16.xpose.msra.mxu0 0
    %2110 = vmatpush.bf16.xpose.msra.mxu0 0
    %2111 = vmatpush.bf16.xpose.msra.mxu0 0
    %2112 = vmatpush.bf16.xpose.msra.mxu0 0
    %2113 = vmatpush.bf16.xpose.msra.mxu0 0
    %2114 = vmatpush.bf16.xpose.msra.mxu0 %v2105
    %2115 = vmatmul.bf16.gmra.mxu0 %v2102
    %v2116 = vpop.f32.mrf.mxu0
    %v2117 = vadd.f32 %v473, %v2116
    %v2118 = vpop.f32.mrf.mxu0
    %v2119 = vadd.f32 %v474, %v2118
    %2120 = vdwg.mxu0
    %v2121 = vsel %vm606, %v2117, -inf
    %2122 = vmax.xlane.f32.xlu0 %v2121
    %v2123 = vpop.xlane.xlu0 %2122
    %v2124 = vsel %vm606, %v2119, -inf
    %2125 = vmax.xlane.f32.xlu0 %v2124
    %v2126 = vpop.xlane.xlu0 %2125
    %v2127 = vsub.f32 %v2117, %v2123
    %v2128 = vsub.f32 %v2119, %v2126
    %v2129 = vmul.f32 %v2127, 1.442695
    %v2130 = vpow.pop %v2129
    %v2131 = vmul.f32 %v2128, 1.442695
    %v2132 = vpow.pop %v2131
    %v2133 = vsel %vm606, %v2130, 0.0
    %2134 = vadd.xlane.f32.xlu0 %v2133
    %v2135 = vpop.xlane.xlu0 %2134
    %v2136 = vsel %vm606, %v2132, 0.0
    %2137 = vadd.xlane.f32.xlu0 %v2136
    %v2138 = vpop.xlane.xlu0 %2137
    %v2139 = vmax.f32 %v2135, 1e-06
    %v2140 = vmax.f32 %v2138, 1e-06
    %v2141 = vrcp.pop %v2139
    %v2142 = vrcp.pop %v2140
    %v2143 = vmul.f32 %v2130, %v2141
    %v2144 = vmul.f32 %v2132, %v2142
    %v2145 = vpack.c.bf16 %v2144, %v2143
    %2146 = vrot.lane.b32.xlu0 %v1917, 48
    %v2147 = vpop.permute.xlu0 %2146
    %v2150 = vsel %vm606, %v2145, 0
    %2152 = vmatpush.bf16.msra.mxu0 0
    %2153 = vmatpush.bf16.msra.mxu0 0
    %2154 = vmatpush.bf16.msra.mxu0 0
    %2155 = vmatpush.bf16.msra.mxu0 0
    %2156 = vmatpush.bf16.msra.mxu0 0
    %2157 = vmatpush.bf16.msra.mxu0 0
    %2158 = vmatpush.bf16.msra.mxu0 0
    %2159 = vmatpush.bf16.msra.mxu0 %v2147
    %2160 = vmatmul.bf16.gmra.mxu0 %v2150
    %v2161 = vpop.f32.mrf.mxu0
    %v2162 = vadd.f32 0.0, %v2161
    %v2163 = vpop.f32.mrf.mxu0
    %v2164 = vadd.f32 0.0, %v2163
    %2165 = vdwg.mxu0
    %v2166 = vpack.c.bf16 %v2164, %v2162
    %v2168 = vsel %vm585, %v2166, 0
    %v2171 = vsel %vm726, %v1915, 0
    %2173 = vmatpush.bf16.msra.mxu0 0
    %2174 = vmatpush.bf16.msra.mxu0 0
    %2175 = vmatpush.bf16.msra.mxu0 0
    %2176 = vmatpush.bf16.msra.mxu0 0
    %2177 = vmatpush.bf16.msra.mxu0 0
    %2178 = vmatpush.bf16.msra.mxu0 0
    %2179 = vmatpush.bf16.msra.mxu0 0
    %2180 = vmatpush.bf16.msra.mxu0 %v2171
    %2181 = vmatmul.bf16.gmra.mxu0 %v2168
    %v2182 = vpop.f32.mrf.mxu0
    %v2183 = vadd.f32 0.0, %v2182
    %v2184 = vpop.f32.mrf.mxu0
    %v2185 = vadd.f32 0.0, %v2184
    %2186 = vdwg.mxu0
    %v2187 = vadd.f32 %v2093, %v2183
    %v2188 = vadd.f32 %v2095, %v2185
    %2189 = vrot.lane.b32.xlu0 %v1917, 104
    %v2190 = vpop.permute.xlu0 %2189
    %2191 = vrot.lane.b32.xlu0 %v1917, 72
    %v2192 = vpop.permute.xlu0 %2191
    %v2194 = vsel %vm585, %v2190, 0
    %v2197 = vsel %vm585, %v2192, 0
    %2199 = vmatpush.bf16.xpose.msra.mxu0 0
    %2200 = vmatpush.bf16.xpose.msra.mxu0 0
    %2201 = vmatpush.bf16.xpose.msra.mxu0 0
    %2202 = vmatpush.bf16.xpose.msra.mxu0 0
    %2203 = vmatpush.bf16.xpose.msra.mxu0 0
    %2204 = vmatpush.bf16.xpose.msra.mxu0 0
    %2205 = vmatpush.bf16.xpose.msra.mxu0 0
    %2206 = vmatpush.bf16.xpose.msra.mxu0 %v2197
    %2207 = vmatmul.bf16.gmra.mxu0 %v2194
    %v2208 = vpop.f32.mrf.mxu0
    %v2209 = vadd.f32 %v473, %v2208
    %v2210 = vpop.f32.mrf.mxu0
    %v2211 = vadd.f32 %v474, %v2210
    %2212 = vdwg.mxu0
    %v2213 = vsel %vm606, %v2209, -inf
    %2214 = vmax.xlane.f32.xlu0 %v2213
    %v2215 = vpop.xlane.xlu0 %2214
    %v2216 = vsel %vm606, %v2211, -inf
    %2217 = vmax.xlane.f32.xlu0 %v2216
    %v2218 = vpop.xlane.xlu0 %2217
    %v2219 = vsub.f32 %v2209, %v2215
    %v2220 = vsub.f32 %v2211, %v2218
    %v2221 = vmul.f32 %v2219, 1.442695
    %v2222 = vpow.pop %v2221
    %v2223 = vmul.f32 %v2220, 1.442695
    %v2224 = vpow.pop %v2223
    %v2225 = vsel %vm606, %v2222, 0.0
    %2226 = vadd.xlane.f32.xlu0 %v2225
    %v2227 = vpop.xlane.xlu0 %2226
    %v2228 = vsel %vm606, %v2224, 0.0
    %2229 = vadd.xlane.f32.xlu0 %v2228
    %v2230 = vpop.xlane.xlu0 %2229
    %v2231 = vmax.f32 %v2227, 1e-06
    %v2232 = vmax.f32 %v2230, 1e-06
    %v2233 = vrcp.pop %v2231
    %v2234 = vrcp.pop %v2232
    %v2235 = vmul.f32 %v2222, %v2233
    %v2236 = vmul.f32 %v2224, %v2234
    %v2237 = vpack.c.bf16 %v2236, %v2235
    %2238 = vrot.lane.b32.xlu0 %v1917, 40
    %v2239 = vpop.permute.xlu0 %2238
    %v2242 = vsel %vm606, %v2237, 0
    %2244 = vmatpush.bf16.msra.mxu0 0
    %2245 = vmatpush.bf16.msra.mxu0 0
    %2246 = vmatpush.bf16.msra.mxu0 0
    %2247 = vmatpush.bf16.msra.mxu0 0
    %2248 = vmatpush.bf16.msra.mxu0 0
    %2249 = vmatpush.bf16.msra.mxu0 0
    %2250 = vmatpush.bf16.msra.mxu0 0
    %2251 = vmatpush.bf16.msra.mxu0 %v2239
    %2252 = vmatmul.bf16.gmra.mxu0 %v2242
    %v2253 = vpop.f32.mrf.mxu0
    %v2254 = vadd.f32 0.0, %v2253
    %v2255 = vpop.f32.mrf.mxu0
    %v2256 = vadd.f32 0.0, %v2255
    %2257 = vdwg.mxu0
    %v2258 = vpack.c.bf16 %v2256, %v2254
    %v2260 = vsel %vm585, %v2258, 0
    %v2263 = vsel %vm726, %v1916, 0
    %2265 = vmatpush.bf16.msra.mxu0 0
    %2266 = vmatpush.bf16.msra.mxu0 0
    %2267 = vmatpush.bf16.msra.mxu0 0
    %2268 = vmatpush.bf16.msra.mxu0 0
    %2269 = vmatpush.bf16.msra.mxu0 0
    %2270 = vmatpush.bf16.msra.mxu0 0
    %2271 = vmatpush.bf16.msra.mxu0 0
    %2272 = vmatpush.bf16.msra.mxu0 %v2263
    %2273 = vmatmul.bf16.gmra.mxu0 %v2260
    %v2274 = vpop.f32.mrf.mxu0
    %v2275 = vadd.f32 0.0, %v2274
    %v2276 = vpop.f32.mrf.mxu0
    %v2277 = vadd.f32 0.0, %v2276
    %2278 = vdwg.mxu0
    %v2279 = vadd.f32 %v2187, %v2275
    %v2280 = vadd.f32 %v2188, %v2277
    %v2281 = vadd.f32 %v1821, %v2279
    %v2282 = vadd.f32 %v1822, %v2280
    %v2283 = vld [vmem:[%s45] sm:$0x1]
    %v2285 = vperm.slane %v2283, 0
    %v2287 = vadd.f32 %v2281, %v2285
    %v2288 = vadd.f32 %v2282, %v2285
    %v2289 = vsel %vm481, %v2287, 0.0
    %2290 = vadd.xlane.f32.xlu0 %v2289
    %v2291 = vpop.xlane.xlu0 %2290
    %v2292 = vsel %vm481, %v2288, 0.0
    %2293 = vadd.xlane.f32.xlu0 %v2292
    %v2294 = vpop.xlane.xlu0 %2293
    %v2295 = vmul.f32 %v2291, %v494
    %v2296 = vmul.f32 %v2294, %v494
    %v2297 = vsub.f32 %v2287, %v2295
    %v2298 = vsub.f32 %v2288, %v2296
    %v2299 = vmul.f32 %v2297, %v2297
    %v2300 = vmul.f32 %v2298, %v2298
    %v2301 = vsel %vm481, %v2299, 0.0
    %2302 = vadd.xlane.f32.xlu0 %v2301
    %v2303 = vpop.xlane.xlu0 %2302
    %v2304 = vsel %vm481, %v2300, 0.0
    %2305 = vadd.xlane.f32.xlu0 %v2304
    %v2306 = vpop.xlane.xlu0 %2305
    %v2307 = vmul.f32 %v2303, %v494
    %v2308 = vmul.f32 %v2306, %v494
    %v2309 = vadd.f32 %v2307, 1e-06
    %v2310 = vadd.f32 %v2308, 1e-06
    %v2311 = vrsqrt.pop %v2309
    %v2312 = vmul.f32 %v2311, %v2309
    %v2313 = vmul.f32 %v2312, %v2311
    %v2314 = vmul.f32 0.5, %v2313
    %v2315 = vsub.f32 1.5, %v2314
    %v2316 = vmul.f32 %v2311, %v2315
    %vm2317 = vweird.f32 %v2309
    %vm2318 = vweird.f32 %v2311
    %vm2319 = vmor %vm2317, %vm2318
    %v2320 = vsel %vm2319, %v2311, %v2316
    %v2321 = vrsqrt.pop %v2310
    %v2322 = vmul.f32 %v2321, %v2310
    %v2323 = vmul.f32 %v2322, %v2321
    %v2324 = vmul.f32 0.5, %v2323
    %v2325 = vsub.f32 1.5, %v2324
    %v2326 = vmul.f32 %v2321, %v2325
    %vm2327 = vweird.f32 %v2310
    %vm2328 = vweird.f32 %v2321
    %vm2329 = vmor %vm2327, %vm2328
    %v2330 = vsel %vm2329, %v2321, %v2326
    %v2331 = vmul.f32 %v2297, %v2320
    %v2332 = vmul.f32 %v2298, %v2330
    %v2333 = vperm.slane %v1823, 1
    %v2334 = vmul.f32 %v2331, %v2333
    %v2335 = vmul.f32 %v2332, %v2333
    %v2336 = vperm.slane %v1824, 1
    %v2337 = vadd.f32 %v2334, %v2336
    %v2338 = vadd.f32 %v2335, %v2336
    %v2339 = vpack.c.bf16 %v2338, %v2337
    %v2340 = vld [vmem:[#allocation25] sm:$0xf]
    %v2341 = vld [vmem:[#allocation25 + $0x4] sm:$0xf]
    %v2342 = vld [vmem:[#allocation25 + $0x8] sm:$0xf]
    %v2343 = vld [vmem:[#allocation25 + $0xc] sm:$0xf]
    %v2344 = vld [vmem:[%s49] sm:$0x1]
    %v2346 = vperm.slane %v2344, 0
    %v2352 = vunpack.c.l.b16 %v2340
    %v2353 = vunpack.c.l.b16 %v2341
    %v2354 = vunpack.c.l.b16 %v2342
    %v2355 = vunpack.c.l.b16 %v2343
    %v2356 = vpack.c.b16 %v2353, %v2352
    %v2357 = vpack.c.b16 %v2355, %v2354
    %v2361 = vsel %vm481, %v2339, 0
    %2363 = vmatpush.bf16.msra.mxu0 0
    %2364 = vmatpush.bf16.msra.mxu0 0
    %2365 = vmatpush.bf16.msra.mxu0 0
    %2366 = vmatpush.bf16.msra.mxu0 0
    %2367 = vmatpush.bf16.msra.mxu0 0
    %2368 = vmatpush.bf16.msra.mxu0 0
    %2369 = vmatpush.bf16.msra.mxu0 %v2357
    %2370 = vmatpush.bf16.msra.mxu0 %v2356
    %2371 = vmatmul.bf16.gmra.mxu0 %v2361
    %v2372 = vpop.f32.mrf.mxu0
    %v2373 = vadd.f32 %v2346, %v2372
    %v2374 = vpop.f32.mrf.mxu0
    %v2375 = vadd.f32 %v2346, %v2374
    %2376 = vdwg.mxu0
    %v2377 = vld [vmem:[#allocation26] sm:$0xf]
    %v2378 = vld [vmem:[#allocation26 + $0x4] sm:$0xf]
    %v2379 = vld [vmem:[#allocation26 + $0x8] sm:$0xf]
    %v2380 = vld [vmem:[#allocation26 + $0xc] sm:$0xf]
    %v2381 = vld [vmem:[%s53] sm:$0x1]
    %v2383 = vperm.slane %v2381, 0
    %v2389 = vunpack.c.l.b16 %v2377
    %v2390 = vunpack.c.l.b16 %v2378
    %v2391 = vunpack.c.l.b16 %v2379
    %v2392 = vunpack.c.l.b16 %v2380
    %v2393 = vpack.c.b16 %v2390, %v2389
    %v2394 = vpack.c.b16 %v2392, %v2391
    %v2398 = vsel %vm481, %v1820, 0
    %2400 = vmatpush.bf16.msra.mxu0 0
    %2401 = vmatpush.bf16.msra.mxu0 0
    %2402 = vmatpush.bf16.msra.mxu0 0
    %2403 = vmatpush.bf16.msra.mxu0 0
    %2404 = vmatpush.bf16.msra.mxu0 0
    %2405 = vmatpush.bf16.msra.mxu0 0
    %2406 = vmatpush.bf16.msra.mxu0 %v2394
    %2407 = vmatpush.bf16.msra.mxu0 %v2393
    %2408 = vmatmul.bf16.gmra.mxu0 %v2398
    %v2409 = vpop.f32.mrf.mxu0
    %v2410 = vadd.f32 %v2383, %v2409
    %v2411 = vpop.f32.mrf.mxu0
    %v2412 = vadd.f32 %v2383, %v2411
    %2413 = vdwg.mxu0
    %v2414 = vld [vmem:[#allocation28] sm:$0xf]
    %v2415 = vld [vmem:[#allocation28 + $0x4] sm:$0xf]
    %v2416 = vld [vmem:[#allocation28 + $0x8] sm:$0xf]
    %v2417 = vld [vmem:[#allocation28 + $0xc] sm:$0xf]
    %v2418 = vpack.c.bf16 %v2375, %v2373
    %v2419 = vpack.c.bf16 %v2412, %v2410
    %v2421 = vsel %vm585, %v2418, 0
    %v2424 = vsel %vm585, %v2419, 0
    %2426 = vmatpush.bf16.xpose.msra.mxu0 0
    %2427 = vmatpush.bf16.xpose.msra.mxu0 0
    %2428 = vmatpush.bf16.xpose.msra.mxu0 0
    %2429 = vmatpush.bf16.xpose.msra.mxu0 0
    %2430 = vmatpush.bf16.xpose.msra.mxu0 0
    %2431 = vmatpush.bf16.xpose.msra.mxu0 0
    %2432 = vmatpush.bf16.xpose.msra.mxu0 0
    %2433 = vmatpush.bf16.xpose.msra.mxu0 %v2424
    %2434 = vmatmul.bf16.gmra.mxu0 %v2421
    %v2435 = vpop.f32.mrf.mxu0
    %v2436 = vadd.f32 %v475, %v2435
    %v2437 = vpop.f32.mrf.mxu0
    %v2438 = vadd.f32 %v476, %v2437
    %2439 = vdwg.mxu0
    %v2440 = vsel %vm606, %v2436, -inf
    %2441 = vmax.xlane.f32.xlu0 %v2440
    %v2442 = vpop.xlane.xlu0 %2441
    %v2443 = vsel %vm606, %v2438, -inf
    %2444 = vmax.xlane.f32.xlu0 %v2443
    %v2445 = vpop.xlane.xlu0 %2444
    %v2446 = vsub.f32 %v2436, %v2442
    %v2447 = vsub.f32 %v2438, %v2445
    %v2448 = vmul.f32 %v2446, 1.442695
    %v2449 = vpow.pop %v2448
    %v2450 = vmul.f32 %v2447, 1.442695
    %v2451 = vpow.pop %v2450
    %v2452 = vsel %vm606, %v2449, 0.0
    %2453 = vadd.xlane.f32.xlu0 %v2452
    %v2454 = vpop.xlane.xlu0 %2453
    %v2455 = vsel %vm606, %v2451, 0.0
    %2456 = vadd.xlane.f32.xlu0 %v2455
    %v2457 = vpop.xlane.xlu0 %2456
    %v2458 = vmax.f32 %v2454, 1e-06
    %v2459 = vmax.f32 %v2457, 1e-06
    %v2460 = vrcp.pop %v2458
    %v2461 = vrcp.pop %v2459
    %v2462 = vmul.f32 %v2449, %v2460
    %v2463 = vmul.f32 %v2451, %v2461
    %v2464 = vpack.c.bf16 %v2463, %v2462
    %2466 = vrot.lane.b32.xlu0 %v2419, 96
    %v2467 = vpop.permute.xlu0 %2466
    %v2470 = vsel %vm606, %v2464, 0
    %2472 = vmatpush.bf16.msra.mxu0 0
    %2473 = vmatpush.bf16.msra.mxu0 0
    %2474 = vmatpush.bf16.msra.mxu0 0
    %2475 = vmatpush.bf16.msra.mxu0 0
    %2476 = vmatpush.bf16.msra.mxu0 0
    %2477 = vmatpush.bf16.msra.mxu0 0
    %2478 = vmatpush.bf16.msra.mxu0 0
    %2479 = vmatpush.bf16.msra.mxu0 %v2467
    %2480 = vmatmul.bf16.gmra.mxu0 %v2470
    %v2481 = vpop.f32.mrf.mxu0
    %v2482 = vadd.f32 0.0, %v2481
    %v2483 = vpop.f32.mrf.mxu0
    %v2484 = vadd.f32 0.0, %v2483
    %2485 = vdwg.mxu0
    %v2486 = vpack.c.bf16 %v2484, %v2482
    %2488 = vrot.lane.b32.xlu0 %v2418, 120
    %v2489 = vpop.permute.xlu0 %2488
    %2490 = vrot.lane.b32.xlu0 %v2419, 120
    %v2491 = vpop.permute.xlu0 %2490
    %v2493 = vsel %vm585, %v2489, 0
    %v2496 = vsel %vm585, %v2491, 0
    %2498 = vmatpush.bf16.xpose.msra.mxu0 0
    %2499 = vmatpush.bf16.xpose.msra.mxu0 0
    %2500 = vmatpush.bf16.xpose.msra.mxu0 0
    %2501 = vmatpush.bf16.xpose.msra.mxu0 0
    %2502 = vmatpush.bf16.xpose.msra.mxu0 0
    %2503 = vmatpush.bf16.xpose.msra.mxu0 0
    %2504 = vmatpush.bf16.xpose.msra.mxu0 0
    %2505 = vmatpush.bf16.xpose.msra.mxu0 %v2496
    %2506 = vmatmul.bf16.gmra.mxu0 %v2493
    %v2507 = vpop.f32.mrf.mxu0
    %v2508 = vadd.f32 %v475, %v2507
    %v2509 = vpop.f32.mrf.mxu0
    %v2510 = vadd.f32 %v476, %v2509
    %2511 = vdwg.mxu0
    %v2512 = vsel %vm606, %v2508, -inf
    %2513 = vmax.xlane.f32.xlu0 %v2512
    %v2514 = vpop.xlane.xlu0 %2513
    %v2515 = vsel %vm606, %v2510, -inf
    %2516 = vmax.xlane.f32.xlu0 %v2515
    %v2517 = vpop.xlane.xlu0 %2516
    %v2518 = vsub.f32 %v2508, %v2514
    %v2519 = vsub.f32 %v2510, %v2517
    %v2520 = vmul.f32 %v2518, 1.442695
    %v2521 = vpow.pop %v2520
    %v2522 = vmul.f32 %v2519, 1.442695
    %v2523 = vpow.pop %v2522
    %v2524 = vsel %vm606, %v2521, 0.0
    %2525 = vadd.xlane.f32.xlu0 %v2524
    %v2526 = vpop.xlane.xlu0 %2525
    %v2527 = vsel %vm606, %v2523, 0.0
    %2528 = vadd.xlane.f32.xlu0 %v2527
    %v2529 = vpop.xlane.xlu0 %2528
    %v2530 = vmax.f32 %v2526, 1e-06
    %v2531 = vmax.f32 %v2529, 1e-06
    %v2532 = vrcp.pop %v2530
    %v2533 = vrcp.pop %v2531
    %v2534 = vmul.f32 %v2521, %v2532
    %v2535 = vmul.f32 %v2523, %v2533
    %v2536 = vpack.c.bf16 %v2535, %v2534
    %2537 = vrot.lane.b32.xlu0 %v2419, 88
    %v2538 = vpop.permute.xlu0 %2537
    %v2541 = vsel %vm606, %v2536, 0
    %2543 = vmatpush.bf16.msra.mxu0 0
    %2544 = vmatpush.bf16.msra.mxu0 0
    %2545 = vmatpush.bf16.msra.mxu0 0
    %2546 = vmatpush.bf16.msra.mxu0 0
    %2547 = vmatpush.bf16.msra.mxu0 0
    %2548 = vmatpush.bf16.msra.mxu0 0
    %2549 = vmatpush.bf16.msra.mxu0 0
    %2550 = vmatpush.bf16.msra.mxu0 %v2538
    %2551 = vmatmul.bf16.gmra.mxu0 %v2541
    %v2552 = vpop.f32.mrf.mxu0
    %v2553 = vadd.f32 0.0, %v2552
    %v2554 = vpop.f32.mrf.mxu0
    %v2555 = vadd.f32 0.0, %v2554
    %2556 = vdwg.mxu0
    %v2557 = vpack.c.bf16 %v2555, %v2553
    %v2559 = vsel %vm585, %v2557, 0
    %v2562 = vsel %vm726, %v2415, 0
    %2564 = vmatpush.bf16.msra.mxu0 0
    %2565 = vmatpush.bf16.msra.mxu0 0
    %2566 = vmatpush.bf16.msra.mxu0 0
    %2567 = vmatpush.bf16.msra.mxu0 0
    %2568 = vmatpush.bf16.msra.mxu0 0
    %2569 = vmatpush.bf16.msra.mxu0 0
    %2570 = vmatpush.bf16.msra.mxu0 0
    %2571 = vmatpush.bf16.msra.mxu0 %v2562
    %2572 = vmatmul.bf16.gmra.mxu0 %v2559
    %v2573 = vpop.f32.mrf.mxu0
    %v2574 = vadd.f32 0.0, %v2573
    %v2575 = vpop.f32.mrf.mxu0
    %v2576 = vadd.f32 0.0, %v2575
    %2577 = vdwg.mxu0
    %v2579 = vsel %vm585, %v2486, 0
    %v2582 = vsel %vm726, %v2414, 0
    %2584 = vmatpush.bf16.msra.mxu0 0
    %2585 = vmatpush.bf16.msra.mxu0 0
    %2586 = vmatpush.bf16.msra.mxu0 0
    %2587 = vmatpush.bf16.msra.mxu0 0
    %2588 = vmatpush.bf16.msra.mxu0 0
    %2589 = vmatpush.bf16.msra.mxu0 0
    %2590 = vmatpush.bf16.msra.mxu0 0
    %2591 = vmatpush.bf16.msra.mxu0 %v2582
    %2592 = vmatmul.bf16.gmra.mxu0 %v2579
    %v2593 = vpop.f32.mrf.mxu0
    %v2594 = vadd.f32 %v2574, %v2593
    %v2595 = vpop.f32.mrf.mxu0
    %v2596 = vadd.f32 %v2576, %v2595
    %2597 = vdwg.mxu0
    %2598 = vrot.lane.b32.xlu0 %v2418, 112
    %v2599 = vpop.permute.xlu0 %2598
    %2600 = vrot.lane.b32.xlu0 %v2419, 112
    %v2601 = vpop.permute.xlu0 %2600
    %v2603 = vsel %vm585, %v2599, 0
    %v2606 = vsel %vm585, %v2601, 0
    %2608 = vmatpush.bf16.xpose.msra.mxu0 0
    %2609 = vmatpush.bf16.xpose.msra.mxu0 0
    %2610 = vmatpush.bf16.xpose.msra.mxu0 0
    %2611 = vmatpush.bf16.xpose.msra.mxu0 0
    %2612 = vmatpush.bf16.xpose.msra.mxu0 0
    %2613 = vmatpush.bf16.xpose.msra.mxu0 0
    %2614 = vmatpush.bf16.xpose.msra.mxu0 0
    %2615 = vmatpush.bf16.xpose.msra.mxu0 %v2606
    %2616 = vmatmul.bf16.gmra.mxu0 %v2603
    %v2617 = vpop.f32.mrf.mxu0
    %v2618 = vadd.f32 %v475, %v2617
    %v2619 = vpop.f32.mrf.mxu0
    %v2620 = vadd.f32 %v476, %v2619
    %2621 = vdwg.mxu0
    %v2622 = vsel %vm606, %v2618, -inf
    %2623 = vmax.xlane.f32.xlu0 %v2622
    %v2624 = vpop.xlane.xlu0 %2623
    %v2625 = vsel %vm606, %v2620, -inf
    %2626 = vmax.xlane.f32.xlu0 %v2625
    %v2627 = vpop.xlane.xlu0 %2626
    %v2628 = vsub.f32 %v2618, %v2624
    %v2629 = vsub.f32 %v2620, %v2627
    %v2630 = vmul.f32 %v2628, 1.442695
    %v2631 = vpow.pop %v2630
    %v2632 = vmul.f32 %v2629, 1.442695
    %v2633 = vpow.pop %v2632
    %v2634 = vsel %vm606, %v2631, 0.0
    %2635 = vadd.xlane.f32.xlu0 %v2634
    %v2636 = vpop.xlane.xlu0 %2635
    %v2637 = vsel %vm606, %v2633, 0.0
    %2638 = vadd.xlane.f32.xlu0 %v2637
    %v2639 = vpop.xlane.xlu0 %2638
    %v2640 = vmax.f32 %v2636, 1e-06
    %v2641 = vmax.f32 %v2639, 1e-06
    %v2642 = vrcp.pop %v2640
    %v2643 = vrcp.pop %v2641
    %v2644 = vmul.f32 %v2631, %v2642
    %v2645 = vmul.f32 %v2633, %v2643
    %v2646 = vpack.c.bf16 %v2645, %v2644
    %2647 = vrot.lane.b32.xlu0 %v2419, 80
    %v2648 = vpop.permute.xlu0 %2647
    %v2651 = vsel %vm606, %v2646, 0
    %2653 = vmatpush.bf16.msra.mxu0 0
    %2654 = vmatpush.bf16.msra.mxu0 0
    %2655 = vmatpush.bf16.msra.mxu0 0
    %2656 = vmatpush.bf16.msra.mxu0 0
    %2657 = vmatpush.bf16.msra.mxu0 0
    %2658 = vmatpush.bf16.msra.mxu0 0
    %2659 = vmatpush.bf16.msra.mxu0 0
    %2660 = vmatpush.bf16.msra.mxu0 %v2648
    %2661 = vmatmul.bf16.gmra.mxu0 %v2651
    %v2662 = vpop.f32.mrf.mxu0
    %v2663 = vadd.f32 0.0, %v2662
    %v2664 = vpop.f32.mrf.mxu0
    %v2665 = vadd.f32 0.0, %v2664
    %2666 = vdwg.mxu0
    %v2667 = vpack.c.bf16 %v2665, %v2663
    %v2669 = vsel %vm585, %v2667, 0
    %v2672 = vsel %vm726, %v2416, 0
    %2674 = vmatpush.bf16.msra.mxu0 0
    %2675 = vmatpush.bf16.msra.mxu0 0
    %2676 = vmatpush.bf16.msra.mxu0 0
    %2677 = vmatpush.bf16.msra.mxu0 0
    %2678 = vmatpush.bf16.msra.mxu0 0
    %2679 = vmatpush.bf16.msra.mxu0 0
    %2680 = vmatpush.bf16.msra.mxu0 0
    %2681 = vmatpush.bf16.msra.mxu0 %v2672
    %2682 = vmatmul.bf16.gmra.mxu0 %v2669
    %v2683 = vpop.f32.mrf.mxu0
    %v2684 = vadd.f32 0.0, %v2683
    %v2685 = vpop.f32.mrf.mxu0
    %v2686 = vadd.f32 0.0, %v2685
    %2687 = vdwg.mxu0
    %v2688 = vadd.f32 %v2594, %v2684
    %v2689 = vadd.f32 %v2596, %v2686
    %2690 = vrot.lane.b32.xlu0 %v2418, 104
    %v2691 = vpop.permute.xlu0 %2690
    %2692 = vrot.lane.b32.xlu0 %v2419, 104
    %v2693 = vpop.permute.xlu0 %2692
    %v2695 = vsel %vm585, %v2691, 0
    %v2698 = vsel %vm585, %v2693, 0
    %2700 = vmatpush.bf16.xpose.msra.mxu0 0
    %2701 = vmatpush.bf16.xpose.msra.mxu0 0
    %2702 = vmatpush.bf16.xpose.msra.mxu0 0
    %2703 = vmatpush.bf16.xpose.msra.mxu0 0
    %2704 = vmatpush.bf16.xpose.msra.mxu0 0
    %2705 = vmatpush.bf16.xpose.msra.mxu0 0
    %2706 = vmatpush.bf16.xpose.msra.mxu0 0
    %2707 = vmatpush.bf16.xpose.msra.mxu0 %v2698
    %2708 = vmatmul.bf16.gmra.mxu0 %v2695
    %v2709 = vpop.f32.mrf.mxu0
    %v2710 = vadd.f32 %v475, %v2709
    %v2711 = vpop.f32.mrf.mxu0
    %v2712 = vadd.f32 %v476, %v2711
    %2713 = vdwg.mxu0
    %v2714 = vsel %vm606, %v2710, -inf
    %2715 = vmax.xlane.f32.xlu0 %v2714
    %v2716 = vpop.xlane.xlu0 %2715
    %v2717 = vsel %vm606, %v2712, -inf
    %2718 = vmax.xlane.f32.xlu0 %v2717
    %v2719 = vpop.xlane.xlu0 %2718
    %v2720 = vsub.f32 %v2710, %v2716
    %v2721 = vsub.f32 %v2712, %v2719
    %v2722 = vmul.f32 %v2720, 1.442695
    %v2723 = vpow.pop %v2722
    %v2724 = vmul.f32 %v2721, 1.442695
    %v2725 = vpow.pop %v2724
    %v2726 = vsel %vm606, %v2723, 0.0
    %2727 = vadd.xlane.f32.xlu0 %v2726
    %v2728 = vpop.xlane.xlu0 %2727
    %v2729 = vsel %vm606, %v2725, 0.0
    %2730 = vadd.xlane.f32.xlu0 %v2729
    %v2731 = vpop.xlane.xlu0 %2730
    %v2732 = vmax.f32 %v2728, 1e-06
    %v2733 = vmax.f32 %v2731, 1e-06
    %v2734 = vrcp.pop %v2732
    %v2735 = vrcp.pop %v2733
    %v2736 = vmul.f32 %v2723, %v2734
    %v2737 = vmul.f32 %v2725, %v2735
    %v2738 = vpack.c.bf16 %v2737, %v2736
    %2739 = vrot.lane.b32.xlu0 %v2419, 72
    %v2740 = vpop.permute.xlu0 %2739
    %v2743 = vsel %vm606, %v2738, 0
    %2745 = vmatpush.bf16.msra.mxu0 0
    %2746 = vmatpush.bf16.msra.mxu0 0
    %2747 = vmatpush.bf16.msra.mxu0 0
    %2748 = vmatpush.bf16.msra.mxu0 0
    %2749 = vmatpush.bf16.msra.mxu0 0
    %2750 = vmatpush.bf16.msra.mxu0 0
    %2751 = vmatpush.bf16.msra.mxu0 0
    %2752 = vmatpush.bf16.msra.mxu0 %v2740
    %2753 = vmatmul.bf16.gmra.mxu0 %v2743
    %v2754 = vpop.f32.mrf.mxu0
    %v2755 = vadd.f32 0.0, %v2754
    %v2756 = vpop.f32.mrf.mxu0
    %v2757 = vadd.f32 0.0, %v2756
    %2758 = vdwg.mxu0
    %v2759 = vpack.c.bf16 %v2757, %v2755
    %v2761 = vsel %vm585, %v2759, 0
    %v2764 = vsel %vm726, %v2417, 0
    %2766 = vmatpush.bf16.msra.mxu0 0
    %2767 = vmatpush.bf16.msra.mxu0 0
    %2768 = vmatpush.bf16.msra.mxu0 0
    %2769 = vmatpush.bf16.msra.mxu0 0
    %2770 = vmatpush.bf16.msra.mxu0 0
    %2771 = vmatpush.bf16.msra.mxu0 0
    %2772 = vmatpush.bf16.msra.mxu0 0
    %2773 = vmatpush.bf16.msra.mxu0 %v2764
    %2774 = vmatmul.bf16.gmra.mxu0 %v2761
    %v2775 = vpop.f32.mrf.mxu0
    %v2776 = vadd.f32 0.0, %v2775
    %v2777 = vpop.f32.mrf.mxu0
    %v2778 = vadd.f32 0.0, %v2777
    %2779 = vdwg.mxu0
    %v2780 = vadd.f32 %v2688, %v2776
    %v2781 = vadd.f32 %v2689, %v2778
    %v2782 = vadd.f32 %v2287, %v2780
    %v2783 = vadd.f32 %v2288, %v2781
    %v2784 = vld [vmem:[%s57] sm:$0x1]
    %v2786 = vperm.slane %v2784, 0
    %v2788 = vadd.f32 %v2782, %v2786
    %v2789 = vadd.f32 %v2783, %v2786
    %v2790 = vsel %vm481, %v2788, 0.0
    %2791 = vadd.xlane.f32.xlu0 %v2790
    %v2792 = vpop.xlane.xlu0 %2791
    %v2793 = vsel %vm481, %v2789, 0.0
    %2794 = vadd.xlane.f32.xlu0 %v2793
    %v2795 = vpop.xlane.xlu0 %2794
    %v2796 = vmul.f32 %v2792, %v494
    %v2797 = vmul.f32 %v2795, %v494
    %v2798 = vsub.f32 %v2788, %v2796
    %v2799 = vsub.f32 %v2789, %v2797
    %v2800 = vmul.f32 %v2798, %v2798
    %v2801 = vmul.f32 %v2799, %v2799
    %v2802 = vsel %vm481, %v2800, 0.0
    %2803 = vadd.xlane.f32.xlu0 %v2802
    %v2804 = vpop.xlane.xlu0 %2803
    %v2805 = vsel %vm481, %v2801, 0.0
    %2806 = vadd.xlane.f32.xlu0 %v2805
    %v2807 = vpop.xlane.xlu0 %2806
    %v2808 = vmul.f32 %v2804, %v494
    %v2809 = vmul.f32 %v2807, %v494
    %v2810 = vadd.f32 %v2808, 1e-06
    %v2811 = vadd.f32 %v2809, 1e-06
    %v2812 = vrsqrt.pop %v2810
    %v2813 = vmul.f32 %v2812, %v2810
    %v2814 = vmul.f32 %v2813, %v2812
    %v2815 = vmul.f32 0.5, %v2814
    %v2816 = vsub.f32 1.5, %v2815
    %v2817 = vmul.f32 %v2812, %v2816
    %vm2818 = vweird.f32 %v2810
    %vm2819 = vweird.f32 %v2812
    %vm2820 = vmor %vm2818, %vm2819
    %v2821 = vsel %vm2820, %v2812, %v2817
    %v2822 = vrsqrt.pop %v2811
    %v2823 = vmul.f32 %v2822, %v2811
    %v2824 = vmul.f32 %v2823, %v2822
    %v2825 = vmul.f32 0.5, %v2824
    %v2826 = vsub.f32 1.5, %v2825
    %v2827 = vmul.f32 %v2822, %v2826
    %vm2828 = vweird.f32 %v2811
    %vm2829 = vweird.f32 %v2822
    %vm2830 = vmor %vm2828, %vm2829
    %v2831 = vsel %vm2830, %v2822, %v2827
    %v2832 = vmul.f32 %v2798, %v2821
    %v2833 = vmul.f32 %v2799, %v2831
    %v2834 = vperm.slane %v1823, 2
    %v2835 = vmul.f32 %v2832, %v2834
    %v2836 = vmul.f32 %v2833, %v2834
    %v2837 = vperm.slane %v1824, 2
    %v2838 = vadd.f32 %v2835, %v2837
    %v2839 = vadd.f32 %v2836, %v2837
    %v2840 = vpack.c.bf16 %v2839, %v2838
    %v2841 = vld [vmem:[#allocation29] sm:$0xf]
    %v2842 = vld [vmem:[#allocation29 + $0x4] sm:$0xf]
    %v2843 = vld [vmem:[#allocation29 + $0x8] sm:$0xf]
    %v2844 = vld [vmem:[#allocation29 + $0xc] sm:$0xf]
    %v2845 = vld [vmem:[%s61] sm:$0x1]
    %v2847 = vperm.slane %v2845, 0
    %v2853 = vunpack.c.l.b16 %v2841
    %v2854 = vunpack.c.l.b16 %v2842
    %v2855 = vunpack.c.l.b16 %v2843
    %v2856 = vunpack.c.l.b16 %v2844
    %v2857 = vpack.c.b16 %v2854, %v2853
    %v2858 = vpack.c.b16 %v2856, %v2855
    %v2862 = vsel %vm481, %v2840, 0
    %2864 = vmatpush.bf16.msra.mxu0 0
    %2865 = vmatpush.bf16.msra.mxu0 0
    %2866 = vmatpush.bf16.msra.mxu0 0
    %2867 = vmatpush.bf16.msra.mxu0 0
    %2868 = vmatpush.bf16.msra.mxu0 0
    %2869 = vmatpush.bf16.msra.mxu0 0
    %2870 = vmatpush.bf16.msra.mxu0 %v2858
    %2871 = vmatpush.bf16.msra.mxu0 %v2857
    %2872 = vmatmul.bf16.gmra.mxu0 %v2862
    %v2873 = vpop.f32.mrf.mxu0
    %v2874 = vadd.f32 %v2847, %v2873
    %v2875 = vpop.f32.mrf.mxu0
    %v2876 = vadd.f32 %v2847, %v2875
    %2877 = vdwg.mxu0
    %v2878 = vmax.f32 %v2874, 0.0
    %v2879 = vmax.f32 %v2876, 0.0
    %v2880 = vpack.c.bf16 %v2879, %v2878
    %v2881 = vld [vmem:[%s63] sm:$0xf]
    %v2882 = vld [vmem:[%s63 + $0x4] sm:$0xf]
    %v2883 = vld [vmem:[%s63 + $0x8] sm:$0xf]
    %v2884 = vld [vmem:[%s63 + $0xc] sm:$0xf]
    %v2885 = vld [vmem:[%s63 + $0x10] sm:$0xf]
    %v2886 = vld [vmem:[%s63 + $0x14] sm:$0xf]
    %v2887 = vld [vmem:[%s63 + $0x18] sm:$0xf]
    %v2888 = vld [vmem:[%s63 + $0x1c] sm:$0xf]
    %v2897 = vunpack.c.l.b16 %v2881
    %v2898 = vunpack.c.l.b16 %v2882
    %v2899 = vunpack.c.l.b16 %v2883
    %v2900 = vunpack.c.l.b16 %v2884
    %v2901 = vunpack.c.l.b16 %v2885
    %v2902 = vunpack.c.l.b16 %v2886
    %v2903 = vunpack.c.l.b16 %v2887
    %v2904 = vunpack.c.l.b16 %v2888
    %v2905 = vpack.c.b16 %v2898, %v2897
    %v2906 = vpack.c.b16 %v2900, %v2899
    %v2907 = vpack.c.b16 %v2902, %v2901
    %v2908 = vpack.c.b16 %v2904, %v2903
    %v2914 = vsel %vm1079, %v2880, 0
    %2916 = vmatpush.bf16.msra.mxu0 0
    %2917 = vmatpush.bf16.msra.mxu0 0
    %2918 = vmatpush.bf16.msra.mxu0 0
    %2919 = vmatpush.bf16.msra.mxu0 0
    %2920 = vmatpush.bf16.msra.mxu0 %v2908
    %2921 = vmatpush.bf16.msra.mxu0 %v2907
    %2922 = vmatpush.bf16.msra.mxu0 %v2906
    %2923 = vmatpush.bf16.msra.mxu0 %v2905
    %2924 = vmatmul.bf16.gmra.mxu0 %v2914
    %v2925 = vpop.f32.mrf.mxu0
    %v2926 = vadd.f32 0.0, %v2925
    %v2927 = vpop.f32.mrf.mxu0
    %v2928 = vadd.f32 0.0, %v2927
    %2929 = vdwg.mxu0
    %v2930 = vadd.f32 %v2788, %v2926
    %v2931 = vadd.f32 %v2789, %v2928
    %v2932 = vld [vmem:[%s65] sm:$0x1]
    %v2934 = vperm.slane %v2932, 0
    %v2936 = vadd.f32 %v2930, %v2934
    %v2937 = vadd.f32 %v2931, %v2934
    %s2938 = scalar_lea.vmem %s35, 4
    %v2939 = vld [vmem:[%s2938] sm:$0x7]
    %s2940 = scalar_lea.vmem %s37, 4
    %v2941 = vld [vmem:[%s2940] sm:$0x7]
    %v2942 = vsel %vm481, %v2936, 0.0
    %2943 = vadd.xlane.f32.xlu0 %v2942
    %v2944 = vpop.xlane.xlu0 %2943
    %v2945 = vsel %vm481, %v2937, 0.0
    %2946 = vadd.xlane.f32.xlu0 %v2945
    %v2947 = vpop.xlane.xlu0 %2946
    %v2948 = vmul.f32 %v2944, %v494
    %v2949 = vmul.f32 %v2947, %v494
    %v2950 = vsub.f32 %v2936, %v2948
    %v2951 = vsub.f32 %v2937, %v2949
    %v2952 = vmul.f32 %v2950, %v2950
    %v2953 = vmul.f32 %v2951, %v2951
    %v2954 = vsel %vm481, %v2952, 0.0
    %2955 = vadd.xlane.f32.xlu0 %v2954
    %v2956 = vpop.xlane.xlu0 %2955
    %v2957 = vsel %vm481, %v2953, 0.0
    %2958 = vadd.xlane.f32.xlu0 %v2957
    %v2959 = vpop.xlane.xlu0 %2958
    %v2960 = vmul.f32 %v2956, %v494
    %v2961 = vmul.f32 %v2959, %v494
    %v2962 = vadd.f32 %v2960, 1e-06
    %v2963 = vadd.f32 %v2961, 1e-06
    %v2964 = vrsqrt.pop %v2962
    %v2965 = vmul.f32 %v2964, %v2962
    %v2966 = vmul.f32 %v2965, %v2964
    %v2967 = vmul.f32 0.5, %v2966
    %v2968 = vsub.f32 1.5, %v2967
    %v2969 = vmul.f32 %v2964, %v2968
    %vm2970 = vweird.f32 %v2962
    %vm2971 = vweird.f32 %v2964
    %vm2972 = vmor %vm2970, %vm2971
    %v2973 = vsel %vm2972, %v2964, %v2969
    %v2974 = vrsqrt.pop %v2963
    %v2975 = vmul.f32 %v2974, %v2963
    %v2976 = vmul.f32 %v2975, %v2974
    %v2977 = vmul.f32 0.5, %v2976
    %v2978 = vsub.f32 1.5, %v2977
    %v2979 = vmul.f32 %v2974, %v2978
    %vm2980 = vweird.f32 %v2963
    %vm2981 = vweird.f32 %v2974
    %vm2982 = vmor %vm2980, %vm2981
    %v2983 = vsel %vm2982, %v2974, %v2979
    %v2984 = vmul.f32 %v2950, %v2973
    %v2985 = vmul.f32 %v2951, %v2983
    %v2986 = vperm.slane %v2939, 0
    %v2987 = vmul.f32 %v2984, %v2986
    %v2988 = vmul.f32 %v2985, %v2986
    %v2989 = vperm.slane %v2941, 0
    %v2990 = vadd.f32 %v2987, %v2989
    %v2991 = vadd.f32 %v2988, %v2989
    %v2992 = vpack.c.bf16 %v2991, %v2990
    %s2993 = scalar_lea.vmem %s39, 16
    %v2994 = vld [vmem:[%s2993] sm:$0xf]
    %v2995 = vld [vmem:[%s2993 + $0x4] sm:$0xf]
    %v2996 = vld [vmem:[%s2993 + $0x8] sm:$0xf]
    %v2997 = vld [vmem:[%s2993 + $0xc] sm:$0xf]
    %s2998 = scalar_lea.vmem [#allocation23], 1
    %v2999 = vld [vmem:[%s2998] sm:$0x1]
    %v3001 = vperm.slane %v2999, 0
    %v3007 = vunpack.c.l.b16 %v2994
    %v3008 = vunpack.c.l.b16 %v2995
    %v3009 = vunpack.c.l.b16 %v2996
    %v3010 = vunpack.c.l.b16 %v2997
    %v3011 = vpack.c.b16 %v3008, %v3007
    %v3012 = vpack.c.b16 %v3010, %v3009
    %v3016 = vsel %vm481, %v2992, 0
    %3018 = vmatpush.bf16.msra.mxu0 0
    %3019 = vmatpush.bf16.msra.mxu0 0
    %3020 = vmatpush.bf16.msra.mxu0 0
    %3021 = vmatpush.bf16.msra.mxu0 0
    %3022 = vmatpush.bf16.msra.mxu0 0
    %3023 = vmatpush.bf16.msra.mxu0 0
    %3024 = vmatpush.bf16.msra.mxu0 %v3012
    %3025 = vmatpush.bf16.msra.mxu0 %v3011
    %3026 = vmatmul.bf16.gmra.mxu0 %v3016
    %v3027 = vpop.f32.mrf.mxu0
    %v3028 = vadd.f32 %v3001, %v3027
    %v3029 = vpop.f32.mrf.mxu0
    %v3030 = vadd.f32 %v3001, %v3029
    %3031 = vdwg.mxu0
    %s3032 = scalar_lea.vmem %s43, 16
    %v3033 = vld [vmem:[%s3032] sm:$0xf]
    %v3034 = vld [vmem:[%s3032 + $0x4] sm:$0xf]
    %v3035 = vld [vmem:[%s3032 + $0x8] sm:$0xf]
    %v3036 = vld [vmem:[%s3032 + $0xc] sm:$0xf]
    %v3037 = vpack.c.bf16 %v3030, %v3028
    %3039 = vrot.lane.b32.xlu0 %v3037, 96
    %v3040 = vpop.permute.xlu0 %3039
    %v3042 = vsel %vm585, %v3037, 0
    %v3045 = vsel %vm585, %v3040, 0
    %3047 = vmatpush.bf16.xpose.msra.mxu0 0
    %3048 = vmatpush.bf16.xpose.msra.mxu0 0
    %3049 = vmatpush.bf16.xpose.msra.mxu0 0
    %3050 = vmatpush.bf16.xpose.msra.mxu0 0
    %3051 = vmatpush.bf16.xpose.msra.mxu0 0
    %3052 = vmatpush.bf16.xpose.msra.mxu0 0
    %3053 = vmatpush.bf16.xpose.msra.mxu0 0
    %3054 = vmatpush.bf16.xpose.msra.mxu0 %v3045
    %3055 = vmatmul.bf16.gmra.mxu0 %v3042
    %v3056 = vpop.f32.mrf.mxu0
    %v3057 = vadd.f32 %v473, %v3056
    %v3058 = vpop.f32.mrf.mxu0
    %v3059 = vadd.f32 %v474, %v3058
    %3060 = vdwg.mxu0
    %v3061 = vsel %vm606, %v3057, -inf
    %3062 = vmax.xlane.f32.xlu0 %v3061
    %v3063 = vpop.xlane.xlu0 %3062
    %v3064 = vsel %vm606, %v3059, -inf
    %3065 = vmax.xlane.f32.xlu0 %v3064
    %v3066 = vpop.xlane.xlu0 %3065
    %v3067 = vsub.f32 %v3057, %v3063
    %v3068 = vsub.f32 %v3059, %v3066
    %v3069 = vmul.f32 %v3067, 1.442695
    %v3070 = vpow.pop %v3069
    %v3071 = vmul.f32 %v3068, 1.442695
    %v3072 = vpow.pop %v3071
    %v3073 = vsel %vm606, %v3070, 0.0
    %3074 = vadd.xlane.f32.xlu0 %v3073
    %v3075 = vpop.xlane.xlu0 %3074
    %v3076 = vsel %vm606, %v3072, 0.0
    %3077 = vadd.xlane.f32.xlu0 %v3076
    %v3078 = vpop.xlane.xlu0 %3077
    %v3079 = vmax.f32 %v3075, 1e-06
    %v3080 = vmax.f32 %v3078, 1e-06
    %v3081 = vrcp.pop %v3079
    %v3082 = vrcp.pop %v3080
    %v3083 = vmul.f32 %v3070, %v3081
    %v3084 = vmul.f32 %v3072, %v3082
    %v3085 = vpack.c.bf16 %v3084, %v3083
    %3086 = vrot.lane.b32.xlu0 %v3037, 64
    %v3087 = vpop.permute.xlu0 %3086
    %v3090 = vsel %vm606, %v3085, 0
    %3092 = vmatpush.bf16.msra.mxu0 0
    %3093 = vmatpush.bf16.msra.mxu0 0
    %3094 = vmatpush.bf16.msra.mxu0 0
    %3095 = vmatpush.bf16.msra.mxu0 0
    %3096 = vmatpush.bf16.msra.mxu0 0
    %3097 = vmatpush.bf16.msra.mxu0 0
    %3098 = vmatpush.bf16.msra.mxu0 0
    %3099 = vmatpush.bf16.msra.mxu0 %v3087
    %3100 = vmatmul.bf16.gmra.mxu0 %v3090
    %v3101 = vpop.f32.mrf.mxu0
    %v3102 = vadd.f32 0.0, %v3101
    %v3103 = vpop.f32.mrf.mxu0
    %v3104 = vadd.f32 0.0, %v3103
    %3105 = vdwg.mxu0
    %v3106 = vpack.c.bf16 %v3104, %v3102
    %3107 = vrot.lane.b32.xlu0 %v3037, 120
    %v3108 = vpop.permute.xlu0 %3107
    %3109 = vrot.lane.b32.xlu0 %v3037, 88
    %v3110 = vpop.permute.xlu0 %3109
    %v3112 = vsel %vm585, %v3108, 0
    %v3115 = vsel %vm585, %v3110, 0
    %3117 = vmatpush.bf16.xpose.msra.mxu0 0
    %3118 = vmatpush.bf16.xpose.msra.mxu0 0
    %3119 = vmatpush.bf16.xpose.msra.mxu0 0
    %3120 = vmatpush.bf16.xpose.msra.mxu0 0
    %3121 = vmatpush.bf16.xpose.msra.mxu0 0
    %3122 = vmatpush.bf16.xpose.msra.mxu0 0
    %3123 = vmatpush.bf16.xpose.msra.mxu0 0
    %3124 = vmatpush.bf16.xpose.msra.mxu0 %v3115
    %3125 = vmatmul.bf16.gmra.mxu0 %v3112
    %v3126 = vpop.f32.mrf.mxu0
    %v3127 = vadd.f32 %v473, %v3126
    %v3128 = vpop.f32.mrf.mxu0
    %v3129 = vadd.f32 %v474, %v3128
    %3130 = vdwg.mxu0
    %v3131 = vsel %vm606, %v3127, -inf
    %3132 = vmax.xlane.f32.xlu0 %v3131
    %v3133 = vpop.xlane.xlu0 %3132
    %v3134 = vsel %vm606, %v3129, -inf
    %3135 = vmax.xlane.f32.xlu0 %v3134
    %v3136 = vpop.xlane.xlu0 %3135
    %v3137 = vsub.f32 %v3127, %v3133
    %v3138 = vsub.f32 %v3129, %v3136
    %v3139 = vmul.f32 %v3137, 1.442695
    %v3140 = vpow.pop %v3139
    %v3141 = vmul.f32 %v3138, 1.442695
    %v3142 = vpow.pop %v3141
    %v3143 = vsel %vm606, %v3140, 0.0
    %3144 = vadd.xlane.f32.xlu0 %v3143
    %v3145 = vpop.xlane.xlu0 %3144
    %v3146 = vsel %vm606, %v3142, 0.0
    %3147 = vadd.xlane.f32.xlu0 %v3146
    %v3148 = vpop.xlane.xlu0 %3147
    %v3149 = vmax.f32 %v3145, 1e-06
    %v3150 = vmax.f32 %v3148, 1e-06
    %v3151 = vrcp.pop %v3149
    %v3152 = vrcp.pop %v3150
    %v3153 = vmul.f32 %v3140, %v3151
    %v3154 = vmul.f32 %v3142, %v3152
    %v3155 = vpack.c.bf16 %v3154, %v3153
    %3156 = vrot.lane.b32.xlu0 %v3037, 56
    %v3157 = vpop.permute.xlu0 %3156
    %v3160 = vsel %vm606, %v3155, 0
    %3162 = vmatpush.bf16.msra.mxu0 0
    %3163 = vmatpush.bf16.msra.mxu0 0
    %3164 = vmatpush.bf16.msra.mxu0 0
    %3165 = vmatpush.bf16.msra.mxu0 0
    %3166 = vmatpush.bf16.msra.mxu0 0
    %3167 = vmatpush.bf16.msra.mxu0 0
    %3168 = vmatpush.bf16.msra.mxu0 0
    %3169 = vmatpush.bf16.msra.mxu0 %v3157
    %3170 = vmatmul.bf16.gmra.mxu0 %v3160
    %v3171 = vpop.f32.mrf.mxu0
    %v3172 = vadd.f32 0.0, %v3171
    %v3173 = vpop.f32.mrf.mxu0
    %v3174 = vadd.f32 0.0, %v3173
    %3175 = vdwg.mxu0
    %v3176 = vpack.c.bf16 %v3174, %v3172
    %v3178 = vsel %vm585, %v3176, 0
    %v3181 = vsel %vm726, %v3034, 0
    %3183 = vmatpush.bf16.msra.mxu0 0
    %3184 = vmatpush.bf16.msra.mxu0 0
    %3185 = vmatpush.bf16.msra.mxu0 0
    %3186 = vmatpush.bf16.msra.mxu0 0
    %3187 = vmatpush.bf16.msra.mxu0 0
    %3188 = vmatpush.bf16.msra.mxu0 0
    %3189 = vmatpush.bf16.msra.mxu0 0
    %3190 = vmatpush.bf16.msra.mxu0 %v3181
    %3191 = vmatmul.bf16.gmra.mxu0 %v3178
    %v3192 = vpop.f32.mrf.mxu0
    %v3193 = vadd.f32 0.0, %v3192
    %v3194 = vpop.f32.mrf.mxu0
    %v3195 = vadd.f32 0.0, %v3194
    %3196 = vdwg.mxu0
    %v3198 = vsel %vm585, %v3106, 0
    %v3201 = vsel %vm726, %v3033, 0
    %3203 = vmatpush.bf16.msra.mxu0 0
    %3204 = vmatpush.bf16.msra.mxu0 0
    %3205 = vmatpush.bf16.msra.mxu0 0
    %3206 = vmatpush.bf16.msra.mxu0 0
    %3207 = vmatpush.bf16.msra.mxu0 0
    %3208 = vmatpush.bf16.msra.mxu0 0
    %3209 = vmatpush.bf16.msra.mxu0 0
    %3210 = vmatpush.bf16.msra.mxu0 %v3201
    %3211 = vmatmul.bf16.gmra.mxu0 %v3198
    %v3212 = vpop.f32.mrf.mxu0
    %v3213 = vadd.f32 %v3193, %v3212
    %v3214 = vpop.f32.mrf.mxu0
    %v3215 = vadd.f32 %v3195, %v3214
    %3216 = vdwg.mxu0
    %3217 = vrot.lane.b32.xlu0 %v3037, 112
    %v3218 = vpop.permute.xlu0 %3217
    %3219 = vrot.lane.b32.xlu0 %v3037, 80
    %v3220 = vpop.permute.xlu0 %3219
    %v3222 = vsel %vm585, %v3218, 0
    %v3225 = vsel %vm585, %v3220, 0
    %3227 = vmatpush.bf16.xpose.msra.mxu0 0
    %3228 = vmatpush.bf16.xpose.msra.mxu0 0
    %3229 = vmatpush.bf16.xpose.msra.mxu0 0
    %3230 = vmatpush.bf16.xpose.msra.mxu0 0
    %3231 = vmatpush.bf16.xpose.msra.mxu0 0
    %3232 = vmatpush.bf16.xpose.msra.mxu0 0
    %3233 = vmatpush.bf16.xpose.msra.mxu0 0
    %3234 = vmatpush.bf16.xpose.msra.mxu0 %v3225
    %3235 = vmatmul.bf16.gmra.mxu0 %v3222
    %v3236 = vpop.f32.mrf.mxu0
    %v3237 = vadd.f32 %v473, %v3236
    %v3238 = vpop.f32.mrf.mxu0
    %v3239 = vadd.f32 %v474, %v3238
    %3240 = vdwg.mxu0
    %v3241 = vsel %vm606, %v3237, -inf
    %3242 = vmax.xlane.f32.xlu0 %v3241
    %v3243 = vpop.xlane.xlu0 %3242
    %v3244 = vsel %vm606, %v3239, -inf
    %3245 = vmax.xlane.f32.xlu0 %v3244
    %v3246 = vpop.xlane.xlu0 %3245
    %v3247 = vsub.f32 %v3237, %v3243
    %v3248 = vsub.f32 %v3239, %v3246
    %v3249 = vmul.f32 %v3247, 1.442695
    %v3250 = vpow.pop %v3249
    %v3251 = vmul.f32 %v3248, 1.442695
    %v3252 = vpow.pop %v3251
    %v3253 = vsel %vm606, %v3250, 0.0
    %3254 = vadd.xlane.f32.xlu0 %v3253
    %v3255 = vpop.xlane.xlu0 %3254
    %v3256 = vsel %vm606, %v3252, 0.0
    %3257 = vadd.xlane.f32.xlu0 %v3256
    %v3258 = vpop.xlane.xlu0 %3257
    %v3259 = vmax.f32 %v3255, 1e-06
    %v3260 = vmax.f32 %v3258, 1e-06
    %v3261 = vrcp.pop %v3259
    %v3262 = vrcp.pop %v3260
    %v3263 = vmul.f32 %v3250, %v3261
    %v3264 = vmul.f32 %v3252, %v3262
    %v3265 = vpack.c.bf16 %v3264, %v3263
    %3266 = vrot.lane.b32.xlu0 %v3037, 48
    %v3267 = vpop.permute.xlu0 %3266
    %v3270 = vsel %vm606, %v3265, 0
    %3272 = vmatpush.bf16.msra.mxu0 0
    %3273 = vmatpush.bf16.msra.mxu0 0
    %3274 = vmatpush.bf16.msra.mxu0 0
    %3275 = vmatpush.bf16.msra.mxu0 0
    %3276 = vmatpush.bf16.msra.mxu0 0
    %3277 = vmatpush.bf16.msra.mxu0 0
    %3278 = vmatpush.bf16.msra.mxu0 0
    %3279 = vmatpush.bf16.msra.mxu0 %v3267
    %3280 = vmatmul.bf16.gmra.mxu0 %v3270
    %v3281 = vpop.f32.mrf.mxu0
    %v3282 = vadd.f32 0.0, %v3281
    %v3283 = vpop.f32.mrf.mxu0
    %v3284 = vadd.f32 0.0, %v3283
    %3285 = vdwg.mxu0
    %v3286 = vpack.c.bf16 %v3284, %v3282
    %v3288 = vsel %vm585, %v3286, 0
    %v3291 = vsel %vm726, %v3035, 0
    %3293 = vmatpush.bf16.msra.mxu0 0
    %3294 = vmatpush.bf16.msra.mxu0 0
    %3295 = vmatpush.bf16.msra.mxu0 0
    %3296 = vmatpush.bf16.msra.mxu0 0
    %3297 = vmatpush.bf16.msra.mxu0 0
    %3298 = vmatpush.bf16.msra.mxu0 0
    %3299 = vmatpush.bf16.msra.mxu0 0
    %3300 = vmatpush.bf16.msra.mxu0 %v3291
    %3301 = vmatmul.bf16.gmra.mxu0 %v3288
    %v3302 = vpop.f32.mrf.mxu0
    %v3303 = vadd.f32 0.0, %v3302
    %v3304 = vpop.f32.mrf.mxu0
    %v3305 = vadd.f32 0.0, %v3304
    %3306 = vdwg.mxu0
    %v3307 = vadd.f32 %v3213, %v3303
    %v3308 = vadd.f32 %v3215, %v3305
    %3309 = vrot.lane.b32.xlu0 %v3037, 104
    %v3310 = vpop.permute.xlu0 %3309
    %3311 = vrot.lane.b32.xlu0 %v3037, 72
    %v3312 = vpop.permute.xlu0 %3311
    %v3314 = vsel %vm585, %v3310, 0
    %v3317 = vsel %vm585, %v3312, 0
    %3319 = vmatpush.bf16.xpose.msra.mxu0 0
    %3320 = vmatpush.bf16.xpose.msra.mxu0 0
    %3321 = vmatpush.bf16.xpose.msra.mxu0 0
    %3322 = vmatpush.bf16.xpose.msra.mxu0 0
    %3323 = vmatpush.bf16.xpose.msra.mxu0 0
    %3324 = vmatpush.bf16.xpose.msra.mxu0 0
    %3325 = vmatpush.bf16.xpose.msra.mxu0 0
    %3326 = vmatpush.bf16.xpose.msra.mxu0 %v3317
    %3327 = vmatmul.bf16.gmra.mxu0 %v3314
    %v3328 = vpop.f32.mrf.mxu0
    %v3329 = vadd.f32 %v473, %v3328
    %v3330 = vpop.f32.mrf.mxu0
    %v3331 = vadd.f32 %v474, %v3330
    %3332 = vdwg.mxu0
    %v3333 = vsel %vm606, %v3329, -inf
    %3334 = vmax.xlane.f32.xlu0 %v3333
    %v3335 = vpop.xlane.xlu0 %3334
    %v3336 = vsel %vm606, %v3331, -inf
    %3337 = vmax.xlane.f32.xlu0 %v3336
    %v3338 = vpop.xlane.xlu0 %3337
    %v3339 = vsub.f32 %v3329, %v3335
    %v3340 = vsub.f32 %v3331, %v3338
    %v3341 = vmul.f32 %v3339, 1.442695
    %v3342 = vpow.pop %v3341
    %v3343 = vmul.f32 %v3340, 1.442695
    %v3344 = vpow.pop %v3343
    %v3345 = vsel %vm606, %v3342, 0.0
    %3346 = vadd.xlane.f32.xlu0 %v3345
    %v3347 = vpop.xlane.xlu0 %3346
    %v3348 = vsel %vm606, %v3344, 0.0
    %3349 = vadd.xlane.f32.xlu0 %v3348
    %v3350 = vpop.xlane.xlu0 %3349
    %v3351 = vmax.f32 %v3347, 1e-06
    %v3352 = vmax.f32 %v3350, 1e-06
    %v3353 = vrcp.pop %v3351
    %v3354 = vrcp.pop %v3352
    %v3355 = vmul.f32 %v3342, %v3353
    %v3356 = vmul.f32 %v3344, %v3354
    %v3357 = vpack.c.bf16 %v3356, %v3355
    %3358 = vrot.lane.b32.xlu0 %v3037, 40
    %v3359 = vpop.permute.xlu0 %3358
    %v3362 = vsel %vm606, %v3357, 0
    %3364 = vmatpush.bf16.msra.mxu0 0
    %3365 = vmatpush.bf16.msra.mxu0 0
    %3366 = vmatpush.bf16.msra.mxu0 0
    %3367 = vmatpush.bf16.msra.mxu0 0
    %3368 = vmatpush.bf16.msra.mxu0 0
    %3369 = vmatpush.bf16.msra.mxu0 0
    %3370 = vmatpush.bf16.msra.mxu0 0
    %3371 = vmatpush.bf16.msra.mxu0 %v3359
    %3372 = vmatmul.bf16.gmra.mxu0 %v3362
    %v3373 = vpop.f32.mrf.mxu0
    %v3374 = vadd.f32 0.0, %v3373
    %v3375 = vpop.f32.mrf.mxu0
    %v3376 = vadd.f32 0.0, %v3375
    %3377 = vdwg.mxu0
    %v3378 = vpack.c.bf16 %v3376, %v3374
    %v3380 = vsel %vm585, %v3378, 0
    %v3383 = vsel %vm726, %v3036, 0
    %3385 = vmatpush.bf16.msra.mxu0 0
    %3386 = vmatpush.bf16.msra.mxu0 0
    %3387 = vmatpush.bf16.msra.mxu0 0
    %3388 = vmatpush.bf16.msra.mxu0 0
    %3389 = vmatpush.bf16.msra.mxu0 0
    %3390 = vmatpush.bf16.msra.mxu0 0
    %3391 = vmatpush.bf16.msra.mxu0 0
    %3392 = vmatpush.bf16.msra.mxu0 %v3383
    %3393 = vmatmul.bf16.gmra.mxu0 %v3380
    %v3394 = vpop.f32.mrf.mxu0
    %v3395 = vadd.f32 0.0, %v3394
    %v3396 = vpop.f32.mrf.mxu0
    %v3397 = vadd.f32 0.0, %v3396
    %3398 = vdwg.mxu0
    %v3399 = vadd.f32 %v3307, %v3395
    %v3400 = vadd.f32 %v3308, %v3397
    %v3401 = vadd.f32 %v2936, %v3399
    %v3402 = vadd.f32 %v2937, %v3400
    %s3403 = scalar_lea.vmem %s45, 1
    %v3404 = vld [vmem:[%s3403] sm:$0x1]
    %v3406 = vperm.slane %v3404, 0
    %v3408 = vadd.f32 %v3401, %v3406
    %v3409 = vadd.f32 %v3402, %v3406
    %v3410 = vsel %vm481, %v3408, 0.0
    %3411 = vadd.xlane.f32.xlu0 %v3410
    %v3412 = vpop.xlane.xlu0 %3411
    %v3413 = vsel %vm481, %v3409, 0.0
    %3414 = vadd.xlane.f32.xlu0 %v3413
    %v3415 = vpop.xlane.xlu0 %3414
    %v3416 = vmul.f32 %v3412, %v494
    %v3417 = vmul.f32 %v3415, %v494
    %v3418 = vsub.f32 %v3408, %v3416
    %v3419 = vsub.f32 %v3409, %v3417
    %v3420 = vmul.f32 %v3418, %v3418
    %v3421 = vmul.f32 %v3419, %v3419
    %v3422 = vsel %vm481, %v3420, 0.0
    %3423 = vadd.xlane.f32.xlu0 %v3422
    %v3424 = vpop.xlane.xlu0 %3423
    %v3425 = vsel %vm481, %v3421, 0.0
    %3426 = vadd.xlane.f32.xlu0 %v3425
    %v3427 = vpop.xlane.xlu0 %3426
    %v3428 = vmul.f32 %v3424, %v494
    %v3429 = vmul.f32 %v3427, %v494
    %v3430 = vadd.f32 %v3428, 1e-06
    %v3431 = vadd.f32 %v3429, 1e-06
    %v3432 = vrsqrt.pop %v3430
    %v3433 = vmul.f32 %v3432, %v3430
    %v3434 = vmul.f32 %v3433, %v3432
    %v3435 = vmul.f32 0.5, %v3434
    %v3436 = vsub.f32 1.5, %v3435
    %v3437 = vmul.f32 %v3432, %v3436
    %vm3438 = vweird.f32 %v3430
    %vm3439 = vweird.f32 %v3432
    %vm3440 = vmor %vm3438, %vm3439
    %v3441 = vsel %vm3440, %v3432, %v3437
    %v3442 = vrsqrt.pop %v3431
    %v3443 = vmul.f32 %v3442, %v3431
    %v3444 = vmul.f32 %v3443, %v3442
    %v3445 = vmul.f32 0.5, %v3444
    %v3446 = vsub.f32 1.5, %v3445
    %v3447 = vmul.f32 %v3442, %v3446
    %vm3448 = vweird.f32 %v3431
    %vm3449 = vweird.f32 %v3442
    %vm3450 = vmor %vm3448, %vm3449
    %v3451 = vsel %vm3450, %v3442, %v3447
    %v3452 = vmul.f32 %v3418, %v3441
    %v3453 = vmul.f32 %v3419, %v3451
    %v3454 = vperm.slane %v2939, 1
    %v3455 = vmul.f32 %v3452, %v3454
    %v3456 = vmul.f32 %v3453, %v3454
    %v3457 = vperm.slane %v2941, 1
    %v3458 = vadd.f32 %v3455, %v3457
    %v3459 = vadd.f32 %v3456, %v3457
    %v3460 = vpack.c.bf16 %v3459, %v3458
    %s3461 = scalar_lea.vmem [#allocation25], 16
    %v3462 = vld [vmem:[%s3461] sm:$0xf]
    %v3463 = vld [vmem:[%s3461 + $0x4] sm:$0xf]
    %v3464 = vld [vmem:[%s3461 + $0x8] sm:$0xf]
    %v3465 = vld [vmem:[%s3461 + $0xc] sm:$0xf]
    %s3466 = scalar_lea.vmem %s49, 1
    %v3467 = vld [vmem:[%s3466] sm:$0x1]
    %v3469 = vperm.slane %v3467, 0
    %v3475 = vunpack.c.l.b16 %v3462
    %v3476 = vunpack.c.l.b16 %v3463
    %v3477 = vunpack.c.l.b16 %v3464
    %v3478 = vunpack.c.l.b16 %v3465
    %v3479 = vpack.c.b16 %v3476, %v3475
    %v3480 = vpack.c.b16 %v3478, %v3477
    %v3484 = vsel %vm481, %v3460, 0
    %3486 = vmatpush.bf16.msra.mxu0 0
    %3487 = vmatpush.bf16.msra.mxu0 0
    %3488 = vmatpush.bf16.msra.mxu0 0
    %3489 = vmatpush.bf16.msra.mxu0 0
    %3490 = vmatpush.bf16.msra.mxu0 0
    %3491 = vmatpush.bf16.msra.mxu0 0
    %3492 = vmatpush.bf16.msra.mxu0 %v3480
    %3493 = vmatpush.bf16.msra.mxu0 %v3479
    %3494 = vmatmul.bf16.gmra.mxu0 %v3484
    %v3495 = vpop.f32.mrf.mxu0
    %v3496 = vadd.f32 %v3469, %v3495
    %v3497 = vpop.f32.mrf.mxu0
    %v3498 = vadd.f32 %v3469, %v3497
    %3499 = vdwg.mxu0
    %s3500 = scalar_lea.vmem [#allocation26], 16
    %v3501 = vld [vmem:[%s3500] sm:$0xf]
    %v3502 = vld [vmem:[%s3500 + $0x4] sm:$0xf]
    %v3503 = vld [vmem:[%s3500 + $0x8] sm:$0xf]
    %v3504 = vld [vmem:[%s3500 + $0xc] sm:$0xf]
    %s3505 = scalar_lea.vmem %s53, 1
    %v3506 = vld [vmem:[%s3505] sm:$0x1]
    %v3508 = vperm.slane %v3506, 0
    %v3514 = vunpack.c.l.b16 %v3501
    %v3515 = vunpack.c.l.b16 %v3502
    %v3516 = vunpack.c.l.b16 %v3503
    %v3517 = vunpack.c.l.b16 %v3504
    %v3518 = vpack.c.b16 %v3515, %v3514
    %v3519 = vpack.c.b16 %v3517, %v3516
    %3522 = vmatpush.bf16.msra.mxu0 0
    %3523 = vmatpush.bf16.msra.mxu0 0
    %3524 = vmatpush.bf16.msra.mxu0 0
    %3525 = vmatpush.bf16.msra.mxu0 0
    %3526 = vmatpush.bf16.msra.mxu0 0
    %3527 = vmatpush.bf16.msra.mxu0 0
    %3528 = vmatpush.bf16.msra.mxu0 %v3519
    %3529 = vmatpush.bf16.msra.mxu0 %v3518
    %3530 = vmatmul.bf16.gmra.mxu0 %v2398
    %v3531 = vpop.f32.mrf.mxu0
    %v3532 = vadd.f32 %v3508, %v3531
    %v3533 = vpop.f32.mrf.mxu0
    %v3534 = vadd.f32 %v3508, %v3533
    %3535 = vdwg.mxu0
    %s3536 = scalar_lea.vmem [#allocation28], 16
    %v3537 = vld [vmem:[%s3536] sm:$0xf]
    %v3538 = vld [vmem:[%s3536 + $0x4] sm:$0xf]
    %v3539 = vld [vmem:[%s3536 + $0x8] sm:$0xf]
    %v3540 = vld [vmem:[%s3536 + $0xc] sm:$0xf]
    %v3541 = vpack.c.bf16 %v3498, %v3496
    %v3542 = vpack.c.bf16 %v3534, %v3532
    %v3544 = vsel %vm585, %v3541, 0
    %v3547 = vsel %vm585, %v3542, 0
    %3549 = vmatpush.bf16.xpose.msra.mxu0 0
    %3550 = vmatpush.bf16.xpose.msra.mxu0 0
    %3551 = vmatpush.bf16.xpose.msra.mxu0 0
    %3552 = vmatpush.bf16.xpose.msra.mxu0 0
    %3553 = vmatpush.bf16.xpose.msra.mxu0 0
    %3554 = vmatpush.bf16.xpose.msra.mxu0 0
    %3555 = vmatpush.bf16.xpose.msra.mxu0 0
    %3556 = vmatpush.bf16.xpose.msra.mxu0 %v3547
    %3557 = vmatmul.bf16.gmra.mxu0 %v3544
    %v3558 = vpop.f32.mrf.mxu0
    %v3559 = vadd.f32 %v475, %v3558
    %v3560 = vpop.f32.mrf.mxu0
    %v3561 = vadd.f32 %v476, %v3560
    %3562 = vdwg.mxu0
    %v3563 = vsel %vm606, %v3559, -inf
    %3564 = vmax.xlane.f32.xlu0 %v3563
    %v3565 = vpop.xlane.xlu0 %3564
    %v3566 = vsel %vm606, %v3561, -inf
    %3567 = vmax.xlane.f32.xlu0 %v3566
    %v3568 = vpop.xlane.xlu0 %3567
    %v3569 = vsub.f32 %v3559, %v3565
    %v3570 = vsub.f32 %v3561, %v3568
    %v3571 = vmul.f32 %v3569, 1.442695
    %v3572 = vpow.pop %v3571
    %v3573 = vmul.f32 %v3570, 1.442695
    %v3574 = vpow.pop %v3573
    %v3575 = vsel %vm606, %v3572, 0.0
    %3576 = vadd.xlane.f32.xlu0 %v3575
    %v3577 = vpop.xlane.xlu0 %3576
    %v3578 = vsel %vm606, %v3574, 0.0
    %3579 = vadd.xlane.f32.xlu0 %v3578
    %v3580 = vpop.xlane.xlu0 %3579
    %v3581 = vmax.f32 %v3577, 1e-06
    %v3582 = vmax.f32 %v3580, 1e-06
    %v3583 = vrcp.pop %v3581
    %v3584 = vrcp.pop %v3582
    %v3585 = vmul.f32 %v3572, %v3583
    %v3586 = vmul.f32 %v3574, %v3584
    %v3587 = vpack.c.bf16 %v3586, %v3585
    %3589 = vrot.lane.b32.xlu0 %v3542, 96
    %v3590 = vpop.permute.xlu0 %3589
    %v3593 = vsel %vm606, %v3587, 0
    %3595 = vmatpush.bf16.msra.mxu0 0
    %3596 = vmatpush.bf16.msra.mxu0 0
    %3597 = vmatpush.bf16.msra.mxu0 0
    %3598 = vmatpush.bf16.msra.mxu0 0
    %3599 = vmatpush.bf16.msra.mxu0 0
    %3600 = vmatpush.bf16.msra.mxu0 0
    %3601 = vmatpush.bf16.msra.mxu0 0
    %3602 = vmatpush.bf16.msra.mxu0 %v3590
    %3603 = vmatmul.bf16.gmra.mxu0 %v3593
    %v3604 = vpop.f32.mrf.mxu0
    %v3605 = vadd.f32 0.0, %v3604
    %v3606 = vpop.f32.mrf.mxu0
    %v3607 = vadd.f32 0.0, %v3606
    %3608 = vdwg.mxu0
    %v3609 = vpack.c.bf16 %v3607, %v3605
    %3611 = vrot.lane.b32.xlu0 %v3541, 120
    %v3612 = vpop.permute.xlu0 %3611
    %3613 = vrot.lane.b32.xlu0 %v3542, 120
    %v3614 = vpop.permute.xlu0 %3613
    %v3616 = vsel %vm585, %v3612, 0
    %v3619 = vsel %vm585, %v3614, 0
    %3621 = vmatpush.bf16.xpose.msra.mxu0 0
    %3622 = vmatpush.bf16.xpose.msra.mxu0 0
    %3623 = vmatpush.bf16.xpose.msra.mxu0 0
    %3624 = vmatpush.bf16.xpose.msra.mxu0 0
    %3625 = vmatpush.bf16.xpose.msra.mxu0 0
    %3626 = vmatpush.bf16.xpose.msra.mxu0 0
    %3627 = vmatpush.bf16.xpose.msra.mxu0 0
    %3628 = vmatpush.bf16.xpose.msra.mxu0 %v3619
    %3629 = vmatmul.bf16.gmra.mxu0 %v3616
    %v3630 = vpop.f32.mrf.mxu0
    %v3631 = vadd.f32 %v475, %v3630
    %v3632 = vpop.f32.mrf.mxu0
    %v3633 = vadd.f32 %v476, %v3632
    %3634 = vdwg.mxu0
    %v3635 = vsel %vm606, %v3631, -inf
    %3636 = vmax.xlane.f32.xlu0 %v3635
    %v3637 = vpop.xlane.xlu0 %3636
    %v3638 = vsel %vm606, %v3633, -inf
    %3639 = vmax.xlane.f32.xlu0 %v3638
    %v3640 = vpop.xlane.xlu0 %3639
    %v3641 = vsub.f32 %v3631, %v3637
    %v3642 = vsub.f32 %v3633, %v3640
    %v3643 = vmul.f32 %v3641, 1.442695
    %v3644 = vpow.pop %v3643
    %v3645 = vmul.f32 %v3642, 1.442695
    %v3646 = vpow.pop %v3645
    %v3647 = vsel %vm606, %v3644, 0.0
    %3648 = vadd.xlane.f32.xlu0 %v3647
    %v3649 = vpop.xlane.xlu0 %3648
    %v3650 = vsel %vm606, %v3646, 0.0
    %3651 = vadd.xlane.f32.xlu0 %v3650
    %v3652 = vpop.xlane.xlu0 %3651
    %v3653 = vmax.f32 %v3649, 1e-06
    %v3654 = vmax.f32 %v3652, 1e-06
    %v3655 = vrcp.pop %v3653
    %v3656 = vrcp.pop %v3654
    %v3657 = vmul.f32 %v3644, %v3655
    %v3658 = vmul.f32 %v3646, %v3656
    %v3659 = vpack.c.bf16 %v3658, %v3657
    %3660 = vrot.lane.b32.xlu0 %v3542, 88
    %v3661 = vpop.permute.xlu0 %3660
    %v3664 = vsel %vm606, %v3659, 0
    %3666 = vmatpush.bf16.msra.mxu0 0
    %3667 = vmatpush.bf16.msra.mxu0 0
    %3668 = vmatpush.bf16.msra.mxu0 0
    %3669 = vmatpush.bf16.msra.mxu0 0
    %3670 = vmatpush.bf16.msra.mxu0 0
    %3671 = vmatpush.bf16.msra.mxu0 0
    %3672 = vmatpush.bf16.msra.mxu0 0
    %3673 = vmatpush.bf16.msra.mxu0 %v3661
    %3674 = vmatmul.bf16.gmra.mxu0 %v3664
    %v3675 = vpop.f32.mrf.mxu0
    %v3676 = vadd.f32 0.0, %v3675
    %v3677 = vpop.f32.mrf.mxu0
    %v3678 = vadd.f32 0.0, %v3677
    %3679 = vdwg.mxu0
    %v3680 = vpack.c.bf16 %v3678, %v3676
    %v3682 = vsel %vm585, %v3680, 0
    %v3685 = vsel %vm726, %v3538, 0
    %3687 = vmatpush.bf16.msra.mxu0 0
    %3688 = vmatpush.bf16.msra.mxu0 0
    %3689 = vmatpush.bf16.msra.mxu0 0
    %3690 = vmatpush.bf16.msra.mxu0 0
    %3691 = vmatpush.bf16.msra.mxu0 0
    %3692 = vmatpush.bf16.msra.mxu0 0
    %3693 = vmatpush.bf16.msra.mxu0 0
    %3694 = vmatpush.bf16.msra.mxu0 %v3685
    %3695 = vmatmul.bf16.gmra.mxu0 %v3682
    %v3696 = vpop.f32.mrf.mxu0
    %v3697 = vadd.f32 0.0, %v3696
    %v3698 = vpop.f32.mrf.mxu0
    %v3699 = vadd.f32 0.0, %v3698
    %3700 = vdwg.mxu0
    %v3702 = vsel %vm585, %v3609, 0
    %v3705 = vsel %vm726, %v3537, 0
    %3707 = vmatpush.bf16.msra.mxu0 0
    %3708 = vmatpush.bf16.msra.mxu0 0
    %3709 = vmatpush.bf16.msra.mxu0 0
    %3710 = vmatpush.bf16.msra.mxu0 0
    %3711 = vmatpush.bf16.msra.mxu0 0
    %3712 = vmatpush.bf16.msra.mxu0 0
    %3713 = vmatpush.bf16.msra.mxu0 0
    %3714 = vmatpush.bf16.msra.mxu0 %v3705
    %3715 = vmatmul.bf16.gmra.mxu0 %v3702
    %v3716 = vpop.f32.mrf.mxu0
    %v3717 = vadd.f32 %v3697, %v3716
    %v3718 = vpop.f32.mrf.mxu0
    %v3719 = vadd.f32 %v3699, %v3718
    %3720 = vdwg.mxu0
    %3721 = vrot.lane.b32.xlu0 %v3541, 112
    %v3722 = vpop.permute.xlu0 %3721
    %3723 = vrot.lane.b32.xlu0 %v3542, 112
    %v3724 = vpop.permute.xlu0 %3723
    %v3726 = vsel %vm585, %v3722, 0
    %v3729 = vsel %vm585, %v3724, 0
    %3731 = vmatpush.bf16.xpose.msra.mxu0 0
    %3732 = vmatpush.bf16.xpose.msra.mxu0 0
    %3733 = vmatpush.bf16.xpose.msra.mxu0 0
    %3734 = vmatpush.bf16.xpose.msra.mxu0 0
    %3735 = vmatpush.bf16.xpose.msra.mxu0 0
    %3736 = vmatpush.bf16.xpose.msra.mxu0 0
    %3737 = vmatpush.bf16.xpose.msra.mxu0 0
    %3738 = vmatpush.bf16.xpose.msra.mxu0 %v3729
    %3739 = vmatmul.bf16.gmra.mxu0 %v3726
    %v3740 = vpop.f32.mrf.mxu0
    %v3741 = vadd.f32 %v475, %v3740
    %v3742 = vpop.f32.mrf.mxu0
    %v3743 = vadd.f32 %v476, %v3742
    %3744 = vdwg.mxu0
    %v3745 = vsel %vm606, %v3741, -inf
    %3746 = vmax.xlane.f32.xlu0 %v3745
    %v3747 = vpop.xlane.xlu0 %3746
    %v3748 = vsel %vm606, %v3743, -inf
    %3749 = vmax.xlane.f32.xlu0 %v3748
    %v3750 = vpop.xlane.xlu0 %3749
    %v3751 = vsub.f32 %v3741, %v3747
    %v3752 = vsub.f32 %v3743, %v3750
    %v3753 = vmul.f32 %v3751, 1.442695
    %v3754 = vpow.pop %v3753
    %v3755 = vmul.f32 %v3752, 1.442695
    %v3756 = vpow.pop %v3755
    %v3757 = vsel %vm606, %v3754, 0.0
    %3758 = vadd.xlane.f32.xlu0 %v3757
    %v3759 = vpop.xlane.xlu0 %3758
    %v3760 = vsel %vm606, %v3756, 0.0
    %3761 = vadd.xlane.f32.xlu0 %v3760
    %v3762 = vpop.xlane.xlu0 %3761
    %v3763 = vmax.f32 %v3759, 1e-06
    %v3764 = vmax.f32 %v3762, 1e-06
    %v3765 = vrcp.pop %v3763
    %v3766 = vrcp.pop %v3764
    %v3767 = vmul.f32 %v3754, %v3765
    %v3768 = vmul.f32 %v3756, %v3766
    %v3769 = vpack.c.bf16 %v3768, %v3767
    %3770 = vrot.lane.b32.xlu0 %v3542, 80
    %v3771 = vpop.permute.xlu0 %3770
    %v3774 = vsel %vm606, %v3769, 0
    %3776 = vmatpush.bf16.msra.mxu0 0
    %3777 = vmatpush.bf16.msra.mxu0 0
    %3778 = vmatpush.bf16.msra.mxu0 0
    %3779 = vmatpush.bf16.msra.mxu0 0
    %3780 = vmatpush.bf16.msra.mxu0 0
    %3781 = vmatpush.bf16.msra.mxu0 0
    %3782 = vmatpush.bf16.msra.mxu0 0
    %3783 = vmatpush.bf16.msra.mxu0 %v3771
    %3784 = vmatmul.bf16.gmra.mxu0 %v3774
    %v3785 = vpop.f32.mrf.mxu0
    %v3786 = vadd.f32 0.0, %v3785
    %v3787 = vpop.f32.mrf.mxu0
    %v3788 = vadd.f32 0.0, %v3787
    %3789 = vdwg.mxu0
    %v3790 = vpack.c.bf16 %v3788, %v3786
    %v3792 = vsel %vm585, %v3790, 0
    %v3795 = vsel %vm726, %v3539, 0
    %3797 = vmatpush.bf16.msra.mxu0 0
    %3798 = vmatpush.bf16.msra.mxu0 0
    %3799 = vmatpush.bf16.msra.mxu0 0
    %3800 = vmatpush.bf16.msra.mxu0 0
    %3801 = vmatpush.bf16.msra.mxu0 0
    %3802 = vmatpush.bf16.msra.mxu0 0
    %3803 = vmatpush.bf16.msra.mxu0 0
    %3804 = vmatpush.bf16.msra.mxu0 %v3795
    %3805 = vmatmul.bf16.gmra.mxu0 %v3792
    %v3806 = vpop.f32.mrf.mxu0
    %v3807 = vadd.f32 0.0, %v3806
    %v3808 = vpop.f32.mrf.mxu0
    %v3809 = vadd.f32 0.0, %v3808
    %3810 = vdwg.mxu0
    %v3811 = vadd.f32 %v3717, %v3807
    %v3812 = vadd.f32 %v3719, %v3809
    %3813 = vrot.lane.b32.xlu0 %v3541, 104
    %v3814 = vpop.permute.xlu0 %3813
    %3815 = vrot.lane.b32.xlu0 %v3542, 104
    %v3816 = vpop.permute.xlu0 %3815
    %v3818 = vsel %vm585, %v3814, 0
    %v3821 = vsel %vm585, %v3816, 0
    %3823 = vmatpush.bf16.xpose.msra.mxu0 0
    %3824 = vmatpush.bf16.xpose.msra.mxu0 0
    %3825 = vmatpush.bf16.xpose.msra.mxu0 0
    %3826 = vmatpush.bf16.xpose.msra.mxu0 0
    %3827 = vmatpush.bf16.xpose.msra.mxu0 0
    %3828 = vmatpush.bf16.xpose.msra.mxu0 0
    %3829 = vmatpush.bf16.xpose.msra.mxu0 0
    %3830 = vmatpush.bf16.xpose.msra.mxu0 %v3821
    %3831 = vmatmul.bf16.gmra.mxu0 %v3818
    %v3832 = vpop.f32.mrf.mxu0
    %v3833 = vadd.f32 %v475, %v3832
    %v3834 = vpop.f32.mrf.mxu0
    %v3835 = vadd.f32 %v476, %v3834
    %3836 = vdwg.mxu0
    %v3837 = vsel %vm606, %v3833, -inf
    %3838 = vmax.xlane.f32.xlu0 %v3837
    %v3839 = vpop.xlane.xlu0 %3838
    %v3840 = vsel %vm606, %v3835, -inf
    %3841 = vmax.xlane.f32.xlu0 %v3840
    %v3842 = vpop.xlane.xlu0 %3841
    %v3843 = vsub.f32 %v3833, %v3839
    %v3844 = vsub.f32 %v3835, %v3842
    %v3845 = vmul.f32 %v3843, 1.442695
    %v3846 = vpow.pop %v3845
    %v3847 = vmul.f32 %v3844, 1.442695
    %v3848 = vpow.pop %v3847
    %v3849 = vsel %vm606, %v3846, 0.0
    %3850 = vadd.xlane.f32.xlu0 %v3849
    %v3851 = vpop.xlane.xlu0 %3850
    %v3852 = vsel %vm606, %v3848, 0.0
    %3853 = vadd.xlane.f32.xlu0 %v3852
    %v3854 = vpop.xlane.xlu0 %3853
    %v3855 = vmax.f32 %v3851, 1e-06
    %v3856 = vmax.f32 %v3854, 1e-06
    %v3857 = vrcp.pop %v3855
    %v3858 = vrcp.pop %v3856
    %v3859 = vmul.f32 %v3846, %v3857
    %v3860 = vmul.f32 %v3848, %v3858
    %v3861 = vpack.c.bf16 %v3860, %v3859
    %3862 = vrot.lane.b32.xlu0 %v3542, 72
    %v3863 = vpop.permute.xlu0 %3862
    %v3866 = vsel %vm606, %v3861, 0
    %3868 = vmatpush.bf16.msra.mxu0 0
    %3869 = vmatpush.bf16.msra.mxu0 0
    %3870 = vmatpush.bf16.msra.mxu0 0
    %3871 = vmatpush.bf16.msra.mxu0 0
    %3872 = vmatpush.bf16.msra.mxu0 0
    %3873 = vmatpush.bf16.msra.mxu0 0
    %3874 = vmatpush.bf16.msra.mxu0 0
    %3875 = vmatpush.bf16.msra.mxu0 %v3863
    %3876 = vmatmul.bf16.gmra.mxu0 %v3866
    %v3877 = vpop.f32.mrf.mxu0
    %v3878 = vadd.f32 0.0, %v3877
    %v3879 = vpop.f32.mrf.mxu0
    %v3880 = vadd.f32 0.0, %v3879
    %3881 = vdwg.mxu0
    %v3882 = vpack.c.bf16 %v3880, %v3878
    %v3884 = vsel %vm585, %v3882, 0
    %v3887 = vsel %vm726, %v3540, 0
    %3889 = vmatpush.bf16.msra.mxu0 0
    %3890 = vmatpush.bf16.msra.mxu0 0
    %3891 = vmatpush.bf16.msra.mxu0 0
    %3892 = vmatpush.bf16.msra.mxu0 0
    %3893 = vmatpush.bf16.msra.mxu0 0
    %3894 = vmatpush.bf16.msra.mxu0 0
    %3895 = vmatpush.bf16.msra.mxu0 0
    %3896 = vmatpush.bf16.msra.mxu0 %v3887
    %3897 = vmatmul.bf16.gmra.mxu0 %v3884
    %v3898 = vpop.f32.mrf.mxu0
    %v3899 = vadd.f32 0.0, %v3898
    %v3900 = vpop.f32.mrf.mxu0
    %v3901 = vadd.f32 0.0, %v3900
    %3902 = vdwg.mxu0
    %v3903 = vadd.f32 %v3811, %v3899
    %v3904 = vadd.f32 %v3812, %v3901
    %v3905 = vadd.f32 %v3408, %v3903
    %v3906 = vadd.f32 %v3409, %v3904
    %s3907 = scalar_lea.vmem %s57, 1
    %v3908 = vld [vmem:[%s3907] sm:$0x1]
    %v3910 = vperm.slane %v3908, 0
    %v3912 = vadd.f32 %v3905, %v3910
    %v3913 = vadd.f32 %v3906, %v3910
    %v3914 = vsel %vm481, %v3912, 0.0
    %3915 = vadd.xlane.f32.xlu0 %v3914
    %v3916 = vpop.xlane.xlu0 %3915
    %v3917 = vsel %vm481, %v3913, 0.0
    %3918 = vadd.xlane.f32.xlu0 %v3917
    %v3919 = vpop.xlane.xlu0 %3918
    %v3920 = vmul.f32 %v3916, %v494
    %v3921 = vmul.f32 %v3919, %v494
    %v3922 = vsub.f32 %v3912, %v3920
    %v3923 = vsub.f32 %v3913, %v3921
    %v3924 = vmul.f32 %v3922, %v3922
    %v3925 = vmul.f32 %v3923, %v3923
    %v3926 = vsel %vm481, %v3924, 0.0
    %3927 = vadd.xlane.f32.xlu0 %v3926
    %v3928 = vpop.xlane.xlu0 %3927
    %v3929 = vsel %vm481, %v3925, 0.0
    %3930 = vadd.xlane.f32.xlu0 %v3929
    %v3931 = vpop.xlane.xlu0 %3930
    %v3932 = vmul.f32 %v3928, %v494
    %v3933 = vmul.f32 %v3931, %v494
    %v3934 = vadd.f32 %v3932, 1e-06
    %v3935 = vadd.f32 %v3933, 1e-06
    %v3936 = vrsqrt.pop %v3934
    %v3937 = vmul.f32 %v3936, %v3934
    %v3938 = vmul.f32 %v3937, %v3936
    %v3939 = vmul.f32 0.5, %v3938
    %v3940 = vsub.f32 1.5, %v3939
    %v3941 = vmul.f32 %v3936, %v3940
    %vm3942 = vweird.f32 %v3934
    %vm3943 = vweird.f32 %v3936
    %vm3944 = vmor %vm3942, %vm3943
    %v3945 = vsel %vm3944, %v3936, %v3941
    %v3946 = vrsqrt.pop %v3935
    %v3947 = vmul.f32 %v3946, %v3935
    %v3948 = vmul.f32 %v3947, %v3946
    %v3949 = vmul.f32 0.5, %v3948
    %v3950 = vsub.f32 1.5, %v3949
    %v3951 = vmul.f32 %v3946, %v3950
    %vm3952 = vweird.f32 %v3935
    %vm3953 = vweird.f32 %v3946
    %vm3954 = vmor %vm3952, %vm3953
    %v3955 = vsel %vm3954, %v3946, %v3951
    %v3956 = vmul.f32 %v3922, %v3945
    %v3957 = vmul.f32 %v3923, %v3955
    %v3958 = vperm.slane %v2939, 2
    %v3959 = vmul.f32 %v3956, %v3958
    %v3960 = vmul.f32 %v3957, %v3958
    %v3961 = vperm.slane %v2941, 2
    %v3962 = vadd.f32 %v3959, %v3961
    %v3963 = vadd.f32 %v3960, %v3961
    %v3964 = vpack.c.bf16 %v3963, %v3962
    %s3965 = scalar_lea.vmem [#allocation29], 16
    %v3966 = vld [vmem:[%s3965] sm:$0xf]
    %v3967 = vld [vmem:[%s3965 + $0x4] sm:$0xf]
    %v3968 = vld [vmem:[%s3965 + $0x8] sm:$0xf]
    %v3969 = vld [vmem:[%s3965 + $0xc] sm:$0xf]
    %s3970 = scalar_lea.vmem %s61, 1
    %v3971 = vld [vmem:[%s3970] sm:$0x1]
    %v3973 = vperm.slane %v3971, 0
    %v3979 = vunpack.c.l.b16 %v3966
    %v3980 = vunpack.c.l.b16 %v3967
    %v3981 = vunpack.c.l.b16 %v3968
    %v3982 = vunpack.c.l.b16 %v3969
    %v3983 = vpack.c.b16 %v3980, %v3979
    %v3984 = vpack.c.b16 %v3982, %v3981
    %v3988 = vsel %vm481, %v3964, 0
    %3990 = vmatpush.bf16.msra.mxu0 0
    %3991 = vmatpush.bf16.msra.mxu0 0
    %3992 = vmatpush.bf16.msra.mxu0 0
    %3993 = vmatpush.bf16.msra.mxu0 0
    %3994 = vmatpush.bf16.msra.mxu0 0
    %3995 = vmatpush.bf16.msra.mxu0 0
    %3996 = vmatpush.bf16.msra.mxu0 %v3984
    %3997 = vmatpush.bf16.msra.mxu0 %v3983
    %3998 = vmatmul.bf16.gmra.mxu0 %v3988
    %v3999 = vpop.f32.mrf.mxu0
    %v4000 = vadd.f32 %v3973, %v3999
    %v4001 = vpop.f32.mrf.mxu0
    %v4002 = vadd.f32 %v3973, %v4001
    %4003 = vdwg.mxu0
    %v4004 = vmax.f32 %v4000, 0.0
    %v4005 = vmax.f32 %v4002, 0.0
    %v4006 = vpack.c.bf16 %v4005, %v4004
    %s4007 = scalar_lea.vmem %s63, 32
    %v4008 = vld [vmem:[%s4007] sm:$0xf]
    %v4009 = vld [vmem:[%s4007 + $0x4] sm:$0xf]
    %v4010 = vld [vmem:[%s4007 + $0x8] sm:$0xf]
    %v4011 = vld [vmem:[%s4007 + $0xc] sm:$0xf]
    %v4012 = vld [vmem:[%s4007 + $0x10] sm:$0xf]
    %v4013 = vld [vmem:[%s4007 + $0x14] sm:$0xf]
    %v4014 = vld [vmem:[%s4007 + $0x18] sm:$0xf]
    %v4015 = vld [vmem:[%s4007 + $0x1c] sm:$0xf]
    %v4024 = vunpack.c.l.b16 %v4008
    %v4025 = vunpack.c.l.b16 %v4009
    %v4026 = vunpack.c.l.b16 %v4010
    %v4027 = vunpack.c.l.b16 %v4011
    %v4028 = vunpack.c.l.b16 %v4012
    %v4029 = vunpack.c.l.b16 %v4013
    %v4030 = vunpack.c.l.b16 %v4014
    %v4031 = vunpack.c.l.b16 %v4015
    %v4032 = vpack.c.b16 %v4025, %v4024
    %v4033 = vpack.c.b16 %v4027, %v4026
    %v4034 = vpack.c.b16 %v4029, %v4028
    %v4035 = vpack.c.b16 %v4031, %v4030
    %v4041 = vsel %vm1079, %v4006, 0
    %4043 = vmatpush.bf16.msra.mxu0 0
    %4044 = vmatpush.bf16.msra.mxu0 0
    %4045 = vmatpush.bf16.msra.mxu0 0
    %4046 = vmatpush.bf16.msra.mxu0 0
    %4047 = vmatpush.bf16.msra.mxu0 %v4035
    %4048 = vmatpush.bf16.msra.mxu0 %v4034
    %4049 = vmatpush.bf16.msra.mxu0 %v4033
    %4050 = vmatpush.bf16.msra.mxu0 %v4032
    %4051 = vmatmul.bf16.gmra.mxu0 %v4041
    %v4052 = vpop.f32.mrf.mxu0
    %v4053 = vadd.f32 0.0, %v4052
    %v4054 = vpop.f32.mrf.mxu0
    %v4055 = vadd.f32 0.0, %v4054
    %4056 = vdwg.mxu0
    %v4057 = vadd.f32 %v3912, %v4053
    %v4058 = vadd.f32 %v3913, %v4055
    %s4059 = scalar_lea.vmem %s65, 1
    %v4060 = vld [vmem:[%s4059] sm:$0x1]
    %v4062 = vperm.slane %v4060, 0
    %v4064 = vadd.f32 %v4057, %v4062
    %v4065 = vadd.f32 %v4058, %v4062
    %v4066 = vld [vmem:[%s67] sm:$0x1]
    %v4067 = vld [vmem:[%s69] sm:$0x1]
    %v4068 = vsel %vm481, %v4064, 0.0
    %4069 = vadd.xlane.f32.xlu0 %v4068
    %v4070 = vpop.xlane.xlu0 %4069
    %v4071 = vsel %vm481, %v4065, 0.0
    %4072 = vadd.xlane.f32.xlu0 %v4071
    %v4073 = vpop.xlane.xlu0 %4072
    %v4074 = vmul.f32 %v4070, %v494
    %v4075 = vmul.f32 %v4073, %v494
    %v4076 = vsub.f32 %v4064, %v4074
    %v4077 = vsub.f32 %v4065, %v4075
    %v4078 = vmul.f32 %v4076, %v4076
    %v4079 = vmul.f32 %v4077, %v4077
    %v4080 = vsel %vm481, %v4078, 0.0
    %4081 = vadd.xlane.f32.xlu0 %v4080
    %v4082 = vpop.xlane.xlu0 %4081
    %v4083 = vsel %vm481, %v4079, 0.0
    %4084 = vadd.xlane.f32.xlu0 %v4083
    %v4085 = vpop.xlane.xlu0 %4084
    %v4086 = vmul.f32 %v4082, %v494
    %v4087 = vmul.f32 %v4085, %v494
    %v4088 = vadd.f32 %v4086, 1e-06
    %v4089 = vadd.f32 %v4087, 1e-06
    %v4090 = vrsqrt.pop %v4088
    %v4091 = vmul.f32 %v4090, %v4088
    %v4092 = vmul.f32 %v4091, %v4090
    %v4093 = vmul.f32 0.5, %v4092
    %v4094 = vsub.f32 1.5, %v4093
    %v4095 = vmul.f32 %v4090, %v4094
    %vm4096 = vweird.f32 %v4088
    %vm4097 = vweird.f32 %v4090
    %vm4098 = vmor %vm4096, %vm4097
    %v4099 = vsel %vm4098, %v4090, %v4095
    %v4100 = vrsqrt.pop %v4089
    %v4101 = vmul.f32 %v4100, %v4089
    %v4102 = vmul.f32 %v4101, %v4100
    %v4103 = vmul.f32 0.5, %v4102
    %v4104 = vsub.f32 1.5, %v4103
    %v4105 = vmul.f32 %v4100, %v4104
    %vm4106 = vweird.f32 %v4089
    %vm4107 = vweird.f32 %v4100
    %vm4108 = vmor %vm4106, %vm4107
    %v4109 = vsel %vm4108, %v4100, %v4105
    %v4110 = vmul.f32 %v4076, %v4099
    %v4111 = vmul.f32 %v4077, %v4109
    %v4113 = vperm.slane %v4066, 0
    %v4115 = vmul.f32 %v4110, %v4113
    %v4116 = vmul.f32 %v4111, %v4113
    %v4118 = vperm.slane %v4067, 0
    %v4120 = vadd.f32 %v4115, %v4118
    %v4121 = vadd.f32 %v4116, %v4118
    %v4122 = vld [vmem:[#allocation32] sm:$0xff]
    %v4123 = vld [vmem:[#allocation32 + $0x8] sm:$0xff]
    %v4124 = vld [vmem:[#allocation32 + $0x10] sm:$0xff]
    %v4125 = vld [vmem:[#allocation32 + $0x18] sm:$0xff]
    %v4126 = vld [vmem:[%s75] sm:$0x1]
    %v4128 = vperm.slane %v4126, 0
    %v4131 = vsel %vm481, %v4120, 0
    %v4134 = vsel %vm481, %v4121, 0
    %4136 = vmatpush.msra.mxu0 0.0
    %4137 = vmatpush.msra.mxu0 0.0
    %4138 = vmatpush.msra.mxu0 0.0
    %4139 = vmatpush.msra.mxu0 0.0
    %4140 = vmatpush.msra.mxu0 0.0
    %4141 = vmatpush.msra.mxu0 0.0
    %4142 = vmatpush.msra.mxu0 0.0
    %4143 = vmatpush.msra.mxu0 0.0
    %4144 = vmatpush.msra.mxu0 0.0
    %4145 = vmatpush.msra.mxu0 0.0
    %4146 = vmatpush.msra.mxu0 0.0
    %4147 = vmatpush.msra.mxu0 0.0
    %4148 = vmatpush.msra.mxu0 %v4125
    %4149 = vmatpush.msra.mxu0 %v4124
    %4150 = vmatpush.msra.mxu0 %v4123
    %4151 = vmatpush.msra.mxu0 %v4122
    %4152 = vmatmul.f32.gmra.mxu0 %v4131
    %v4153 = vpop.f32.mrf.mxu0
    %v4154 = vadd.f32 %v4128, %v4153
    %4155 = vmatmul.f32.gmra.mxu0 %v4134
    %v4156 = vpop.f32.mrf.mxu0
    %v4157 = vadd.f32 %v4128, %v4156
    %4158 = vdwg.mxu0
    %4159 = vst [vmem:[#allocation35] sm:$0xff] %v4154
    %4160 = vst [vmem:[#allocation35 + $0x8] sm:$0xff] %v4157
    // Predicated region
    $region234: #{tpu_custom_call.1} parent=1 // pred_check
      _
    $region235: #{tpu_custom_call.1} parent=1 // pred_check_branch
      %4162 = sbr.rel (0) target = $region237
    $region236: #{tpu_custom_call.1} parent=1 // pred_region
      %4164 = vsyncadd [#allocation4], 0
      %s4165 = sshll.u32 [#allocation34], 4
      %s4166 = int_to_ptr.vmem [resolvable:$true] %s4165
      %s4167 = sshll.u32 %s77, 4
      %s4168 = int_to_ptr.hbm [resolvable:$true] %s4167
      %4173 = dma.vmem_to_hbm [thread:$0]  %s4166, 256, %s4168, [#allocation4], 128, 128, 8
    $region237: #{tpu_custom_call.1} parent=1 // pred_fallthru
      _
    // Predicated region
    $region238: #{tpu_custom_call.1} parent=1 // pred_check
      _
    $region239: #{tpu_custom_call.1} parent=1 // pred_check_branch
      %4175 = sbr.rel (0) target = $region241
    $region240: #{tpu_custom_call.1} parent=1 // pred_region
      %4177 = vsyncadd [#allocation36], 0
      %s4178 = sshll.u32 [#allocation35], 4
      %s4179 = int_to_ptr.vmem [resolvable:$true] %s4178
      %s4180 = sshll.u32 %s79, 4
      %s4181 = int_to_ptr.hbm [resolvable:$true] %s4180
      %4186 = dma.vmem_to_hbm [thread:$0]  %s4179, 256, %s4181, [#allocation36], 128, 128, 8
    $region241: #{tpu_custom_call.1} parent=1 // pred_fallthru
      _
    // Predicated region
    $region242: #{tpu_custom_call.1} parent=1 // pred_check
      _
    $region243: #{tpu_custom_call.1} parent=1 // pred_check_branch
      %4188 = sbr.rel (0) target = $region245
    $region244: #{tpu_custom_call.1} parent=1 // pred_region
      %4190 = dma.done [#allocation4], 256
    $region245: #{tpu_custom_call.1} parent=1 // pred_fallthru
      _
    // Predicated region
    $region246: #{tpu_custom_call.1} parent=1 // pred_check
      _
    $region247: #{tpu_custom_call.1} parent=1 // pred_check_branch
      %4192 = sbr.rel (0) target = $region249
    $region248: #{tpu_custom_call.1} parent=1 // pred_region
      %4194 = dma.done [#allocation36], 256
    $region249: #{tpu_custom_call.1} parent=1 // pred_fallthru
      _
    %4195 = vsyncpa [#allocation3], 1
    %4196 = vsyncpa [#allocation6], 1
    %4197 = vsyncpa [#allocation9], 1
    %4198 = vsyncpa [#allocation12], 1
    %4199 = vsyncpa [#allocation15], 1
    %4200 = vsyncpa [#allocation18], 1
    %4201 = vsyncpa [#allocation21], 1
    %4202 = vsyncpa [#allocation24], 1
    %4203 = vsyncpa [#allocation27], 1
    %4204 = vsyncpa [#allocation30], 1
    %4205 = vsyncpa [#allocation33], 1
    %4206 = vsyncpa [#allocation4], 1
    %4207 = vsyncpa [#allocation36], 1

</llo_original>
